<compile_context>
chip_gen: v6e
topology: v6e:2x2x1
jax: 0.10.0
libtpu: 0.0.40
codegen_flags: <defaults>
</compile_context>

<pallas_src>
import jax
import jax.numpy as jnp
from jax.experimental import pallas as pl
from jax.experimental.pallas import tpu as pltpu

BN_EPS = 1e-5

# (in_ch of first block, out_ch, stride of first block) for layer1..layer3
LAYER_CFG = [
    (64, 64, 1),
    (64, 128, 2),
    (128, 256, 2),
]


def _round_up(x, m):
    return (x + m - 1) // m * m


# ----------------------------------------------------------------------------
# Pallas kernels
# ----------------------------------------------------------------------------
def _matmul_stats_kernel(x_ref, w_ref, y_ref, st_ref):
    # One full-K bf16 dot per grid step (no K axis, no accumulator scratch).
    yf = jnp.dot(x_ref[...], w_ref[...], preferred_element_type=jnp.float32)
    y_ref[...] = yf.astype(y_ref.dtype)

    # Fused BatchNorm batch-statistics epilogue: accumulate per-column sum
    # (row 0) and sum of squares (row 1) into a grid-resident output.
    @pl.when(pl.program_id(0) == 0)
    def _():
        st_ref[...] = jnp.zeros_like(st_ref)

    s = jnp.sum(yf, axis=0, keepdims=True)
    s2 = jnp.sum(yf * yf, axis=0, keepdims=True)
    st_ref[...] += jnp.concatenate([s, s2], axis=0)


def _bn_relu_kernel(y_ref, s_ref, b_ref, o_ref):
    y = y_ref[...].astype(jnp.float32)
    o_ref[...] = jnp.maximum(y * s_ref[...] + b_ref[...], 0.0).astype(o_ref.dtype)


def _bn_kernel(y_ref, s_ref, b_ref, o_ref):
    y = y_ref[...].astype(jnp.float32)
    o_ref[...] = (y * s_ref[...] + b_ref[...]).astype(o_ref.dtype)


def _bn_add_relu_kernel(y_ref, s_ref, b_ref, r_ref, o_ref):
    y = y_ref[...].astype(jnp.float32)
    r = r_ref[...].astype(jnp.float32)
    o_ref[...] = jnp.maximum(y * s_ref[...] + b_ref[...] + r, 0.0).astype(o_ref.dtype)


def _maxpool_kernel(p_ref, o_ref):
    # p_ref: (tm, 9, CL) -> max over the 3x3 window axis (lane-dense CL).
    o_ref[...] = jnp.max(p_ref[...].astype(jnp.float32), axis=1).astype(o_ref.dtype)


# ----------------------------------------------------------------------------
# Pallas wrappers
# ----------------------------------------------------------------------------
def pallas_matmul_stats(x, w):
    """x: [M, K] bf16, w: [Kp, Cout] bf16 (Kp >= K, zero-padded).

    Returns (Y [Mp, Cout] bf16, stats [2, Cout] f32) where stats rows are the
    column sum and sum-of-squares of the f32 matmul result (padded rows are
    zero and do not perturb the statistics).
    """
    M, K = x.shape
    Kp, Cout = w.shape
    tm = min(128, _round_up(M, 8))
    Mp = _round_up(M, tm)
    if (Mp, Kp) != (M, K):
        x = jnp.pad(x, ((0, Mp - M), (0, Kp - K)))

    yp, stats = pl.pallas_call(
        _matmul_stats_kernel,
        out_shape=(
            jax.ShapeDtypeStruct((Mp, Cout), jnp.bfloat16),
            jax.ShapeDtypeStruct((2, Cout), jnp.float32),
        ),
        grid=(Mp // tm,),
        in_specs=[
            pl.BlockSpec((tm, Kp), lambda i: (i, 0)),
            # Full weight matrix resident in VMEM across all M tiles.
            pl.BlockSpec((Kp, Cout), lambda i: (0, 0)),
        ],
        out_specs=(
            pl.BlockSpec((tm, Cout), lambda i: (i, 0)),
            pl.BlockSpec((2, Cout), lambda i: (0, 0)),
        ),
        # The stats output is revisited across the M axis -> must be arbitrary.
        compiler_params=pltpu.CompilerParams(
            dimension_semantics=("arbitrary",)
        ),
    )(x, w)
    return yp, stats


def pallas_bn_act(yp, scale, shift, residual=None, relu=True):
    """Elementwise y*scale + shift (+residual) (+ReLU) over [Mp, C] (bf16 out)."""
    Mp, C = yp.shape
    tm = min(128, Mp)
    assert Mp % tm == 0
    scale2 = scale.reshape(1, C).astype(jnp.float32)
    shift2 = shift.reshape(1, C).astype(jnp.float32)

    yspec = pl.BlockSpec((tm, C), lambda i: (i, 0))
    sspec = pl.BlockSpec((1, C), lambda i: (0, 0))

    if residual is None:
        kernel = _bn_relu_kernel if relu else _bn_kernel
        args = (yp, scale2, shift2)
        in_specs = [yspec, sspec, sspec]
    else:
        assert relu
        kernel = _bn_add_relu_kernel
        args = (yp, scale2, shift2, residual)
        in_specs = [yspec, sspec, sspec, yspec]

    return pl.pallas_call(
        kernel,
        out_shape=jax.ShapeDtypeStruct((Mp, C), jnp.bfloat16),
        grid=(Mp // tm,),
        in_specs=in_specs,
        out_specs=yspec,
        compiler_params=pltpu.CompilerParams(
            dimension_semantics=("parallel",)
        ),
    )(*args)


def pallas_maxpool_3x3_s2_p1(x):
    """MaxPool2d(kernel=3, stride=2, padding=1) over NHWC (bf16) input."""
    N, H, W, C = x.shape
    OH = (H + 2 - 3) // 2 + 1
    OW = (W + 2 - 3) // 2 + 1
    neg = float(jnp.finfo(x.dtype).min)
    xp = jnp.pad(x, ((0, 0), (1, 1), (1, 1), (0, 0)), constant_values=neg)

    # TODO(synk): tap extraction stays in XLA glue; an in-kernel shifted-window
    # gather would avoid the 9x patch materialization for large inputs.
    pats = []
    for ky in range(3):
        for kx in range(3):
            pats.append(xp[:, ky:ky + 2 * OH:2, kx:kx + 2 * OW:2, :])
    pat = jnp.stack(pats, axis=3)  # [N, OH, OW, 9, C]
    M = N * OH * OW

    # Pack two output pixels per row so the kernel's output last dim is a
    # lane-dense multiple of 128 (avoids masked partial stores).
    if (M % 2 == 0) and (2 * C <= 256):
        pat = (pat.reshape(M // 2, 2, 9, C)
               .transpose(0, 2, 1, 3)
               .reshape(M // 2, 9, 2 * C))
        Mr, CL = M // 2, 2 * C
    else:
        pat = pat.reshape(M, 9, C)
        Mr, CL = M, C

    tm = min(128, _round_up(Mr, 8))
    Mp = _round_up(Mr, tm)
    if Mp != Mr:
        pat = jnp.pad(pat, ((0, Mp - Mr), (0, 0), (0, 0)), constant_values=neg)

    out = pl.pallas_call(
        _maxpool_kernel,
        out_shape=jax.ShapeDtypeStruct((Mp, CL), x.dtype),
        grid=(Mp // tm,),
        in_specs=[pl.BlockSpec((tm, 9, CL), lambda i: (i, 0, 0))],
        out_specs=pl.BlockSpec((tm, CL), lambda i: (i, 0)),
        compiler_params=pltpu.CompilerParams(
            dimension_semantics=("parallel",)
        ),
    )(pat)
    return out[:Mr].reshape(M, C).reshape(N, OH, OW, C)


# ----------------------------------------------------------------------------
# Glue: im2col + fused conv/BN/act building block
# ----------------------------------------------------------------------------
def _im2col(x, kh, kw, stride, padding):
    """x: NHWC (bf16) -> (X [M, K] bf16, (N, OH, OW)); K ordered (ky, kx, cin)."""
    N, H, W, Cin = x.shape
    OH = (H + 2 * padding - kh) // stride + 1
    OW = (W + 2 * padding - kw) // stride + 1
    if padding > 0:
        x = jnp.pad(x, ((0, 0), (padding, padding), (padding, padding), (0, 0)))
    pats = []
    for ky in range(kh):
        for kx in range(kw):
            pats.append(
                x[:, ky:ky + stride * OH:stride, kx:kx + stride * OW:stride, :]
            )
    Xm = jnp.stack(pats, axis=3).reshape(N * OH * OW, kh * kw * Cin)
    return Xm, (N, OH, OW)


def conv_bn_act(x, w_mat, gamma, beta, kh, kw, stride, padding,
                relu=True, residual=None):
    """conv (no bias) + training-mode BatchNorm + optional residual + ReLU."""
    Xm, (N, OH, OW) = _im2col(x, kh, kw, stride, padding)
    Cout = w_mat.shape[1]
    M = Xm.shape[0]

    Yp, stats = pallas_matmul_stats(Xm, w_mat)   # [Mp, Cout] bf16, [2, Cout] f32
    Mp = Yp.shape[0]

    # Training-mode batch statistics (biased variance, as PyTorch BN uses for
    # normalization).  Single-pass sum/sumsq in f32 is adequate here; clamp
    # guards tiny negative values from cancellation.
    mean = stats[0] / M
    var = jnp.maximum(stats[1] / M - mean * mean, 0.0)
    scale = gamma * jax.lax.rsqrt(var + BN_EPS)
    shift = beta - mean * scale

    res_p = None
    if residual is not None:
        res_p = residual.reshape(M, Cout)
        if Mp != M:
            res_p = jnp.pad(res_p, ((0, Mp - M), (0, 0)))

    Yo = pallas_bn_act(Yp, scale, shift, res_p, relu)
    return Yo[:M].reshape(N, OH, OW, Cout)


# ----------------------------------------------------------------------------
# Parameters (deterministic, resnet18 shapes)
# ----------------------------------------------------------------------------
def _conv_w(key, cout, cin, kh, kw):
    fan_in = cin * kh * kw
    return jax.random.normal(key, (cout, cin, kh, kw), jnp.float32) * (
        2.0 / fan_in
    ) ** 0.5


def _bn_p(key, c):
    k1, k2 = jax.random.split(key)
    gamma = 1.0 + 0.1 * jax.random.normal(k1, (c,), jnp.float32)
    beta = 0.1 * jax.random.normal(k2, (c,), jnp.float32)
    return gamma, beta


def init_params(key):
    keys = iter(jax.random.split(key, 64))
    P = {}
    P["conv1_w"] = _conv_w(next(keys), 64, 3, 7, 7)
    P["bn1_g"], P["bn1_b"] = _bn_p(next(keys), 64)
    layers = []
    for (cin, cout, stride) in LAYER_CFG:
        blocks = []
        for bi in range(2):
            ci = cin if bi == 0 else cout
            s = stride if bi == 0 else 1
            b = {}
            b["w1"] = _conv_w(next(keys), cout, ci, 3, 3)
            b["g1"], b["b1"] = _bn_p(next(keys), cout)
            b["w2"] = _conv_w(next(keys), cout, cout, 3, 3)
            b["g2"], b["b2"] = _bn_p(next(keys), cout)
            if bi == 0 and (s != 1 or ci != cout):
                b["wd"] = _conv_w(next(keys), cout, ci, 1, 1)
                b["gd"], b["bd"] = _bn_p(next(keys), cout)
            blocks.append(b)
        layers.append(blocks)
    P["layers"] = layers
    return P


def _prep_w(w_oihw):
    """OIHW conv weight -> [Kp, Cout] bf16 matmul weight (K padded to 128)."""
    cout, cin, kh, kw = w_oihw.shape
    K = kh * kw * cin
    Kp = _round_up(K, 128)
    wm = jnp.transpose(w_oihw, (2, 3, 1, 0)).reshape(K, cout)
    return jnp.pad(wm, ((0, Kp - K), (0, 0))).astype(jnp.bfloat16)


def prepare_params(P):
    """One-time conversion of conv weights to matmul-ready bf16 layout."""
    Q = {
        "conv1_w": _prep_w(P["conv1_w"]),
        "bn1_g": P["bn1_g"].astype(jnp.float32),
        "bn1_b": P["bn1_b"].astype(jnp.float32),
    }
    layers = []
    for li in range(len(LAYER_CFG)):
        blocks = []
        for bi in range(2):
            b = P["layers"][li][bi]
            nb = {
                "w1": _prep_w(b["w1"]), "g1": b["g1"], "b1": b["b1"],
                "w2": _prep_w(b["w2"]), "g2": b["g2"], "b2": b["b2"],
            }
            if "wd" in b:
                nb["wd"] = _prep_w(b["wd"])
                nb["gd"] = b["gd"]
                nb["bd"] = b["bd"]
            blocks.append(nb)
        layers.append(blocks)
    Q["layers"] = layers
    return Q


# ----------------------------------------------------------------------------
# Forward (matches nn.Sequential(conv1, bn1, relu, maxpool, layer1..layer3))
# ----------------------------------------------------------------------------
@jax.jit
def backbone_forward(x_nchw, P):
    x = jnp.transpose(x_nchw, (0, 2, 3, 1)).astype(jnp.bfloat16)  # -> NHWC bf16
    x = conv_bn_act(x, P["conv1_w"], P["bn1_g"], P["bn1_b"],
                    kh=7, kw=7, stride=2, padding=3, relu=True)
    x = pallas_maxpool_3x3_s2_p1(x)
    for li, (cin, cout, stride) in enumerate(LAYER_CFG):
        for bi in range(2):
            b = P["layers"][li][bi]
            s = stride if bi == 0 else 1
            identity = x
            out = conv_bn_act(x, b["w1"], b["g1"], b["b1"],
                              kh=3, kw=3, stride=s, padding=1, relu=True)
            if "wd" in b:
                identity = conv_bn_act(x, b["wd"], b["gd"], b["bd"],
                                       kh=1, kw=1, stride=s, padding=0,
                                       relu=False)
            x = conv_bn_act(out, b["w2"], b["g2"], b["b2"],
                            kh=3, kw=3, stride=1, padding=1, relu=True,
                            residual=identity)
    return jnp.transpose(x, (0, 3, 1, 2)).astype(jnp.float32)  # -> NCHW f32


# TODO(synk): torchvision `pretrained=True` checkpoint loading is not
# reproducible in-script; weights are synthesized deterministically instead.

if __name__ == "__main__":
    key = jax.random.PRNGKey(0)
    k_x, k_p = jax.random.split(key)
    x = jax.random.normal(k_x, (2, 3, 32, 32), jnp.float32)  # NCHW, like PyTorch
    params = prepare_params(init_params(k_p))

    y = backbone_forward(x, params)
    y = jax.block_until_ready(y)
    assert y.shape == (2, 256, 2, 2), y.shape
    assert y.dtype == jnp.float32
    print("KERNEL_OK")
</pallas_src>

<mosaic_0001>
module attributes {stable_mosaic.version = 11 : i64} {
  func.func @_bn_relu_kernel(%arg0: i32, %arg1: memref<128x64xbf16, #tpu.memory_space<vmem>>, %arg2: memref<1x64xf32, #tpu.memory_space<vmem>>, %arg3: memref<1x64xf32, #tpu.memory_space<vmem>>, %arg4: memref<128x64xbf16, #tpu.memory_space<vmem>>) attributes {dimension_semantics = [#tpu.dimension_semantics<parallel>], iteration_bounds = array<i64: 4>, scalar_prefetch = 0 : i64, scratch_operands = 0 : i64, tpu.core_type = #tpu.core_type<tc>, window_params = [{transform_indices = @transform_0, window_bounds = array<i64: 128, 64>}, {pipeline_mode = #tpu.pipeline_mode<synchronous>, transform_indices = @transform_1, window_bounds = array<i64: 1, 64>}, {pipeline_mode = #tpu.pipeline_mode<synchronous>, transform_indices = @transform_2, window_bounds = array<i64: 1, 64>}, {transform_indices = @transform_3, window_bounds = array<i64: 128, 64>}]} {
    %c0 = arith.constant 0 : index
    %c0_0 = arith.constant 0 : index
    %0 = vector.load %arg1[%c0, %c0_0] : memref<128x64xbf16, #tpu.memory_space<vmem>>, vector<128x64xbf16>
    %1 = arith.extf %0 : vector<128x64xbf16> to vector<128x64xf32>
    %c0_1 = arith.constant 0 : index
    %c0_2 = arith.constant 0 : index
    %2 = vector.load %arg2[%c0_1, %c0_2] : memref<1x64xf32, #tpu.memory_space<vmem>>, vector<1x64xf32>
    %3 = vector.broadcast %2 : vector<1x64xf32> to vector<128x64xf32>
    %4 = arith.mulf %1, %3 : vector<128x64xf32>
    %c0_3 = arith.constant 0 : index
    %c0_4 = arith.constant 0 : index
    %5 = vector.load %arg3[%c0_3, %c0_4] : memref<1x64xf32, #tpu.memory_space<vmem>>, vector<1x64xf32>
    %6 = vector.broadcast %5 : vector<1x64xf32> to vector<128x64xf32>
    %7 = arith.addf %4, %6 : vector<128x64xf32>
    %cst = arith.constant 0.000000e+00 : f32
    %8 = vector.broadcast %cst : f32 to vector<128x64xf32>
    %9 = arith.maximumf %7, %8 : vector<128x64xf32>
    %10 = arith.truncf %9 : vector<128x64xf32> to vector<128x64xbf16>
    %c0_5 = arith.constant 0 : index
    %c0_6 = arith.constant 0 : index
    %11 = vector.load %arg4[%c0_5, %c0_6] : memref<128x64xbf16, #tpu.memory_space<vmem>>, vector<128x64xbf16>
    tpu.vector_store %arg4[%c0_5, %c0_6], %10 {strides = array<i32>} : memref<128x64xbf16, #tpu.memory_space<vmem>>, vector<128x64xbf16>,
    return
  }
  func.func @transform_0(%arg0: i32) -> (i32, i32) {
    %c0_i32 = arith.constant 0 : i32
    %c0_i32_0 = arith.constant 0 : i32
    return %arg0, %c0_i32 : i32, i32
  }
  func.func @transform_1(%arg0: i32) -> (i32, i32) {
    %c0_i32 = arith.constant 0 : i32
    %c0_i32_0 = arith.constant 0 : i32
    %c0_i32_1 = arith.constant 0 : i32
    return %c0_i32, %c0_i32_0 : i32, i32
  }
  func.func @transform_2(%arg0: i32) -> (i32, i32) {
    %c0_i32 = arith.constant 0 : i32
    %c0_i32_0 = arith.constant 0 : i32
    %c0_i32_1 = arith.constant 0 : i32
    return %c0_i32, %c0_i32_0 : i32, i32
  }
  func.func @transform_3(%arg0: i32) -> (i32, i32) {
    %c0_i32 = arith.constant 0 : i32
    %c0_i32_0 = arith.constant 0 : i32
    return %arg0, %c0_i32 : i32, i32
  }
}

module attributes {stable_mosaic.version = 11 : i64} {
  func.func @_matmul_stats_kernel(%arg0: i32, %arg1: memref<128x256xbf16, #tpu.memory_space<vmem>>, %arg2: memref<256x64xbf16, #tpu.memory_space<vmem>>, %arg3: memref<128x64xbf16, #tpu.memory_space<vmem>>, %arg4: memref<2x64xf32, #tpu.memory_space<vmem>>) attributes {dimension_semantics = [#tpu.dimension_semantics<arbitrary>], iteration_bounds = array<i64: 4>, scalar_prefetch = 0 : i64, scratch_operands = 0 : i64, tpu.core_type = #tpu.core_type<tc>, window_params = [{transform_indices = @transform_0, window_bounds = array<i64: 128, 256>}, {pipeline_mode = #tpu.pipeline_mode<synchronous>, transform_indices = @transform_1, window_bounds = array<i64: 256, 64>}, {transform_indices = @transform_2, window_bounds = array<i64: 128, 64>}, {pipeline_mode = #tpu.pipeline_mode<synchronous>, transform_indices = @transform_3, window_bounds = array<i64: 2, 64>}]} {
    %c0 = arith.constant 0 : index
    %c0_0 = arith.constant 0 : index
    %0 = vector.load %arg1[%c0, %c0_0] : memref<128x256xbf16, #tpu.memory_space<vmem>>, vector<128x256xbf16>
    %c0_1 = arith.constant 0 : index
    %c0_2 = arith.constant 0 : index
    %1 = vector.load %arg2[%c0_1, %c0_2] : memref<256x64xbf16, #tpu.memory_space<vmem>>, vector<256x64xbf16>
    %cst = arith.constant dense<0.000000e+00> : vector<128x64xf32>
    %2 = tpu.matmul %0, %1, %cst {dimension_numbers = #tpu.dot_dimension_numbers<[1], [0], [0], [1], [0, 0, 1, 1], [], []>} : vector<128x256xbf16>, vector<256x64xbf16>, vector<128x64xf32> -> vector<128x64xf32>
    %3 = arith.truncf %2 : vector<128x64xf32> to vector<128x64xbf16>
    %c0_3 = arith.constant 0 : index
    %c0_4 = arith.constant 0 : index
    %4 = vector.load %arg3[%c0_3, %c0_4] : memref<128x64xbf16, #tpu.memory_space<vmem>>, vector<128x64xbf16>
    tpu.vector_store %arg3[%c0_3, %c0_4], %3 {strides = array<i32>} : memref<128x64xbf16, #tpu.memory_space<vmem>>, vector<128x64xbf16>,
    %c0_i32 = arith.constant 0 : i32
    %5 = arith.cmpi eq, %arg0, %c0_i32 : i32
    %6 = arith.extui %5 : i1 to i32
    %c0_i32_5 = arith.constant 0 : i32
    %7 = arith.cmpi ne, %6, %c0_i32_5 : i32
    scf.if %7 {
      %cst_12 = arith.constant 0.000000e+00 : f32
      %17 = vector.broadcast %cst_12 : f32 to vector<2x64xf32>
      %c0_13 = arith.constant 0 : index
      %c0_14 = arith.constant 0 : index
      %18 = vector.load %arg4[%c0_13, %c0_14] : memref<2x64xf32, #tpu.memory_space<vmem>>, vector<2x64xf32>
      tpu.vector_store %arg4[%c0_13, %c0_14], %17 {strides = array<i32>} : memref<2x64xf32, #tpu.memory_space<vmem>>, vector<2x64xf32>,
    } else {
    }
    %cst_6 = arith.constant dense<0.000000e+00> : vector<64xf32>
    %8 = vector.multi_reduction <add>, %2, %cst_6 [0] : vector<128x64xf32> to vector<64xf32>
    %9 = vector.shape_cast %8 : vector<64xf32> to vector<1x64xf32>
    %10 = arith.mulf %2, %2 : vector<128x64xf32>
    %cst_7 = arith.constant dense<0.000000e+00> : vector<64xf32>
    %11 = vector.multi_reduction <add>, %10, %cst_7 [0] : vector<128x64xf32> to vector<64xf32>
    %12 = vector.shape_cast %11 : vector<64xf32> to vector<1x64xf32>
    %c0_8 = arith.constant 0 : index
    %c0_9 = arith.constant 0 : index
    %13 = vector.load %arg4[%c0_8, %c0_9] : memref<2x64xf32, #tpu.memory_space<vmem>>, vector<2x64xf32>
    %14 = tpu.concatenate %9, %12 in 0 : vector<1x64xf32>, vector<1x64xf32> -> vector<2x64xf32>
    %15 = arith.addf %13, %14 : vector<2x64xf32>
    %c0_10 = arith.constant 0 : index
    %c0_11 = arith.constant 0 : index
    %16 = vector.load %arg4[%c0_10, %c0_11] : memref<2x64xf32, #tpu.memory_space<vmem>>, vector<2x64xf32>
    tpu.vector_store %arg4[%c0_10, %c0_11], %15 {strides = array<i32>} : memref<2x64xf32, #tpu.memory_space<vmem>>, vector<2x64xf32>,
    return
  }
  func.func @transform_0(%arg0: i32) -> (i32, i32) {
    %c0_i32 = arith.constant 0 : i32
    %c0_i32_0 = arith.constant 0 : i32
    return %arg0, %c0_i32 : i32, i32
  }
  func.func @transform_1(%arg0: i32) -> (i32, i32) {
    %c0_i32 = arith.constant 0 : i32
    %c0_i32_0 = arith.constant 0 : i32
    %c0_i32_1 = arith.constant 0 : i32
    return %c0_i32, %c0_i32_0 : i32, i32
  }
  func.func @transform_2(%arg0: i32) -> (i32, i32) {
    %c0_i32 = arith.constant 0 : i32
    %c0_i32_0 = arith.constant 0 : i32
    return %arg0, %c0_i32 : i32, i32
  }
  func.func @transform_3(%arg0: i32) -> (i32, i32) {
    %c0_i32 = arith.constant 0 : i32
    %c0_i32_0 = arith.constant 0 : i32
    %c0_i32_1 = arith.constant 0 : i32
    return %c0_i32, %c0_i32_0 : i32, i32
  }
}

module attributes {stable_mosaic.version = 11 : i64} {
  func.func @_maxpool_kernel(%arg0: i32, %arg1: memref<64x9x128xbf16, #tpu.memory_space<vmem>>, %arg2: memref<64x128xbf16, #tpu.memory_space<vmem>>) attributes {dimension_semantics = [#tpu.dimension_semantics<parallel>], iteration_bounds = array<i64: 1>, scalar_prefetch = 0 : i64, scratch_operands = 0 : i64, tpu.core_type = #tpu.core_type<tc>, window_params = [{transform_indices = @transform_0, window_bounds = array<i64: 64, 9, 128>}, {transform_indices = @transform_1, window_bounds = array<i64: 64, 128>}]} {
    %c0 = arith.constant 0 : index
    %c0_0 = arith.constant 0 : index
    %c0_1 = arith.constant 0 : index
    %0 = vector.load %arg1[%c0, %c0_0, %c0_1] : memref<64x9x128xbf16, #tpu.memory_space<vmem>>, vector<64x9x128xbf16>
    %1 = arith.extf %0 : vector<64x9x128xbf16> to vector<64x9x128xf32>
    %cst = arith.constant dense<0xFF800000> : vector<64x128xf32>
    %2 = vector.multi_reduction <maximumf>, %1, %cst [1] : vector<64x9x128xf32> to vector<64x128xf32>
    %3 = arith.truncf %2 : vector<64x128xf32> to vector<64x128xbf16>
    %c0_2 = arith.constant 0 : index
    %c0_3 = arith.constant 0 : index
    %4 = vector.load %arg2[%c0_2, %c0_3] : memref<64x128xbf16, #tpu.memory_space<vmem>>, vector<64x128xbf16>
    tpu.vector_store %arg2[%c0_2, %c0_3], %3 {strides = array<i32>} : memref<64x128xbf16, #tpu.memory_space<vmem>>, vector<64x128xbf16>,
    return
  }
  func.func @transform_0(%arg0: i32) -> (i32, i32, i32) {
    %c0_i32 = arith.constant 0 : i32
    %c0_i32_0 = arith.constant 0 : i32
    %c0_i32_1 = arith.constant 0 : i32
    return %arg0, %c0_i32, %c0_i32_0 : i32, i32, i32
  }
  func.func @transform_1(%arg0: i32) -> (i32, i32) {
    %c0_i32 = arith.constant 0 : i32
    %c0_i32_0 = arith.constant 0 : i32
    return %arg0, %c0_i32 : i32, i32
  }
}

module attributes {stable_mosaic.version = 11 : i64} {
  func.func @_matmul_stats_kernel(%arg0: i32, %arg1: memref<128x640xbf16, #tpu.memory_space<vmem>>, %arg2: memref<640x64xbf16, #tpu.memory_space<vmem>>, %arg3: memref<128x64xbf16, #tpu.memory_space<vmem>>, %arg4: memref<2x64xf32, #tpu.memory_space<vmem>>) attributes {dimension_semantics = [#tpu.dimension_semantics<arbitrary>], iteration_bounds = array<i64: 1>, scalar_prefetch = 0 : i64, scratch_operands = 0 : i64, tpu.core_type = #tpu.core_type<tc>, window_params = [{transform_indices = @transform_0, window_bounds = array<i64: 128, 640>}, {pipeline_mode = #tpu.pipeline_mode<synchronous>, transform_indices = @transform_1, window_bounds = array<i64: 640, 64>}, {transform_indices = @transform_2, window_bounds = array<i64: 128, 64>}, {pipeline_mode = #tpu.pipeline_mode<synchronous>, transform_indices = @transform_3, window_bounds = array<i64: 2, 64>}]} {
    %c0 = arith.constant 0 : index
    %c0_0 = arith.constant 0 : index
    %0 = vector.load %arg1[%c0, %c0_0] : memref<128x640xbf16, #tpu.memory_space<vmem>>, vector<128x640xbf16>
    %c0_1 = arith.constant 0 : index
    %c0_2 = arith.constant 0 : index
    %1 = vector.load %arg2[%c0_1, %c0_2] : memref<640x64xbf16, #tpu.memory_space<vmem>>, vector<640x64xbf16>
    %cst = arith.constant dense<0.000000e+00> : vector<128x64xf32>
    %2 = tpu.matmul %0, %1, %cst {dimension_numbers = #tpu.dot_dimension_numbers<[1], [0], [0], [1], [0, 0, 1, 1], [], []>} : vector<128x640xbf16>, vector<640x64xbf16>, vector<128x64xf32> -> vector<128x64xf32>
    %3 = arith.truncf %2 : vector<128x64xf32> to vector<128x64xbf16>
    %c0_3 = arith.constant 0 : index
    %c0_4 = arith.constant 0 : index
    %4 = vector.load %arg3[%c0_3, %c0_4] : memref<128x64xbf16, #tpu.memory_space<vmem>>, vector<128x64xbf16>
    tpu.vector_store %arg3[%c0_3, %c0_4], %3 {strides = array<i32>} : memref<128x64xbf16, #tpu.memory_space<vmem>>, vector<128x64xbf16>,
    %c0_i32 = arith.constant 0 : i32
    %5 = arith.cmpi eq, %arg0, %c0_i32 : i32
    %6 = arith.extui %5 : i1 to i32
    %c0_i32_5 = arith.constant 0 : i32
    %7 = arith.cmpi ne, %6, %c0_i32_5 : i32
    scf.if %7 {
      %cst_12 = arith.constant 0.000000e+00 : f32
      %17 = vector.broadcast %cst_12 : f32 to vector<2x64xf32>
      %c0_13 = arith.constant 0 : index
      %c0_14 = arith.constant 0 : index
      %18 = vector.load %arg4[%c0_13, %c0_14] : memref<2x64xf32, #tpu.memory_space<vmem>>, vector<2x64xf32>
      tpu.vector_store %arg4[%c0_13, %c0_14], %17 {strides = array<i32>} : memref<2x64xf32, #tpu.memory_space<vmem>>, vector<2x64xf32>,
    } else {
    }
    %cst_6 = arith.constant dense<0.000000e+00> : vector<64xf32>
    %8 = vector.multi_reduction <add>, %2, %cst_6 [0] : vector<128x64xf32> to vector<64xf32>
    %9 = vector.shape_cast %8 : vector<64xf32> to vector<1x64xf32>
    %10 = arith.mulf %2, %2 : vector<128x64xf32>
    %cst_7 = arith.constant dense<0.000000e+00> : vector<64xf32>
    %11 = vector.multi_reduction <add>, %10, %cst_7 [0] : vector<128x64xf32> to vector<64xf32>
    %12 = vector.shape_cast %11 : vector<64xf32> to vector<1x64xf32>
    %c0_8 = arith.constant 0 : index
    %c0_9 = arith.constant 0 : index
    %13 = vector.load %arg4[%c0_8, %c0_9] : memref<2x64xf32, #tpu.memory_space<vmem>>, vector<2x64xf32>
    %14 = tpu.concatenate %9, %12 in 0 : vector<1x64xf32>, vector<1x64xf32> -> vector<2x64xf32>
    %15 = arith.addf %13, %14 : vector<2x64xf32>
    %c0_10 = arith.constant 0 : index
    %c0_11 = arith.constant 0 : index
    %16 = vector.load %arg4[%c0_10, %c0_11] : memref<2x64xf32, #tpu.memory_space<vmem>>, vector<2x64xf32>
    tpu.vector_store %arg4[%c0_10, %c0_11], %15 {strides = array<i32>} : memref<2x64xf32, #tpu.memory_space<vmem>>, vector<2x64xf32>,
    return
  }
  func.func @transform_0(%arg0: i32) -> (i32, i32) {
    %c0_i32 = arith.constant 0 : i32
    %c0_i32_0 = arith.constant 0 : i32
    return %arg0, %c0_i32 : i32, i32
  }
  func.func @transform_1(%arg0: i32) -> (i32, i32) {
    %c0_i32 = arith.constant 0 : i32
    %c0_i32_0 = arith.constant 0 : i32
    %c0_i32_1 = arith.constant 0 : i32
    return %c0_i32, %c0_i32_0 : i32, i32
  }
  func.func @transform_2(%arg0: i32) -> (i32, i32) {
    %c0_i32 = arith.constant 0 : i32
    %c0_i32_0 = arith.constant 0 : i32
    return %arg0, %c0_i32 : i32, i32
  }
  func.func @transform_3(%arg0: i32) -> (i32, i32) {
    %c0_i32 = arith.constant 0 : i32
    %c0_i32_0 = arith.constant 0 : i32
    %c0_i32_1 = arith.constant 0 : i32
    return %c0_i32, %c0_i32_0 : i32, i32
  }
}

module attributes {stable_mosaic.version = 11 : i64} {
  func.func @_bn_relu_kernel(%arg0: i32, %arg1: memref<128x64xbf16, #tpu.memory_space<vmem>>, %arg2: memref<1x64xf32, #tpu.memory_space<vmem>>, %arg3: memref<1x64xf32, #tpu.memory_space<vmem>>, %arg4: memref<128x64xbf16, #tpu.memory_space<vmem>>) attributes {dimension_semantics = [#tpu.dimension_semantics<parallel>], iteration_bounds = array<i64: 1>, scalar_prefetch = 0 : i64, scratch_operands = 0 : i64, tpu.core_type = #tpu.core_type<tc>, window_params = [{transform_indices = @transform_0, window_bounds = array<i64: 128, 64>}, {pipeline_mode = #tpu.pipeline_mode<synchronous>, transform_indices = @transform_1, window_bounds = array<i64: 1, 64>}, {pipeline_mode = #tpu.pipeline_mode<synchronous>, transform_indices = @transform_2, window_bounds = array<i64: 1, 64>}, {transform_indices = @transform_3, window_bounds = array<i64: 128, 64>}]} {
    %c0 = arith.constant 0 : index
    %c0_0 = arith.constant 0 : index
    %0 = vector.load %arg1[%c0, %c0_0] : memref<128x64xbf16, #tpu.memory_space<vmem>>, vector<128x64xbf16>
    %1 = arith.extf %0 : vector<128x64xbf16> to vector<128x64xf32>
    %c0_1 = arith.constant 0 : index
    %c0_2 = arith.constant 0 : index
    %2 = vector.load %arg2[%c0_1, %c0_2] : memref<1x64xf32, #tpu.memory_space<vmem>>, vector<1x64xf32>
    %3 = vector.broadcast %2 : vector<1x64xf32> to vector<128x64xf32>
    %4 = arith.mulf %1, %3 : vector<128x64xf32>
    %c0_3 = arith.constant 0 : index
    %c0_4 = arith.constant 0 : index
    %5 = vector.load %arg3[%c0_3, %c0_4] : memref<1x64xf32, #tpu.memory_space<vmem>>, vector<1x64xf32>
    %6 = vector.broadcast %5 : vector<1x64xf32> to vector<128x64xf32>
    %7 = arith.addf %4, %6 : vector<128x64xf32>
    %cst = arith.constant 0.000000e+00 : f32
    %8 = vector.broadcast %cst : f32 to vector<128x64xf32>
    %9 = arith.maximumf %7, %8 : vector<128x64xf32>
    %10 = arith.truncf %9 : vector<128x64xf32> to vector<128x64xbf16>
    %c0_5 = arith.constant 0 : index
    %c0_6 = arith.constant 0 : index
    %11 = vector.load %arg4[%c0_5, %c0_6] : memref<128x64xbf16, #tpu.memory_space<vmem>>, vector<128x64xbf16>
    tpu.vector_store %arg4[%c0_5, %c0_6], %10 {strides = array<i32>} : memref<128x64xbf16, #tpu.memory_space<vmem>>, vector<128x64xbf16>,
    return
  }
  func.func @transform_0(%arg0: i32) -> (i32, i32) {
    %c0_i32 = arith.constant 0 : i32
    %c0_i32_0 = arith.constant 0 : i32
    return %arg0, %c0_i32 : i32, i32
  }
  func.func @transform_1(%arg0: i32) -> (i32, i32) {
    %c0_i32 = arith.constant 0 : i32
    %c0_i32_0 = arith.constant 0 : i32
    %c0_i32_1 = arith.constant 0 : i32
    return %c0_i32, %c0_i32_0 : i32, i32
  }
  func.func @transform_2(%arg0: i32) -> (i32, i32) {
    %c0_i32 = arith.constant 0 : i32
    %c0_i32_0 = arith.constant 0 : i32
    %c0_i32_1 = arith.constant 0 : i32
    return %c0_i32, %c0_i32_0 : i32, i32
  }
  func.func @transform_3(%arg0: i32) -> (i32, i32) {
    %c0_i32 = arith.constant 0 : i32
    %c0_i32_0 = arith.constant 0 : i32
    return %arg0, %c0_i32 : i32, i32
  }
}

module attributes {stable_mosaic.version = 11 : i64} {
  func.func @_bn_add_relu_kernel(%arg0: i32, %arg1: memref<128x64xbf16, #tpu.memory_space<vmem>>, %arg2: memref<1x64xf32, #tpu.memory_space<vmem>>, %arg3: memref<1x64xf32, #tpu.memory_space<vmem>>, %arg4: memref<128x64xbf16, #tpu.memory_space<vmem>>, %arg5: memref<128x64xbf16, #tpu.memory_space<vmem>>) attributes {dimension_semantics = [#tpu.dimension_semantics<parallel>], iteration_bounds = array<i64: 1>, scalar_prefetch = 0 : i64, scratch_operands = 0 : i64, tpu.core_type = #tpu.core_type<tc>, window_params = [{transform_indices = @transform_0, window_bounds = array<i64: 128, 64>}, {pipeline_mode = #tpu.pipeline_mode<synchronous>, transform_indices = @transform_1, window_bounds = array<i64: 1, 64>}, {pipeline_mode = #tpu.pipeline_mode<synchronous>, transform_indices = @transform_2, window_bounds = array<i64: 1, 64>}, {transform_indices = @transform_3, window_bounds = array<i64: 128, 64>}, {transform_indices = @transform_4, window_bounds = array<i64: 128, 64>}]} {
    %c0 = arith.constant 0 : index
    %c0_0 = arith.constant 0 : index
    %0 = vector.load %arg1[%c0, %c0_0] : memref<128x64xbf16, #tpu.memory_space<vmem>>, vector<128x64xbf16>
    %1 = arith.extf %0 : vector<128x64xbf16> to vector<128x64xf32>
    %c0_1 = arith.constant 0 : index
    %c0_2 = arith.constant 0 : index
    %2 = vector.load %arg4[%c0_1, %c0_2] : memref<128x64xbf16, #tpu.memory_space<vmem>>, vector<128x64xbf16>
    %3 = arith.extf %2 : vector<128x64xbf16> to vector<128x64xf32>
    %c0_3 = arith.constant 0 : index
    %c0_4 = arith.constant 0 : index
    %4 = vector.load %arg2[%c0_3, %c0_4] : memref<1x64xf32, #tpu.memory_space<vmem>>, vector<1x64xf32>
    %5 = vector.broadcast %4 : vector<1x64xf32> to vector<128x64xf32>
    %6 = arith.mulf %1, %5 : vector<128x64xf32>
    %c0_5 = arith.constant 0 : index
    %c0_6 = arith.constant 0 : index
    %7 = vector.load %arg3[%c0_5, %c0_6] : memref<1x64xf32, #tpu.memory_space<vmem>>, vector<1x64xf32>
    %8 = vector.broadcast %7 : vector<1x64xf32> to vector<128x64xf32>
    %9 = arith.addf %6, %8 : vector<128x64xf32>
    %10 = arith.addf %9, %3 : vector<128x64xf32>
    %cst = arith.constant 0.000000e+00 : f32
    %11 = vector.broadcast %cst : f32 to vector<128x64xf32>
    %12 = arith.maximumf %10, %11 : vector<128x64xf32>
    %13 = arith.truncf %12 : vector<128x64xf32> to vector<128x64xbf16>
    %c0_7 = arith.constant 0 : index
    %c0_8 = arith.constant 0 : index
    %14 = vector.load %arg5[%c0_7, %c0_8] : memref<128x64xbf16, #tpu.memory_space<vmem>>, vector<128x64xbf16>
    tpu.vector_store %arg5[%c0_7, %c0_8], %13 {strides = array<i32>} : memref<128x64xbf16, #tpu.memory_space<vmem>>, vector<128x64xbf16>,
    return
  }
  func.func @transform_0(%arg0: i32) -> (i32, i32) {
    %c0_i32 = arith.constant 0 : i32
    %c0_i32_0 = arith.constant 0 : i32
    return %arg0, %c0_i32 : i32, i32
  }
  func.func @transform_1(%arg0: i32) -> (i32, i32) {
    %c0_i32 = arith.constant 0 : i32
    %c0_i32_0 = arith.constant 0 : i32
    %c0_i32_1 = arith.constant 0 : i32
    return %c0_i32, %c0_i32_0 : i32, i32
  }
  func.func @transform_2(%arg0: i32) -> (i32, i32) {
    %c0_i32 = arith.constant 0 : i32
    %c0_i32_0 = arith.constant 0 : i32
    %c0_i32_1 = arith.constant 0 : i32
    return %c0_i32, %c0_i32_0 : i32, i32
  }
  func.func @transform_3(%arg0: i32) -> (i32, i32) {
    %c0_i32 = arith.constant 0 : i32
    %c0_i32_0 = arith.constant 0 : i32
    return %arg0, %c0_i32 : i32, i32
  }
  func.func @transform_4(%arg0: i32) -> (i32, i32) {
    %c0_i32 = arith.constant 0 : i32
    %c0_i32_0 = arith.constant 0 : i32
    return %arg0, %c0_i32 : i32, i32
  }
}

module attributes {stable_mosaic.version = 11 : i64} {
  func.func @_matmul_stats_kernel(%arg0: i32, %arg1: memref<32x128xbf16, #tpu.memory_space<vmem>>, %arg2: memref<128x128xbf16, #tpu.memory_space<vmem>>, %arg3: memref<32x128xbf16, #tpu.memory_space<vmem>>, %arg4: memref<2x128xf32, #tpu.memory_space<vmem>>) attributes {dimension_semantics = [#tpu.dimension_semantics<arbitrary>], iteration_bounds = array<i64: 1>, scalar_prefetch = 0 : i64, scratch_operands = 0 : i64, tpu.core_type = #tpu.core_type<tc>, window_params = [{transform_indices = @transform_0, window_bounds = array<i64: 32, 128>}, {pipeline_mode = #tpu.pipeline_mode<synchronous>, transform_indices = @transform_1, window_bounds = array<i64: 128, 128>}, {transform_indices = @transform_2, window_bounds = array<i64: 32, 128>}, {pipeline_mode = #tpu.pipeline_mode<synchronous>, transform_indices = @transform_3, window_bounds = array<i64: 2, 128>}]} {
    %c0 = arith.constant 0 : index
    %c0_0 = arith.constant 0 : index
    %0 = vector.load %arg1[%c0, %c0_0] : memref<32x128xbf16, #tpu.memory_space<vmem>>, vector<32x128xbf16>
    %c0_1 = arith.constant 0 : index
    %c0_2 = arith.constant 0 : index
    %1 = vector.load %arg2[%c0_1, %c0_2] : memref<128x128xbf16, #tpu.memory_space<vmem>>, vector<128x128xbf16>
    %cst = arith.constant dense<0.000000e+00> : vector<32x128xf32>
    %2 = tpu.matmul %0, %1, %cst {dimension_numbers = #tpu.dot_dimension_numbers<[1], [0], [0], [1], [0, 0, 1, 1], [], []>} : vector<32x128xbf16>, vector<128x128xbf16>, vector<32x128xf32> -> vector<32x128xf32>
    %3 = arith.truncf %2 : vector<32x128xf32> to vector<32x128xbf16>
    %c0_3 = arith.constant 0 : index
    %c0_4 = arith.constant 0 : index
    %4 = vector.load %arg3[%c0_3, %c0_4] : memref<32x128xbf16, #tpu.memory_space<vmem>>, vector<32x128xbf16>
    tpu.vector_store %arg3[%c0_3, %c0_4], %3 {strides = array<i32>} : memref<32x128xbf16, #tpu.memory_space<vmem>>, vector<32x128xbf16>,
    %c0_i32 = arith.constant 0 : i32
    %5 = arith.cmpi eq, %arg0, %c0_i32 : i32
    %6 = arith.extui %5 : i1 to i32
    %c0_i32_5 = arith.constant 0 : i32
    %7 = arith.cmpi ne, %6, %c0_i32_5 : i32
    scf.if %7 {
      %cst_12 = arith.constant 0.000000e+00 : f32
      %17 = vector.broadcast %cst_12 : f32 to vector<2x128xf32>
      %c0_13 = arith.constant 0 : index
      %c0_14 = arith.constant 0 : index
      %18 = vector.load %arg4[%c0_13, %c0_14] : memref<2x128xf32, #tpu.memory_space<vmem>>, vector<2x128xf32>
      tpu.vector_store %arg4[%c0_13, %c0_14], %17 {strides = array<i32>} : memref<2x128xf32, #tpu.memory_space<vmem>>, vector<2x128xf32>,
    } else {
    }
    %cst_6 = arith.constant dense<0.000000e+00> : vector<128xf32>
    %8 = vector.multi_reduction <add>, %2, %cst_6 [0] : vector<32x128xf32> to vector<128xf32>
    %9 = vector.shape_cast %8 : vector<128xf32> to vector<1x128xf32>
    %10 = arith.mulf %2, %2 : vector<32x128xf32>
    %cst_7 = arith.constant dense<0.000000e+00> : vector<128xf32>
    %11 = vector.multi_reduction <add>, %10, %cst_7 [0] : vector<32x128xf32> to vector<128xf32>
    %12 = vector.shape_cast %11 : vector<128xf32> to vector<1x128xf32>
    %c0_8 = arith.constant 0 : index
    %c0_9 = arith.constant 0 : index
    %13 = vector.load %arg4[%c0_8, %c0_9] : memref<2x128xf32, #tpu.memory_space<vmem>>, vector<2x128xf32>
    %14 = tpu.concatenate %9, %12 in 0 : vector<1x128xf32>, vector<1x128xf32> -> vector<2x128xf32>
    %15 = arith.addf %13, %14 : vector<2x128xf32>
    %c0_10 = arith.constant 0 : index
    %c0_11 = arith.constant 0 : index
    %16 = vector.load %arg4[%c0_10, %c0_11] : memref<2x128xf32, #tpu.memory_space<vmem>>, vector<2x128xf32>
    tpu.vector_store %arg4[%c0_10, %c0_11], %15 {strides = array<i32>} : memref<2x128xf32, #tpu.memory_space<vmem>>, vector<2x128xf32>,
    return
  }
  func.func @transform_0(%arg0: i32) -> (i32, i32) {
    %c0_i32 = arith.constant 0 : i32
    %c0_i32_0 = arith.constant 0 : i32
    return %arg0, %c0_i32 : i32, i32
  }
  func.func @transform_1(%arg0: i32) -> (i32, i32) {
    %c0_i32 = arith.constant 0 : i32
    %c0_i32_0 = arith.constant 0 : i32
    %c0_i32_1 = arith.constant 0 : i32
    return %c0_i32, %c0_i32_0 : i32, i32
  }
  func.func @transform_2(%arg0: i32) -> (i32, i32) {
    %c0_i32 = arith.constant 0 : i32
    %c0_i32_0 = arith.constant 0 : i32
    return %arg0, %c0_i32 : i32, i32
  }
  func.func @transform_3(%arg0: i32) -> (i32, i32) {
    %c0_i32 = arith.constant 0 : i32
    %c0_i32_0 = arith.constant 0 : i32
    %c0_i32_1 = arith.constant 0 : i32
    return %c0_i32, %c0_i32_0 : i32, i32
  }
}

module attributes {stable_mosaic.version = 11 : i64} {
  func.func @_bn_kernel(%arg0: i32, %arg1: memref<32x128xbf16, #tpu.memory_space<vmem>>, %arg2: memref<1x128xf32, #tpu.memory_space<vmem>>, %arg3: memref<1x128xf32, #tpu.memory_space<vmem>>, %arg4: memref<32x128xbf16, #tpu.memory_space<vmem>>) attributes {dimension_semantics = [#tpu.dimension_semantics<parallel>], iteration_bounds = array<i64: 1>, scalar_prefetch = 0 : i64, scratch_operands = 0 : i64, tpu.core_type = #tpu.core_type<tc>, window_params = [{transform_indices = @transform_0, window_bounds = array<i64: 32, 128>}, {pipeline_mode = #tpu.pipeline_mode<synchronous>, transform_indices = @transform_1, window_bounds = array<i64: 1, 128>}, {pipeline_mode = #tpu.pipeline_mode<synchronous>, transform_indices = @transform_2, window_bounds = array<i64: 1, 128>}, {transform_indices = @transform_3, window_bounds = array<i64: 32, 128>}]} {
    %c0 = arith.constant 0 : index
    %c0_0 = arith.constant 0 : index
    %0 = vector.load %arg1[%c0, %c0_0] : memref<32x128xbf16, #tpu.memory_space<vmem>>, vector<32x128xbf16>
    %1 = arith.extf %0 : vector<32x128xbf16> to vector<32x128xf32>
    %c0_1 = arith.constant 0 : index
    %c0_2 = arith.constant 0 : index
    %2 = vector.load %arg2[%c0_1, %c0_2] : memref<1x128xf32, #tpu.memory_space<vmem>>, vector<1x128xf32>
    %3 = vector.broadcast %2 : vector<1x128xf32> to vector<32x128xf32>
    %4 = arith.mulf %1, %3 : vector<32x128xf32>
    %c0_3 = arith.constant 0 : index
    %c0_4 = arith.constant 0 : index
    %5 = vector.load %arg3[%c0_3, %c0_4] : memref<1x128xf32, #tpu.memory_space<vmem>>, vector<1x128xf32>
    %6 = vector.broadcast %5 : vector<1x128xf32> to vector<32x128xf32>
    %7 = arith.addf %4, %6 : vector<32x128xf32>
    %8 = arith.truncf %7 : vector<32x128xf32> to vector<32x128xbf16>
    %c0_5 = arith.constant 0 : index
    %c0_6 = arith.constant 0 : index
    %9 = vector.load %arg4[%c0_5, %c0_6] : memref<32x128xbf16, #tpu.memory_space<vmem>>, vector<32x128xbf16>
    tpu.vector_store %arg4[%c0_5, %c0_6], %8 {strides = array<i32>} : memref<32x128xbf16, #tpu.memory_space<vmem>>, vector<32x128xbf16>,
    return
  }
  func.func @transform_0(%arg0: i32) -> (i32, i32) {
    %c0_i32 = arith.constant 0 : i32
    %c0_i32_0 = arith.constant 0 : i32
    return %arg0, %c0_i32 : i32, i32
  }
  func.func @transform_1(%arg0: i32) -> (i32, i32) {
    %c0_i32 = arith.constant 0 : i32
    %c0_i32_0 = arith.constant 0 : i32
    %c0_i32_1 = arith.constant 0 : i32
    return %c0_i32, %c0_i32_0 : i32, i32
  }
  func.func @transform_2(%arg0: i32) -> (i32, i32) {
    %c0_i32 = arith.constant 0 : i32
    %c0_i32_0 = arith.constant 0 : i32
    %c0_i32_1 = arith.constant 0 : i32
    return %c0_i32, %c0_i32_0 : i32, i32
  }
  func.func @transform_3(%arg0: i32) -> (i32, i32) {
    %c0_i32 = arith.constant 0 : i32
    %c0_i32_0 = arith.constant 0 : i32
    return %arg0, %c0_i32 : i32, i32
  }
}

module attributes {stable_mosaic.version = 11 : i64} {
  func.func @_matmul_stats_kernel(%arg0: i32, %arg1: memref<32x640xbf16, #tpu.memory_space<vmem>>, %arg2: memref<640x128xbf16, #tpu.memory_space<vmem>>, %arg3: memref<32x128xbf16, #tpu.memory_space<vmem>>, %arg4: memref<2x128xf32, #tpu.memory_space<vmem>>) attributes {dimension_semantics = [#tpu.dimension_semantics<arbitrary>], iteration_bounds = array<i64: 1>, scalar_prefetch = 0 : i64, scratch_operands = 0 : i64, tpu.core_type = #tpu.core_type<tc>, window_params = [{transform_indices = @transform_0, window_bounds = array<i64: 32, 640>}, {pipeline_mode = #tpu.pipeline_mode<synchronous>, transform_indices = @transform_1, window_bounds = array<i64: 640, 128>}, {transform_indices = @transform_2, window_bounds = array<i64: 32, 128>}, {pipeline_mode = #tpu.pipeline_mode<synchronous>, transform_indices = @transform_3, window_bounds = array<i64: 2, 128>}]} {
    %c0 = arith.constant 0 : index
    %c0_0 = arith.constant 0 : index
    %0 = vector.load %arg1[%c0, %c0_0] : memref<32x640xbf16, #tpu.memory_space<vmem>>, vector<32x640xbf16>
    %c0_1 = arith.constant 0 : index
    %c0_2 = arith.constant 0 : index
    %1 = vector.load %arg2[%c0_1, %c0_2] : memref<640x128xbf16, #tpu.memory_space<vmem>>, vector<640x128xbf16>
    %cst = arith.constant dense<0.000000e+00> : vector<32x128xf32>
    %2 = tpu.matmul %0, %1, %cst {dimension_numbers = #tpu.dot_dimension_numbers<[1], [0], [0], [1], [0, 0, 1, 1], [], []>} : vector<32x640xbf16>, vector<640x128xbf16>, vector<32x128xf32> -> vector<32x128xf32>
    %3 = arith.truncf %2 : vector<32x128xf32> to vector<32x128xbf16>
    %c0_3 = arith.constant 0 : index
    %c0_4 = arith.constant 0 : index
    %4 = vector.load %arg3[%c0_3, %c0_4] : memref<32x128xbf16, #tpu.memory_space<vmem>>, vector<32x128xbf16>
    tpu.vector_store %arg3[%c0_3, %c0_4], %3 {strides = array<i32>} : memref<32x128xbf16, #tpu.memory_space<vmem>>, vector<32x128xbf16>,
    %c0_i32 = arith.constant 0 : i32
    %5 = arith.cmpi eq, %arg0, %c0_i32 : i32
    %6 = arith.extui %5 : i1 to i32
    %c0_i32_5 = arith.constant 0 : i32
    %7 = arith.cmpi ne, %6, %c0_i32_5 : i32
    scf.if %7 {
      %cst_12 = arith.constant 0.000000e+00 : f32
      %17 = vector.broadcast %cst_12 : f32 to vector<2x128xf32>
      %c0_13 = arith.constant 0 : index
      %c0_14 = arith.constant 0 : index
      %18 = vector.load %arg4[%c0_13, %c0_14] : memref<2x128xf32, #tpu.memory_space<vmem>>, vector<2x128xf32>
      tpu.vector_store %arg4[%c0_13, %c0_14], %17 {strides = array<i32>} : memref<2x128xf32, #tpu.memory_space<vmem>>, vector<2x128xf32>,
    } else {
    }
    %cst_6 = arith.constant dense<0.000000e+00> : vector<128xf32>
    %8 = vector.multi_reduction <add>, %2, %cst_6 [0] : vector<32x128xf32> to vector<128xf32>
    %9 = vector.shape_cast %8 : vector<128xf32> to vector<1x128xf32>
    %10 = arith.mulf %2, %2 : vector<32x128xf32>
    %cst_7 = arith.constant dense<0.000000e+00> : vector<128xf32>
    %11 = vector.multi_reduction <add>, %10, %cst_7 [0] : vector<32x128xf32> to vector<128xf32>
    %12 = vector.shape_cast %11 : vector<128xf32> to vector<1x128xf32>
    %c0_8 = arith.constant 0 : index
    %c0_9 = arith.constant 0 : index
    %13 = vector.load %arg4[%c0_8, %c0_9] : memref<2x128xf32, #tpu.memory_space<vmem>>, vector<2x128xf32>
    %14 = tpu.concatenate %9, %12 in 0 : vector<1x128xf32>, vector<1x128xf32> -> vector<2x128xf32>
    %15 = arith.addf %13, %14 : vector<2x128xf32>
    %c0_10 = arith.constant 0 : index
    %c0_11 = arith.constant 0 : index
    %16 = vector.load %arg4[%c0_10, %c0_11] : memref<2x128xf32, #tpu.memory_space<vmem>>, vector<2x128xf32>
    tpu.vector_store %arg4[%c0_10, %c0_11], %15 {strides = array<i32>} : memref<2x128xf32, #tpu.memory_space<vmem>>, vector<2x128xf32>,
    return
  }
  func.func @transform_0(%arg0: i32) -> (i32, i32) {
    %c0_i32 = arith.constant 0 : i32
    %c0_i32_0 = arith.constant 0 : i32
    return %arg0, %c0_i32 : i32, i32
  }
  func.func @transform_1(%arg0: i32) -> (i32, i32) {
    %c0_i32 = arith.constant 0 : i32
    %c0_i32_0 = arith.constant 0 : i32
    %c0_i32_1 = arith.constant 0 : i32
    return %c0_i32, %c0_i32_0 : i32, i32
  }
  func.func @transform_2(%arg0: i32) -> (i32, i32) {
    %c0_i32 = arith.constant 0 : i32
    %c0_i32_0 = arith.constant 0 : i32
    return %arg0, %c0_i32 : i32, i32
  }
  func.func @transform_3(%arg0: i32) -> (i32, i32) {
    %c0_i32 = arith.constant 0 : i32
    %c0_i32_0 = arith.constant 0 : i32
    %c0_i32_1 = arith.constant 0 : i32
    return %c0_i32, %c0_i32_0 : i32, i32
  }
}

module attributes {stable_mosaic.version = 11 : i64} {
  func.func @_bn_relu_kernel(%arg0: i32, %arg1: memref<32x128xbf16, #tpu.memory_space<vmem>>, %arg2: memref<1x128xf32, #tpu.memory_space<vmem>>, %arg3: memref<1x128xf32, #tpu.memory_space<vmem>>, %arg4: memref<32x128xbf16, #tpu.memory_space<vmem>>) attributes {dimension_semantics = [#tpu.dimension_semantics<parallel>], iteration_bounds = array<i64: 1>, scalar_prefetch = 0 : i64, scratch_operands = 0 : i64, tpu.core_type = #tpu.core_type<tc>, window_params = [{transform_indices = @transform_0, window_bounds = array<i64: 32, 128>}, {pipeline_mode = #tpu.pipeline_mode<synchronous>, transform_indices = @transform_1, window_bounds = array<i64: 1, 128>}, {pipeline_mode = #tpu.pipeline_mode<synchronous>, transform_indices = @transform_2, window_bounds = array<i64: 1, 128>}, {transform_indices = @transform_3, window_bounds = array<i64: 32, 128>}]} {
    %c0 = arith.constant 0 : index
    %c0_0 = arith.constant 0 : index
    %0 = vector.load %arg1[%c0, %c0_0] : memref<32x128xbf16, #tpu.memory_space<vmem>>, vector<32x128xbf16>
    %1 = arith.extf %0 : vector<32x128xbf16> to vector<32x128xf32>
    %c0_1 = arith.constant 0 : index
    %c0_2 = arith.constant 0 : index
    %2 = vector.load %arg2[%c0_1, %c0_2] : memref<1x128xf32, #tpu.memory_space<vmem>>, vector<1x128xf32>
    %3 = vector.broadcast %2 : vector<1x128xf32> to vector<32x128xf32>
    %4 = arith.mulf %1, %3 : vector<32x128xf32>
    %c0_3 = arith.constant 0 : index
    %c0_4 = arith.constant 0 : index
    %5 = vector.load %arg3[%c0_3, %c0_4] : memref<1x128xf32, #tpu.memory_space<vmem>>, vector<1x128xf32>
    %6 = vector.broadcast %5 : vector<1x128xf32> to vector<32x128xf32>
    %7 = arith.addf %4, %6 : vector<32x128xf32>
    %cst = arith.constant 0.000000e+00 : f32
    %8 = vector.broadcast %cst : f32 to vector<32x128xf32>
    %9 = arith.maximumf %7, %8 : vector<32x128xf32>
    %10 = arith.truncf %9 : vector<32x128xf32> to vector<32x128xbf16>
    %c0_5 = arith.constant 0 : index
    %c0_6 = arith.constant 0 : index
    %11 = vector.load %arg4[%c0_5, %c0_6] : memref<32x128xbf16, #tpu.memory_space<vmem>>, vector<32x128xbf16>
    tpu.vector_store %arg4[%c0_5, %c0_6], %10 {strides = array<i32>} : memref<32x128xbf16, #tpu.memory_space<vmem>>, vector<32x128xbf16>,
    return
  }
  func.func @transform_0(%arg0: i32) -> (i32, i32) {
    %c0_i32 = arith.constant 0 : i32
    %c0_i32_0 = arith.constant 0 : i32
    return %arg0, %c0_i32 : i32, i32
  }
  func.func @transform_1(%arg0: i32) -> (i32, i32) {
    %c0_i32 = arith.constant 0 : i32
    %c0_i32_0 = arith.constant 0 : i32
    %c0_i32_1 = arith.constant 0 : i32
    return %c0_i32, %c0_i32_0 : i32, i32
  }
  func.func @transform_2(%arg0: i32) -> (i32, i32) {
    %c0_i32 = arith.constant 0 : i32
    %c0_i32_0 = arith.constant 0 : i32
    %c0_i32_1 = arith.constant 0 : i32
    return %c0_i32, %c0_i32_0 : i32, i32
  }
  func.func @transform_3(%arg0: i32) -> (i32, i32) {
    %c0_i32 = arith.constant 0 : i32
    %c0_i32_0 = arith.constant 0 : i32
    return %arg0, %c0_i32 : i32, i32
  }
}

module attributes {stable_mosaic.version = 11 : i64} {
  func.func @_matmul_stats_kernel(%arg0: i32, %arg1: memref<32x1152xbf16, #tpu.memory_space<vmem>>, %arg2: memref<1152x128xbf16, #tpu.memory_space<vmem>>, %arg3: memref<32x128xbf16, #tpu.memory_space<vmem>>, %arg4: memref<2x128xf32, #tpu.memory_space<vmem>>) attributes {dimension_semantics = [#tpu.dimension_semantics<arbitrary>], iteration_bounds = array<i64: 1>, scalar_prefetch = 0 : i64, scratch_operands = 0 : i64, tpu.core_type = #tpu.core_type<tc>, window_params = [{transform_indices = @transform_0, window_bounds = array<i64: 32, 1152>}, {pipeline_mode = #tpu.pipeline_mode<synchronous>, transform_indices = @transform_1, window_bounds = array<i64: 1152, 128>}, {transform_indices = @transform_2, window_bounds = array<i64: 32, 128>}, {pipeline_mode = #tpu.pipeline_mode<synchronous>, transform_indices = @transform_3, window_bounds = array<i64: 2, 128>}]} {
    %c0 = arith.constant 0 : index
    %c0_0 = arith.constant 0 : index
    %0 = vector.load %arg1[%c0, %c0_0] : memref<32x1152xbf16, #tpu.memory_space<vmem>>, vector<32x1152xbf16>
    %c0_1 = arith.constant 0 : index
    %c0_2 = arith.constant 0 : index
    %1 = vector.load %arg2[%c0_1, %c0_2] : memref<1152x128xbf16, #tpu.memory_space<vmem>>, vector<1152x128xbf16>
    %cst = arith.constant dense<0.000000e+00> : vector<32x128xf32>
    %2 = tpu.matmul %0, %1, %cst {dimension_numbers = #tpu.dot_dimension_numbers<[1], [0], [0], [1], [0, 0, 1, 1], [], []>} : vector<32x1152xbf16>, vector<1152x128xbf16>, vector<32x128xf32> -> vector<32x128xf32>
    %3 = arith.truncf %2 : vector<32x128xf32> to vector<32x128xbf16>
    %c0_3 = arith.constant 0 : index
    %c0_4 = arith.constant 0 : index
    %4 = vector.load %arg3[%c0_3, %c0_4] : memref<32x128xbf16, #tpu.memory_space<vmem>>, vector<32x128xbf16>
    tpu.vector_store %arg3[%c0_3, %c0_4], %3 {strides = array<i32>} : memref<32x128xbf16, #tpu.memory_space<vmem>>, vector<32x128xbf16>,
    %c0_i32 = arith.constant 0 : i32
    %5 = arith.cmpi eq, %arg0, %c0_i32 : i32
    %6 = arith.extui %5 : i1 to i32
    %c0_i32_5 = arith.constant 0 : i32
    %7 = arith.cmpi ne, %6, %c0_i32_5 : i32
    scf.if %7 {
      %cst_12 = arith.constant 0.000000e+00 : f32
      %17 = vector.broadcast %cst_12 : f32 to vector<2x128xf32>
      %c0_13 = arith.constant 0 : index
      %c0_14 = arith.constant 0 : index
      %18 = vector.load %arg4[%c0_13, %c0_14] : memref<2x128xf32, #tpu.memory_space<vmem>>, vector<2x128xf32>
      tpu.vector_store %arg4[%c0_13, %c0_14], %17 {strides = array<i32>} : memref<2x128xf32, #tpu.memory_space<vmem>>, vector<2x128xf32>,
    } else {
    }
    %cst_6 = arith.constant dense<0.000000e+00> : vector<128xf32>
    %8 = vector.multi_reduction <add>, %2, %cst_6 [0] : vector<32x128xf32> to vector<128xf32>
    %9 = vector.shape_cast %8 : vector<128xf32> to vector<1x128xf32>
    %10 = arith.mulf %2, %2 : vector<32x128xf32>
    %cst_7 = arith.constant dense<0.000000e+00> : vector<128xf32>
    %11 = vector.multi_reduction <add>, %10, %cst_7 [0] : vector<32x128xf32> to vector<128xf32>
    %12 = vector.shape_cast %11 : vector<128xf32> to vector<1x128xf32>
    %c0_8 = arith.constant 0 : index
    %c0_9 = arith.constant 0 : index
    %13 = vector.load %arg4[%c0_8, %c0_9] : memref<2x128xf32, #tpu.memory_space<vmem>>, vector<2x128xf32>
    %14 = tpu.concatenate %9, %12 in 0 : vector<1x128xf32>, vector<1x128xf32> -> vector<2x128xf32>
    %15 = arith.addf %13, %14 : vector<2x128xf32>
    %c0_10 = arith.constant 0 : index
    %c0_11 = arith.constant 0 : index
    %16 = vector.load %arg4[%c0_10, %c0_11] : memref<2x128xf32, #tpu.memory_space<vmem>>, vector<2x128xf32>
    tpu.vector_store %arg4[%c0_10, %c0_11], %15 {strides = array<i32>} : memref<2x128xf32, #tpu.memory_space<vmem>>, vector<2x128xf32>,
    return
  }
  func.func @transform_0(%arg0: i32) -> (i32, i32) {
    %c0_i32 = arith.constant 0 : i32
    %c0_i32_0 = arith.constant 0 : i32
    return %arg0, %c0_i32 : i32, i32
  }
  func.func @transform_1(%arg0: i32) -> (i32, i32) {
    %c0_i32 = arith.constant 0 : i32
    %c0_i32_0 = arith.constant 0 : i32
    %c0_i32_1 = arith.constant 0 : i32
    return %c0_i32, %c0_i32_0 : i32, i32
  }
  func.func @transform_2(%arg0: i32) -> (i32, i32) {
    %c0_i32 = arith.constant 0 : i32
    %c0_i32_0 = arith.constant 0 : i32
    return %arg0, %c0_i32 : i32, i32
  }
  func.func @transform_3(%arg0: i32) -> (i32, i32) {
    %c0_i32 = arith.constant 0 : i32
    %c0_i32_0 = arith.constant 0 : i32
    %c0_i32_1 = arith.constant 0 : i32
    return %c0_i32, %c0_i32_0 : i32, i32
  }
}

module attributes {stable_mosaic.version = 11 : i64} {
  func.func @_matmul_stats_kernel(%arg0: i32, %arg1: memref<8x128xbf16, #tpu.memory_space<vmem>>, %arg2: memref<128x256xbf16, #tpu.memory_space<vmem>>, %arg3: memref<8x256xbf16, #tpu.memory_space<vmem>>, %arg4: memref<2x256xf32, #tpu.memory_space<vmem>>) attributes {dimension_semantics = [#tpu.dimension_semantics<arbitrary>], iteration_bounds = array<i64: 1>, scalar_prefetch = 0 : i64, scratch_operands = 0 : i64, tpu.core_type = #tpu.core_type<tc>, window_params = [{transform_indices = @transform_0, window_bounds = array<i64: 8, 128>}, {pipeline_mode = #tpu.pipeline_mode<synchronous>, transform_indices = @transform_1, window_bounds = array<i64: 128, 256>}, {transform_indices = @transform_2, window_bounds = array<i64: 8, 256>}, {pipeline_mode = #tpu.pipeline_mode<synchronous>, transform_indices = @transform_3, window_bounds = array<i64: 2, 256>}]} {
    %c0 = arith.constant 0 : index
    %c0_0 = arith.constant 0 : index
    %0 = vector.load %arg1[%c0, %c0_0] : memref<8x128xbf16, #tpu.memory_space<vmem>>, vector<8x128xbf16>
    %c0_1 = arith.constant 0 : index
    %c0_2 = arith.constant 0 : index
    %1 = vector.load %arg2[%c0_1, %c0_2] : memref<128x256xbf16, #tpu.memory_space<vmem>>, vector<128x256xbf16>
    %cst = arith.constant dense<0.000000e+00> : vector<8x256xf32>
    %2 = tpu.matmul %0, %1, %cst {dimension_numbers = #tpu.dot_dimension_numbers<[1], [0], [0], [1], [0, 0, 1, 1], [], []>} : vector<8x128xbf16>, vector<128x256xbf16>, vector<8x256xf32> -> vector<8x256xf32>
    %3 = arith.truncf %2 : vector<8x256xf32> to vector<8x256xbf16>
    %c0_3 = arith.constant 0 : index
    %c0_4 = arith.constant 0 : index
    %4 = vector.load %arg3[%c0_3, %c0_4] : memref<8x256xbf16, #tpu.memory_space<vmem>>, vector<8x256xbf16>
    tpu.vector_store %arg3[%c0_3, %c0_4], %3 {strides = array<i32>} : memref<8x256xbf16, #tpu.memory_space<vmem>>, vector<8x256xbf16>,
    %c0_i32 = arith.constant 0 : i32
    %5 = arith.cmpi eq, %arg0, %c0_i32 : i32
    %6 = arith.extui %5 : i1 to i32
    %c0_i32_5 = arith.constant 0 : i32
    %7 = arith.cmpi ne, %6, %c0_i32_5 : i32
    scf.if %7 {
      %cst_12 = arith.constant 0.000000e+00 : f32
      %17 = vector.broadcast %cst_12 : f32 to vector<2x256xf32>
      %c0_13 = arith.constant 0 : index
      %c0_14 = arith.constant 0 : index
      %18 = vector.load %arg4[%c0_13, %c0_14] : memref<2x256xf32, #tpu.memory_space<vmem>>, vector<2x256xf32>
      tpu.vector_store %arg4[%c0_13, %c0_14], %17 {strides = array<i32>} : memref<2x256xf32, #tpu.memory_space<vmem>>, vector<2x256xf32>,
    } else {
    }
    %cst_6 = arith.constant dense<0.000000e+00> : vector<256xf32>
    %8 = vector.multi_reduction <add>, %2, %cst_6 [0] : vector<8x256xf32> to vector<256xf32>
    %9 = vector.shape_cast %8 : vector<256xf32> to vector<1x256xf32>
    %10 = arith.mulf %2, %2 : vector<8x256xf32>
    %cst_7 = arith.constant dense<0.000000e+00> : vector<256xf32>
    %11 = vector.multi_reduction <add>, %10, %cst_7 [0] : vector<8x256xf32> to vector<256xf32>
    %12 = vector.shape_cast %11 : vector<256xf32> to vector<1x256xf32>
    %c0_8 = arith.constant 0 : index
    %c0_9 = arith.constant 0 : index
    %13 = vector.load %arg4[%c0_8, %c0_9] : memref<2x256xf32, #tpu.memory_space<vmem>>, vector<2x256xf32>
    %14 = tpu.concatenate %9, %12 in 0 : vector<1x256xf32>, vector<1x256xf32> -> vector<2x256xf32>
    %15 = arith.addf %13, %14 : vector<2x256xf32>
    %c0_10 = arith.constant 0 : index
    %c0_11 = arith.constant 0 : index
    %16 = vector.load %arg4[%c0_10, %c0_11] : memref<2x256xf32, #tpu.memory_space<vmem>>, vector<2x256xf32>
    tpu.vector_store %arg4[%c0_10, %c0_11], %15 {strides = array<i32>} : memref<2x256xf32, #tpu.memory_space<vmem>>, vector<2x256xf32>,
    return
  }
  func.func @transform_0(%arg0: i32) -> (i32, i32) {
    %c0_i32 = arith.constant 0 : i32
    %c0_i32_0 = arith.constant 0 : i32
    return %arg0, %c0_i32 : i32, i32
  }
  func.func @transform_1(%arg0: i32) -> (i32, i32) {
    %c0_i32 = arith.constant 0 : i32
    %c0_i32_0 = arith.constant 0 : i32
    %c0_i32_1 = arith.constant 0 : i32
    return %c0_i32, %c0_i32_0 : i32, i32
  }
  func.func @transform_2(%arg0: i32) -> (i32, i32) {
    %c0_i32 = arith.constant 0 : i32
    %c0_i32_0 = arith.constant 0 : i32
    return %arg0, %c0_i32 : i32, i32
  }
  func.func @transform_3(%arg0: i32) -> (i32, i32) {
    %c0_i32 = arith.constant 0 : i32
    %c0_i32_0 = arith.constant 0 : i32
    %c0_i32_1 = arith.constant 0 : i32
    return %c0_i32, %c0_i32_0 : i32, i32
  }
}

module attributes {stable_mosaic.version = 11 : i64} {
  func.func @_bn_add_relu_kernel(%arg0: i32, %arg1: memref<32x128xbf16, #tpu.memory_space<vmem>>, %arg2: memref<1x128xf32, #tpu.memory_space<vmem>>, %arg3: memref<1x128xf32, #tpu.memory_space<vmem>>, %arg4: memref<32x128xbf16, #tpu.memory_space<vmem>>, %arg5: memref<32x128xbf16, #tpu.memory_space<vmem>>) attributes {dimension_semantics = [#tpu.dimension_semantics<parallel>], iteration_bounds = array<i64: 1>, scalar_prefetch = 0 : i64, scratch_operands = 0 : i64, tpu.core_type = #tpu.core_type<tc>, window_params = [{transform_indices = @transform_0, window_bounds = array<i64: 32, 128>}, {pipeline_mode = #tpu.pipeline_mode<synchronous>, transform_indices = @transform_1, window_bounds = array<i64: 1, 128>}, {pipeline_mode = #tpu.pipeline_mode<synchronous>, transform_indices = @transform_2, window_bounds = array<i64: 1, 128>}, {transform_indices = @transform_3, window_bounds = array<i64: 32, 128>}, {transform_indices = @transform_4, window_bounds = array<i64: 32, 128>}]} {
    %c0 = arith.constant 0 : index
    %c0_0 = arith.constant 0 : index
    %0 = vector.load %arg1[%c0, %c0_0] : memref<32x128xbf16, #tpu.memory_space<vmem>>, vector<32x128xbf16>
    %1 = arith.extf %0 : vector<32x128xbf16> to vector<32x128xf32>
    %c0_1 = arith.constant 0 : index
    %c0_2 = arith.constant 0 : index
    %2 = vector.load %arg4[%c0_1, %c0_2] : memref<32x128xbf16, #tpu.memory_space<vmem>>, vector<32x128xbf16>
    %3 = arith.extf %2 : vector<32x128xbf16> to vector<32x128xf32>
    %c0_3 = arith.constant 0 : index
    %c0_4 = arith.constant 0 : index
    %4 = vector.load %arg2[%c0_3, %c0_4] : memref<1x128xf32, #tpu.memory_space<vmem>>, vector<1x128xf32>
    %5 = vector.broadcast %4 : vector<1x128xf32> to vector<32x128xf32>
    %6 = arith.mulf %1, %5 : vector<32x128xf32>
    %c0_5 = arith.constant 0 : index
    %c0_6 = arith.constant 0 : index
    %7 = vector.load %arg3[%c0_5, %c0_6] : memref<1x128xf32, #tpu.memory_space<vmem>>, vector<1x128xf32>
    %8 = vector.broadcast %7 : vector<1x128xf32> to vector<32x128xf32>
    %9 = arith.addf %6, %8 : vector<32x128xf32>
    %10 = arith.addf %9, %3 : vector<32x128xf32>
    %cst = arith.constant 0.000000e+00 : f32
    %11 = vector.broadcast %cst : f32 to vector<32x128xf32>
    %12 = arith.maximumf %10, %11 : vector<32x128xf32>
    %13 = arith.truncf %12 : vector<32x128xf32> to vector<32x128xbf16>
    %c0_7 = arith.constant 0 : index
    %c0_8 = arith.constant 0 : index
    %14 = vector.load %arg5[%c0_7, %c0_8] : memref<32x128xbf16, #tpu.memory_space<vmem>>, vector<32x128xbf16>
    tpu.vector_store %arg5[%c0_7, %c0_8], %13 {strides = array<i32>} : memref<32x128xbf16, #tpu.memory_space<vmem>>, vector<32x128xbf16>,
    return
  }
  func.func @transform_0(%arg0: i32) -> (i32, i32) {
    %c0_i32 = arith.constant 0 : i32
    %c0_i32_0 = arith.constant 0 : i32
    return %arg0, %c0_i32 : i32, i32
  }
  func.func @transform_1(%arg0: i32) -> (i32, i32) {
    %c0_i32 = arith.constant 0 : i32
    %c0_i32_0 = arith.constant 0 : i32
    %c0_i32_1 = arith.constant 0 : i32
    return %c0_i32, %c0_i32_0 : i32, i32
  }
  func.func @transform_2(%arg0: i32) -> (i32, i32) {
    %c0_i32 = arith.constant 0 : i32
    %c0_i32_0 = arith.constant 0 : i32
    %c0_i32_1 = arith.constant 0 : i32
    return %c0_i32, %c0_i32_0 : i32, i32
  }
  func.func @transform_3(%arg0: i32) -> (i32, i32) {
    %c0_i32 = arith.constant 0 : i32
    %c0_i32_0 = arith.constant 0 : i32
    return %arg0, %c0_i32 : i32, i32
  }
  func.func @transform_4(%arg0: i32) -> (i32, i32) {
    %c0_i32 = arith.constant 0 : i32
    %c0_i32_0 = arith.constant 0 : i32
    return %arg0, %c0_i32 : i32, i32
  }
}

module attributes {stable_mosaic.version = 11 : i64} {
  func.func @_bn_kernel(%arg0: i32, %arg1: memref<8x256xbf16, #tpu.memory_space<vmem>>, %arg2: memref<1x256xf32, #tpu.memory_space<vmem>>, %arg3: memref<1x256xf32, #tpu.memory_space<vmem>>, %arg4: memref<8x256xbf16, #tpu.memory_space<vmem>>) attributes {dimension_semantics = [#tpu.dimension_semantics<parallel>], iteration_bounds = array<i64: 1>, scalar_prefetch = 0 : i64, scratch_operands = 0 : i64, tpu.core_type = #tpu.core_type<tc>, window_params = [{transform_indices = @transform_0, window_bounds = array<i64: 8, 256>}, {pipeline_mode = #tpu.pipeline_mode<synchronous>, transform_indices = @transform_1, window_bounds = array<i64: 1, 256>}, {pipeline_mode = #tpu.pipeline_mode<synchronous>, transform_indices = @transform_2, window_bounds = array<i64: 1, 256>}, {transform_indices = @transform_3, window_bounds = array<i64: 8, 256>}]} {
    %c0 = arith.constant 0 : index
    %c0_0 = arith.constant 0 : index
    %0 = vector.load %arg1[%c0, %c0_0] : memref<8x256xbf16, #tpu.memory_space<vmem>>, vector<8x256xbf16>
    %1 = arith.extf %0 : vector<8x256xbf16> to vector<8x256xf32>
    %c0_1 = arith.constant 0 : index
    %c0_2 = arith.constant 0 : index
    %2 = vector.load %arg2[%c0_1, %c0_2] : memref<1x256xf32, #tpu.memory_space<vmem>>, vector<1x256xf32>
    %3 = vector.broadcast %2 : vector<1x256xf32> to vector<8x256xf32>
    %4 = arith.mulf %1, %3 : vector<8x256xf32>
    %c0_3 = arith.constant 0 : index
    %c0_4 = arith.constant 0 : index
    %5 = vector.load %arg3[%c0_3, %c0_4] : memref<1x256xf32, #tpu.memory_space<vmem>>, vector<1x256xf32>
    %6 = vector.broadcast %5 : vector<1x256xf32> to vector<8x256xf32>
    %7 = arith.addf %4, %6 : vector<8x256xf32>
    %8 = arith.truncf %7 : vector<8x256xf32> to vector<8x256xbf16>
    %c0_5 = arith.constant 0 : index
    %c0_6 = arith.constant 0 : index
    %9 = vector.load %arg4[%c0_5, %c0_6] : memref<8x256xbf16, #tpu.memory_space<vmem>>, vector<8x256xbf16>
    tpu.vector_store %arg4[%c0_5, %c0_6], %8 {strides = array<i32>} : memref<8x256xbf16, #tpu.memory_space<vmem>>, vector<8x256xbf16>,
    return
  }
  func.func @transform_0(%arg0: i32) -> (i32, i32) {
    %c0_i32 = arith.constant 0 : i32
    %c0_i32_0 = arith.constant 0 : i32
    return %arg0, %c0_i32 : i32, i32
  }
  func.func @transform_1(%arg0: i32) -> (i32, i32) {
    %c0_i32 = arith.constant 0 : i32
    %c0_i32_0 = arith.constant 0 : i32
    %c0_i32_1 = arith.constant 0 : i32
    return %c0_i32, %c0_i32_0 : i32, i32
  }
  func.func @transform_2(%arg0: i32) -> (i32, i32) {
    %c0_i32 = arith.constant 0 : i32
    %c0_i32_0 = arith.constant 0 : i32
    %c0_i32_1 = arith.constant 0 : i32
    return %c0_i32, %c0_i32_0 : i32, i32
  }
  func.func @transform_3(%arg0: i32) -> (i32, i32) {
    %c0_i32 = arith.constant 0 : i32
    %c0_i32_0 = arith.constant 0 : i32
    return %arg0, %c0_i32 : i32, i32
  }
}

module attributes {stable_mosaic.version = 11 : i64} {
  func.func @_matmul_stats_kernel(%arg0: i32, %arg1: memref<8x1152xbf16, #tpu.memory_space<vmem>>, %arg2: memref<1152x256xbf16, #tpu.memory_space<vmem>>, %arg3: memref<8x256xbf16, #tpu.memory_space<vmem>>, %arg4: memref<2x256xf32, #tpu.memory_space<vmem>>) attributes {dimension_semantics = [#tpu.dimension_semantics<arbitrary>], iteration_bounds = array<i64: 1>, scalar_prefetch = 0 : i64, scratch_operands = 0 : i64, tpu.core_type = #tpu.core_type<tc>, window_params = [{transform_indices = @transform_0, window_bounds = array<i64: 8, 1152>}, {pipeline_mode = #tpu.pipeline_mode<synchronous>, transform_indices = @transform_1, window_bounds = array<i64: 1152, 256>}, {transform_indices = @transform_2, window_bounds = array<i64: 8, 256>}, {pipeline_mode = #tpu.pipeline_mode<synchronous>, transform_indices = @transform_3, window_bounds = array<i64: 2, 256>}]} {
    %c0 = arith.constant 0 : index
    %c0_0 = arith.constant 0 : index
    %0 = vector.load %arg1[%c0, %c0_0] : memref<8x1152xbf16, #tpu.memory_space<vmem>>, vector<8x1152xbf16>
    %c0_1 = arith.constant 0 : index
    %c0_2 = arith.constant 0 : index
    %1 = vector.load %arg2[%c0_1, %c0_2] : memref<1152x256xbf16, #tpu.memory_space<vmem>>, vector<1152x256xbf16>
    %cst = arith.constant dense<0.000000e+00> : vector<8x256xf32>
    %2 = tpu.matmul %0, %1, %cst {dimension_numbers = #tpu.dot_dimension_numbers<[1], [0], [0], [1], [0, 0, 1, 1], [], []>} : vector<8x1152xbf16>, vector<1152x256xbf16>, vector<8x256xf32> -> vector<8x256xf32>
    %3 = arith.truncf %2 : vector<8x256xf32> to vector<8x256xbf16>
    %c0_3 = arith.constant 0 : index
    %c0_4 = arith.constant 0 : index
    %4 = vector.load %arg3[%c0_3, %c0_4] : memref<8x256xbf16, #tpu.memory_space<vmem>>, vector<8x256xbf16>
    tpu.vector_store %arg3[%c0_3, %c0_4], %3 {strides = array<i32>} : memref<8x256xbf16, #tpu.memory_space<vmem>>, vector<8x256xbf16>,
    %c0_i32 = arith.constant 0 : i32
    %5 = arith.cmpi eq, %arg0, %c0_i32 : i32
    %6 = arith.extui %5 : i1 to i32
    %c0_i32_5 = arith.constant 0 : i32
    %7 = arith.cmpi ne, %6, %c0_i32_5 : i32
    scf.if %7 {
      %cst_12 = arith.constant 0.000000e+00 : f32
      %17 = vector.broadcast %cst_12 : f32 to vector<2x256xf32>
      %c0_13 = arith.constant 0 : index
      %c0_14 = arith.constant 0 : index
      %18 = vector.load %arg4[%c0_13, %c0_14] : memref<2x256xf32, #tpu.memory_space<vmem>>, vector<2x256xf32>
      tpu.vector_store %arg4[%c0_13, %c0_14], %17 {strides = array<i32>} : memref<2x256xf32, #tpu.memory_space<vmem>>, vector<2x256xf32>,
    } else {
    }
    %cst_6 = arith.constant dense<0.000000e+00> : vector<256xf32>
    %8 = vector.multi_reduction <add>, %2, %cst_6 [0] : vector<8x256xf32> to vector<256xf32>
    %9 = vector.shape_cast %8 : vector<256xf32> to vector<1x256xf32>
    %10 = arith.mulf %2, %2 : vector<8x256xf32>
    %cst_7 = arith.constant dense<0.000000e+00> : vector<256xf32>
    %11 = vector.multi_reduction <add>, %10, %cst_7 [0] : vector<8x256xf32> to vector<256xf32>
    %12 = vector.shape_cast %11 : vector<256xf32> to vector<1x256xf32>
    %c0_8 = arith.constant 0 : index
    %c0_9 = arith.constant 0 : index
    %13 = vector.load %arg4[%c0_8, %c0_9] : memref<2x256xf32, #tpu.memory_space<vmem>>, vector<2x256xf32>
    %14 = tpu.concatenate %9, %12 in 0 : vector<1x256xf32>, vector<1x256xf32> -> vector<2x256xf32>
    %15 = arith.addf %13, %14 : vector<2x256xf32>
    %c0_10 = arith.constant 0 : index
    %c0_11 = arith.constant 0 : index
    %16 = vector.load %arg4[%c0_10, %c0_11] : memref<2x256xf32, #tpu.memory_space<vmem>>, vector<2x256xf32>
    tpu.vector_store %arg4[%c0_10, %c0_11], %15 {strides = array<i32>} : memref<2x256xf32, #tpu.memory_space<vmem>>, vector<2x256xf32>,
    return
  }
  func.func @transform_0(%arg0: i32) -> (i32, i32) {
    %c0_i32 = arith.constant 0 : i32
    %c0_i32_0 = arith.constant 0 : i32
    return %arg0, %c0_i32 : i32, i32
  }
  func.func @transform_1(%arg0: i32) -> (i32, i32) {
    %c0_i32 = arith.constant 0 : i32
    %c0_i32_0 = arith.constant 0 : i32
    %c0_i32_1 = arith.constant 0 : i32
    return %c0_i32, %c0_i32_0 : i32, i32
  }
  func.func @transform_2(%arg0: i32) -> (i32, i32) {
    %c0_i32 = arith.constant 0 : i32
    %c0_i32_0 = arith.constant 0 : i32
    return %arg0, %c0_i32 : i32, i32
  }
  func.func @transform_3(%arg0: i32) -> (i32, i32) {
    %c0_i32 = arith.constant 0 : i32
    %c0_i32_0 = arith.constant 0 : i32
    %c0_i32_1 = arith.constant 0 : i32
    return %c0_i32, %c0_i32_0 : i32, i32
  }
}

module attributes {stable_mosaic.version = 11 : i64} {
  func.func @_bn_relu_kernel(%arg0: i32, %arg1: memref<8x256xbf16, #tpu.memory_space<vmem>>, %arg2: memref<1x256xf32, #tpu.memory_space<vmem>>, %arg3: memref<1x256xf32, #tpu.memory_space<vmem>>, %arg4: memref<8x256xbf16, #tpu.memory_space<vmem>>) attributes {dimension_semantics = [#tpu.dimension_semantics<parallel>], iteration_bounds = array<i64: 1>, scalar_prefetch = 0 : i64, scratch_operands = 0 : i64, tpu.core_type = #tpu.core_type<tc>, window_params = [{transform_indices = @transform_0, window_bounds = array<i64: 8, 256>}, {pipeline_mode = #tpu.pipeline_mode<synchronous>, transform_indices = @transform_1, window_bounds = array<i64: 1, 256>}, {pipeline_mode = #tpu.pipeline_mode<synchronous>, transform_indices = @transform_2, window_bounds = array<i64: 1, 256>}, {transform_indices = @transform_3, window_bounds = array<i64: 8, 256>}]} {
    %c0 = arith.constant 0 : index
    %c0_0 = arith.constant 0 : index
    %0 = vector.load %arg1[%c0, %c0_0] : memref<8x256xbf16, #tpu.memory_space<vmem>>, vector<8x256xbf16>
    %1 = arith.extf %0 : vector<8x256xbf16> to vector<8x256xf32>
    %c0_1 = arith.constant 0 : index
    %c0_2 = arith.constant 0 : index
    %2 = vector.load %arg2[%c0_1, %c0_2] : memref<1x256xf32, #tpu.memory_space<vmem>>, vector<1x256xf32>
    %3 = vector.broadcast %2 : vector<1x256xf32> to vector<8x256xf32>
    %4 = arith.mulf %1, %3 : vector<8x256xf32>
    %c0_3 = arith.constant 0 : index
    %c0_4 = arith.constant 0 : index
    %5 = vector.load %arg3[%c0_3, %c0_4] : memref<1x256xf32, #tpu.memory_space<vmem>>, vector<1x256xf32>
    %6 = vector.broadcast %5 : vector<1x256xf32> to vector<8x256xf32>
    %7 = arith.addf %4, %6 : vector<8x256xf32>
    %cst = arith.constant 0.000000e+00 : f32
    %8 = vector.broadcast %cst : f32 to vector<8x256xf32>
    %9 = arith.maximumf %7, %8 : vector<8x256xf32>
    %10 = arith.truncf %9 : vector<8x256xf32> to vector<8x256xbf16>
    %c0_5 = arith.constant 0 : index
    %c0_6 = arith.constant 0 : index
    %11 = vector.load %arg4[%c0_5, %c0_6] : memref<8x256xbf16, #tpu.memory_space<vmem>>, vector<8x256xbf16>
    tpu.vector_store %arg4[%c0_5, %c0_6], %10 {strides = array<i32>} : memref<8x256xbf16, #tpu.memory_space<vmem>>, vector<8x256xbf16>,
    return
  }
  func.func @transform_0(%arg0: i32) -> (i32, i32) {
    %c0_i32 = arith.constant 0 : i32
    %c0_i32_0 = arith.constant 0 : i32
    return %arg0, %c0_i32 : i32, i32
  }
  func.func @transform_1(%arg0: i32) -> (i32, i32) {
    %c0_i32 = arith.constant 0 : i32
    %c0_i32_0 = arith.constant 0 : i32
    %c0_i32_1 = arith.constant 0 : i32
    return %c0_i32, %c0_i32_0 : i32, i32
  }
  func.func @transform_2(%arg0: i32) -> (i32, i32) {
    %c0_i32 = arith.constant 0 : i32
    %c0_i32_0 = arith.constant 0 : i32
    %c0_i32_1 = arith.constant 0 : i32
    return %c0_i32, %c0_i32_0 : i32, i32
  }
  func.func @transform_3(%arg0: i32) -> (i32, i32) {
    %c0_i32 = arith.constant 0 : i32
    %c0_i32_0 = arith.constant 0 : i32
    return %arg0, %c0_i32 : i32, i32
  }
}

module attributes {stable_mosaic.version = 11 : i64} {
  func.func @_matmul_stats_kernel(%arg0: i32, %arg1: memref<8x2304xbf16, #tpu.memory_space<vmem>>, %arg2: memref<2304x256xbf16, #tpu.memory_space<vmem>>, %arg3: memref<8x256xbf16, #tpu.memory_space<vmem>>, %arg4: memref<2x256xf32, #tpu.memory_space<vmem>>) attributes {dimension_semantics = [#tpu.dimension_semantics<arbitrary>], iteration_bounds = array<i64: 1>, scalar_prefetch = 0 : i64, scratch_operands = 0 : i64, tpu.core_type = #tpu.core_type<tc>, window_params = [{transform_indices = @transform_0, window_bounds = array<i64: 8, 2304>}, {pipeline_mode = #tpu.pipeline_mode<synchronous>, transform_indices = @transform_1, window_bounds = array<i64: 2304, 256>}, {transform_indices = @transform_2, window_bounds = array<i64: 8, 256>}, {pipeline_mode = #tpu.pipeline_mode<synchronous>, transform_indices = @transform_3, window_bounds = array<i64: 2, 256>}]} {
    %c0 = arith.constant 0 : index
    %c0_0 = arith.constant 0 : index
    %0 = vector.load %arg1[%c0, %c0_0] : memref<8x2304xbf16, #tpu.memory_space<vmem>>, vector<8x2304xbf16>
    %c0_1 = arith.constant 0 : index
    %c0_2 = arith.constant 0 : index
    %1 = vector.load %arg2[%c0_1, %c0_2] : memref<2304x256xbf16, #tpu.memory_space<vmem>>, vector<2304x256xbf16>
    %cst = arith.constant dense<0.000000e+00> : vector<8x256xf32>
    %2 = tpu.matmul %0, %1, %cst {dimension_numbers = #tpu.dot_dimension_numbers<[1], [0], [0], [1], [0, 0, 1, 1], [], []>} : vector<8x2304xbf16>, vector<2304x256xbf16>, vector<8x256xf32> -> vector<8x256xf32>
    %3 = arith.truncf %2 : vector<8x256xf32> to vector<8x256xbf16>
    %c0_3 = arith.constant 0 : index
    %c0_4 = arith.constant 0 : index
    %4 = vector.load %arg3[%c0_3, %c0_4] : memref<8x256xbf16, #tpu.memory_space<vmem>>, vector<8x256xbf16>
    tpu.vector_store %arg3[%c0_3, %c0_4], %3 {strides = array<i32>} : memref<8x256xbf16, #tpu.memory_space<vmem>>, vector<8x256xbf16>,
    %c0_i32 = arith.constant 0 : i32
    %5 = arith.cmpi eq, %arg0, %c0_i32 : i32
    %6 = arith.extui %5 : i1 to i32
    %c0_i32_5 = arith.constant 0 : i32
    %7 = arith.cmpi ne, %6, %c0_i32_5 : i32
    scf.if %7 {
      %cst_12 = arith.constant 0.000000e+00 : f32
      %17 = vector.broadcast %cst_12 : f32 to vector<2x256xf32>
      %c0_13 = arith.constant 0 : index
      %c0_14 = arith.constant 0 : index
      %18 = vector.load %arg4[%c0_13, %c0_14] : memref<2x256xf32, #tpu.memory_space<vmem>>, vector<2x256xf32>
      tpu.vector_store %arg4[%c0_13, %c0_14], %17 {strides = array<i32>} : memref<2x256xf32, #tpu.memory_space<vmem>>, vector<2x256xf32>,
    } else {
    }
    %cst_6 = arith.constant dense<0.000000e+00> : vector<256xf32>
    %8 = vector.multi_reduction <add>, %2, %cst_6 [0] : vector<8x256xf32> to vector<256xf32>
    %9 = vector.shape_cast %8 : vector<256xf32> to vector<1x256xf32>
    %10 = arith.mulf %2, %2 : vector<8x256xf32>
    %cst_7 = arith.constant dense<0.000000e+00> : vector<256xf32>
    %11 = vector.multi_reduction <add>, %10, %cst_7 [0] : vector<8x256xf32> to vector<256xf32>
    %12 = vector.shape_cast %11 : vector<256xf32> to vector<1x256xf32>
    %c0_8 = arith.constant 0 : index
    %c0_9 = arith.constant 0 : index
    %13 = vector.load %arg4[%c0_8, %c0_9] : memref<2x256xf32, #tpu.memory_space<vmem>>, vector<2x256xf32>
    %14 = tpu.concatenate %9, %12 in 0 : vector<1x256xf32>, vector<1x256xf32> -> vector<2x256xf32>
    %15 = arith.addf %13, %14 : vector<2x256xf32>
    %c0_10 = arith.constant 0 : index
    %c0_11 = arith.constant 0 : index
    %16 = vector.load %arg4[%c0_10, %c0_11] : memref<2x256xf32, #tpu.memory_space<vmem>>, vector<2x256xf32>
    tpu.vector_store %arg4[%c0_10, %c0_11], %15 {strides = array<i32>} : memref<2x256xf32, #tpu.memory_space<vmem>>, vector<2x256xf32>,
    return
  }
  func.func @transform_0(%arg0: i32) -> (i32, i32) {
    %c0_i32 = arith.constant 0 : i32
    %c0_i32_0 = arith.constant 0 : i32
    return %arg0, %c0_i32 : i32, i32
  }
  func.func @transform_1(%arg0: i32) -> (i32, i32) {
    %c0_i32 = arith.constant 0 : i32
    %c0_i32_0 = arith.constant 0 : i32
    %c0_i32_1 = arith.constant 0 : i32
    return %c0_i32, %c0_i32_0 : i32, i32
  }
  func.func @transform_2(%arg0: i32) -> (i32, i32) {
    %c0_i32 = arith.constant 0 : i32
    %c0_i32_0 = arith.constant 0 : i32
    return %arg0, %c0_i32 : i32, i32
  }
  func.func @transform_3(%arg0: i32) -> (i32, i32) {
    %c0_i32 = arith.constant 0 : i32
    %c0_i32_0 = arith.constant 0 : i32
    %c0_i32_1 = arith.constant 0 : i32
    return %c0_i32, %c0_i32_0 : i32, i32
  }
}

module attributes {stable_mosaic.version = 11 : i64} {
  func.func @_bn_add_relu_kernel(%arg0: i32, %arg1: memref<8x256xbf16, #tpu.memory_space<vmem>>, %arg2: memref<1x256xf32, #tpu.memory_space<vmem>>, %arg3: memref<1x256xf32, #tpu.memory_space<vmem>>, %arg4: memref<8x256xbf16, #tpu.memory_space<vmem>>, %arg5: memref<8x256xbf16, #tpu.memory_space<vmem>>) attributes {dimension_semantics = [#tpu.dimension_semantics<parallel>], iteration_bounds = array<i64: 1>, scalar_prefetch = 0 : i64, scratch_operands = 0 : i64, tpu.core_type = #tpu.core_type<tc>, window_params = [{transform_indices = @transform_0, window_bounds = array<i64: 8, 256>}, {pipeline_mode = #tpu.pipeline_mode<synchronous>, transform_indices = @transform_1, window_bounds = array<i64: 1, 256>}, {pipeline_mode = #tpu.pipeline_mode<synchronous>, transform_indices = @transform_2, window_bounds = array<i64: 1, 256>}, {transform_indices = @transform_3, window_bounds = array<i64: 8, 256>}, {transform_indices = @transform_4, window_bounds = array<i64: 8, 256>}]} {
    %c0 = arith.constant 0 : index
    %c0_0 = arith.constant 0 : index
    %0 = vector.load %arg1[%c0, %c0_0] : memref<8x256xbf16, #tpu.memory_space<vmem>>, vector<8x256xbf16>
    %1 = arith.extf %0 : vector<8x256xbf16> to vector<8x256xf32>
    %c0_1 = arith.constant 0 : index
    %c0_2 = arith.constant 0 : index
    %2 = vector.load %arg4[%c0_1, %c0_2] : memref<8x256xbf16, #tpu.memory_space<vmem>>, vector<8x256xbf16>
    %3 = arith.extf %2 : vector<8x256xbf16> to vector<8x256xf32>
    %c0_3 = arith.constant 0 : index
    %c0_4 = arith.constant 0 : index
    %4 = vector.load %arg2[%c0_3, %c0_4] : memref<1x256xf32, #tpu.memory_space<vmem>>, vector<1x256xf32>
    %5 = vector.broadcast %4 : vector<1x256xf32> to vector<8x256xf32>
    %6 = arith.mulf %1, %5 : vector<8x256xf32>
    %c0_5 = arith.constant 0 : index
    %c0_6 = arith.constant 0 : index
    %7 = vector.load %arg3[%c0_5, %c0_6] : memref<1x256xf32, #tpu.memory_space<vmem>>, vector<1x256xf32>
    %8 = vector.broadcast %7 : vector<1x256xf32> to vector<8x256xf32>
    %9 = arith.addf %6, %8 : vector<8x256xf32>
    %10 = arith.addf %9, %3 : vector<8x256xf32>
    %cst = arith.constant 0.000000e+00 : f32
    %11 = vector.broadcast %cst : f32 to vector<8x256xf32>
    %12 = arith.maximumf %10, %11 : vector<8x256xf32>
    %13 = arith.truncf %12 : vector<8x256xf32> to vector<8x256xbf16>
    %c0_7 = arith.constant 0 : index
    %c0_8 = arith.constant 0 : index
    %14 = vector.load %arg5[%c0_7, %c0_8] : memref<8x256xbf16, #tpu.memory_space<vmem>>, vector<8x256xbf16>
    tpu.vector_store %arg5[%c0_7, %c0_8], %13 {strides = array<i32>} : memref<8x256xbf16, #tpu.memory_space<vmem>>, vector<8x256xbf16>,
    return
  }
  func.func @transform_0(%arg0: i32) -> (i32, i32) {
    %c0_i32 = arith.constant 0 : i32
    %c0_i32_0 = arith.constant 0 : i32
    return %arg0, %c0_i32 : i32, i32
  }
  func.func @transform_1(%arg0: i32) -> (i32, i32) {
    %c0_i32 = arith.constant 0 : i32
    %c0_i32_0 = arith.constant 0 : i32
    %c0_i32_1 = arith.constant 0 : i32
    return %c0_i32, %c0_i32_0 : i32, i32
  }
  func.func @transform_2(%arg0: i32) -> (i32, i32) {
    %c0_i32 = arith.constant 0 : i32
    %c0_i32_0 = arith.constant 0 : i32
    %c0_i32_1 = arith.constant 0 : i32
    return %c0_i32, %c0_i32_0 : i32, i32
  }
  func.func @transform_3(%arg0: i32) -> (i32, i32) {
    %c0_i32 = arith.constant 0 : i32
    %c0_i32_0 = arith.constant 0 : i32
    return %arg0, %c0_i32 : i32, i32
  }
  func.func @transform_4(%arg0: i32) -> (i32, i32) {
    %c0_i32 = arith.constant 0 : i32
    %c0_i32_0 = arith.constant 0 : i32
    return %arg0, %c0_i32 : i32, i32
  }
}

</mosaic_0001>

<llo_original>
// kernel: backbone_forward.32
$region0: #{backbone_forward.32}
  #allocation0 [shape = 'u32[]', space=smem, size = 0x4, offset = 0x4, fixed_abs, tag = 'smem constant byte address 0x4 - core index']
  #allocation1 [shape = 'u32[144,128]{1,0:T(1,128)}', space=vmem, size = 0x12000, scoped, tag = 'internal scratch']
  %s0 = inlined_call_operand.vmem [shape: bf16[512,64], index: 0, kind: input, shape index: {}]
  %s1 = inlined_call_operand.vmem [shape: f32[1,64], index: 1, kind: input, shape index: {}]
  %s2 = inlined_call_operand.vmem [shape: f32[1,64], index: 2, kind: input, shape index: {}]
  %s3 = inlined_call_operand.vmem [shape: bf16[512,64], index: 3, kind: output, shape index: {}]
  %s4 = sld [smem:[#allocation0]]
  $region45: #{backbone_forward.32} parent=0
    _
  %s6 = ssub.s32 1, %s4
  %s7 = scalar_select 0, %s6, %s4
  loop: start=0, step=1, limit=6
  $region2: #{backbone_forward.32} parent=0 // loop_pre_header
    _
  $region3: #{backbone_forward.32} parent=0 // loop_header
    %s9 = sphi 0, %s13
    %p10 = scmp.ge.s32.totalorder %s9, 6
    %s19 = sphi 0, %s21
    %s22 = sphi 0, %s19
    %s23 = sphi 0, %s22
    %s39 = sphi 0, %s23
    %s43 = sphi 0, %s43
    %s45 = sphi 0, %s43
    %s46 = sphi 0, %s45
    %s60 = sphi 0, %s46
    %s64 = sphi 0, %s64
    %s66 = sphi 0, %s64
    %s67 = sphi 0, %s66
    %s81 = sphi 0, %s67
    %s87 = sphi 0, %s89
    %s90 = sphi 0, %s87
    %s91 = sphi 0, %s90
    %s107 = sphi 0, %s91
  $region4: #{backbone_forward.32} parent=0 // loop_header_branch
    %12 = sbr.rel (%p10) target = $region8
  $region5: #{backbone_forward.32} parent=0 // loop_body
    %s14 = ssub.s32 %s9, 1
    %s15 = ssub.s32 %s9, 2
    %s16 = sadd.s32 %s9, 1
    %s17 = ssub.s32 %s9, %s16
    %p18 = scmp.eq.s32.totalorder %s17, 0
    %s20 = sadd.s32 %s19, 1
    %s21 = scalar_select %p18, %s19, %s20
    %p24 = pneg %p18
    %p25 = scmp.eq.s32.totalorder %s9, 3
    %p26 = por %p24, %p25
    %p27 = scmp.ne.s32.totalorder %s19, %s22
    %p28 = scmp.eq.s32.totalorder %s9, 0
    %p29 = por %p27, %p28
    %p30 = scmp.ne.s32.totalorder %s19, %s22
    %p31 = scmp.eq.s32.totalorder %s14, 3
    %p32 = por %p30, %p31
    %p33 = scmp.ne.s32.totalorder %s22, %s23
    %p34 = scmp.eq.s32.totalorder %s14, 0
    %p35 = por %p33, %p34
    %p36 = scmp.ne.s32.totalorder %s22, %s23
    %p37 = scmp.eq.s32.totalorder %s15, 3
    %p38 = por %p36, %p37
    %p40 = scmp.ne.s32.totalorder %s23, %s39
    %p41 = scmp.eq.s32.totalorder %s15, 0
    %p42 = por %p40, %p41
    %s44 = sadd.s32 %s43, 1
    %p47 = scmp.eq.s32.totalorder %s9, 3
    %p48 = scmp.ne.s32.totalorder %s43, %s45
    %p49 = scmp.eq.s32.totalorder %s9, 0
    %p50 = por %p48, %p49
    %p51 = scmp.ne.s32.totalorder %s43, %s45
    %p52 = scmp.eq.s32.totalorder %s14, 3
    %p53 = por %p51, %p52
    %p54 = scmp.ne.s32.totalorder %s45, %s46
    %p55 = scmp.eq.s32.totalorder %s14, 0
    %p56 = por %p54, %p55
    %p57 = scmp.ne.s32.totalorder %s45, %s46
    %p58 = scmp.eq.s32.totalorder %s15, 3
    %p59 = por %p57, %p58
    %p61 = scmp.ne.s32.totalorder %s46, %s60
    %p62 = scmp.eq.s32.totalorder %s15, 0
    %p63 = por %p61, %p62
    %s65 = sadd.s32 %s64, 1
    %p68 = scmp.eq.s32.totalorder %s9, 3
    %p69 = scmp.ne.s32.totalorder %s64, %s66
    %p70 = scmp.eq.s32.totalorder %s9, 0
    %p71 = por %p69, %p70
    %p72 = scmp.ne.s32.totalorder %s64, %s66
    %p73 = scmp.eq.s32.totalorder %s14, 3
    %p74 = por %p72, %p73
    %p75 = scmp.ne.s32.totalorder %s66, %s67
    %p76 = scmp.eq.s32.totalorder %s14, 0
    %p77 = por %p75, %p76
    %p78 = scmp.ne.s32.totalorder %s66, %s67
    %p79 = scmp.eq.s32.totalorder %s15, 3
    %p80 = por %p78, %p79
    %p82 = scmp.ne.s32.totalorder %s67, %s81
    %p83 = scmp.eq.s32.totalorder %s15, 0
    %p84 = por %p82, %p83
    %s85 = ssub.s32 %s9, %s16
    %p86 = scmp.eq.s32.totalorder %s85, 0
    %s88 = sadd.s32 %s87, 1
    %s89 = scalar_select %p86, %s87, %s88
    %p92 = pneg %p86
    %p93 = scmp.eq.s32.totalorder %s9, 3
    %p94 = por %p92, %p93
    %p95 = scmp.ne.s32.totalorder %s87, %s90
    %p96 = scmp.eq.s32.totalorder %s9, 0
    %p97 = por %p95, %p96
    %p98 = scmp.ne.s32.totalorder %s87, %s90
    %p99 = scmp.eq.s32.totalorder %s14, 3
    %p100 = por %p98, %p99
    %p101 = scmp.ne.s32.totalorder %s90, %s91
    %p102 = scmp.eq.s32.totalorder %s14, 0
    %p103 = por %p101, %p102
    %p104 = scmp.ne.s32.totalorder %s90, %s91
    %p105 = scmp.eq.s32.totalorder %s15, 3
    %p106 = por %p104, %p105
    %p108 = scmp.ne.s32.totalorder %s91, %s107
    %p109 = scmp.eq.s32.totalorder %s15, 0
    %p110 = por %p108, %p109
    %p111 = scmp.le.s32.totalorder 1, %s9
    %p112 = scmp.lt.s32.totalorder %s9, 5
    %p113 = pnand %p111, %p112
    %p114 = pneg %p113
    // Predicated region
    $region9: #{backbone_forward.32} parent=5 // pred_check
      _
    $region10: #{backbone_forward.32} parent=5 // pred_check_branch
      %116 = sbr.rel (%p113) target = $region12
    $region11: #{backbone_forward.32} parent=5 // pred_region
      %s117 = ssub.s32 %s9, 1
      // Predicated region
      $region13: #{backbone_forward.32} parent=11 // pred_check
        %p118 = pneg %p56
      $region14: #{backbone_forward.32} parent=11 // pred_check_branch
        %120 = sbr.rel (%p118) target = $region16
      $region15: #{backbone_forward.32} parent=11 // pred_region
        _
      $region16: #{backbone_forward.32} parent=11 // pred_fallthru
        _
      // Predicated region
      $region17: #{backbone_forward.32} parent=11 // pred_check
        %p121 = pneg %p77
      $region18: #{backbone_forward.32} parent=11 // pred_check_branch
        %123 = sbr.rel (%p121) target = $region20
      $region19: #{backbone_forward.32} parent=11 // pred_region
        _
      $region20: #{backbone_forward.32} parent=11 // pred_fallthru
        _
    $region12: #{backbone_forward.32} parent=5 // pred_fallthru
      _
    %p124 = scmp.lt.s32.totalorder %s9, 4
    // Predicated region
    $region21: #{backbone_forward.32} parent=5 // pred_check
      %p125 = pneg %p124
    $region22: #{backbone_forward.32} parent=5 // pred_check_branch
      %127 = sbr.rel (%p125) target = $region24
    $region23: #{backbone_forward.32} parent=5 // pred_region
      // Predicated region
      $region25: #{backbone_forward.32} parent=23 // pred_check
        %p128 = pneg %p29
      $region26: #{backbone_forward.32} parent=23 // pred_check_branch
        %130 = sbr.rel (%p128) target = $region28
      $region27: #{backbone_forward.32} parent=23 // pred_region
        %s131 = smul.u32 16, %s9
        %p132 = scmp.lt.s32.totalorder %s131, 63
        %s133 = scalar_select %p132, %s131, 63
        %s134 = smul.addr %s133, 4
        %s135 = scalar_lea.vmem %s0, %s134
        %s136 = smul.u32 16, %s9
      $region28: #{backbone_forward.32} parent=23 // pred_fallthru
        _
    $region24: #{backbone_forward.32} parent=5 // pred_fallthru
      _
    %p137 = scmp.le.s32.totalorder 1, %s9
    %p138 = scmp.lt.s32.totalorder %s9, 5
    %p139 = pnand %p137, %p138
    %p140 = pneg %p139
    // Predicated region
    $region29: #{backbone_forward.32} parent=5 // pred_check
      _
    $region30: #{backbone_forward.32} parent=5 // pred_check_branch
      %142 = sbr.rel (%p139) target = $region32
    $region31: #{backbone_forward.32} parent=5 // pred_region
      %s143 = ssub.s32 %s9, 1
      %s144 = smul.u32 16, %s14
      %p145 = scmp.lt.s32.totalorder %s144, 63
      %s146 = scalar_select %p145, %s144, 63
      %s147 = smul.addr %s146, 4
      %s148 = scalar_lea.vmem %s0, %s147
      %p149 = pneg %p35
      %p150 = pneg %p32
      %p151 = pneg %p56
      %p152 = pneg %p53
      %p153 = pneg %p77
      %p154 = pneg %p74
      %p155 = pneg %p103
      %p156 = pneg %p100
      %s157 = smul.u32 16, %s14
      %p158 = scmp.lt.s32.totalorder %s157, 63
      %s159 = scalar_select %p158, %s157, 63
      %s160 = smul.addr %s159, 4
      %s161 = scalar_lea.vmem %s3, %s160
      %s162 = smul.u32 16, %s14
      %p163 = scmp.lt.s32.totalorder %s162, 63
      %s164 = scalar_select %p163, %s162, 63
      %s165 = smul.addr %s164, 4
      %s166 = scalar_lea.vmem %s0, %s165
      %s167 = smul.u32 16, %s14
      %s168 = smul.u32 16, %s14
      %p169 = scmp.lt.s32.totalorder %s168, 63
      %s170 = scalar_select %p169, %s168, 63
      %s171 = smul.addr %s170, 4
      %s172 = scalar_lea.vmem %s3, %s171
      %s173 = smul.u32 16, %s14
      %v174 = vld [vmem:[%s166] sm:$0xf]
      %v175 = vld [vmem:[%s166 + $0x4] sm:$0xf]
      %v176 = vld [vmem:[%s166 + $0x8] sm:$0xf]
      %v177 = vld [vmem:[%s166 + $0xc] sm:$0xf]
      %v178 = vld [vmem:[%s166 + $0x10] sm:$0xf]
      %v179 = vld [vmem:[%s166 + $0x14] sm:$0xf]
      %v180 = vld [vmem:[%s166 + $0x18] sm:$0xf]
      %v181 = vld [vmem:[%s166 + $0x1c] sm:$0xf]
      %v182 = vld [vmem:[%s166 + $0x20] sm:$0xf]
      %v183 = vld [vmem:[%s166 + $0x24] sm:$0xf]
      %v184 = vld [vmem:[%s166 + $0x28] sm:$0xf]
      %v185 = vld [vmem:[%s166 + $0x2c] sm:$0xf]
      %v186 = vld [vmem:[%s166 + $0x30] sm:$0xf]
      %v187 = vld [vmem:[%s166 + $0x34] sm:$0xf]
      %v188 = vld [vmem:[%s166 + $0x38] sm:$0xf]
      %v189 = vld [vmem:[%s166 + $0x3c] sm:$0xf]
      %v190 = vunpack.c.l.bf16 %v174
      %v191 = vunpack.c.l.bf16 %v175
      %v192 = vunpack.c.l.bf16 %v176
      %v193 = vunpack.c.l.bf16 %v177
      %v194 = vunpack.c.l.bf16 %v178
      %v195 = vunpack.c.l.bf16 %v179
      %v196 = vunpack.c.l.bf16 %v180
      %v197 = vunpack.c.l.bf16 %v181
      %v198 = vunpack.c.l.bf16 %v182
      %v199 = vunpack.c.l.bf16 %v183
      %v200 = vunpack.c.l.bf16 %v184
      %v201 = vunpack.c.l.bf16 %v185
      %v202 = vunpack.c.l.bf16 %v186
      %v203 = vunpack.c.l.bf16 %v187
      %v204 = vunpack.c.l.bf16 %v188
      %v205 = vunpack.c.l.bf16 %v189
      %v206 = vld [vmem:[%s1] sm:$0x1]
      %v208 = vlaneseq
      %v209 = vshrl.u32 %v208, 7
      %v210 = vsub.s32 0, %v209
      %v211 = vrot.slane %v206, %v210
      %v213 = vmul.f32 %v190, %v211
      %v214 = vmul.f32 %v191, %v211
      %v215 = vmul.f32 %v192, %v211
      %v216 = vmul.f32 %v193, %v211
      %v217 = vmul.f32 %v194, %v211
      %v218 = vmul.f32 %v195, %v211
      %v219 = vmul.f32 %v196, %v211
      %v220 = vmul.f32 %v197, %v211
      %v221 = vmul.f32 %v198, %v211
      %v222 = vmul.f32 %v199, %v211
      %v223 = vmul.f32 %v200, %v211
      %v224 = vmul.f32 %v201, %v211
      %v225 = vmul.f32 %v202, %v211
      %v226 = vmul.f32 %v203, %v211
      %v227 = vmul.f32 %v204, %v211
      %v228 = vmul.f32 %v205, %v211
      %v229 = vld [vmem:[%s2] sm:$0x1]
      %v231 = vlaneseq
      %v232 = vshrl.u32 %v231, 7
      %v233 = vsub.s32 0, %v232
      %v234 = vrot.slane %v229, %v233
      %v236 = vadd.f32 %v213, %v234
      %v237 = vadd.f32 %v214, %v234
      %v238 = vadd.f32 %v215, %v234
      %v239 = vadd.f32 %v216, %v234
      %v240 = vadd.f32 %v217, %v234
      %v241 = vadd.f32 %v218, %v234
      %v242 = vadd.f32 %v219, %v234
      %v243 = vadd.f32 %v220, %v234
      %v244 = vadd.f32 %v221, %v234
      %v245 = vadd.f32 %v222, %v234
      %v246 = vadd.f32 %v223, %v234
      %v247 = vadd.f32 %v224, %v234
      %v248 = vadd.f32 %v225, %v234
      %v249 = vadd.f32 %v226, %v234
      %v250 = vadd.f32 %v227, %v234
      %v251 = vadd.f32 %v228, %v234
      %v252 = vmax.f32 %v236, 0.0
      %v253 = vmax.f32 %v237, 0.0
      %v254 = vmax.f32 %v238, 0.0
      %v255 = vmax.f32 %v239, 0.0
      %v256 = vmax.f32 %v240, 0.0
      %v257 = vmax.f32 %v241, 0.0
      %v258 = vmax.f32 %v242, 0.0
      %v259 = vmax.f32 %v243, 0.0
      %v260 = vmax.f32 %v244, 0.0
      %v261 = vmax.f32 %v245, 0.0
      %v262 = vmax.f32 %v246, 0.0
      %v263 = vmax.f32 %v247, 0.0
      %v264 = vmax.f32 %v248, 0.0
      %v265 = vmax.f32 %v249, 0.0
      %v266 = vmax.f32 %v250, 0.0
      %v267 = vmax.f32 %v251, 0.0
      %v268 = vpack.c.bf16 %v253, %v252
      %v269 = vpack.c.bf16 %v255, %v254
      %v270 = vpack.c.bf16 %v257, %v256
      %v271 = vpack.c.bf16 %v259, %v258
      %v272 = vpack.c.bf16 %v261, %v260
      %v273 = vpack.c.bf16 %v263, %v262
      %v274 = vpack.c.bf16 %v265, %v264
      %v275 = vpack.c.bf16 %v267, %v266
      %v284 = vunpack.c.l.b16 %v268
      %v285 = vunpack.c.h.b16 %v268
      %v286 = vunpack.c.l.b16 %v269
      %v287 = vunpack.c.h.b16 %v269
      %v288 = vunpack.c.l.b16 %v270
      %v289 = vunpack.c.h.b16 %v270
      %v290 = vunpack.c.l.b16 %v271
      %v291 = vunpack.c.h.b16 %v271
      %v292 = vunpack.c.l.b16 %v272
      %v293 = vunpack.c.h.b16 %v272
      %v294 = vunpack.c.l.b16 %v273
      %v295 = vunpack.c.h.b16 %v273
      %v296 = vunpack.c.l.b16 %v274
      %v297 = vunpack.c.h.b16 %v274
      %v298 = vunpack.c.l.b16 %v275
      %v299 = vunpack.c.h.b16 %v275
      %v300 = vpack.c.b16 %v284, %v284
      %v301 = vpack.c.b16 %v285, %v285
      %v302 = vpack.c.b16 %v286, %v286
      %v303 = vpack.c.b16 %v287, %v287
      %v304 = vpack.c.b16 %v288, %v288
      %v305 = vpack.c.b16 %v289, %v289
      %v306 = vpack.c.b16 %v290, %v290
      %v307 = vpack.c.b16 %v291, %v291
      %v308 = vpack.c.b16 %v292, %v292
      %v309 = vpack.c.b16 %v293, %v293
      %v310 = vpack.c.b16 %v294, %v294
      %v311 = vpack.c.b16 %v295, %v295
      %v312 = vpack.c.b16 %v296, %v296
      %v313 = vpack.c.b16 %v297, %v297
      %v314 = vpack.c.b16 %v298, %v298
      %v315 = vpack.c.b16 %v299, %v299
      %vm332 = vcmask 519168
      %333 = vst.msk [vmem:[%s172] sm:$0xf] %vm332, %v300
      %334 = vst.msk [vmem:[%s172 + $0x4] sm:$0xf] %vm332, %v301
      %335 = vst.msk [vmem:[%s172 + $0x8] sm:$0xf] %vm332, %v302
      %336 = vst.msk [vmem:[%s172 + $0xc] sm:$0xf] %vm332, %v303
      %337 = vst.msk [vmem:[%s172 + $0x10] sm:$0xf] %vm332, %v304
      %338 = vst.msk [vmem:[%s172 + $0x14] sm:$0xf] %vm332, %v305
      %339 = vst.msk [vmem:[%s172 + $0x18] sm:$0xf] %vm332, %v306
      %340 = vst.msk [vmem:[%s172 + $0x1c] sm:$0xf] %vm332, %v307
      %341 = vst.msk [vmem:[%s172 + $0x20] sm:$0xf] %vm332, %v308
      %342 = vst.msk [vmem:[%s172 + $0x24] sm:$0xf] %vm332, %v309
      %343 = vst.msk [vmem:[%s172 + $0x28] sm:$0xf] %vm332, %v310
      %344 = vst.msk [vmem:[%s172 + $0x2c] sm:$0xf] %vm332, %v311
      %345 = vst.msk [vmem:[%s172 + $0x30] sm:$0xf] %vm332, %v312
      %346 = vst.msk [vmem:[%s172 + $0x34] sm:$0xf] %vm332, %v313
      %347 = vst.msk [vmem:[%s172 + $0x38] sm:$0xf] %vm332, %v314
      %348 = vst.msk [vmem:[%s172 + $0x3c] sm:$0xf] %vm332, %v315
      %s349 = smul.u32 16, %s14
      %p350 = scmp.lt.s32.totalorder %s349, 63
      %s351 = scalar_select %p350, %s349, 63
      %s352 = smul.addr %s351, 4
      %s353 = scalar_lea.vmem %s3, %s352
      // Predicated region
      $region33: #{backbone_forward.32} parent=31 // pred_check
        %p354 = pneg %p100
      $region34: #{backbone_forward.32} parent=31 // pred_check_branch
        %356 = sbr.rel (%p354) target = $region36
      $region35: #{backbone_forward.32} parent=31 // pred_region
        %s357 = smul.u32 16, %s14
      $region36: #{backbone_forward.32} parent=31 // pred_fallthru
        _
    $region32: #{backbone_forward.32} parent=5 // pred_fallthru
      _
    %p358 = scmp.le.s32.totalorder 2, %s9
    // Predicated region
    $region37: #{backbone_forward.32} parent=5 // pred_check
      %p359 = pneg %p358
    $region38: #{backbone_forward.32} parent=5 // pred_check_branch
      %361 = sbr.rel (%p359) target = $region40
    $region39: #{backbone_forward.32} parent=5 // pred_region
      %s362 = ssub.s32 %s9, 2
      // Predicated region
      $region41: #{backbone_forward.32} parent=39 // pred_check
        %p363 = pneg %p106
      $region42: #{backbone_forward.32} parent=39 // pred_check_branch
        %365 = sbr.rel (%p363) target = $region44
      $region43: #{backbone_forward.32} parent=39 // pred_region
        %s366 = smul.u32 16, %s15
        %p367 = scmp.lt.s32.totalorder %s366, 63
        %s368 = scalar_select %p367, %s366, 63
        %s369 = smul.addr %s368, 4
        %s370 = scalar_lea.vmem %s3, %s369
      $region44: #{backbone_forward.32} parent=39 // pred_fallthru
        _
    $region40: #{backbone_forward.32} parent=5 // pred_fallthru
      _
  $region6: #{backbone_forward.32} parent=0 // loop_footer
    %s13 = sadd.s32 1, %s9
  $region7: #{backbone_forward.32} parent=0 // loop_footer_branch
    %8 = sbr.rel target = $region3
  $region8: #{backbone_forward.32} parent=0 // loop_exit
    _

// kernel: backbone_forward.31
$region0: #{backbone_forward.31}
  #allocation0 [shape = 'u32[]', space=smem, size = 0x4, offset = 0x4, fixed_abs, tag = 'smem constant byte address 0x4 - core index']
  #allocation1 [shape = 'u32[144,128]{1,0:T(1,128)}', space=vmem, size = 0x12000, scoped, tag = 'internal scratch']
  %s0 = inlined_call_operand.vmem [shape: bf16[512,256], index: 0, kind: input, shape index: {}]
  %s1 = inlined_call_operand.vmem [shape: bf16[256,64], index: 1, kind: input, shape index: {}]
  %s2 = inlined_call_operand.vmem [shape: bf16[512,64], index: 2, kind: output, shape index: {0}]
  %s3 = inlined_call_operand.vmem [shape: f32[2,64], index: 3, kind: output, shape index: {1}]
  %4 = xla_tuple %s2, %s3
  %s5 = sld [smem:[#allocation0]]
  $region53: #{backbone_forward.31} parent=0
    _
  %s7 = ssub.s32 1, %s5
  %s8 = scalar_select 0, %s7, %s5
  loop: start=0, step=1, limit=6
  $region2: #{backbone_forward.31} parent=0 // loop_pre_header
    _
  $region3: #{backbone_forward.31} parent=0 // loop_header
    %s10 = sphi 0, %s14
    %p11 = scmp.ge.s32.totalorder %s10, 6
    %s20 = sphi 0, %s22
    %s23 = sphi 0, %s20
    %s24 = sphi 0, %s23
    %s40 = sphi 0, %s24
    %s44 = sphi 0, %s44
    %s46 = sphi 0, %s44
    %s47 = sphi 0, %s46
    %s61 = sphi 0, %s47
    %s67 = sphi 0, %s69
    %s70 = sphi 0, %s67
    %s71 = sphi 0, %s70
    %s87 = sphi 0, %s71
    %s91 = sphi 0, %s91
    %s93 = sphi 0, %s91
    %s94 = sphi 0, %s93
    %s108 = sphi 0, %s94
  $region4: #{backbone_forward.31} parent=0 // loop_header_branch
    %13 = sbr.rel (%p11) target = $region8
  $region5: #{backbone_forward.31} parent=0 // loop_body
    %s15 = ssub.s32 %s10, 1
    %s16 = ssub.s32 %s10, 2
    %s17 = sadd.s32 %s10, 1
    %s18 = ssub.s32 %s10, %s17
    %p19 = scmp.eq.s32.totalorder %s18, 0
    %s21 = sadd.s32 %s20, 1
    %s22 = scalar_select %p19, %s20, %s21
    %p25 = pneg %p19
    %p26 = scmp.eq.s32.totalorder %s10, 3
    %p27 = por %p25, %p26
    %p28 = scmp.ne.s32.totalorder %s20, %s23
    %p29 = scmp.eq.s32.totalorder %s10, 0
    %p30 = por %p28, %p29
    %p31 = scmp.ne.s32.totalorder %s20, %s23
    %p32 = scmp.eq.s32.totalorder %s15, 3
    %p33 = por %p31, %p32
    %p34 = scmp.ne.s32.totalorder %s23, %s24
    %p35 = scmp.eq.s32.totalorder %s15, 0
    %p36 = por %p34, %p35
    %p37 = scmp.ne.s32.totalorder %s23, %s24
    %p38 = scmp.eq.s32.totalorder %s16, 3
    %p39 = por %p37, %p38
    %p41 = scmp.ne.s32.totalorder %s24, %s40
    %p42 = scmp.eq.s32.totalorder %s16, 0
    %p43 = por %p41, %p42
    %s45 = sadd.s32 %s44, 1
    %p48 = scmp.eq.s32.totalorder %s10, 3
    %p49 = scmp.ne.s32.totalorder %s44, %s46
    %p50 = scmp.eq.s32.totalorder %s10, 0
    %p51 = por %p49, %p50
    %p52 = scmp.ne.s32.totalorder %s44, %s46
    %p53 = scmp.eq.s32.totalorder %s15, 3
    %p54 = por %p52, %p53
    %p55 = scmp.ne.s32.totalorder %s46, %s47
    %p56 = scmp.eq.s32.totalorder %s15, 0
    %p57 = por %p55, %p56
    %p58 = scmp.ne.s32.totalorder %s46, %s47
    %p59 = scmp.eq.s32.totalorder %s16, 3
    %p60 = por %p58, %p59
    %p62 = scmp.ne.s32.totalorder %s47, %s61
    %p63 = scmp.eq.s32.totalorder %s16, 0
    %p64 = por %p62, %p63
    %s65 = ssub.s32 %s10, %s17
    %p66 = scmp.eq.s32.totalorder %s65, 0
    %s68 = sadd.s32 %s67, 1
    %s69 = scalar_select %p66, %s67, %s68
    %p72 = pneg %p66
    %p73 = scmp.eq.s32.totalorder %s10, 3
    %p74 = por %p72, %p73
    %p75 = scmp.ne.s32.totalorder %s67, %s70
    %p76 = scmp.eq.s32.totalorder %s10, 0
    %p77 = por %p75, %p76
    %p78 = scmp.ne.s32.totalorder %s67, %s70
    %p79 = scmp.eq.s32.totalorder %s15, 3
    %p80 = por %p78, %p79
    %p81 = scmp.ne.s32.totalorder %s70, %s71
    %p82 = scmp.eq.s32.totalorder %s15, 0
    %p83 = por %p81, %p82
    %p84 = scmp.ne.s32.totalorder %s70, %s71
    %p85 = scmp.eq.s32.totalorder %s16, 3
    %p86 = por %p84, %p85
    %p88 = scmp.ne.s32.totalorder %s71, %s87
    %p89 = scmp.eq.s32.totalorder %s16, 0
    %p90 = por %p88, %p89
    %s92 = sadd.s32 %s91, 1
    %p95 = scmp.eq.s32.totalorder %s10, 3
    %p96 = scmp.ne.s32.totalorder %s91, %s93
    %p97 = scmp.eq.s32.totalorder %s10, 0
    %p98 = por %p96, %p97
    %p99 = scmp.ne.s32.totalorder %s91, %s93
    %p100 = scmp.eq.s32.totalorder %s15, 3
    %p101 = por %p99, %p100
    %p102 = scmp.ne.s32.totalorder %s93, %s94
    %p103 = scmp.eq.s32.totalorder %s15, 0
    %p104 = por %p102, %p103
    %p105 = scmp.ne.s32.totalorder %s93, %s94
    %p106 = scmp.eq.s32.totalorder %s16, 3
    %p107 = por %p105, %p106
    %p109 = scmp.ne.s32.totalorder %s94, %s108
    %p110 = scmp.eq.s32.totalorder %s16, 0
    %p111 = por %p109, %p110
    %p112 = scmp.le.s32.totalorder 1, %s10
    %p113 = scmp.lt.s32.totalorder %s10, 5
    %p114 = pnand %p112, %p113
    %p115 = pneg %p114
    // Predicated region
    $region9: #{backbone_forward.31} parent=5 // pred_check
      _
    $region10: #{backbone_forward.31} parent=5 // pred_check_branch
      %117 = sbr.rel (%p114) target = $region12
    $region11: #{backbone_forward.31} parent=5 // pred_region
      %s118 = ssub.s32 %s10, 1
      // Predicated region
      $region13: #{backbone_forward.31} parent=11 // pred_check
        %p119 = pneg %p57
      $region14: #{backbone_forward.31} parent=11 // pred_check_branch
        %121 = sbr.rel (%p119) target = $region16
      $region15: #{backbone_forward.31} parent=11 // pred_region
        _
      $region16: #{backbone_forward.31} parent=11 // pred_fallthru
        _
    $region12: #{backbone_forward.31} parent=5 // pred_fallthru
      _
    %p122 = scmp.lt.s32.totalorder %s10, 4
    // Predicated region
    $region17: #{backbone_forward.31} parent=5 // pred_check
      %p123 = pneg %p122
    $region18: #{backbone_forward.31} parent=5 // pred_check_branch
      %125 = sbr.rel (%p123) target = $region20
    $region19: #{backbone_forward.31} parent=5 // pred_region
      // Predicated region
      $region21: #{backbone_forward.31} parent=19 // pred_check
        %p126 = pneg %p30
      $region22: #{backbone_forward.31} parent=19 // pred_check_branch
        %128 = sbr.rel (%p126) target = $region24
      $region23: #{backbone_forward.31} parent=19 // pred_region
        %s129 = smul.u32 16, %s10
        %p130 = scmp.lt.s32.totalorder %s129, 63
        %s131 = scalar_select %p130, %s129, 63
        %s132 = smul.addr %s131, 2
        %s133 = smul.addr %s132, 4
        %s134 = scalar_lea.vmem %s0, %s133
        %s135 = smul.u32 16, %s10
      $region24: #{backbone_forward.31} parent=19 // pred_fallthru
        _
    $region20: #{backbone_forward.31} parent=5 // pred_fallthru
      _
    %p136 = scmp.le.s32.totalorder 1, %s10
    %p137 = scmp.lt.s32.totalorder %s10, 5
    %p138 = pnand %p136, %p137
    %p139 = pneg %p138
    // Predicated region
    $region25: #{backbone_forward.31} parent=5 // pred_check
      _
    $region26: #{backbone_forward.31} parent=5 // pred_check_branch
      %141 = sbr.rel (%p138) target = $region28
    $region27: #{backbone_forward.31} parent=5 // pred_region
      %s142 = ssub.s32 %s10, 1
      %s143 = smul.u32 16, %s15
      %p144 = scmp.lt.s32.totalorder %s143, 63
      %s145 = scalar_select %p144, %s143, 63
      %s146 = smul.addr %s145, 2
      %s147 = smul.addr %s146, 4
      %s148 = scalar_lea.vmem %s0, %s147
      %p149 = pneg %p36
      %p150 = pneg %p33
      %p151 = pneg %p57
      %p152 = pneg %p54
      %p153 = pneg %p83
      %p154 = pneg %p80
      %s155 = smul.u32 16, %s15
      %p156 = scmp.lt.s32.totalorder %s155, 63
      %s157 = scalar_select %p156, %s155, 63
      %s158 = smul.addr %s157, 4
      %s159 = scalar_lea.vmem %s2, %s158
      %p160 = pneg %p104
      %p161 = pneg %p101
      %s162 = smul.u32 16, %s15
      %p163 = scmp.lt.s32.totalorder %s162, 63
      %s164 = scalar_select %p163, %s162, 63
      %s165 = smul.addr %s164, 2
      %s166 = smul.addr %s165, 4
      %s167 = scalar_lea.vmem %s0, %s166
      %s168 = smul.u32 16, %s15
      %s169 = smul.u32 16, %s15
      %p170 = scmp.lt.s32.totalorder %s169, 63
      %s171 = scalar_select %p170, %s169, 63
      %s172 = smul.addr %s171, 4
      %s173 = scalar_lea.vmem %s2, %s172
      %s174 = smul.u32 16, %s15
      %v176 = vld [vmem:[%s167] sm:$0xff]
      %v177 = vld [vmem:[%s167 + $0x8] sm:$0xff]
      %v178 = vld [vmem:[%s167 + $0x10] sm:$0xff]
      %v179 = vld [vmem:[%s167 + $0x18] sm:$0xff]
      %v180 = vld [vmem:[%s167 + $0x20] sm:$0xff]
      %v181 = vld [vmem:[%s167 + $0x28] sm:$0xff]
      %v182 = vld [vmem:[%s167 + $0x30] sm:$0xff]
      %v183 = vld [vmem:[%s167 + $0x38] sm:$0xff]
      %v184 = vld [vmem:[%s167 + $0x40] sm:$0xff]
      %v185 = vld [vmem:[%s167 + $0x48] sm:$0xff]
      %v186 = vld [vmem:[%s167 + $0x50] sm:$0xff]
      %v187 = vld [vmem:[%s167 + $0x58] sm:$0xff]
      %v188 = vld [vmem:[%s167 + $0x60] sm:$0xff]
      %v189 = vld [vmem:[%s167 + $0x68] sm:$0xff]
      %v190 = vld [vmem:[%s167 + $0x70] sm:$0xff]
      %v191 = vld [vmem:[%s167 + $0x78] sm:$0xff]
      %v192 = vld [vmem:[%s1] sm:$0xf]
      %v193 = vld [vmem:[%s1 + $0x4] sm:$0xf]
      %v194 = vld [vmem:[%s1 + $0x8] sm:$0xf]
      %v195 = vld [vmem:[%s1 + $0xc] sm:$0xf]
      %v196 = vld [vmem:[%s1 + $0x10] sm:$0xf]
      %v197 = vld [vmem:[%s1 + $0x14] sm:$0xf]
      %v198 = vld [vmem:[%s1 + $0x18] sm:$0xf]
      %v199 = vld [vmem:[%s1 + $0x1c] sm:$0xf]
      %v200 = vld [vmem:[%s1 + $0x20] sm:$0xf]
      %v201 = vld [vmem:[%s1 + $0x24] sm:$0xf]
      %v202 = vld [vmem:[%s1 + $0x28] sm:$0xf]
      %v203 = vld [vmem:[%s1 + $0x2c] sm:$0xf]
      %v204 = vld [vmem:[%s1 + $0x30] sm:$0xf]
      %v205 = vld [vmem:[%s1 + $0x34] sm:$0xf]
      %v206 = vld [vmem:[%s1 + $0x38] sm:$0xf]
      %v207 = vld [vmem:[%s1 + $0x3c] sm:$0xf]
      %v208 = vld [vmem:[%s1 + $0x40] sm:$0xf]
      %v209 = vld [vmem:[%s1 + $0x44] sm:$0xf]
      %v210 = vld [vmem:[%s1 + $0x48] sm:$0xf]
      %v211 = vld [vmem:[%s1 + $0x4c] sm:$0xf]
      %v212 = vld [vmem:[%s1 + $0x50] sm:$0xf]
      %v213 = vld [vmem:[%s1 + $0x54] sm:$0xf]
      %v214 = vld [vmem:[%s1 + $0x58] sm:$0xf]
      %v215 = vld [vmem:[%s1 + $0x5c] sm:$0xf]
      %v216 = vld [vmem:[%s1 + $0x60] sm:$0xf]
      %v217 = vld [vmem:[%s1 + $0x64] sm:$0xf]
      %v218 = vld [vmem:[%s1 + $0x68] sm:$0xf]
      %v219 = vld [vmem:[%s1 + $0x6c] sm:$0xf]
      %v220 = vld [vmem:[%s1 + $0x70] sm:$0xf]
      %v221 = vld [vmem:[%s1 + $0x74] sm:$0xf]
      %v222 = vld [vmem:[%s1 + $0x78] sm:$0xf]
      %v223 = vld [vmem:[%s1 + $0x7c] sm:$0xf]
      %v240 = vunpack.c.l.b16 %v176
      %v241 = vunpack.c.h.b16 %v176
      %v242 = vunpack.c.l.b16 %v177
      %v243 = vunpack.c.h.b16 %v177
      %v244 = vunpack.c.l.b16 %v178
      %v245 = vunpack.c.h.b16 %v178
      %v246 = vunpack.c.l.b16 %v179
      %v247 = vunpack.c.h.b16 %v179
      %v248 = vunpack.c.l.b16 %v180
      %v249 = vunpack.c.h.b16 %v180
      %v250 = vunpack.c.l.b16 %v181
      %v251 = vunpack.c.h.b16 %v181
      %v252 = vunpack.c.l.b16 %v182
      %v253 = vunpack.c.h.b16 %v182
      %v254 = vunpack.c.l.b16 %v183
      %v255 = vunpack.c.h.b16 %v183
      %v256 = vunpack.c.l.b16 %v184
      %v257 = vunpack.c.h.b16 %v184
      %v258 = vunpack.c.l.b16 %v185
      %v259 = vunpack.c.h.b16 %v185
      %v260 = vunpack.c.l.b16 %v186
      %v261 = vunpack.c.h.b16 %v186
      %v262 = vunpack.c.l.b16 %v187
      %v263 = vunpack.c.h.b16 %v187
      %v264 = vunpack.c.l.b16 %v188
      %v265 = vunpack.c.h.b16 %v188
      %v266 = vunpack.c.l.b16 %v189
      %v267 = vunpack.c.h.b16 %v189
      %v268 = vunpack.c.l.b16 %v190
      %v269 = vunpack.c.h.b16 %v190
      %v270 = vunpack.c.l.b16 %v191
      %v271 = vunpack.c.h.b16 %v191
      %v272 = vpack.c.b16 %v242, %v240
      %v273 = vpack.c.b16 %v243, %v241
      %v274 = vpack.c.b16 %v246, %v244
      %v275 = vpack.c.b16 %v247, %v245
      %v276 = vpack.c.b16 %v250, %v248
      %v277 = vpack.c.b16 %v251, %v249
      %v278 = vpack.c.b16 %v254, %v252
      %v279 = vpack.c.b16 %v255, %v253
      %v280 = vpack.c.b16 %v258, %v256
      %v281 = vpack.c.b16 %v259, %v257
      %v282 = vpack.c.b16 %v262, %v260
      %v283 = vpack.c.b16 %v263, %v261
      %v284 = vpack.c.b16 %v266, %v264
      %v285 = vpack.c.b16 %v267, %v265
      %v286 = vpack.c.b16 %v270, %v268
      %v287 = vpack.c.b16 %v271, %v269
      %v336 = vunpack.c.l.b16 %v192
      %v337 = vunpack.c.l.b16 %v193
      %v338 = vunpack.c.l.b16 %v194
      %v339 = vunpack.c.l.b16 %v195
      %v340 = vunpack.c.l.b16 %v196
      %v341 = vunpack.c.l.b16 %v197
      %v342 = vunpack.c.l.b16 %v198
      %v343 = vunpack.c.l.b16 %v199
      %v344 = vunpack.c.l.b16 %v200
      %v345 = vunpack.c.l.b16 %v201
      %v346 = vunpack.c.l.b16 %v202
      %v347 = vunpack.c.l.b16 %v203
      %v348 = vunpack.c.l.b16 %v204
      %v349 = vunpack.c.l.b16 %v205
      %v350 = vunpack.c.l.b16 %v206
      %v351 = vunpack.c.l.b16 %v207
      %v352 = vunpack.c.l.b16 %v208
      %v353 = vunpack.c.l.b16 %v209
      %v354 = vunpack.c.l.b16 %v210
      %v355 = vunpack.c.l.b16 %v211
      %v356 = vunpack.c.l.b16 %v212
      %v357 = vunpack.c.l.b16 %v213
      %v358 = vunpack.c.l.b16 %v214
      %v359 = vunpack.c.l.b16 %v215
      %v360 = vunpack.c.l.b16 %v216
      %v361 = vunpack.c.l.b16 %v217
      %v362 = vunpack.c.l.b16 %v218
      %v363 = vunpack.c.l.b16 %v219
      %v364 = vunpack.c.l.b16 %v220
      %v365 = vunpack.c.l.b16 %v221
      %v366 = vunpack.c.l.b16 %v222
      %v367 = vunpack.c.l.b16 %v223
      %v368 = vpack.c.b16 %v337, %v336
      %v369 = vpack.c.b16 %v339, %v338
      %v370 = vpack.c.b16 %v341, %v340
      %v371 = vpack.c.b16 %v343, %v342
      %v372 = vpack.c.b16 %v345, %v344
      %v373 = vpack.c.b16 %v347, %v346
      %v374 = vpack.c.b16 %v349, %v348
      %v375 = vpack.c.b16 %v351, %v350
      %v376 = vpack.c.b16 %v353, %v352
      %v377 = vpack.c.b16 %v355, %v354
      %v378 = vpack.c.b16 %v357, %v356
      %v379 = vpack.c.b16 %v359, %v358
      %v380 = vpack.c.b16 %v361, %v360
      %v381 = vpack.c.b16 %v363, %v362
      %v382 = vpack.c.b16 %v365, %v364
      %v383 = vpack.c.b16 %v367, %v366
      %400 = vmatprep.subr.bf16.mxu0 0
      %401 = vmatpush1.bf16.msra.mxu0 %v375
      %402 = vmatprep.subr.bf16.mxu0 0
      %403 = vmatpush1.bf16.msra.mxu0 %v374
      %404 = vmatprep.subr.bf16.mxu0 0
      %405 = vmatpush1.bf16.msra.mxu0 %v373
      %406 = vmatprep.subr.bf16.mxu0 0
      %407 = vmatpush1.bf16.msra.mxu0 %v372
      %408 = vmatprep.subr.bf16.mxu0 0
      %409 = vmatpush1.bf16.msra.mxu0 %v371
      %410 = vmatprep.subr.bf16.mxu0 0
      %411 = vmatpush1.bf16.msra.mxu0 %v370
      %412 = vmatprep.subr.bf16.mxu0 0
      %413 = vmatpush1.bf16.msra.mxu0 %v369
      %414 = vmatprep.subr.bf16.mxu0 0
      %415 = vmatpush1.bf16.msra.mxu0 %v368
      %416 = vmatprep.subr.bf16.mxu0 0
      %417 = vmatpush2.bf16.msra.mxu0 %v383
      %418 = vmatprep.subr.bf16.mxu0 0
      %419 = vmatpush2.bf16.msra.mxu0 %v382
      %420 = vmatprep.subr.bf16.mxu0 0
      %421 = vmatpush2.bf16.msra.mxu0 %v381
      %422 = vmatprep.subr.bf16.mxu0 0
      %423 = vmatpush2.bf16.msra.mxu0 %v380
      %424 = vmatprep.subr.bf16.mxu0 0
      %425 = vmatpush2.bf16.msra.mxu0 %v379
      %426 = vmatprep.subr.bf16.mxu0 0
      %427 = vmatpush2.bf16.msra.mxu0 %v378
      %428 = vmatprep.subr.bf16.mxu0 0
      %429 = vmatpush2.bf16.msra.mxu0 %v377
      %430 = vmatprep.subr.bf16.mxu0 0
      %431 = vmatpush2.bf16.msra.mxu0 %v376
      %432 = vmatprep.mubr.bf16.mxu0 %v273
      %433 = vmatmul.mubr.bf16.gmra.mxu0 %v272
      %v434 = vpop.f32.mrf.mxu0
      %v435 = vadd.f32 0.0, %v434
      %v436 = vpop.f32.mrf.mxu0
      %v437 = vpop.f32.mrf.mxu0
      %v438 = vadd.f32 0.0, %v437
      %v439 = vpop.f32.mrf.mxu0
      %440 = vmatprep.mubr.bf16.mxu0 %v275
      %441 = vmatmul.mubr.bf16.gmra.mxu0 %v274
      %v442 = vpop.f32.mrf.mxu0
      %v443 = vadd.f32 0.0, %v442
      %v444 = vpop.f32.mrf.mxu0
      %v445 = vpop.f32.mrf.mxu0
      %v446 = vadd.f32 0.0, %v445
      %v447 = vpop.f32.mrf.mxu0
      %448 = vmatprep.mubr.bf16.mxu0 %v277
      %449 = vmatmul.mubr.bf16.gmra.mxu0 %v276
      %v450 = vpop.f32.mrf.mxu0
      %v451 = vadd.f32 0.0, %v450
      %v452 = vpop.f32.mrf.mxu0
      %v453 = vpop.f32.mrf.mxu0
      %v454 = vadd.f32 0.0, %v453
      %v455 = vpop.f32.mrf.mxu0
      %456 = vmatprep.mubr.bf16.mxu0 %v279
      %457 = vmatmul.mubr.bf16.gmra.mxu0 %v278
      %v458 = vpop.f32.mrf.mxu0
      %v459 = vadd.f32 0.0, %v458
      %v460 = vpop.f32.mrf.mxu0
      %v461 = vpop.f32.mrf.mxu0
      %v462 = vadd.f32 0.0, %v461
      %v463 = vpop.f32.mrf.mxu0
      %464 = vmatprep.mubr.bf16.mxu0 %v281
      %465 = vmatmul.mubr.bf16.gmra.mxu0 %v280
      %v466 = vpop.f32.mrf.mxu0
      %v467 = vadd.f32 0.0, %v466
      %v468 = vpop.f32.mrf.mxu0
      %v469 = vpop.f32.mrf.mxu0
      %v470 = vadd.f32 0.0, %v469
      %v471 = vpop.f32.mrf.mxu0
      %472 = vmatprep.mubr.bf16.mxu0 %v283
      %473 = vmatmul.mubr.bf16.gmra.mxu0 %v282
      %v474 = vpop.f32.mrf.mxu0
      %v475 = vadd.f32 0.0, %v474
      %v476 = vpop.f32.mrf.mxu0
      %v477 = vpop.f32.mrf.mxu0
      %v478 = vadd.f32 0.0, %v477
      %v479 = vpop.f32.mrf.mxu0
      %480 = vmatprep.mubr.bf16.mxu0 %v285
      %481 = vmatmul.mubr.bf16.gmra.mxu0 %v284
      %v482 = vpop.f32.mrf.mxu0
      %v483 = vadd.f32 0.0, %v482
      %v484 = vpop.f32.mrf.mxu0
      %v485 = vpop.f32.mrf.mxu0
      %v486 = vadd.f32 0.0, %v485
      %v487 = vpop.f32.mrf.mxu0
      %488 = vmatprep.mubr.bf16.mxu0 %v287
      %489 = vmatmul.mubr.bf16.gmra.mxu0 %v286
      %v490 = vpop.f32.mrf.mxu0
      %v491 = vadd.f32 0.0, %v490
      %v492 = vpop.f32.mrf.mxu0
      %v493 = vpop.f32.mrf.mxu0
      %v494 = vadd.f32 0.0, %v493
      %v495 = vpop.f32.mrf.mxu0
      %496 = vdwg.mxu0
      %v497 = vpack.c.bf16 %v438, %v435
      %v498 = vpack.c.bf16 %v446, %v443
      %v499 = vpack.c.bf16 %v454, %v451
      %v500 = vpack.c.bf16 %v462, %v459
      %v501 = vpack.c.bf16 %v470, %v467
      %v502 = vpack.c.bf16 %v478, %v475
      %v503 = vpack.c.bf16 %v486, %v483
      %v504 = vpack.c.bf16 %v494, %v491
      %v513 = vunpack.c.l.b16 %v497
      %v514 = vunpack.c.h.b16 %v497
      %v515 = vunpack.c.l.b16 %v498
      %v516 = vunpack.c.h.b16 %v498
      %v517 = vunpack.c.l.b16 %v499
      %v518 = vunpack.c.h.b16 %v499
      %v519 = vunpack.c.l.b16 %v500
      %v520 = vunpack.c.h.b16 %v500
      %v521 = vunpack.c.l.b16 %v501
      %v522 = vunpack.c.h.b16 %v501
      %v523 = vunpack.c.l.b16 %v502
      %v524 = vunpack.c.h.b16 %v502
      %v525 = vunpack.c.l.b16 %v503
      %v526 = vunpack.c.h.b16 %v503
      %v527 = vunpack.c.l.b16 %v504
      %v528 = vunpack.c.h.b16 %v504
      %v529 = vpack.c.b16 %v513, %v513
      %v530 = vpack.c.b16 %v514, %v514
      %v531 = vpack.c.b16 %v515, %v515
      %v532 = vpack.c.b16 %v516, %v516
      %v533 = vpack.c.b16 %v517, %v517
      %v534 = vpack.c.b16 %v518, %v518
      %v535 = vpack.c.b16 %v519, %v519
      %v536 = vpack.c.b16 %v520, %v520
      %v537 = vpack.c.b16 %v521, %v521
      %v538 = vpack.c.b16 %v522, %v522
      %v539 = vpack.c.b16 %v523, %v523
      %v540 = vpack.c.b16 %v524, %v524
      %v541 = vpack.c.b16 %v525, %v525
      %v542 = vpack.c.b16 %v526, %v526
      %v543 = vpack.c.b16 %v527, %v527
      %v544 = vpack.c.b16 %v528, %v528
      %vm561 = vcmask 519168
      %562 = vst.msk [vmem:[%s173] sm:$0xf] %vm561, %v529
      %563 = vst.msk [vmem:[%s173 + $0x4] sm:$0xf] %vm561, %v530
      %564 = vst.msk [vmem:[%s173 + $0x8] sm:$0xf] %vm561, %v531
      %565 = vst.msk [vmem:[%s173 + $0xc] sm:$0xf] %vm561, %v532
      %566 = vst.msk [vmem:[%s173 + $0x10] sm:$0xf] %vm561, %v533
      %567 = vst.msk [vmem:[%s173 + $0x14] sm:$0xf] %vm561, %v534
      %568 = vst.msk [vmem:[%s173 + $0x18] sm:$0xf] %vm561, %v535
      %569 = vst.msk [vmem:[%s173 + $0x1c] sm:$0xf] %vm561, %v536
      %570 = vst.msk [vmem:[%s173 + $0x20] sm:$0xf] %vm561, %v537
      %571 = vst.msk [vmem:[%s173 + $0x24] sm:$0xf] %vm561, %v538
      %572 = vst.msk [vmem:[%s173 + $0x28] sm:$0xf] %vm561, %v539
      %573 = vst.msk [vmem:[%s173 + $0x2c] sm:$0xf] %vm561, %v540
      %574 = vst.msk [vmem:[%s173 + $0x30] sm:$0xf] %vm561, %v541
      %575 = vst.msk [vmem:[%s173 + $0x34] sm:$0xf] %vm561, %v542
      %576 = vst.msk [vmem:[%s173 + $0x38] sm:$0xf] %vm561, %v543
      %577 = vst.msk [vmem:[%s173 + $0x3c] sm:$0xf] %vm561, %v544
      %p578 = scmp.eq.s32.totalorder %s15, 0
      // Predicated region
      $region29: #{backbone_forward.31} parent=27 // pred_check
        %p579 = pneg %p578
      $region30: #{backbone_forward.31} parent=27 // pred_check_branch
        %581 = sbr.rel (%p579) target = $region32
      $region31: #{backbone_forward.31} parent=27 // pred_region
        %vm582 = vcmask 517120
        %583 = vst.msk [vmem:[%s3] sm:$0x3] %vm582, 0.0
      $region32: #{backbone_forward.31} parent=27 // pred_fallthru
        _
      %vm584 = vcmask 523264
      %v585 = vsel %vm584, %v435, 0.0
      %v586 = vsel %vm584, %v438, 0.0
      %v587 = vadd.f32 %v585, %v586
      %v588 = vsel %vm584, %v443, 0.0
      %v589 = vadd.f32 %v587, %v588
      %v590 = vsel %vm584, %v446, 0.0
      %v591 = vadd.f32 %v589, %v590
      %v592 = vsel %vm584, %v451, 0.0
      %v593 = vadd.f32 %v591, %v592
      %v594 = vsel %vm584, %v454, 0.0
      %v595 = vadd.f32 %v593, %v594
      %v596 = vsel %vm584, %v459, 0.0
      %v597 = vadd.f32 %v595, %v596
      %v598 = vsel %vm584, %v462, 0.0
      %v599 = vadd.f32 %v597, %v598
      %v600 = vsel %vm584, %v467, 0.0
      %v601 = vadd.f32 %v599, %v600
      %v602 = vsel %vm584, %v470, 0.0
      %v603 = vadd.f32 %v601, %v602
      %v604 = vsel %vm584, %v475, 0.0
      %v605 = vadd.f32 %v603, %v604
      %v606 = vsel %vm584, %v478, 0.0
      %v607 = vadd.f32 %v605, %v606
      %v608 = vsel %vm584, %v483, 0.0
      %v609 = vadd.f32 %v607, %v608
      %v610 = vsel %vm584, %v486, 0.0
      %v611 = vadd.f32 %v609, %v610
      %v612 = vsel %vm584, %v491, 0.0
      %v613 = vadd.f32 %v611, %v612
      %v614 = vsel %vm584, %v494, 0.0
      %v615 = vadd.f32 %v613, %v614
      %v616 = vrot.slane %v615, 4
      %v617 = vadd.f32 %v615, %v616
      %v618 = vrot.slane %v617, 2
      %v619 = vadd.f32 %v617, %v618
      %v620 = vrot.slane %v619, 1
      %v621 = vadd.f32 %v619, %v620
      %v622 = vmul.f32 %v435, %v435
      %v623 = vmul.f32 %v438, %v438
      %v624 = vmul.f32 %v443, %v443
      %v625 = vmul.f32 %v446, %v446
      %v626 = vmul.f32 %v451, %v451
      %v627 = vmul.f32 %v454, %v454
      %v628 = vmul.f32 %v459, %v459
      %v629 = vmul.f32 %v462, %v462
      %v630 = vmul.f32 %v467, %v467
      %v631 = vmul.f32 %v470, %v470
      %v632 = vmul.f32 %v475, %v475
      %v633 = vmul.f32 %v478, %v478
      %v634 = vmul.f32 %v483, %v483
      %v635 = vmul.f32 %v486, %v486
      %v636 = vmul.f32 %v491, %v491
      %v637 = vmul.f32 %v494, %v494
      %v638 = vsel %vm584, %v622, 0.0
      %v639 = vsel %vm584, %v623, 0.0
      %v640 = vadd.f32 %v638, %v639
      %v641 = vsel %vm584, %v624, 0.0
      %v642 = vadd.f32 %v640, %v641
      %v643 = vsel %vm584, %v625, 0.0
      %v644 = vadd.f32 %v642, %v643
      %v645 = vsel %vm584, %v626, 0.0
      %v646 = vadd.f32 %v644, %v645
      %v647 = vsel %vm584, %v627, 0.0
      %v648 = vadd.f32 %v646, %v647
      %v649 = vsel %vm584, %v628, 0.0
      %v650 = vadd.f32 %v648, %v649
      %v651 = vsel %vm584, %v629, 0.0
      %v652 = vadd.f32 %v650, %v651
      %v653 = vsel %vm584, %v630, 0.0
      %v654 = vadd.f32 %v652, %v653
      %v655 = vsel %vm584, %v631, 0.0
      %v656 = vadd.f32 %v654, %v655
      %v657 = vsel %vm584, %v632, 0.0
      %v658 = vadd.f32 %v656, %v657
      %v659 = vsel %vm584, %v633, 0.0
      %v660 = vadd.f32 %v658, %v659
      %v661 = vsel %vm584, %v634, 0.0
      %v662 = vadd.f32 %v660, %v661
      %v663 = vsel %vm584, %v635, 0.0
      %v664 = vadd.f32 %v662, %v663
      %v665 = vsel %vm584, %v636, 0.0
      %v666 = vadd.f32 %v664, %v665
      %v667 = vsel %vm584, %v637, 0.0
      %v668 = vadd.f32 %v666, %v667
      %v669 = vrot.slane %v668, 4
      %v670 = vadd.f32 %v668, %v669
      %v671 = vrot.slane %v670, 2
      %v672 = vadd.f32 %v670, %v671
      %v673 = vrot.slane %v672, 1
      %v674 = vadd.f32 %v672, %v673
      %v675 = vld [vmem:[%s3] sm:$0x3]
      %vm676 = vcmask 1040384
      %v677 = vsel %vm676, %v621, %v674
      %v678 = vadd.f32 %v675, %v677
      %vm679 = vcmask 517120
      %680 = vst.msk [vmem:[%s3] sm:$0x3] %vm679, %v678
      %s681 = smul.u32 16, %s15
      %p682 = scmp.lt.s32.totalorder %s681, 63
      %s683 = scalar_select %p682, %s681, 63
      %s684 = smul.addr %s683, 4
      %s685 = scalar_lea.vmem %s2, %s684
      // Predicated region
      $region33: #{backbone_forward.31} parent=27 // pred_check
        %p686 = pneg %p80
      $region34: #{backbone_forward.31} parent=27 // pred_check_branch
        %688 = sbr.rel (%p686) target = $region36
      $region35: #{backbone_forward.31} parent=27 // pred_region
        %s689 = smul.u32 16, %s15
      $region36: #{backbone_forward.31} parent=27 // pred_fallthru
        _
      // Predicated region
      $region37: #{backbone_forward.31} parent=27 // pred_check
        %p690 = pneg %p101
      $region38: #{backbone_forward.31} parent=27 // pred_check_branch
        %692 = sbr.rel (%p690) target = $region40
      $region39: #{backbone_forward.31} parent=27 // pred_region
        _
      $region40: #{backbone_forward.31} parent=27 // pred_fallthru
        _
      // Predicated region
      $region41: #{backbone_forward.31} parent=27 // pred_check
        %p693 = pneg %p101
      $region42: #{backbone_forward.31} parent=27 // pred_check_branch
        %695 = sbr.rel (%p693) target = $region44
      $region43: #{backbone_forward.31} parent=27 // pred_region
        _
      $region44: #{backbone_forward.31} parent=27 // pred_fallthru
        _
    $region28: #{backbone_forward.31} parent=5 // pred_fallthru
      _
    %p696 = scmp.le.s32.totalorder 2, %s10
    // Predicated region
    $region45: #{backbone_forward.31} parent=5 // pred_check
      %p697 = pneg %p696
    $region46: #{backbone_forward.31} parent=5 // pred_check_branch
      %699 = sbr.rel (%p697) target = $region48
    $region47: #{backbone_forward.31} parent=5 // pred_region
      %s700 = ssub.s32 %s10, 2
      // Predicated region
      $region49: #{backbone_forward.31} parent=47 // pred_check
        %p701 = pneg %p86
      $region50: #{backbone_forward.31} parent=47 // pred_check_branch
        %703 = sbr.rel (%p701) target = $region52
      $region51: #{backbone_forward.31} parent=47 // pred_region
        %s704 = smul.u32 16, %s16
        %p705 = scmp.lt.s32.totalorder %s704, 63
        %s706 = scalar_select %p705, %s704, 63
        %s707 = smul.addr %s706, 4
        %s708 = scalar_lea.vmem %s2, %s707
      $region52: #{backbone_forward.31} parent=47 // pred_fallthru
        _
    $region48: #{backbone_forward.31} parent=5 // pred_fallthru
      _
  $region6: #{backbone_forward.31} parent=0 // loop_footer
    %s14 = sadd.s32 1, %s10
  $region7: #{backbone_forward.31} parent=0 // loop_footer_branch
    %9 = sbr.rel target = $region3
  $region8: #{backbone_forward.31} parent=0 // loop_exit
    _

// kernel: backbone_forward.33
$region0: #{backbone_forward.33}
  #allocation0 [shape = 'u32[]', space=smem, size = 0x4, offset = 0x4, fixed_abs, tag = 'smem constant byte address 0x4 - core index']
  #allocation1 [shape = 'u32[144,128]{1,0:T(1,128)}', space=vmem, size = 0x12000, scoped, tag = 'internal scratch']
  %s0 = inlined_call_operand.vmem [shape: bf16[64,9,128], index: 0, kind: input, shape index: {}]
  %s1 = inlined_call_operand.vmem [shape: bf16[64,128], index: 1, kind: output, shape index: {}]
  %s2 = sld [smem:[#allocation0]]
  $region14: #{backbone_forward.33} parent=0
    _
  %s4 = ssub.s32 1, %s2
  %s5 = scalar_select 0, %s4, %s2
  // Predicated region
  $region2: #{backbone_forward.33} parent=0 // pred_check
    _
  $region3: #{backbone_forward.33} parent=0 // pred_check_branch
    %7 = sbr.rel (0) target = $region5
  $region4: #{backbone_forward.33} parent=0 // pred_region
    _
  $region5: #{backbone_forward.33} parent=0 // pred_fallthru
    _
  %v8 = vld [vmem:[%s0] sm:$0xf]
  %v9 = vld [vmem:[%s0 + $0x4] sm:$0x1]
  %v10 = vld [vmem:[%s0 + $0x8] sm:$0xf]
  %v11 = vld [vmem:[%s0 + $0xc] sm:$0x1]
  %v12 = vld [vmem:[%s0 + $0x10] sm:$0xf]
  %v13 = vld [vmem:[%s0 + $0x14] sm:$0x1]
  %v14 = vld [vmem:[%s0 + $0x18] sm:$0xf]
  %v15 = vld [vmem:[%s0 + $0x1c] sm:$0x1]
  %v16 = vld [vmem:[%s0 + $0x20] sm:$0xf]
  %v17 = vld [vmem:[%s0 + $0x24] sm:$0x1]
  %v18 = vld [vmem:[%s0 + $0x28] sm:$0xf]
  %v19 = vld [vmem:[%s0 + $0x2c] sm:$0x1]
  %v20 = vld [vmem:[%s0 + $0x30] sm:$0xf]
  %v21 = vld [vmem:[%s0 + $0x34] sm:$0x1]
  %v22 = vld [vmem:[%s0 + $0x38] sm:$0xf]
  %v23 = vld [vmem:[%s0 + $0x3c] sm:$0x1]
  %v24 = vld [vmem:[%s0 + $0x40] sm:$0xf]
  %v25 = vld [vmem:[%s0 + $0x44] sm:$0x1]
  %v26 = vld [vmem:[%s0 + $0x48] sm:$0xf]
  %v27 = vld [vmem:[%s0 + $0x4c] sm:$0x1]
  %v28 = vld [vmem:[%s0 + $0x50] sm:$0xf]
  %v29 = vld [vmem:[%s0 + $0x54] sm:$0x1]
  %v30 = vld [vmem:[%s0 + $0x58] sm:$0xf]
  %v31 = vld [vmem:[%s0 + $0x5c] sm:$0x1]
  %v32 = vld [vmem:[%s0 + $0x60] sm:$0xf]
  %v33 = vld [vmem:[%s0 + $0x64] sm:$0x1]
  %v34 = vld [vmem:[%s0 + $0x68] sm:$0xf]
  %v35 = vld [vmem:[%s0 + $0x6c] sm:$0x1]
  %v36 = vld [vmem:[%s0 + $0x70] sm:$0xf]
  %v37 = vld [vmem:[%s0 + $0x74] sm:$0x1]
  %v38 = vld [vmem:[%s0 + $0x78] sm:$0xf]
  %v39 = vld [vmem:[%s0 + $0x7c] sm:$0x1]
  %v40 = vld [vmem:[%s0 + $0x80] sm:$0xf]
  %v41 = vld [vmem:[%s0 + $0x84] sm:$0x1]
  %v42 = vld [vmem:[%s0 + $0x88] sm:$0xf]
  %v43 = vld [vmem:[%s0 + $0x8c] sm:$0x1]
  %v44 = vld [vmem:[%s0 + $0x90] sm:$0xf]
  %v45 = vld [vmem:[%s0 + $0x94] sm:$0x1]
  %v46 = vld [vmem:[%s0 + $0x98] sm:$0xf]
  %v47 = vld [vmem:[%s0 + $0x9c] sm:$0x1]
  %v48 = vld [vmem:[%s0 + $0xa0] sm:$0xf]
  %v49 = vld [vmem:[%s0 + $0xa4] sm:$0x1]
  %v50 = vld [vmem:[%s0 + $0xa8] sm:$0xf]
  %v51 = vld [vmem:[%s0 + $0xac] sm:$0x1]
  %v52 = vld [vmem:[%s0 + $0xb0] sm:$0xf]
  %v53 = vld [vmem:[%s0 + $0xb4] sm:$0x1]
  %v54 = vld [vmem:[%s0 + $0xb8] sm:$0xf]
  %v55 = vld [vmem:[%s0 + $0xbc] sm:$0x1]
  %v56 = vld [vmem:[%s0 + $0xc0] sm:$0xf]
  %v57 = vld [vmem:[%s0 + $0xc4] sm:$0x1]
  %v58 = vld [vmem:[%s0 + $0xc8] sm:$0xf]
  %v59 = vld [vmem:[%s0 + $0xcc] sm:$0x1]
  %v60 = vld [vmem:[%s0 + $0xd0] sm:$0xf]
  %v61 = vld [vmem:[%s0 + $0xd4] sm:$0x1]
  %v62 = vld [vmem:[%s0 + $0xd8] sm:$0xf]
  %v63 = vld [vmem:[%s0 + $0xdc] sm:$0x1]
  %v64 = vld [vmem:[%s0 + $0xe0] sm:$0xf]
  %v65 = vld [vmem:[%s0 + $0xe4] sm:$0x1]
  %v66 = vld [vmem:[%s0 + $0xe8] sm:$0xf]
  %v67 = vld [vmem:[%s0 + $0xec] sm:$0x1]
  %v68 = vld [vmem:[%s0 + $0xf0] sm:$0xf]
  %v69 = vld [vmem:[%s0 + $0xf4] sm:$0x1]
  %v70 = vld [vmem:[%s0 + $0xf8] sm:$0xf]
  %v71 = vld [vmem:[%s0 + $0xfc] sm:$0x1]
  %v72 = vld [vmem:[%s0 + $0x100] sm:$0xf]
  %v73 = vld [vmem:[%s0 + $0x104] sm:$0x1]
  %v74 = vld [vmem:[%s0 + $0x108] sm:$0xf]
  %v75 = vld [vmem:[%s0 + $0x10c] sm:$0x1]
  %v76 = vld [vmem:[%s0 + $0x110] sm:$0xf]
  %v77 = vld [vmem:[%s0 + $0x114] sm:$0x1]
  %v78 = vld [vmem:[%s0 + $0x118] sm:$0xf]
  %v79 = vld [vmem:[%s0 + $0x11c] sm:$0x1]
  %v80 = vld [vmem:[%s0 + $0x120] sm:$0xf]
  %v81 = vld [vmem:[%s0 + $0x124] sm:$0x1]
  %v82 = vld [vmem:[%s0 + $0x128] sm:$0xf]
  %v83 = vld [vmem:[%s0 + $0x12c] sm:$0x1]
  %v84 = vld [vmem:[%s0 + $0x130] sm:$0xf]
  %v85 = vld [vmem:[%s0 + $0x134] sm:$0x1]
  %v86 = vld [vmem:[%s0 + $0x138] sm:$0xf]
  %v87 = vld [vmem:[%s0 + $0x13c] sm:$0x1]
  %v88 = vld [vmem:[%s0 + $0x140] sm:$0xf]
  %v89 = vld [vmem:[%s0 + $0x144] sm:$0x1]
  %v90 = vld [vmem:[%s0 + $0x148] sm:$0xf]
  %v91 = vld [vmem:[%s0 + $0x14c] sm:$0x1]
  %v92 = vld [vmem:[%s0 + $0x150] sm:$0xf]
  %v93 = vld [vmem:[%s0 + $0x154] sm:$0x1]
  %v94 = vld [vmem:[%s0 + $0x158] sm:$0xf]
  %v95 = vld [vmem:[%s0 + $0x15c] sm:$0x1]
  %v96 = vld [vmem:[%s0 + $0x160] sm:$0xf]
  %v97 = vld [vmem:[%s0 + $0x164] sm:$0x1]
  %v98 = vld [vmem:[%s0 + $0x168] sm:$0xf]
  %v99 = vld [vmem:[%s0 + $0x16c] sm:$0x1]
  %v100 = vld [vmem:[%s0 + $0x170] sm:$0xf]
  %v101 = vld [vmem:[%s0 + $0x174] sm:$0x1]
  %v102 = vld [vmem:[%s0 + $0x178] sm:$0xf]
  %v103 = vld [vmem:[%s0 + $0x17c] sm:$0x1]
  %v104 = vld [vmem:[%s0 + $0x180] sm:$0xf]
  %v105 = vld [vmem:[%s0 + $0x184] sm:$0x1]
  %v106 = vld [vmem:[%s0 + $0x188] sm:$0xf]
  %v107 = vld [vmem:[%s0 + $0x18c] sm:$0x1]
  %v108 = vld [vmem:[%s0 + $0x190] sm:$0xf]
  %v109 = vld [vmem:[%s0 + $0x194] sm:$0x1]
  %v110 = vld [vmem:[%s0 + $0x198] sm:$0xf]
  %v111 = vld [vmem:[%s0 + $0x19c] sm:$0x1]
  %v112 = vld [vmem:[%s0 + $0x1a0] sm:$0xf]
  %v113 = vld [vmem:[%s0 + $0x1a4] sm:$0x1]
  %v114 = vld [vmem:[%s0 + $0x1a8] sm:$0xf]
  %v115 = vld [vmem:[%s0 + $0x1ac] sm:$0x1]
  %v116 = vld [vmem:[%s0 + $0x1b0] sm:$0xf]
  %v117 = vld [vmem:[%s0 + $0x1b4] sm:$0x1]
  %v118 = vld [vmem:[%s0 + $0x1b8] sm:$0xf]
  %v119 = vld [vmem:[%s0 + $0x1bc] sm:$0x1]
  %v120 = vld [vmem:[%s0 + $0x1c0] sm:$0xf]
  %v121 = vld [vmem:[%s0 + $0x1c4] sm:$0x1]
  %v122 = vld [vmem:[%s0 + $0x1c8] sm:$0xf]
  %v123 = vld [vmem:[%s0 + $0x1cc] sm:$0x1]
  %v124 = vld [vmem:[%s0 + $0x1d0] sm:$0xf]
  %v125 = vld [vmem:[%s0 + $0x1d4] sm:$0x1]
  %v126 = vld [vmem:[%s0 + $0x1d8] sm:$0xf]
  %v127 = vld [vmem:[%s0 + $0x1dc] sm:$0x1]
  %v128 = vld [vmem:[%s0 + $0x1e0] sm:$0xf]
  %v129 = vld [vmem:[%s0 + $0x1e4] sm:$0x1]
  %v130 = vld [vmem:[%s0 + $0x1e8] sm:$0xf]
  %v131 = vld [vmem:[%s0 + $0x1ec] sm:$0x1]
  %v132 = vld [vmem:[%s0 + $0x1f0] sm:$0xf]
  %v133 = vld [vmem:[%s0 + $0x1f4] sm:$0x1]
  %v134 = vld [vmem:[%s0 + $0x1f8] sm:$0xf]
  %v135 = vld [vmem:[%s0 + $0x1fc] sm:$0x1]
  %v136 = vunpack.c.l.bf16 %v8
  %v137 = vunpack.c.l.bf16 %v9
  %v138 = vunpack.c.l.bf16 %v10
  %v139 = vunpack.c.l.bf16 %v11
  %v140 = vunpack.c.l.bf16 %v12
  %v141 = vunpack.c.l.bf16 %v13
  %v142 = vunpack.c.l.bf16 %v14
  %v143 = vunpack.c.l.bf16 %v15
  %v144 = vunpack.c.l.bf16 %v16
  %v145 = vunpack.c.l.bf16 %v17
  %v146 = vunpack.c.l.bf16 %v18
  %v147 = vunpack.c.l.bf16 %v19
  %v148 = vunpack.c.l.bf16 %v20
  %v149 = vunpack.c.l.bf16 %v21
  %v150 = vunpack.c.l.bf16 %v22
  %v151 = vunpack.c.l.bf16 %v23
  %v152 = vunpack.c.l.bf16 %v24
  %v153 = vunpack.c.l.bf16 %v25
  %v154 = vunpack.c.l.bf16 %v26
  %v155 = vunpack.c.l.bf16 %v27
  %v156 = vunpack.c.l.bf16 %v28
  %v157 = vunpack.c.l.bf16 %v29
  %v158 = vunpack.c.l.bf16 %v30
  %v159 = vunpack.c.l.bf16 %v31
  %v160 = vunpack.c.l.bf16 %v32
  %v161 = vunpack.c.l.bf16 %v33
  %v162 = vunpack.c.l.bf16 %v34
  %v163 = vunpack.c.l.bf16 %v35
  %v164 = vunpack.c.l.bf16 %v36
  %v165 = vunpack.c.l.bf16 %v37
  %v166 = vunpack.c.l.bf16 %v38
  %v167 = vunpack.c.l.bf16 %v39
  %v168 = vunpack.c.l.bf16 %v40
  %v169 = vunpack.c.l.bf16 %v41
  %v170 = vunpack.c.l.bf16 %v42
  %v171 = vunpack.c.l.bf16 %v43
  %v172 = vunpack.c.l.bf16 %v44
  %v173 = vunpack.c.l.bf16 %v45
  %v174 = vunpack.c.l.bf16 %v46
  %v175 = vunpack.c.l.bf16 %v47
  %v176 = vunpack.c.l.bf16 %v48
  %v177 = vunpack.c.l.bf16 %v49
  %v178 = vunpack.c.l.bf16 %v50
  %v179 = vunpack.c.l.bf16 %v51
  %v180 = vunpack.c.l.bf16 %v52
  %v181 = vunpack.c.l.bf16 %v53
  %v182 = vunpack.c.l.bf16 %v54
  %v183 = vunpack.c.l.bf16 %v55
  %v184 = vunpack.c.l.bf16 %v56
  %v185 = vunpack.c.l.bf16 %v57
  %v186 = vunpack.c.l.bf16 %v58
  %v187 = vunpack.c.l.bf16 %v59
  %v188 = vunpack.c.l.bf16 %v60
  %v189 = vunpack.c.l.bf16 %v61
  %v190 = vunpack.c.l.bf16 %v62
  %v191 = vunpack.c.l.bf16 %v63
  %v192 = vunpack.c.l.bf16 %v64
  %v193 = vunpack.c.l.bf16 %v65
  %v194 = vunpack.c.l.bf16 %v66
  %v195 = vunpack.c.l.bf16 %v67
  %v196 = vunpack.c.l.bf16 %v68
  %v197 = vunpack.c.l.bf16 %v69
  %v198 = vunpack.c.l.bf16 %v70
  %v199 = vunpack.c.l.bf16 %v71
  %v200 = vunpack.c.l.bf16 %v72
  %v201 = vunpack.c.l.bf16 %v73
  %v202 = vunpack.c.l.bf16 %v74
  %v203 = vunpack.c.l.bf16 %v75
  %v204 = vunpack.c.l.bf16 %v76
  %v205 = vunpack.c.l.bf16 %v77
  %v206 = vunpack.c.l.bf16 %v78
  %v207 = vunpack.c.l.bf16 %v79
  %v208 = vunpack.c.l.bf16 %v80
  %v209 = vunpack.c.l.bf16 %v81
  %v210 = vunpack.c.l.bf16 %v82
  %v211 = vunpack.c.l.bf16 %v83
  %v212 = vunpack.c.l.bf16 %v84
  %v213 = vunpack.c.l.bf16 %v85
  %v214 = vunpack.c.l.bf16 %v86
  %v215 = vunpack.c.l.bf16 %v87
  %v216 = vunpack.c.l.bf16 %v88
  %v217 = vunpack.c.l.bf16 %v89
  %v218 = vunpack.c.l.bf16 %v90
  %v219 = vunpack.c.l.bf16 %v91
  %v220 = vunpack.c.l.bf16 %v92
  %v221 = vunpack.c.l.bf16 %v93
  %v222 = vunpack.c.l.bf16 %v94
  %v223 = vunpack.c.l.bf16 %v95
  %v224 = vunpack.c.l.bf16 %v96
  %v225 = vunpack.c.l.bf16 %v97
  %v226 = vunpack.c.l.bf16 %v98
  %v227 = vunpack.c.l.bf16 %v99
  %v228 = vunpack.c.l.bf16 %v100
  %v229 = vunpack.c.l.bf16 %v101
  %v230 = vunpack.c.l.bf16 %v102
  %v231 = vunpack.c.l.bf16 %v103
  %v232 = vunpack.c.l.bf16 %v104
  %v233 = vunpack.c.l.bf16 %v105
  %v234 = vunpack.c.l.bf16 %v106
  %v235 = vunpack.c.l.bf16 %v107
  %v236 = vunpack.c.l.bf16 %v108
  %v237 = vunpack.c.l.bf16 %v109
  %v238 = vunpack.c.l.bf16 %v110
  %v239 = vunpack.c.l.bf16 %v111
  %v240 = vunpack.c.l.bf16 %v112
  %v241 = vunpack.c.l.bf16 %v113
  %v242 = vunpack.c.l.bf16 %v114
  %v243 = vunpack.c.l.bf16 %v115
  %v244 = vunpack.c.l.bf16 %v116
  %v245 = vunpack.c.l.bf16 %v117
  %v246 = vunpack.c.l.bf16 %v118
  %v247 = vunpack.c.l.bf16 %v119
  %v248 = vunpack.c.l.bf16 %v120
  %v249 = vunpack.c.l.bf16 %v121
  %v250 = vunpack.c.l.bf16 %v122
  %v251 = vunpack.c.l.bf16 %v123
  %v252 = vunpack.c.l.bf16 %v124
  %v253 = vunpack.c.l.bf16 %v125
  %v254 = vunpack.c.l.bf16 %v126
  %v255 = vunpack.c.l.bf16 %v127
  %v256 = vunpack.c.l.bf16 %v128
  %v257 = vunpack.c.l.bf16 %v129
  %v258 = vunpack.c.l.bf16 %v130
  %v259 = vunpack.c.l.bf16 %v131
  %v260 = vunpack.c.l.bf16 %v132
  %v261 = vunpack.c.l.bf16 %v133
  %v262 = vunpack.c.l.bf16 %v134
  %v263 = vunpack.c.l.bf16 %v135
  %vm264 = vcmask 1040384
  %v265 = vsel %vm264, %v137, -inf
  %v266 = vmax.f32 %v136, %v265
  %v267 = vrot.slane %v266, 4
  %v268 = vmax.f32 %v266, %v267
  %v269 = vrot.slane %v268, 2
  %v270 = vmax.f32 %v268, %v269
  %v271 = vrot.slane %v270, 1
  %v272 = vmax.f32 %v270, %v271
  %v273 = vsel %vm264, %v139, -inf
  %v274 = vmax.f32 %v138, %v273
  %v275 = vrot.slane %v274, 4
  %v276 = vmax.f32 %v274, %v275
  %v277 = vrot.slane %v276, 2
  %v278 = vmax.f32 %v276, %v277
  %v279 = vrot.slane %v278, 1
  %v280 = vmax.f32 %v278, %v279
  %v281 = vsel %vm264, %v141, -inf
  %v282 = vmax.f32 %v140, %v281
  %v283 = vrot.slane %v282, 4
  %v284 = vmax.f32 %v282, %v283
  %v285 = vrot.slane %v284, 2
  %v286 = vmax.f32 %v284, %v285
  %v287 = vrot.slane %v286, 1
  %v288 = vmax.f32 %v286, %v287
  %v289 = vsel %vm264, %v143, -inf
  %v290 = vmax.f32 %v142, %v289
  %v291 = vrot.slane %v290, 4
  %v292 = vmax.f32 %v290, %v291
  %v293 = vrot.slane %v292, 2
  %v294 = vmax.f32 %v292, %v293
  %v295 = vrot.slane %v294, 1
  %v296 = vmax.f32 %v294, %v295
  %v297 = vsel %vm264, %v145, -inf
  %v298 = vmax.f32 %v144, %v297
  %v299 = vrot.slane %v298, 4
  %v300 = vmax.f32 %v298, %v299
  %v301 = vrot.slane %v300, 2
  %v302 = vmax.f32 %v300, %v301
  %v303 = vrot.slane %v302, 1
  %v304 = vmax.f32 %v302, %v303
  %v305 = vsel %vm264, %v147, -inf
  %v306 = vmax.f32 %v146, %v305
  %v307 = vrot.slane %v306, 4
  %v308 = vmax.f32 %v306, %v307
  %v309 = vrot.slane %v308, 2
  %v310 = vmax.f32 %v308, %v309
  %v311 = vrot.slane %v310, 1
  %v312 = vmax.f32 %v310, %v311
  %v313 = vsel %vm264, %v149, -inf
  %v314 = vmax.f32 %v148, %v313
  %v315 = vrot.slane %v314, 4
  %v316 = vmax.f32 %v314, %v315
  %v317 = vrot.slane %v316, 2
  %v318 = vmax.f32 %v316, %v317
  %v319 = vrot.slane %v318, 1
  %v320 = vmax.f32 %v318, %v319
  %v321 = vsel %vm264, %v151, -inf
  %v322 = vmax.f32 %v150, %v321
  %v323 = vrot.slane %v322, 4
  %v324 = vmax.f32 %v322, %v323
  %v325 = vrot.slane %v324, 2
  %v326 = vmax.f32 %v324, %v325
  %v327 = vrot.slane %v326, 1
  %v328 = vmax.f32 %v326, %v327
  %v329 = vsel %vm264, %v153, -inf
  %v330 = vmax.f32 %v152, %v329
  %v331 = vrot.slane %v330, 4
  %v332 = vmax.f32 %v330, %v331
  %v333 = vrot.slane %v332, 2
  %v334 = vmax.f32 %v332, %v333
  %v335 = vrot.slane %v334, 1
  %v336 = vmax.f32 %v334, %v335
  %v337 = vsel %vm264, %v155, -inf
  %v338 = vmax.f32 %v154, %v337
  %v339 = vrot.slane %v338, 4
  %v340 = vmax.f32 %v338, %v339
  %v341 = vrot.slane %v340, 2
  %v342 = vmax.f32 %v340, %v341
  %v343 = vrot.slane %v342, 1
  %v344 = vmax.f32 %v342, %v343
  %v345 = vsel %vm264, %v157, -inf
  %v346 = vmax.f32 %v156, %v345
  %v347 = vrot.slane %v346, 4
  %v348 = vmax.f32 %v346, %v347
  %v349 = vrot.slane %v348, 2
  %v350 = vmax.f32 %v348, %v349
  %v351 = vrot.slane %v350, 1
  %v352 = vmax.f32 %v350, %v351
  %v353 = vsel %vm264, %v159, -inf
  %v354 = vmax.f32 %v158, %v353
  %v355 = vrot.slane %v354, 4
  %v356 = vmax.f32 %v354, %v355
  %v357 = vrot.slane %v356, 2
  %v358 = vmax.f32 %v356, %v357
  %v359 = vrot.slane %v358, 1
  %v360 = vmax.f32 %v358, %v359
  %v361 = vsel %vm264, %v161, -inf
  %v362 = vmax.f32 %v160, %v361
  %v363 = vrot.slane %v362, 4
  %v364 = vmax.f32 %v362, %v363
  %v365 = vrot.slane %v364, 2
  %v366 = vmax.f32 %v364, %v365
  %v367 = vrot.slane %v366, 1
  %v368 = vmax.f32 %v366, %v367
  %v369 = vsel %vm264, %v163, -inf
  %v370 = vmax.f32 %v162, %v369
  %v371 = vrot.slane %v370, 4
  %v372 = vmax.f32 %v370, %v371
  %v373 = vrot.slane %v372, 2
  %v374 = vmax.f32 %v372, %v373
  %v375 = vrot.slane %v374, 1
  %v376 = vmax.f32 %v374, %v375
  %v377 = vsel %vm264, %v165, -inf
  %v378 = vmax.f32 %v164, %v377
  %v379 = vrot.slane %v378, 4
  %v380 = vmax.f32 %v378, %v379
  %v381 = vrot.slane %v380, 2
  %v382 = vmax.f32 %v380, %v381
  %v383 = vrot.slane %v382, 1
  %v384 = vmax.f32 %v382, %v383
  %v385 = vsel %vm264, %v167, -inf
  %v386 = vmax.f32 %v166, %v385
  %v387 = vrot.slane %v386, 4
  %v388 = vmax.f32 %v386, %v387
  %v389 = vrot.slane %v388, 2
  %v390 = vmax.f32 %v388, %v389
  %v391 = vrot.slane %v390, 1
  %v392 = vmax.f32 %v390, %v391
  %v393 = vsel %vm264, %v169, -inf
  %v394 = vmax.f32 %v168, %v393
  %v395 = vrot.slane %v394, 4
  %v396 = vmax.f32 %v394, %v395
  %v397 = vrot.slane %v396, 2
  %v398 = vmax.f32 %v396, %v397
  %v399 = vrot.slane %v398, 1
  %v400 = vmax.f32 %v398, %v399
  %v401 = vsel %vm264, %v171, -inf
  %v402 = vmax.f32 %v170, %v401
  %v403 = vrot.slane %v402, 4
  %v404 = vmax.f32 %v402, %v403
  %v405 = vrot.slane %v404, 2
  %v406 = vmax.f32 %v404, %v405
  %v407 = vrot.slane %v406, 1
  %v408 = vmax.f32 %v406, %v407
  %v409 = vsel %vm264, %v173, -inf
  %v410 = vmax.f32 %v172, %v409
  %v411 = vrot.slane %v410, 4
  %v412 = vmax.f32 %v410, %v411
  %v413 = vrot.slane %v412, 2
  %v414 = vmax.f32 %v412, %v413
  %v415 = vrot.slane %v414, 1
  %v416 = vmax.f32 %v414, %v415
  %v417 = vsel %vm264, %v175, -inf
  %v418 = vmax.f32 %v174, %v417
  %v419 = vrot.slane %v418, 4
  %v420 = vmax.f32 %v418, %v419
  %v421 = vrot.slane %v420, 2
  %v422 = vmax.f32 %v420, %v421
  %v423 = vrot.slane %v422, 1
  %v424 = vmax.f32 %v422, %v423
  %v425 = vsel %vm264, %v177, -inf
  %v426 = vmax.f32 %v176, %v425
  %v427 = vrot.slane %v426, 4
  %v428 = vmax.f32 %v426, %v427
  %v429 = vrot.slane %v428, 2
  %v430 = vmax.f32 %v428, %v429
  %v431 = vrot.slane %v430, 1
  %v432 = vmax.f32 %v430, %v431
  %v433 = vsel %vm264, %v179, -inf
  %v434 = vmax.f32 %v178, %v433
  %v435 = vrot.slane %v434, 4
  %v436 = vmax.f32 %v434, %v435
  %v437 = vrot.slane %v436, 2
  %v438 = vmax.f32 %v436, %v437
  %v439 = vrot.slane %v438, 1
  %v440 = vmax.f32 %v438, %v439
  %v441 = vsel %vm264, %v181, -inf
  %v442 = vmax.f32 %v180, %v441
  %v443 = vrot.slane %v442, 4
  %v444 = vmax.f32 %v442, %v443
  %v445 = vrot.slane %v444, 2
  %v446 = vmax.f32 %v444, %v445
  %v447 = vrot.slane %v446, 1
  %v448 = vmax.f32 %v446, %v447
  %v449 = vsel %vm264, %v183, -inf
  %v450 = vmax.f32 %v182, %v449
  %v451 = vrot.slane %v450, 4
  %v452 = vmax.f32 %v450, %v451
  %v453 = vrot.slane %v452, 2
  %v454 = vmax.f32 %v452, %v453
  %v455 = vrot.slane %v454, 1
  %v456 = vmax.f32 %v454, %v455
  %v457 = vsel %vm264, %v185, -inf
  %v458 = vmax.f32 %v184, %v457
  %v459 = vrot.slane %v458, 4
  %v460 = vmax.f32 %v458, %v459
  %v461 = vrot.slane %v460, 2
  %v462 = vmax.f32 %v460, %v461
  %v463 = vrot.slane %v462, 1
  %v464 = vmax.f32 %v462, %v463
  %v465 = vsel %vm264, %v187, -inf
  %v466 = vmax.f32 %v186, %v465
  %v467 = vrot.slane %v466, 4
  %v468 = vmax.f32 %v466, %v467
  %v469 = vrot.slane %v468, 2
  %v470 = vmax.f32 %v468, %v469
  %v471 = vrot.slane %v470, 1
  %v472 = vmax.f32 %v470, %v471
  %v473 = vsel %vm264, %v189, -inf
  %v474 = vmax.f32 %v188, %v473
  %v475 = vrot.slane %v474, 4
  %v476 = vmax.f32 %v474, %v475
  %v477 = vrot.slane %v476, 2
  %v478 = vmax.f32 %v476, %v477
  %v479 = vrot.slane %v478, 1
  %v480 = vmax.f32 %v478, %v479
  %v481 = vsel %vm264, %v191, -inf
  %v482 = vmax.f32 %v190, %v481
  %v483 = vrot.slane %v482, 4
  %v484 = vmax.f32 %v482, %v483
  %v485 = vrot.slane %v484, 2
  %v486 = vmax.f32 %v484, %v485
  %v487 = vrot.slane %v486, 1
  %v488 = vmax.f32 %v486, %v487
  %v489 = vsel %vm264, %v193, -inf
  %v490 = vmax.f32 %v192, %v489
  %v491 = vrot.slane %v490, 4
  %v492 = vmax.f32 %v490, %v491
  %v493 = vrot.slane %v492, 2
  %v494 = vmax.f32 %v492, %v493
  %v495 = vrot.slane %v494, 1
  %v496 = vmax.f32 %v494, %v495
  %v497 = vsel %vm264, %v195, -inf
  %v498 = vmax.f32 %v194, %v497
  %v499 = vrot.slane %v498, 4
  %v500 = vmax.f32 %v498, %v499
  %v501 = vrot.slane %v500, 2
  %v502 = vmax.f32 %v500, %v501
  %v503 = vrot.slane %v502, 1
  %v504 = vmax.f32 %v502, %v503
  %v505 = vsel %vm264, %v197, -inf
  %v506 = vmax.f32 %v196, %v505
  %v507 = vrot.slane %v506, 4
  %v508 = vmax.f32 %v506, %v507
  %v509 = vrot.slane %v508, 2
  %v510 = vmax.f32 %v508, %v509
  %v511 = vrot.slane %v510, 1
  %v512 = vmax.f32 %v510, %v511
  %v513 = vsel %vm264, %v199, -inf
  %v514 = vmax.f32 %v198, %v513
  %v515 = vrot.slane %v514, 4
  %v516 = vmax.f32 %v514, %v515
  %v517 = vrot.slane %v516, 2
  %v518 = vmax.f32 %v516, %v517
  %v519 = vrot.slane %v518, 1
  %v520 = vmax.f32 %v518, %v519
  %v521 = vsel %vm264, %v201, -inf
  %v522 = vmax.f32 %v200, %v521
  %v523 = vrot.slane %v522, 4
  %v524 = vmax.f32 %v522, %v523
  %v525 = vrot.slane %v524, 2
  %v526 = vmax.f32 %v524, %v525
  %v527 = vrot.slane %v526, 1
  %v528 = vmax.f32 %v526, %v527
  %v529 = vsel %vm264, %v203, -inf
  %v530 = vmax.f32 %v202, %v529
  %v531 = vrot.slane %v530, 4
  %v532 = vmax.f32 %v530, %v531
  %v533 = vrot.slane %v532, 2
  %v534 = vmax.f32 %v532, %v533
  %v535 = vrot.slane %v534, 1
  %v536 = vmax.f32 %v534, %v535
  %v537 = vsel %vm264, %v205, -inf
  %v538 = vmax.f32 %v204, %v537
  %v539 = vrot.slane %v538, 4
  %v540 = vmax.f32 %v538, %v539
  %v541 = vrot.slane %v540, 2
  %v542 = vmax.f32 %v540, %v541
  %v543 = vrot.slane %v542, 1
  %v544 = vmax.f32 %v542, %v543
  %v545 = vsel %vm264, %v207, -inf
  %v546 = vmax.f32 %v206, %v545
  %v547 = vrot.slane %v546, 4
  %v548 = vmax.f32 %v546, %v547
  %v549 = vrot.slane %v548, 2
  %v550 = vmax.f32 %v548, %v549
  %v551 = vrot.slane %v550, 1
  %v552 = vmax.f32 %v550, %v551
  %v553 = vsel %vm264, %v209, -inf
  %v554 = vmax.f32 %v208, %v553
  %v555 = vrot.slane %v554, 4
  %v556 = vmax.f32 %v554, %v555
  %v557 = vrot.slane %v556, 2
  %v558 = vmax.f32 %v556, %v557
  %v559 = vrot.slane %v558, 1
  %v560 = vmax.f32 %v558, %v559
  %v561 = vsel %vm264, %v211, -inf
  %v562 = vmax.f32 %v210, %v561
  %v563 = vrot.slane %v562, 4
  %v564 = vmax.f32 %v562, %v563
  %v565 = vrot.slane %v564, 2
  %v566 = vmax.f32 %v564, %v565
  %v567 = vrot.slane %v566, 1
  %v568 = vmax.f32 %v566, %v567
  %v569 = vsel %vm264, %v213, -inf
  %v570 = vmax.f32 %v212, %v569
  %v571 = vrot.slane %v570, 4
  %v572 = vmax.f32 %v570, %v571
  %v573 = vrot.slane %v572, 2
  %v574 = vmax.f32 %v572, %v573
  %v575 = vrot.slane %v574, 1
  %v576 = vmax.f32 %v574, %v575
  %v577 = vsel %vm264, %v215, -inf
  %v578 = vmax.f32 %v214, %v577
  %v579 = vrot.slane %v578, 4
  %v580 = vmax.f32 %v578, %v579
  %v581 = vrot.slane %v580, 2
  %v582 = vmax.f32 %v580, %v581
  %v583 = vrot.slane %v582, 1
  %v584 = vmax.f32 %v582, %v583
  %v585 = vsel %vm264, %v217, -inf
  %v586 = vmax.f32 %v216, %v585
  %v587 = vrot.slane %v586, 4
  %v588 = vmax.f32 %v586, %v587
  %v589 = vrot.slane %v588, 2
  %v590 = vmax.f32 %v588, %v589
  %v591 = vrot.slane %v590, 1
  %v592 = vmax.f32 %v590, %v591
  %v593 = vsel %vm264, %v219, -inf
  %v594 = vmax.f32 %v218, %v593
  %v595 = vrot.slane %v594, 4
  %v596 = vmax.f32 %v594, %v595
  %v597 = vrot.slane %v596, 2
  %v598 = vmax.f32 %v596, %v597
  %v599 = vrot.slane %v598, 1
  %v600 = vmax.f32 %v598, %v599
  %v601 = vsel %vm264, %v221, -inf
  %v602 = vmax.f32 %v220, %v601
  %v603 = vrot.slane %v602, 4
  %v604 = vmax.f32 %v602, %v603
  %v605 = vrot.slane %v604, 2
  %v606 = vmax.f32 %v604, %v605
  %v607 = vrot.slane %v606, 1
  %v608 = vmax.f32 %v606, %v607
  %v609 = vsel %vm264, %v223, -inf
  %v610 = vmax.f32 %v222, %v609
  %v611 = vrot.slane %v610, 4
  %v612 = vmax.f32 %v610, %v611
  %v613 = vrot.slane %v612, 2
  %v614 = vmax.f32 %v612, %v613
  %v615 = vrot.slane %v614, 1
  %v616 = vmax.f32 %v614, %v615
  %v617 = vsel %vm264, %v225, -inf
  %v618 = vmax.f32 %v224, %v617
  %v619 = vrot.slane %v618, 4
  %v620 = vmax.f32 %v618, %v619
  %v621 = vrot.slane %v620, 2
  %v622 = vmax.f32 %v620, %v621
  %v623 = vrot.slane %v622, 1
  %v624 = vmax.f32 %v622, %v623
  %v625 = vsel %vm264, %v227, -inf
  %v626 = vmax.f32 %v226, %v625
  %v627 = vrot.slane %v626, 4
  %v628 = vmax.f32 %v626, %v627
  %v629 = vrot.slane %v628, 2
  %v630 = vmax.f32 %v628, %v629
  %v631 = vrot.slane %v630, 1
  %v632 = vmax.f32 %v630, %v631
  %v633 = vsel %vm264, %v229, -inf
  %v634 = vmax.f32 %v228, %v633
  %v635 = vrot.slane %v634, 4
  %v636 = vmax.f32 %v634, %v635
  %v637 = vrot.slane %v636, 2
  %v638 = vmax.f32 %v636, %v637
  %v639 = vrot.slane %v638, 1
  %v640 = vmax.f32 %v638, %v639
  %v641 = vsel %vm264, %v231, -inf
  %v642 = vmax.f32 %v230, %v641
  %v643 = vrot.slane %v642, 4
  %v644 = vmax.f32 %v642, %v643
  %v645 = vrot.slane %v644, 2
  %v646 = vmax.f32 %v644, %v645
  %v647 = vrot.slane %v646, 1
  %v648 = vmax.f32 %v646, %v647
  %v649 = vsel %vm264, %v233, -inf
  %v650 = vmax.f32 %v232, %v649
  %v651 = vrot.slane %v650, 4
  %v652 = vmax.f32 %v650, %v651
  %v653 = vrot.slane %v652, 2
  %v654 = vmax.f32 %v652, %v653
  %v655 = vrot.slane %v654, 1
  %v656 = vmax.f32 %v654, %v655
  %v657 = vsel %vm264, %v235, -inf
  %v658 = vmax.f32 %v234, %v657
  %v659 = vrot.slane %v658, 4
  %v660 = vmax.f32 %v658, %v659
  %v661 = vrot.slane %v660, 2
  %v662 = vmax.f32 %v660, %v661
  %v663 = vrot.slane %v662, 1
  %v664 = vmax.f32 %v662, %v663
  %v665 = vsel %vm264, %v237, -inf
  %v666 = vmax.f32 %v236, %v665
  %v667 = vrot.slane %v666, 4
  %v668 = vmax.f32 %v666, %v667
  %v669 = vrot.slane %v668, 2
  %v670 = vmax.f32 %v668, %v669
  %v671 = vrot.slane %v670, 1
  %v672 = vmax.f32 %v670, %v671
  %v673 = vsel %vm264, %v239, -inf
  %v674 = vmax.f32 %v238, %v673
  %v675 = vrot.slane %v674, 4
  %v676 = vmax.f32 %v674, %v675
  %v677 = vrot.slane %v676, 2
  %v678 = vmax.f32 %v676, %v677
  %v679 = vrot.slane %v678, 1
  %v680 = vmax.f32 %v678, %v679
  %v681 = vsel %vm264, %v241, -inf
  %v682 = vmax.f32 %v240, %v681
  %v683 = vrot.slane %v682, 4
  %v684 = vmax.f32 %v682, %v683
  %v685 = vrot.slane %v684, 2
  %v686 = vmax.f32 %v684, %v685
  %v687 = vrot.slane %v686, 1
  %v688 = vmax.f32 %v686, %v687
  %v689 = vsel %vm264, %v243, -inf
  %v690 = vmax.f32 %v242, %v689
  %v691 = vrot.slane %v690, 4
  %v692 = vmax.f32 %v690, %v691
  %v693 = vrot.slane %v692, 2
  %v694 = vmax.f32 %v692, %v693
  %v695 = vrot.slane %v694, 1
  %v696 = vmax.f32 %v694, %v695
  %v697 = vsel %vm264, %v245, -inf
  %v698 = vmax.f32 %v244, %v697
  %v699 = vrot.slane %v698, 4
  %v700 = vmax.f32 %v698, %v699
  %v701 = vrot.slane %v700, 2
  %v702 = vmax.f32 %v700, %v701
  %v703 = vrot.slane %v702, 1
  %v704 = vmax.f32 %v702, %v703
  %v705 = vsel %vm264, %v247, -inf
  %v706 = vmax.f32 %v246, %v705
  %v707 = vrot.slane %v706, 4
  %v708 = vmax.f32 %v706, %v707
  %v709 = vrot.slane %v708, 2
  %v710 = vmax.f32 %v708, %v709
  %v711 = vrot.slane %v710, 1
  %v712 = vmax.f32 %v710, %v711
  %v713 = vsel %vm264, %v249, -inf
  %v714 = vmax.f32 %v248, %v713
  %v715 = vrot.slane %v714, 4
  %v716 = vmax.f32 %v714, %v715
  %v717 = vrot.slane %v716, 2
  %v718 = vmax.f32 %v716, %v717
  %v719 = vrot.slane %v718, 1
  %v720 = vmax.f32 %v718, %v719
  %v721 = vsel %vm264, %v251, -inf
  %v722 = vmax.f32 %v250, %v721
  %v723 = vrot.slane %v722, 4
  %v724 = vmax.f32 %v722, %v723
  %v725 = vrot.slane %v724, 2
  %v726 = vmax.f32 %v724, %v725
  %v727 = vrot.slane %v726, 1
  %v728 = vmax.f32 %v726, %v727
  %v729 = vsel %vm264, %v253, -inf
  %v730 = vmax.f32 %v252, %v729
  %v731 = vrot.slane %v730, 4
  %v732 = vmax.f32 %v730, %v731
  %v733 = vrot.slane %v732, 2
  %v734 = vmax.f32 %v732, %v733
  %v735 = vrot.slane %v734, 1
  %v736 = vmax.f32 %v734, %v735
  %v737 = vsel %vm264, %v255, -inf
  %v738 = vmax.f32 %v254, %v737
  %v739 = vrot.slane %v738, 4
  %v740 = vmax.f32 %v738, %v739
  %v741 = vrot.slane %v740, 2
  %v742 = vmax.f32 %v740, %v741
  %v743 = vrot.slane %v742, 1
  %v744 = vmax.f32 %v742, %v743
  %v745 = vsel %vm264, %v257, -inf
  %v746 = vmax.f32 %v256, %v745
  %v747 = vrot.slane %v746, 4
  %v748 = vmax.f32 %v746, %v747
  %v749 = vrot.slane %v748, 2
  %v750 = vmax.f32 %v748, %v749
  %v751 = vrot.slane %v750, 1
  %v752 = vmax.f32 %v750, %v751
  %v753 = vsel %vm264, %v259, -inf
  %v754 = vmax.f32 %v258, %v753
  %v755 = vrot.slane %v754, 4
  %v756 = vmax.f32 %v754, %v755
  %v757 = vrot.slane %v756, 2
  %v758 = vmax.f32 %v756, %v757
  %v759 = vrot.slane %v758, 1
  %v760 = vmax.f32 %v758, %v759
  %v761 = vsel %vm264, %v261, -inf
  %v762 = vmax.f32 %v260, %v761
  %v763 = vrot.slane %v762, 4
  %v764 = vmax.f32 %v762, %v763
  %v765 = vrot.slane %v764, 2
  %v766 = vmax.f32 %v764, %v765
  %v767 = vrot.slane %v766, 1
  %v768 = vmax.f32 %v766, %v767
  %v769 = vsel %vm264, %v263, -inf
  %v770 = vmax.f32 %v262, %v769
  %v771 = vrot.slane %v770, 4
  %v772 = vmax.f32 %v770, %v771
  %v773 = vrot.slane %v772, 2
  %v774 = vmax.f32 %v772, %v773
  %v775 = vrot.slane %v774, 1
  %v776 = vmax.f32 %v774, %v775
  %v777 = vpack.c.bf16 %v272, %v272
  %v778 = vpack.c.bf16 %v280, %v280
  %v779 = vpack.c.bf16 %v288, %v288
  %v780 = vpack.c.bf16 %v296, %v296
  %v781 = vpack.c.bf16 %v304, %v304
  %v782 = vpack.c.bf16 %v312, %v312
  %v783 = vpack.c.bf16 %v320, %v320
  %v784 = vpack.c.bf16 %v328, %v328
  %v785 = vpack.c.bf16 %v336, %v336
  %v786 = vpack.c.bf16 %v344, %v344
  %v787 = vpack.c.bf16 %v352, %v352
  %v788 = vpack.c.bf16 %v360, %v360
  %v789 = vpack.c.bf16 %v368, %v368
  %v790 = vpack.c.bf16 %v376, %v376
  %v791 = vpack.c.bf16 %v384, %v384
  %v792 = vpack.c.bf16 %v392, %v392
  %v793 = vpack.c.bf16 %v400, %v400
  %v794 = vpack.c.bf16 %v408, %v408
  %v795 = vpack.c.bf16 %v416, %v416
  %v796 = vpack.c.bf16 %v424, %v424
  %v797 = vpack.c.bf16 %v432, %v432
  %v798 = vpack.c.bf16 %v440, %v440
  %v799 = vpack.c.bf16 %v448, %v448
  %v800 = vpack.c.bf16 %v456, %v456
  %v801 = vpack.c.bf16 %v464, %v464
  %v802 = vpack.c.bf16 %v472, %v472
  %v803 = vpack.c.bf16 %v480, %v480
  %v804 = vpack.c.bf16 %v488, %v488
  %v805 = vpack.c.bf16 %v496, %v496
  %v806 = vpack.c.bf16 %v504, %v504
  %v807 = vpack.c.bf16 %v512, %v512
  %v808 = vpack.c.bf16 %v520, %v520
  %v809 = vpack.c.bf16 %v528, %v528
  %v810 = vpack.c.bf16 %v536, %v536
  %v811 = vpack.c.bf16 %v544, %v544
  %v812 = vpack.c.bf16 %v552, %v552
  %v813 = vpack.c.bf16 %v560, %v560
  %v814 = vpack.c.bf16 %v568, %v568
  %v815 = vpack.c.bf16 %v576, %v576
  %v816 = vpack.c.bf16 %v584, %v584
  %v817 = vpack.c.bf16 %v592, %v592
  %v818 = vpack.c.bf16 %v600, %v600
  %v819 = vpack.c.bf16 %v608, %v608
  %v820 = vpack.c.bf16 %v616, %v616
  %v821 = vpack.c.bf16 %v624, %v624
  %v822 = vpack.c.bf16 %v632, %v632
  %v823 = vpack.c.bf16 %v640, %v640
  %v824 = vpack.c.bf16 %v648, %v648
  %v825 = vpack.c.bf16 %v656, %v656
  %v826 = vpack.c.bf16 %v664, %v664
  %v827 = vpack.c.bf16 %v672, %v672
  %v828 = vpack.c.bf16 %v680, %v680
  %v829 = vpack.c.bf16 %v688, %v688
  %v830 = vpack.c.bf16 %v696, %v696
  %v831 = vpack.c.bf16 %v704, %v704
  %v832 = vpack.c.bf16 %v712, %v712
  %v833 = vpack.c.bf16 %v720, %v720
  %v834 = vpack.c.bf16 %v728, %v728
  %v835 = vpack.c.bf16 %v736, %v736
  %v836 = vpack.c.bf16 %v744, %v744
  %v837 = vpack.c.bf16 %v752, %v752
  %v838 = vpack.c.bf16 %v760, %v760
  %v839 = vpack.c.bf16 %v768, %v768
  %v840 = vpack.c.bf16 %v776, %v776
  %v905 = vunpack.c.l.b16 %v777
  %v906 = vunpack.c.l.b16 %v778
  %v907 = vunpack.c.l.b16 %v779
  %v908 = vunpack.c.l.b16 %v780
  %v909 = vunpack.c.l.b16 %v781
  %v910 = vunpack.c.l.b16 %v782
  %v911 = vunpack.c.l.b16 %v783
  %v912 = vunpack.c.l.b16 %v784
  %v913 = vunpack.c.l.b16 %v785
  %v914 = vunpack.c.l.b16 %v786
  %v915 = vunpack.c.l.b16 %v787
  %v916 = vunpack.c.l.b16 %v788
  %v917 = vunpack.c.l.b16 %v789
  %v918 = vunpack.c.l.b16 %v790
  %v919 = vunpack.c.l.b16 %v791
  %v920 = vunpack.c.l.b16 %v792
  %v921 = vunpack.c.l.b16 %v793
  %v922 = vunpack.c.l.b16 %v794
  %v923 = vunpack.c.l.b16 %v795
  %v924 = vunpack.c.l.b16 %v796
  %v925 = vunpack.c.l.b16 %v797
  %v926 = vunpack.c.l.b16 %v798
  %v927 = vunpack.c.l.b16 %v799
  %v928 = vunpack.c.l.b16 %v800
  %v929 = vunpack.c.l.b16 %v801
  %v930 = vunpack.c.l.b16 %v802
  %v931 = vunpack.c.l.b16 %v803
  %v932 = vunpack.c.l.b16 %v804
  %v933 = vunpack.c.l.b16 %v805
  %v934 = vunpack.c.l.b16 %v806
  %v935 = vunpack.c.l.b16 %v807
  %v936 = vunpack.c.l.b16 %v808
  %v937 = vunpack.c.l.b16 %v809
  %v938 = vunpack.c.l.b16 %v810
  %v939 = vunpack.c.l.b16 %v811
  %v940 = vunpack.c.l.b16 %v812
  %v941 = vunpack.c.l.b16 %v813
  %v942 = vunpack.c.l.b16 %v814
  %v943 = vunpack.c.l.b16 %v815
  %v944 = vunpack.c.l.b16 %v816
  %v945 = vunpack.c.l.b16 %v817
  %v946 = vunpack.c.l.b16 %v818
  %v947 = vunpack.c.l.b16 %v819
  %v948 = vunpack.c.l.b16 %v820
  %v949 = vunpack.c.l.b16 %v821
  %v950 = vunpack.c.l.b16 %v822
  %v951 = vunpack.c.l.b16 %v823
  %v952 = vunpack.c.l.b16 %v824
  %v953 = vunpack.c.l.b16 %v825
  %v954 = vunpack.c.l.b16 %v826
  %v955 = vunpack.c.l.b16 %v827
  %v956 = vunpack.c.l.b16 %v828
  %v957 = vunpack.c.l.b16 %v829
  %v958 = vunpack.c.l.b16 %v830
  %v959 = vunpack.c.l.b16 %v831
  %v960 = vunpack.c.l.b16 %v832
  %v961 = vunpack.c.l.b16 %v833
  %v962 = vunpack.c.l.b16 %v834
  %v963 = vunpack.c.l.b16 %v835
  %v964 = vunpack.c.l.b16 %v836
  %v965 = vunpack.c.l.b16 %v837
  %v966 = vunpack.c.l.b16 %v838
  %v967 = vunpack.c.l.b16 %v839
  %v968 = vunpack.c.l.b16 %v840
  %v969 = vpack.c.b16 %v905, %v905
  %v970 = vpack.c.b16 %v906, %v906
  %v971 = vpack.c.b16 %v907, %v907
  %v972 = vpack.c.b16 %v908, %v908
  %v973 = vpack.c.b16 %v909, %v909
  %v974 = vpack.c.b16 %v910, %v910
  %v975 = vpack.c.b16 %v911, %v911
  %v976 = vpack.c.b16 %v912, %v912
  %v977 = vpack.c.b16 %v913, %v913
  %v978 = vpack.c.b16 %v914, %v914
  %v979 = vpack.c.b16 %v915, %v915
  %v980 = vpack.c.b16 %v916, %v916
  %v981 = vpack.c.b16 %v917, %v917
  %v982 = vpack.c.b16 %v918, %v918
  %v983 = vpack.c.b16 %v919, %v919
  %v984 = vpack.c.b16 %v920, %v920
  %v985 = vpack.c.b16 %v921, %v921
  %v986 = vpack.c.b16 %v922, %v922
  %v987 = vpack.c.b16 %v923, %v923
  %v988 = vpack.c.b16 %v924, %v924
  %v989 = vpack.c.b16 %v925, %v925
  %v990 = vpack.c.b16 %v926, %v926
  %v991 = vpack.c.b16 %v927, %v927
  %v992 = vpack.c.b16 %v928, %v928
  %v993 = vpack.c.b16 %v929, %v929
  %v994 = vpack.c.b16 %v930, %v930
  %v995 = vpack.c.b16 %v931, %v931
  %v996 = vpack.c.b16 %v932, %v932
  %v997 = vpack.c.b16 %v933, %v933
  %v998 = vpack.c.b16 %v934, %v934
  %v999 = vpack.c.b16 %v935, %v935
  %v1000 = vpack.c.b16 %v936, %v936
  %v1001 = vpack.c.b16 %v937, %v937
  %v1002 = vpack.c.b16 %v938, %v938
  %v1003 = vpack.c.b16 %v939, %v939
  %v1004 = vpack.c.b16 %v940, %v940
  %v1005 = vpack.c.b16 %v941, %v941
  %v1006 = vpack.c.b16 %v942, %v942
  %v1007 = vpack.c.b16 %v943, %v943
  %v1008 = vpack.c.b16 %v944, %v944
  %v1009 = vpack.c.b16 %v945, %v945
  %v1010 = vpack.c.b16 %v946, %v946
  %v1011 = vpack.c.b16 %v947, %v947
  %v1012 = vpack.c.b16 %v948, %v948
  %v1013 = vpack.c.b16 %v949, %v949
  %v1014 = vpack.c.b16 %v950, %v950
  %v1015 = vpack.c.b16 %v951, %v951
  %v1016 = vpack.c.b16 %v952, %v952
  %v1017 = vpack.c.b16 %v953, %v953
  %v1018 = vpack.c.b16 %v954, %v954
  %v1019 = vpack.c.b16 %v955, %v955
  %v1020 = vpack.c.b16 %v956, %v956
  %v1021 = vpack.c.b16 %v957, %v957
  %v1022 = vpack.c.b16 %v958, %v958
  %v1023 = vpack.c.b16 %v959, %v959
  %v1024 = vpack.c.b16 %v960, %v960
  %v1025 = vpack.c.b16 %v961, %v961
  %v1026 = vpack.c.b16 %v962, %v962
  %v1027 = vpack.c.b16 %v963, %v963
  %v1028 = vpack.c.b16 %v964, %v964
  %v1029 = vpack.c.b16 %v965, %v965
  %v1030 = vpack.c.b16 %v966, %v966
  %v1031 = vpack.c.b16 %v967, %v967
  %v1032 = vpack.c.b16 %v968, %v968
  %v1033 = vunpack.c.l.b16 %v969
  %v1034 = vunpack.c.l.b16 %v970
  %v1035 = vunpack.c.l.b16 %v971
  %v1036 = vunpack.c.l.b16 %v972
  %v1037 = vunpack.c.l.b16 %v973
  %v1038 = vunpack.c.l.b16 %v974
  %v1039 = vunpack.c.l.b16 %v975
  %v1040 = vunpack.c.l.b16 %v976
  %v1041 = vunpack.c.l.b16 %v977
  %v1042 = vunpack.c.l.b16 %v978
  %v1043 = vunpack.c.l.b16 %v979
  %v1044 = vunpack.c.l.b16 %v980
  %v1045 = vunpack.c.l.b16 %v981
  %v1046 = vunpack.c.l.b16 %v982
  %v1047 = vunpack.c.l.b16 %v983
  %v1048 = vunpack.c.l.b16 %v984
  %v1049 = vunpack.c.l.b16 %v985
  %v1050 = vunpack.c.l.b16 %v986
  %v1051 = vunpack.c.l.b16 %v987
  %v1052 = vunpack.c.l.b16 %v988
  %v1053 = vunpack.c.l.b16 %v989
  %v1054 = vunpack.c.l.b16 %v990
  %v1055 = vunpack.c.l.b16 %v991
  %v1056 = vunpack.c.l.b16 %v992
  %v1057 = vunpack.c.l.b16 %v993
  %v1058 = vunpack.c.l.b16 %v994
  %v1059 = vunpack.c.l.b16 %v995
  %v1060 = vunpack.c.l.b16 %v996
  %v1061 = vunpack.c.l.b16 %v997
  %v1062 = vunpack.c.l.b16 %v998
  %v1063 = vunpack.c.l.b16 %v999
  %v1064 = vunpack.c.l.b16 %v1000
  %v1065 = vunpack.c.l.b16 %v1001
  %v1066 = vunpack.c.l.b16 %v1002
  %v1067 = vunpack.c.l.b16 %v1003
  %v1068 = vunpack.c.l.b16 %v1004
  %v1069 = vunpack.c.l.b16 %v1005
  %v1070 = vunpack.c.l.b16 %v1006
  %v1071 = vunpack.c.l.b16 %v1007
  %v1072 = vunpack.c.l.b16 %v1008
  %v1073 = vunpack.c.l.b16 %v1009
  %v1074 = vunpack.c.l.b16 %v1010
  %v1075 = vunpack.c.l.b16 %v1011
  %v1076 = vunpack.c.l.b16 %v1012
  %v1077 = vunpack.c.l.b16 %v1013
  %v1078 = vunpack.c.l.b16 %v1014
  %v1079 = vunpack.c.l.b16 %v1015
  %v1080 = vunpack.c.l.b16 %v1016
  %v1081 = vunpack.c.l.b16 %v1017
  %v1082 = vunpack.c.l.b16 %v1018
  %v1083 = vunpack.c.l.b16 %v1019
  %v1084 = vunpack.c.l.b16 %v1020
  %v1085 = vunpack.c.l.b16 %v1021
  %v1086 = vunpack.c.l.b16 %v1022
  %v1087 = vunpack.c.l.b16 %v1023
  %v1088 = vunpack.c.l.b16 %v1024
  %v1089 = vunpack.c.l.b16 %v1025
  %v1090 = vunpack.c.l.b16 %v1026
  %v1091 = vunpack.c.l.b16 %v1027
  %v1092 = vunpack.c.l.b16 %v1028
  %v1093 = vunpack.c.l.b16 %v1029
  %v1094 = vunpack.c.l.b16 %v1030
  %v1095 = vunpack.c.l.b16 %v1031
  %v1096 = vunpack.c.l.b16 %v1032
  %vm1097 = vcmask 1041409
  %v1098 = vsel %vm1097, %v1034, %v1033
  %vm1099 = vcmask 1042434
  %v1100 = vsel %vm1099, %v1035, %v1098
  %vm1101 = vcmask 1043459
  %v1102 = vsel %vm1101, %v1036, %v1100
  %vm1103 = vcmask 1044484
  %v1104 = vsel %vm1103, %v1037, %v1102
  %vm1105 = vcmask 1045509
  %v1106 = vsel %vm1105, %v1038, %v1104
  %vm1107 = vcmask 1046534
  %v1108 = vsel %vm1107, %v1039, %v1106
  %vm1109 = vcmask 1047559
  %v1110 = vsel %vm1109, %v1040, %v1108
  %v1111 = vsel %vm1097, %v1042, %v1041
  %v1112 = vsel %vm1099, %v1043, %v1111
  %v1113 = vsel %vm1101, %v1044, %v1112
  %v1114 = vsel %vm1103, %v1045, %v1113
  %v1115 = vsel %vm1105, %v1046, %v1114
  %v1116 = vsel %vm1107, %v1047, %v1115
  %v1117 = vsel %vm1109, %v1048, %v1116
  %v1118 = vsel %vm1097, %v1050, %v1049
  %v1119 = vsel %vm1099, %v1051, %v1118
  %v1120 = vsel %vm1101, %v1052, %v1119
  %v1121 = vsel %vm1103, %v1053, %v1120
  %v1122 = vsel %vm1105, %v1054, %v1121
  %v1123 = vsel %vm1107, %v1055, %v1122
  %v1124 = vsel %vm1109, %v1056, %v1123
  %v1125 = vsel %vm1097, %v1058, %v1057
  %v1126 = vsel %vm1099, %v1059, %v1125
  %v1127 = vsel %vm1101, %v1060, %v1126
  %v1128 = vsel %vm1103, %v1061, %v1127
  %v1129 = vsel %vm1105, %v1062, %v1128
  %v1130 = vsel %vm1107, %v1063, %v1129
  %v1131 = vsel %vm1109, %v1064, %v1130
  %v1132 = vsel %vm1097, %v1066, %v1065
  %v1133 = vsel %vm1099, %v1067, %v1132
  %v1134 = vsel %vm1101, %v1068, %v1133
  %v1135 = vsel %vm1103, %v1069, %v1134
  %v1136 = vsel %vm1105, %v1070, %v1135
  %v1137 = vsel %vm1107, %v1071, %v1136
  %v1138 = vsel %vm1109, %v1072, %v1137
  %v1139 = vsel %vm1097, %v1074, %v1073
  %v1140 = vsel %vm1099, %v1075, %v1139
  %v1141 = vsel %vm1101, %v1076, %v1140
  %v1142 = vsel %vm1103, %v1077, %v1141
  %v1143 = vsel %vm1105, %v1078, %v1142
  %v1144 = vsel %vm1107, %v1079, %v1143
  %v1145 = vsel %vm1109, %v1080, %v1144
  %v1146 = vsel %vm1097, %v1082, %v1081
  %v1147 = vsel %vm1099, %v1083, %v1146
  %v1148 = vsel %vm1101, %v1084, %v1147
  %v1149 = vsel %vm1103, %v1085, %v1148
  %v1150 = vsel %vm1105, %v1086, %v1149
  %v1151 = vsel %vm1107, %v1087, %v1150
  %v1152 = vsel %vm1109, %v1088, %v1151
  %v1153 = vsel %vm1097, %v1090, %v1089
  %v1154 = vsel %vm1099, %v1091, %v1153
  %v1155 = vsel %vm1101, %v1092, %v1154
  %v1156 = vsel %vm1103, %v1093, %v1155
  %v1157 = vsel %vm1105, %v1094, %v1156
  %v1158 = vsel %vm1107, %v1095, %v1157
  %v1159 = vsel %vm1109, %v1096, %v1158
  %v1160 = vpack.c.b16 %v1110, %v1110
  %v1161 = vpack.c.b16 %v1117, %v1117
  %v1162 = vpack.c.b16 %v1124, %v1124
  %v1163 = vpack.c.b16 %v1131, %v1131
  %v1164 = vpack.c.b16 %v1138, %v1138
  %v1165 = vpack.c.b16 %v1145, %v1145
  %v1166 = vpack.c.b16 %v1152, %v1152
  %v1167 = vpack.c.b16 %v1159, %v1159
  %1176 = vst [vmem:[%s1] sm:$0xf] %v1160
  %1177 = vst [vmem:[%s1 + $0x4] sm:$0xf] %v1161
  %1178 = vst [vmem:[%s1 + $0x8] sm:$0xf] %v1162
  %1179 = vst [vmem:[%s1 + $0xc] sm:$0xf] %v1163
  %1180 = vst [vmem:[%s1 + $0x10] sm:$0xf] %v1164
  %1181 = vst [vmem:[%s1 + $0x14] sm:$0xf] %v1165
  %1182 = vst [vmem:[%s1 + $0x18] sm:$0xf] %v1166
  %1183 = vst [vmem:[%s1 + $0x1c] sm:$0xf] %v1167
  // Predicated region
  $region6: #{backbone_forward.33} parent=0 // pred_check
    _
  $region7: #{backbone_forward.33} parent=0 // pred_check_branch
    %1185 = sbr.rel (0) target = $region9
  $region8: #{backbone_forward.33} parent=0 // pred_region
    _
  $region9: #{backbone_forward.33} parent=0 // pred_fallthru
    _
  // Predicated region
  $region10: #{backbone_forward.33} parent=0 // pred_check
    _
  $region11: #{backbone_forward.33} parent=0 // pred_check_branch
    %1187 = sbr.rel (0) target = $region13
  $region12: #{backbone_forward.33} parent=0 // pred_region
    _
  $region13: #{backbone_forward.33} parent=0 // pred_fallthru
    _

// kernel: backbone_forward.34
$region0: #{backbone_forward.34}
  #allocation0 [shape = 'u32[]', space=smem, size = 0x4, offset = 0x4, fixed_abs, tag = 'smem constant byte address 0x4 - core index']
  #allocation1 [shape = 'u32[144,128]{1,0:T(1,128)}', space=vmem, size = 0x12000, scoped, tag = 'internal scratch']
  %s0 = inlined_call_operand.vmem [shape: bf16[128,640], index: 0, kind: input, shape index: {}]
  %s1 = inlined_call_operand.vmem [shape: bf16[640,64], index: 1, kind: input, shape index: {}]
  %s2 = inlined_call_operand.vmem [shape: bf16[128,64], index: 2, kind: output, shape index: {0}]
  %s3 = inlined_call_operand.vmem [shape: f32[2,64], index: 3, kind: output, shape index: {1}]
  %4 = xla_tuple %s2, %s3
  %s5 = sld [smem:[#allocation0]]
  $region30: #{backbone_forward.34} parent=0
    _
  %s7 = ssub.s32 1, %s5
  %s8 = scalar_select 0, %s7, %s5
  // Predicated region
  $region2: #{backbone_forward.34} parent=0 // pred_check
    _
  $region3: #{backbone_forward.34} parent=0 // pred_check_branch
    %10 = sbr.rel (0) target = $region5
  $region4: #{backbone_forward.34} parent=0 // pred_region
    _
  $region5: #{backbone_forward.34} parent=0 // pred_fallthru
    _
  // Predicated region
  $region6: #{backbone_forward.34} parent=0 // pred_check
    _
  $region7: #{backbone_forward.34} parent=0 // pred_check_branch
    %12 = sbr.rel (0) target = $region9
  $region8: #{backbone_forward.34} parent=0 // pred_region
    _
  $region9: #{backbone_forward.34} parent=0 // pred_fallthru
    _
  %v14 = vld [vmem:[%s0] sm:$0xff]
  %v15 = vld [vmem:[%s0 + $0x8] sm:$0xff]
  %v16 = vld [vmem:[%s0 + $0x10] sm:$0xf]
  %v17 = vld [vmem:[%s0 + $0x14] sm:$0xff]
  %v18 = vld [vmem:[%s0 + $0x1c] sm:$0xff]
  %v19 = vld [vmem:[%s0 + $0x24] sm:$0xf]
  %v20 = vld [vmem:[%s0 + $0x28] sm:$0xff]
  %v21 = vld [vmem:[%s0 + $0x30] sm:$0xff]
  %v22 = vld [vmem:[%s0 + $0x38] sm:$0xf]
  %v23 = vld [vmem:[%s0 + $0x3c] sm:$0xff]
  %v24 = vld [vmem:[%s0 + $0x44] sm:$0xff]
  %v25 = vld [vmem:[%s0 + $0x4c] sm:$0xf]
  %v26 = vld [vmem:[%s0 + $0x50] sm:$0xff]
  %v27 = vld [vmem:[%s0 + $0x58] sm:$0xff]
  %v28 = vld [vmem:[%s0 + $0x60] sm:$0xf]
  %v29 = vld [vmem:[%s0 + $0x64] sm:$0xff]
  %v30 = vld [vmem:[%s0 + $0x6c] sm:$0xff]
  %v31 = vld [vmem:[%s0 + $0x74] sm:$0xf]
  %v32 = vld [vmem:[%s0 + $0x78] sm:$0xff]
  %v33 = vld [vmem:[%s0 + $0x80] sm:$0xff]
  %v34 = vld [vmem:[%s0 + $0x88] sm:$0xf]
  %v35 = vld [vmem:[%s0 + $0x8c] sm:$0xff]
  %v36 = vld [vmem:[%s0 + $0x94] sm:$0xff]
  %v37 = vld [vmem:[%s0 + $0x9c] sm:$0xf]
  %v38 = vld [vmem:[%s0 + $0xa0] sm:$0xff]
  %v39 = vld [vmem:[%s0 + $0xa8] sm:$0xff]
  %v40 = vld [vmem:[%s0 + $0xb0] sm:$0xf]
  %v41 = vld [vmem:[%s0 + $0xb4] sm:$0xff]
  %v42 = vld [vmem:[%s0 + $0xbc] sm:$0xff]
  %v43 = vld [vmem:[%s0 + $0xc4] sm:$0xf]
  %v44 = vld [vmem:[%s0 + $0xc8] sm:$0xff]
  %v45 = vld [vmem:[%s0 + $0xd0] sm:$0xff]
  %v46 = vld [vmem:[%s0 + $0xd8] sm:$0xf]
  %v47 = vld [vmem:[%s0 + $0xdc] sm:$0xff]
  %v48 = vld [vmem:[%s0 + $0xe4] sm:$0xff]
  %v49 = vld [vmem:[%s0 + $0xec] sm:$0xf]
  %v50 = vld [vmem:[%s0 + $0xf0] sm:$0xff]
  %v51 = vld [vmem:[%s0 + $0xf8] sm:$0xff]
  %v52 = vld [vmem:[%s0 + $0x100] sm:$0xf]
  %v53 = vld [vmem:[%s0 + $0x104] sm:$0xff]
  %v54 = vld [vmem:[%s0 + $0x10c] sm:$0xff]
  %v55 = vld [vmem:[%s0 + $0x114] sm:$0xf]
  %v56 = vld [vmem:[%s0 + $0x118] sm:$0xff]
  %v57 = vld [vmem:[%s0 + $0x120] sm:$0xff]
  %v58 = vld [vmem:[%s0 + $0x128] sm:$0xf]
  %v59 = vld [vmem:[%s0 + $0x12c] sm:$0xff]
  %v60 = vld [vmem:[%s0 + $0x134] sm:$0xff]
  %v61 = vld [vmem:[%s0 + $0x13c] sm:$0xf]
  %v62 = vld [vmem:[%s1] sm:$0xf]
  %v63 = vld [vmem:[%s1 + $0x4] sm:$0xf]
  %v64 = vld [vmem:[%s1 + $0x8] sm:$0xf]
  %v65 = vld [vmem:[%s1 + $0xc] sm:$0xf]
  %v66 = vld [vmem:[%s1 + $0x10] sm:$0xf]
  %v67 = vld [vmem:[%s1 + $0x14] sm:$0xf]
  %v68 = vld [vmem:[%s1 + $0x18] sm:$0xf]
  %v69 = vld [vmem:[%s1 + $0x1c] sm:$0xf]
  %v70 = vld [vmem:[%s1 + $0x20] sm:$0xf]
  %v71 = vld [vmem:[%s1 + $0x24] sm:$0xf]
  %v72 = vld [vmem:[%s1 + $0x28] sm:$0xf]
  %v73 = vld [vmem:[%s1 + $0x2c] sm:$0xf]
  %v74 = vld [vmem:[%s1 + $0x30] sm:$0xf]
  %v75 = vld [vmem:[%s1 + $0x34] sm:$0xf]
  %v76 = vld [vmem:[%s1 + $0x38] sm:$0xf]
  %v77 = vld [vmem:[%s1 + $0x3c] sm:$0xf]
  %v78 = vld [vmem:[%s1 + $0x40] sm:$0xf]
  %v79 = vld [vmem:[%s1 + $0x44] sm:$0xf]
  %v80 = vld [vmem:[%s1 + $0x48] sm:$0xf]
  %v81 = vld [vmem:[%s1 + $0x4c] sm:$0xf]
  %v82 = vld [vmem:[%s1 + $0x50] sm:$0xf]
  %v83 = vld [vmem:[%s1 + $0x54] sm:$0xf]
  %v84 = vld [vmem:[%s1 + $0x58] sm:$0xf]
  %v85 = vld [vmem:[%s1 + $0x5c] sm:$0xf]
  %v86 = vld [vmem:[%s1 + $0x60] sm:$0xf]
  %v87 = vld [vmem:[%s1 + $0x64] sm:$0xf]
  %v88 = vld [vmem:[%s1 + $0x68] sm:$0xf]
  %v89 = vld [vmem:[%s1 + $0x6c] sm:$0xf]
  %v90 = vld [vmem:[%s1 + $0x70] sm:$0xf]
  %v91 = vld [vmem:[%s1 + $0x74] sm:$0xf]
  %v92 = vld [vmem:[%s1 + $0x78] sm:$0xf]
  %v93 = vld [vmem:[%s1 + $0x7c] sm:$0xf]
  %v94 = vld [vmem:[%s1 + $0x80] sm:$0xf]
  %v95 = vld [vmem:[%s1 + $0x84] sm:$0xf]
  %v96 = vld [vmem:[%s1 + $0x88] sm:$0xf]
  %v97 = vld [vmem:[%s1 + $0x8c] sm:$0xf]
  %v98 = vld [vmem:[%s1 + $0x90] sm:$0xf]
  %v99 = vld [vmem:[%s1 + $0x94] sm:$0xf]
  %v100 = vld [vmem:[%s1 + $0x98] sm:$0xf]
  %v101 = vld [vmem:[%s1 + $0x9c] sm:$0xf]
  %v102 = vld [vmem:[%s1 + $0xa0] sm:$0xf]
  %v103 = vld [vmem:[%s1 + $0xa4] sm:$0xf]
  %v104 = vld [vmem:[%s1 + $0xa8] sm:$0xf]
  %v105 = vld [vmem:[%s1 + $0xac] sm:$0xf]
  %v106 = vld [vmem:[%s1 + $0xb0] sm:$0xf]
  %v107 = vld [vmem:[%s1 + $0xb4] sm:$0xf]
  %v108 = vld [vmem:[%s1 + $0xb8] sm:$0xf]
  %v109 = vld [vmem:[%s1 + $0xbc] sm:$0xf]
  %v110 = vld [vmem:[%s1 + $0xc0] sm:$0xf]
  %v111 = vld [vmem:[%s1 + $0xc4] sm:$0xf]
  %v112 = vld [vmem:[%s1 + $0xc8] sm:$0xf]
  %v113 = vld [vmem:[%s1 + $0xcc] sm:$0xf]
  %v114 = vld [vmem:[%s1 + $0xd0] sm:$0xf]
  %v115 = vld [vmem:[%s1 + $0xd4] sm:$0xf]
  %v116 = vld [vmem:[%s1 + $0xd8] sm:$0xf]
  %v117 = vld [vmem:[%s1 + $0xdc] sm:$0xf]
  %v118 = vld [vmem:[%s1 + $0xe0] sm:$0xf]
  %v119 = vld [vmem:[%s1 + $0xe4] sm:$0xf]
  %v120 = vld [vmem:[%s1 + $0xe8] sm:$0xf]
  %v121 = vld [vmem:[%s1 + $0xec] sm:$0xf]
  %v122 = vld [vmem:[%s1 + $0xf0] sm:$0xf]
  %v123 = vld [vmem:[%s1 + $0xf4] sm:$0xf]
  %v124 = vld [vmem:[%s1 + $0xf8] sm:$0xf]
  %v125 = vld [vmem:[%s1 + $0xfc] sm:$0xf]
  %v126 = vld [vmem:[%s1 + $0x100] sm:$0xf]
  %v127 = vld [vmem:[%s1 + $0x104] sm:$0xf]
  %v128 = vld [vmem:[%s1 + $0x108] sm:$0xf]
  %v129 = vld [vmem:[%s1 + $0x10c] sm:$0xf]
  %v130 = vld [vmem:[%s1 + $0x110] sm:$0xf]
  %v131 = vld [vmem:[%s1 + $0x114] sm:$0xf]
  %v132 = vld [vmem:[%s1 + $0x118] sm:$0xf]
  %v133 = vld [vmem:[%s1 + $0x11c] sm:$0xf]
  %v134 = vld [vmem:[%s1 + $0x120] sm:$0xf]
  %v135 = vld [vmem:[%s1 + $0x124] sm:$0xf]
  %v136 = vld [vmem:[%s1 + $0x128] sm:$0xf]
  %v137 = vld [vmem:[%s1 + $0x12c] sm:$0xf]
  %v138 = vld [vmem:[%s1 + $0x130] sm:$0xf]
  %v139 = vld [vmem:[%s1 + $0x134] sm:$0xf]
  %v140 = vld [vmem:[%s1 + $0x138] sm:$0xf]
  %v141 = vld [vmem:[%s1 + $0x13c] sm:$0xf]
  %v190 = vunpack.c.l.b16 %v14
  %v191 = vunpack.c.h.b16 %v14
  %v192 = vunpack.c.l.b16 %v15
  %v193 = vunpack.c.h.b16 %v15
  %v194 = vunpack.c.l.b16 %v16
  %v195 = vunpack.c.l.b16 %v17
  %v196 = vunpack.c.h.b16 %v17
  %v197 = vunpack.c.l.b16 %v18
  %v198 = vunpack.c.h.b16 %v18
  %v199 = vunpack.c.l.b16 %v19
  %v200 = vunpack.c.l.b16 %v20
  %v201 = vunpack.c.h.b16 %v20
  %v202 = vunpack.c.l.b16 %v21
  %v203 = vunpack.c.h.b16 %v21
  %v204 = vunpack.c.l.b16 %v22
  %v205 = vunpack.c.l.b16 %v23
  %v206 = vunpack.c.h.b16 %v23
  %v207 = vunpack.c.l.b16 %v24
  %v208 = vunpack.c.h.b16 %v24
  %v209 = vunpack.c.l.b16 %v25
  %v210 = vunpack.c.l.b16 %v26
  %v211 = vunpack.c.h.b16 %v26
  %v212 = vunpack.c.l.b16 %v27
  %v213 = vunpack.c.h.b16 %v27
  %v214 = vunpack.c.l.b16 %v28
  %v215 = vunpack.c.l.b16 %v29
  %v216 = vunpack.c.h.b16 %v29
  %v217 = vunpack.c.l.b16 %v30
  %v218 = vunpack.c.h.b16 %v30
  %v219 = vunpack.c.l.b16 %v31
  %v220 = vunpack.c.l.b16 %v32
  %v221 = vunpack.c.h.b16 %v32
  %v222 = vunpack.c.l.b16 %v33
  %v223 = vunpack.c.h.b16 %v33
  %v224 = vunpack.c.l.b16 %v34
  %v225 = vunpack.c.l.b16 %v35
  %v226 = vunpack.c.h.b16 %v35
  %v227 = vunpack.c.l.b16 %v36
  %v228 = vunpack.c.h.b16 %v36
  %v229 = vunpack.c.l.b16 %v37
  %v230 = vunpack.c.l.b16 %v38
  %v231 = vunpack.c.h.b16 %v38
  %v232 = vunpack.c.l.b16 %v39
  %v233 = vunpack.c.h.b16 %v39
  %v234 = vunpack.c.l.b16 %v40
  %v235 = vunpack.c.l.b16 %v41
  %v236 = vunpack.c.h.b16 %v41
  %v237 = vunpack.c.l.b16 %v42
  %v238 = vunpack.c.h.b16 %v42
  %v239 = vunpack.c.l.b16 %v43
  %v240 = vunpack.c.l.b16 %v44
  %v241 = vunpack.c.h.b16 %v44
  %v242 = vunpack.c.l.b16 %v45
  %v243 = vunpack.c.h.b16 %v45
  %v244 = vunpack.c.l.b16 %v46
  %v245 = vunpack.c.l.b16 %v47
  %v246 = vunpack.c.h.b16 %v47
  %v247 = vunpack.c.l.b16 %v48
  %v248 = vunpack.c.h.b16 %v48
  %v249 = vunpack.c.l.b16 %v49
  %v250 = vunpack.c.l.b16 %v50
  %v251 = vunpack.c.h.b16 %v50
  %v252 = vunpack.c.l.b16 %v51
  %v253 = vunpack.c.h.b16 %v51
  %v254 = vunpack.c.l.b16 %v52
  %v255 = vunpack.c.l.b16 %v53
  %v256 = vunpack.c.h.b16 %v53
  %v257 = vunpack.c.l.b16 %v54
  %v258 = vunpack.c.h.b16 %v54
  %v259 = vunpack.c.l.b16 %v55
  %v260 = vunpack.c.l.b16 %v56
  %v261 = vunpack.c.h.b16 %v56
  %v262 = vunpack.c.l.b16 %v57
  %v263 = vunpack.c.h.b16 %v57
  %v264 = vunpack.c.l.b16 %v58
  %v265 = vunpack.c.l.b16 %v59
  %v266 = vunpack.c.h.b16 %v59
  %v267 = vunpack.c.l.b16 %v60
  %v268 = vunpack.c.h.b16 %v60
  %v269 = vunpack.c.l.b16 %v61
  %v270 = vpack.c.b16 %v195, %v190
  %v271 = vpack.c.b16 %v196, %v191
  %v272 = vpack.c.b16 %v197, %v192
  %v273 = vpack.c.b16 %v198, %v193
  %v274 = vpack.c.b16 %v199, %v194
  %v275 = vpack.c.b16 %v205, %v200
  %v276 = vpack.c.b16 %v206, %v201
  %v277 = vpack.c.b16 %v207, %v202
  %v278 = vpack.c.b16 %v208, %v203
  %v279 = vpack.c.b16 %v209, %v204
  %v280 = vpack.c.b16 %v215, %v210
  %v281 = vpack.c.b16 %v216, %v211
  %v282 = vpack.c.b16 %v217, %v212
  %v283 = vpack.c.b16 %v218, %v213
  %v284 = vpack.c.b16 %v219, %v214
  %v285 = vpack.c.b16 %v225, %v220
  %v286 = vpack.c.b16 %v226, %v221
  %v287 = vpack.c.b16 %v227, %v222
  %v288 = vpack.c.b16 %v228, %v223
  %v289 = vpack.c.b16 %v229, %v224
  %v290 = vpack.c.b16 %v235, %v230
  %v291 = vpack.c.b16 %v236, %v231
  %v292 = vpack.c.b16 %v237, %v232
  %v293 = vpack.c.b16 %v238, %v233
  %v294 = vpack.c.b16 %v239, %v234
  %v295 = vpack.c.b16 %v245, %v240
  %v296 = vpack.c.b16 %v246, %v241
  %v297 = vpack.c.b16 %v247, %v242
  %v298 = vpack.c.b16 %v248, %v243
  %v299 = vpack.c.b16 %v249, %v244
  %v300 = vpack.c.b16 %v255, %v250
  %v301 = vpack.c.b16 %v256, %v251
  %v302 = vpack.c.b16 %v257, %v252
  %v303 = vpack.c.b16 %v258, %v253
  %v304 = vpack.c.b16 %v259, %v254
  %v305 = vpack.c.b16 %v265, %v260
  %v306 = vpack.c.b16 %v266, %v261
  %v307 = vpack.c.b16 %v267, %v262
  %v308 = vpack.c.b16 %v268, %v263
  %v309 = vpack.c.b16 %v269, %v264
  %v430 = vunpack.c.l.b16 %v62
  %v431 = vunpack.c.l.b16 %v63
  %v432 = vunpack.c.l.b16 %v64
  %v433 = vunpack.c.l.b16 %v65
  %v434 = vunpack.c.l.b16 %v66
  %v435 = vunpack.c.l.b16 %v67
  %v436 = vunpack.c.l.b16 %v68
  %v437 = vunpack.c.l.b16 %v69
  %v438 = vunpack.c.l.b16 %v70
  %v439 = vunpack.c.l.b16 %v71
  %v440 = vunpack.c.l.b16 %v72
  %v441 = vunpack.c.l.b16 %v73
  %v442 = vunpack.c.l.b16 %v74
  %v443 = vunpack.c.l.b16 %v75
  %v444 = vunpack.c.l.b16 %v76
  %v445 = vunpack.c.l.b16 %v77
  %v446 = vunpack.c.l.b16 %v78
  %v447 = vunpack.c.l.b16 %v79
  %v448 = vunpack.c.l.b16 %v80
  %v449 = vunpack.c.l.b16 %v81
  %v450 = vunpack.c.l.b16 %v82
  %v451 = vunpack.c.l.b16 %v83
  %v452 = vunpack.c.l.b16 %v84
  %v453 = vunpack.c.l.b16 %v85
  %v454 = vunpack.c.l.b16 %v86
  %v455 = vunpack.c.l.b16 %v87
  %v456 = vunpack.c.l.b16 %v88
  %v457 = vunpack.c.l.b16 %v89
  %v458 = vunpack.c.l.b16 %v90
  %v459 = vunpack.c.l.b16 %v91
  %v460 = vunpack.c.l.b16 %v92
  %v461 = vunpack.c.l.b16 %v93
  %v462 = vunpack.c.l.b16 %v94
  %v463 = vunpack.c.l.b16 %v95
  %v464 = vunpack.c.l.b16 %v96
  %v465 = vunpack.c.l.b16 %v97
  %v466 = vunpack.c.l.b16 %v98
  %v467 = vunpack.c.l.b16 %v99
  %v468 = vunpack.c.l.b16 %v100
  %v469 = vunpack.c.l.b16 %v101
  %v470 = vunpack.c.l.b16 %v102
  %v471 = vunpack.c.l.b16 %v103
  %v472 = vunpack.c.l.b16 %v104
  %v473 = vunpack.c.l.b16 %v105
  %v474 = vunpack.c.l.b16 %v106
  %v475 = vunpack.c.l.b16 %v107
  %v476 = vunpack.c.l.b16 %v108
  %v477 = vunpack.c.l.b16 %v109
  %v478 = vunpack.c.l.b16 %v110
  %v479 = vunpack.c.l.b16 %v111
  %v480 = vunpack.c.l.b16 %v112
  %v481 = vunpack.c.l.b16 %v113
  %v482 = vunpack.c.l.b16 %v114
  %v483 = vunpack.c.l.b16 %v115
  %v484 = vunpack.c.l.b16 %v116
  %v485 = vunpack.c.l.b16 %v117
  %v486 = vunpack.c.l.b16 %v118
  %v487 = vunpack.c.l.b16 %v119
  %v488 = vunpack.c.l.b16 %v120
  %v489 = vunpack.c.l.b16 %v121
  %v490 = vunpack.c.l.b16 %v122
  %v491 = vunpack.c.l.b16 %v123
  %v492 = vunpack.c.l.b16 %v124
  %v493 = vunpack.c.l.b16 %v125
  %v494 = vunpack.c.l.b16 %v126
  %v495 = vunpack.c.l.b16 %v127
  %v496 = vunpack.c.l.b16 %v128
  %v497 = vunpack.c.l.b16 %v129
  %v498 = vunpack.c.l.b16 %v130
  %v499 = vunpack.c.l.b16 %v131
  %v500 = vunpack.c.l.b16 %v132
  %v501 = vunpack.c.l.b16 %v133
  %v502 = vunpack.c.l.b16 %v134
  %v503 = vunpack.c.l.b16 %v135
  %v504 = vunpack.c.l.b16 %v136
  %v505 = vunpack.c.l.b16 %v137
  %v506 = vunpack.c.l.b16 %v138
  %v507 = vunpack.c.l.b16 %v139
  %v508 = vunpack.c.l.b16 %v140
  %v509 = vunpack.c.l.b16 %v141
  %v510 = vpack.c.b16 %v431, %v430
  %v511 = vpack.c.b16 %v433, %v432
  %v512 = vpack.c.b16 %v435, %v434
  %v513 = vpack.c.b16 %v437, %v436
  %v514 = vpack.c.b16 %v439, %v438
  %v515 = vpack.c.b16 %v441, %v440
  %v516 = vpack.c.b16 %v443, %v442
  %v517 = vpack.c.b16 %v445, %v444
  %v518 = vpack.c.b16 %v447, %v446
  %v519 = vpack.c.b16 %v449, %v448
  %v520 = vpack.c.b16 %v451, %v450
  %v521 = vpack.c.b16 %v453, %v452
  %v522 = vpack.c.b16 %v455, %v454
  %v523 = vpack.c.b16 %v457, %v456
  %v524 = vpack.c.b16 %v459, %v458
  %v525 = vpack.c.b16 %v461, %v460
  %v526 = vpack.c.b16 %v463, %v462
  %v527 = vpack.c.b16 %v465, %v464
  %v528 = vpack.c.b16 %v467, %v466
  %v529 = vpack.c.b16 %v469, %v468
  %v530 = vpack.c.b16 %v471, %v470
  %v531 = vpack.c.b16 %v473, %v472
  %v532 = vpack.c.b16 %v475, %v474
  %v533 = vpack.c.b16 %v477, %v476
  %v534 = vpack.c.b16 %v479, %v478
  %v535 = vpack.c.b16 %v481, %v480
  %v536 = vpack.c.b16 %v483, %v482
  %v537 = vpack.c.b16 %v485, %v484
  %v538 = vpack.c.b16 %v487, %v486
  %v539 = vpack.c.b16 %v489, %v488
  %v540 = vpack.c.b16 %v491, %v490
  %v541 = vpack.c.b16 %v493, %v492
  %v542 = vpack.c.b16 %v495, %v494
  %v543 = vpack.c.b16 %v497, %v496
  %v544 = vpack.c.b16 %v499, %v498
  %v545 = vpack.c.b16 %v501, %v500
  %v546 = vpack.c.b16 %v503, %v502
  %v547 = vpack.c.b16 %v505, %v504
  %v548 = vpack.c.b16 %v507, %v506
  %v549 = vpack.c.b16 %v509, %v508
  %590 = vmatprep.subr.bf16.mxu0 0
  %591 = vmatpush1.bf16.msra.mxu0 %v517
  %592 = vmatprep.subr.bf16.mxu0 0
  %593 = vmatpush1.bf16.msra.mxu0 %v516
  %594 = vmatprep.subr.bf16.mxu0 0
  %595 = vmatpush1.bf16.msra.mxu0 %v515
  %596 = vmatprep.subr.bf16.mxu0 0
  %597 = vmatpush1.bf16.msra.mxu0 %v514
  %598 = vmatprep.subr.bf16.mxu0 0
  %599 = vmatpush1.bf16.msra.mxu0 %v513
  %600 = vmatprep.subr.bf16.mxu0 0
  %601 = vmatpush1.bf16.msra.mxu0 %v512
  %602 = vmatprep.subr.bf16.mxu0 0
  %603 = vmatpush1.bf16.msra.mxu0 %v511
  %604 = vmatprep.subr.bf16.mxu0 0
  %605 = vmatpush1.bf16.msra.mxu0 %v510
  %606 = vmatprep.subr.bf16.mxu0 0
  %607 = vmatpush2.bf16.msra.mxu0 %v525
  %608 = vmatprep.subr.bf16.mxu0 0
  %609 = vmatpush2.bf16.msra.mxu0 %v524
  %610 = vmatprep.subr.bf16.mxu0 0
  %611 = vmatpush2.bf16.msra.mxu0 %v523
  %612 = vmatprep.subr.bf16.mxu0 0
  %613 = vmatpush2.bf16.msra.mxu0 %v522
  %614 = vmatprep.subr.bf16.mxu0 0
  %615 = vmatpush2.bf16.msra.mxu0 %v521
  %616 = vmatprep.subr.bf16.mxu0 0
  %617 = vmatpush2.bf16.msra.mxu0 %v520
  %618 = vmatprep.subr.bf16.mxu0 0
  %619 = vmatpush2.bf16.msra.mxu0 %v519
  %620 = vmatprep.subr.bf16.mxu0 0
  %621 = vmatpush2.bf16.msra.mxu0 %v518
  %622 = vmatprep.mubr.bf16.mxu0 %v271
  %623 = vmatmul.mubr.bf16.gmra.mxu0 %v270
  %v624 = vpop.f32.mrf.mxu0
  %v625 = vadd.f32 0.0, %v624
  %v626 = vpop.f32.mrf.mxu0
  %v627 = vpop.f32.mrf.mxu0
  %v628 = vadd.f32 0.0, %v627
  %v629 = vpop.f32.mrf.mxu0
  %630 = vmatprep.mubr.bf16.mxu0 %v276
  %631 = vmatmul.mubr.bf16.gmra.mxu0 %v275
  %v632 = vpop.f32.mrf.mxu0
  %v633 = vadd.f32 0.0, %v632
  %v634 = vpop.f32.mrf.mxu0
  %v635 = vpop.f32.mrf.mxu0
  %v636 = vadd.f32 0.0, %v635
  %v637 = vpop.f32.mrf.mxu0
  %638 = vmatprep.mubr.bf16.mxu0 %v281
  %639 = vmatmul.mubr.bf16.gmra.mxu0 %v280
  %v640 = vpop.f32.mrf.mxu0
  %v641 = vadd.f32 0.0, %v640
  %v642 = vpop.f32.mrf.mxu0
  %v643 = vpop.f32.mrf.mxu0
  %v644 = vadd.f32 0.0, %v643
  %v645 = vpop.f32.mrf.mxu0
  %646 = vmatprep.mubr.bf16.mxu0 %v286
  %647 = vmatmul.mubr.bf16.gmra.mxu0 %v285
  %v648 = vpop.f32.mrf.mxu0
  %v649 = vadd.f32 0.0, %v648
  %v650 = vpop.f32.mrf.mxu0
  %v651 = vpop.f32.mrf.mxu0
  %v652 = vadd.f32 0.0, %v651
  %v653 = vpop.f32.mrf.mxu0
  %654 = vmatprep.mubr.bf16.mxu0 %v291
  %655 = vmatmul.mubr.bf16.gmra.mxu0 %v290
  %v656 = vpop.f32.mrf.mxu0
  %v657 = vadd.f32 0.0, %v656
  %v658 = vpop.f32.mrf.mxu0
  %v659 = vpop.f32.mrf.mxu0
  %v660 = vadd.f32 0.0, %v659
  %v661 = vpop.f32.mrf.mxu0
  %662 = vmatprep.mubr.bf16.mxu0 %v296
  %663 = vmatmul.mubr.bf16.gmra.mxu0 %v295
  %v664 = vpop.f32.mrf.mxu0
  %v665 = vadd.f32 0.0, %v664
  %v666 = vpop.f32.mrf.mxu0
  %v667 = vpop.f32.mrf.mxu0
  %v668 = vadd.f32 0.0, %v667
  %v669 = vpop.f32.mrf.mxu0
  %670 = vmatprep.mubr.bf16.mxu0 %v301
  %671 = vmatmul.mubr.bf16.gmra.mxu0 %v300
  %v672 = vpop.f32.mrf.mxu0
  %v673 = vadd.f32 0.0, %v672
  %v674 = vpop.f32.mrf.mxu0
  %v675 = vpop.f32.mrf.mxu0
  %v676 = vadd.f32 0.0, %v675
  %v677 = vpop.f32.mrf.mxu0
  %678 = vmatprep.mubr.bf16.mxu0 %v306
  %679 = vmatmul.mubr.bf16.gmra.mxu0 %v305
  %v680 = vpop.f32.mrf.mxu0
  %v681 = vadd.f32 0.0, %v680
  %v682 = vpop.f32.mrf.mxu0
  %v683 = vpop.f32.mrf.mxu0
  %v684 = vadd.f32 0.0, %v683
  %v685 = vpop.f32.mrf.mxu0
  %686 = vdwg.mxu0
  %687 = vmatprep.subr.bf16.mxu0 0
  %688 = vmatpush1.bf16.msra.mxu0 %v533
  %689 = vmatprep.subr.bf16.mxu0 0
  %690 = vmatpush1.bf16.msra.mxu0 %v532
  %691 = vmatprep.subr.bf16.mxu0 0
  %692 = vmatpush1.bf16.msra.mxu0 %v531
  %693 = vmatprep.subr.bf16.mxu0 0
  %694 = vmatpush1.bf16.msra.mxu0 %v530
  %695 = vmatprep.subr.bf16.mxu0 0
  %696 = vmatpush1.bf16.msra.mxu0 %v529
  %697 = vmatprep.subr.bf16.mxu0 0
  %698 = vmatpush1.bf16.msra.mxu0 %v528
  %699 = vmatprep.subr.bf16.mxu0 0
  %700 = vmatpush1.bf16.msra.mxu0 %v527
  %701 = vmatprep.subr.bf16.mxu0 0
  %702 = vmatpush1.bf16.msra.mxu0 %v526
  %703 = vmatprep.subr.bf16.mxu0 0
  %704 = vmatpush2.bf16.msra.mxu0 %v541
  %705 = vmatprep.subr.bf16.mxu0 0
  %706 = vmatpush2.bf16.msra.mxu0 %v540
  %707 = vmatprep.subr.bf16.mxu0 0
  %708 = vmatpush2.bf16.msra.mxu0 %v539
  %709 = vmatprep.subr.bf16.mxu0 0
  %710 = vmatpush2.bf16.msra.mxu0 %v538
  %711 = vmatprep.subr.bf16.mxu0 0
  %712 = vmatpush2.bf16.msra.mxu0 %v537
  %713 = vmatprep.subr.bf16.mxu0 0
  %714 = vmatpush2.bf16.msra.mxu0 %v536
  %715 = vmatprep.subr.bf16.mxu0 0
  %716 = vmatpush2.bf16.msra.mxu0 %v535
  %717 = vmatprep.subr.bf16.mxu0 0
  %718 = vmatpush2.bf16.msra.mxu0 %v534
  %719 = vmatprep.mubr.bf16.mxu0 %v273
  %720 = vmatmul.mubr.bf16.gmra.mxu0 %v272
  %v721 = vpop.f32.mrf.mxu0
  %v722 = vadd.f32 %v625, %v721
  %v723 = vpop.f32.mrf.mxu0
  %v724 = vpop.f32.mrf.mxu0
  %v725 = vadd.f32 %v628, %v724
  %v726 = vpop.f32.mrf.mxu0
  %727 = vmatprep.mubr.bf16.mxu0 %v278
  %728 = vmatmul.mubr.bf16.gmra.mxu0 %v277
  %v729 = vpop.f32.mrf.mxu0
  %v730 = vadd.f32 %v633, %v729
  %v731 = vpop.f32.mrf.mxu0
  %v732 = vpop.f32.mrf.mxu0
  %v733 = vadd.f32 %v636, %v732
  %v734 = vpop.f32.mrf.mxu0
  %735 = vmatprep.mubr.bf16.mxu0 %v283
  %736 = vmatmul.mubr.bf16.gmra.mxu0 %v282
  %v737 = vpop.f32.mrf.mxu0
  %v738 = vadd.f32 %v641, %v737
  %v739 = vpop.f32.mrf.mxu0
  %v740 = vpop.f32.mrf.mxu0
  %v741 = vadd.f32 %v644, %v740
  %v742 = vpop.f32.mrf.mxu0
  %743 = vmatprep.mubr.bf16.mxu0 %v288
  %744 = vmatmul.mubr.bf16.gmra.mxu0 %v287
  %v745 = vpop.f32.mrf.mxu0
  %v746 = vadd.f32 %v649, %v745
  %v747 = vpop.f32.mrf.mxu0
  %v748 = vpop.f32.mrf.mxu0
  %v749 = vadd.f32 %v652, %v748
  %v750 = vpop.f32.mrf.mxu0
  %751 = vmatprep.mubr.bf16.mxu0 %v293
  %752 = vmatmul.mubr.bf16.gmra.mxu0 %v292
  %v753 = vpop.f32.mrf.mxu0
  %v754 = vadd.f32 %v657, %v753
  %v755 = vpop.f32.mrf.mxu0
  %v756 = vpop.f32.mrf.mxu0
  %v757 = vadd.f32 %v660, %v756
  %v758 = vpop.f32.mrf.mxu0
  %759 = vmatprep.mubr.bf16.mxu0 %v298
  %760 = vmatmul.mubr.bf16.gmra.mxu0 %v297
  %v761 = vpop.f32.mrf.mxu0
  %v762 = vadd.f32 %v665, %v761
  %v763 = vpop.f32.mrf.mxu0
  %v764 = vpop.f32.mrf.mxu0
  %v765 = vadd.f32 %v668, %v764
  %v766 = vpop.f32.mrf.mxu0
  %767 = vmatprep.mubr.bf16.mxu0 %v303
  %768 = vmatmul.mubr.bf16.gmra.mxu0 %v302
  %v769 = vpop.f32.mrf.mxu0
  %v770 = vadd.f32 %v673, %v769
  %v771 = vpop.f32.mrf.mxu0
  %v772 = vpop.f32.mrf.mxu0
  %v773 = vadd.f32 %v676, %v772
  %v774 = vpop.f32.mrf.mxu0
  %775 = vmatprep.mubr.bf16.mxu0 %v308
  %776 = vmatmul.mubr.bf16.gmra.mxu0 %v307
  %v777 = vpop.f32.mrf.mxu0
  %v778 = vadd.f32 %v681, %v777
  %v779 = vpop.f32.mrf.mxu0
  %v780 = vpop.f32.mrf.mxu0
  %v781 = vadd.f32 %v684, %v780
  %v782 = vpop.f32.mrf.mxu0
  %783 = vdwg.mxu0
  %784 = vmatprep.subr.bf16.mxu0 0
  %785 = vmatpush1.bf16.msra.mxu0 %v549
  %786 = vmatprep.subr.bf16.mxu0 0
  %787 = vmatpush1.bf16.msra.mxu0 %v548
  %788 = vmatprep.subr.bf16.mxu0 0
  %789 = vmatpush1.bf16.msra.mxu0 %v547
  %790 = vmatprep.subr.bf16.mxu0 0
  %791 = vmatpush1.bf16.msra.mxu0 %v546
  %792 = vmatprep.subr.bf16.mxu0 0
  %793 = vmatpush1.bf16.msra.mxu0 %v545
  %794 = vmatprep.subr.bf16.mxu0 0
  %795 = vmatpush1.bf16.msra.mxu0 %v544
  %796 = vmatprep.subr.bf16.mxu0 0
  %797 = vmatpush1.bf16.msra.mxu0 %v543
  %798 = vmatprep.subr.bf16.mxu0 0
  %799 = vmatpush1.bf16.msra.mxu0 %v542
  %800 = vmatprep.subr.bf16.mxu0 0
  %801 = vmatpush2.bf16.msra.mxu0 0
  %802 = vmatprep.subr.bf16.mxu0 0
  %803 = vmatpush2.bf16.msra.mxu0 0
  %804 = vmatprep.subr.bf16.mxu0 0
  %805 = vmatpush2.bf16.msra.mxu0 0
  %806 = vmatprep.subr.bf16.mxu0 0
  %807 = vmatpush2.bf16.msra.mxu0 0
  %808 = vmatprep.subr.bf16.mxu0 0
  %809 = vmatpush2.bf16.msra.mxu0 0
  %810 = vmatprep.subr.bf16.mxu0 0
  %811 = vmatpush2.bf16.msra.mxu0 0
  %812 = vmatprep.subr.bf16.mxu0 0
  %813 = vmatpush2.bf16.msra.mxu0 0
  %814 = vmatprep.subr.bf16.mxu0 0
  %815 = vmatpush2.bf16.msra.mxu0 0
  %816 = vmatprep.mubr.bf16.mxu0 0
  %817 = vmatmul.mubr.bf16.gmra.mxu0 %v274
  %v818 = vpop.f32.mrf.mxu0
  %v819 = vadd.f32 %v722, %v818
  %v820 = vpop.f32.mrf.mxu0
  %v821 = vpop.f32.mrf.mxu0
  %v822 = vadd.f32 %v725, %v821
  %v823 = vpop.f32.mrf.mxu0
  %824 = vmatprep.mubr.bf16.mxu0 0
  %825 = vmatmul.mubr.bf16.gmra.mxu0 %v279
  %v826 = vpop.f32.mrf.mxu0
  %v827 = vadd.f32 %v730, %v826
  %v828 = vpop.f32.mrf.mxu0
  %v829 = vpop.f32.mrf.mxu0
  %v830 = vadd.f32 %v733, %v829
  %v831 = vpop.f32.mrf.mxu0
  %832 = vmatprep.mubr.bf16.mxu0 0
  %833 = vmatmul.mubr.bf16.gmra.mxu0 %v284
  %v834 = vpop.f32.mrf.mxu0
  %v835 = vadd.f32 %v738, %v834
  %v836 = vpop.f32.mrf.mxu0
  %v837 = vpop.f32.mrf.mxu0
  %v838 = vadd.f32 %v741, %v837
  %v839 = vpop.f32.mrf.mxu0
  %840 = vmatprep.mubr.bf16.mxu0 0
  %841 = vmatmul.mubr.bf16.gmra.mxu0 %v289
  %v842 = vpop.f32.mrf.mxu0
  %v843 = vadd.f32 %v746, %v842
  %v844 = vpop.f32.mrf.mxu0
  %v845 = vpop.f32.mrf.mxu0
  %v846 = vadd.f32 %v749, %v845
  %v847 = vpop.f32.mrf.mxu0
  %848 = vmatprep.mubr.bf16.mxu0 0
  %849 = vmatmul.mubr.bf16.gmra.mxu0 %v294
  %v850 = vpop.f32.mrf.mxu0
  %v851 = vadd.f32 %v754, %v850
  %v852 = vpop.f32.mrf.mxu0
  %v853 = vpop.f32.mrf.mxu0
  %v854 = vadd.f32 %v757, %v853
  %v855 = vpop.f32.mrf.mxu0
  %856 = vmatprep.mubr.bf16.mxu0 0
  %857 = vmatmul.mubr.bf16.gmra.mxu0 %v299
  %v858 = vpop.f32.mrf.mxu0
  %v859 = vadd.f32 %v762, %v858
  %v860 = vpop.f32.mrf.mxu0
  %v861 = vpop.f32.mrf.mxu0
  %v862 = vadd.f32 %v765, %v861
  %v863 = vpop.f32.mrf.mxu0
  %864 = vmatprep.mubr.bf16.mxu0 0
  %865 = vmatmul.mubr.bf16.gmra.mxu0 %v304
  %v866 = vpop.f32.mrf.mxu0
  %v867 = vadd.f32 %v770, %v866
  %v868 = vpop.f32.mrf.mxu0
  %v869 = vpop.f32.mrf.mxu0
  %v870 = vadd.f32 %v773, %v869
  %v871 = vpop.f32.mrf.mxu0
  %872 = vmatprep.mubr.bf16.mxu0 0
  %873 = vmatmul.mubr.bf16.gmra.mxu0 %v309
  %v874 = vpop.f32.mrf.mxu0
  %v875 = vadd.f32 %v778, %v874
  %v876 = vpop.f32.mrf.mxu0
  %v877 = vpop.f32.mrf.mxu0
  %v878 = vadd.f32 %v781, %v877
  %v879 = vpop.f32.mrf.mxu0
  %880 = vdwg.mxu0
  %v881 = vpack.c.bf16 %v822, %v819
  %v882 = vpack.c.bf16 %v830, %v827
  %v883 = vpack.c.bf16 %v838, %v835
  %v884 = vpack.c.bf16 %v846, %v843
  %v885 = vpack.c.bf16 %v854, %v851
  %v886 = vpack.c.bf16 %v862, %v859
  %v887 = vpack.c.bf16 %v870, %v867
  %v888 = vpack.c.bf16 %v878, %v875
  %v897 = vunpack.c.l.b16 %v881
  %v898 = vunpack.c.h.b16 %v881
  %v899 = vunpack.c.l.b16 %v882
  %v900 = vunpack.c.h.b16 %v882
  %v901 = vunpack.c.l.b16 %v883
  %v902 = vunpack.c.h.b16 %v883
  %v903 = vunpack.c.l.b16 %v884
  %v904 = vunpack.c.h.b16 %v884
  %v905 = vunpack.c.l.b16 %v885
  %v906 = vunpack.c.h.b16 %v885
  %v907 = vunpack.c.l.b16 %v886
  %v908 = vunpack.c.h.b16 %v886
  %v909 = vunpack.c.l.b16 %v887
  %v910 = vunpack.c.h.b16 %v887
  %v911 = vunpack.c.l.b16 %v888
  %v912 = vunpack.c.h.b16 %v888
  %v913 = vpack.c.b16 %v897, %v897
  %v914 = vpack.c.b16 %v898, %v898
  %v915 = vpack.c.b16 %v899, %v899
  %v916 = vpack.c.b16 %v900, %v900
  %v917 = vpack.c.b16 %v901, %v901
  %v918 = vpack.c.b16 %v902, %v902
  %v919 = vpack.c.b16 %v903, %v903
  %v920 = vpack.c.b16 %v904, %v904
  %v921 = vpack.c.b16 %v905, %v905
  %v922 = vpack.c.b16 %v906, %v906
  %v923 = vpack.c.b16 %v907, %v907
  %v924 = vpack.c.b16 %v908, %v908
  %v925 = vpack.c.b16 %v909, %v909
  %v926 = vpack.c.b16 %v910, %v910
  %v927 = vpack.c.b16 %v911, %v911
  %v928 = vpack.c.b16 %v912, %v912
  %vm945 = vcmask 519168
  %946 = vst.msk [vmem:[%s2] sm:$0xf] %vm945, %v913
  %947 = vst.msk [vmem:[%s2 + $0x4] sm:$0xf] %vm945, %v914
  %948 = vst.msk [vmem:[%s2 + $0x8] sm:$0xf] %vm945, %v915
  %949 = vst.msk [vmem:[%s2 + $0xc] sm:$0xf] %vm945, %v916
  %950 = vst.msk [vmem:[%s2 + $0x10] sm:$0xf] %vm945, %v917
  %951 = vst.msk [vmem:[%s2 + $0x14] sm:$0xf] %vm945, %v918
  %952 = vst.msk [vmem:[%s2 + $0x18] sm:$0xf] %vm945, %v919
  %953 = vst.msk [vmem:[%s2 + $0x1c] sm:$0xf] %vm945, %v920
  %954 = vst.msk [vmem:[%s2 + $0x20] sm:$0xf] %vm945, %v921
  %955 = vst.msk [vmem:[%s2 + $0x24] sm:$0xf] %vm945, %v922
  %956 = vst.msk [vmem:[%s2 + $0x28] sm:$0xf] %vm945, %v923
  %957 = vst.msk [vmem:[%s2 + $0x2c] sm:$0xf] %vm945, %v924
  %958 = vst.msk [vmem:[%s2 + $0x30] sm:$0xf] %vm945, %v925
  %959 = vst.msk [vmem:[%s2 + $0x34] sm:$0xf] %vm945, %v926
  %960 = vst.msk [vmem:[%s2 + $0x38] sm:$0xf] %vm945, %v927
  %961 = vst.msk [vmem:[%s2 + $0x3c] sm:$0xf] %vm945, %v928
  %p962 = scmp.eq.s32.totalorder 0, 0
  // Predicated region
  $region10: #{backbone_forward.34} parent=0 // pred_check
    %p963 = pneg %p962
  $region11: #{backbone_forward.34} parent=0 // pred_check_branch
    %965 = sbr.rel (%p963) target = $region13
  $region12: #{backbone_forward.34} parent=0 // pred_region
    %vm966 = vcmask 517120
    %967 = vst.msk [vmem:[%s3] sm:$0x3] %vm966, 0.0
  $region13: #{backbone_forward.34} parent=0 // pred_fallthru
    _
  %vm968 = vcmask 523264
  %v969 = vsel %vm968, %v819, 0.0
  %v970 = vsel %vm968, %v822, 0.0
  %v971 = vadd.f32 %v969, %v970
  %v972 = vsel %vm968, %v827, 0.0
  %v973 = vadd.f32 %v971, %v972
  %v974 = vsel %vm968, %v830, 0.0
  %v975 = vadd.f32 %v973, %v974
  %v976 = vsel %vm968, %v835, 0.0
  %v977 = vadd.f32 %v975, %v976
  %v978 = vsel %vm968, %v838, 0.0
  %v979 = vadd.f32 %v977, %v978
  %v980 = vsel %vm968, %v843, 0.0
  %v981 = vadd.f32 %v979, %v980
  %v982 = vsel %vm968, %v846, 0.0
  %v983 = vadd.f32 %v981, %v982
  %v984 = vsel %vm968, %v851, 0.0
  %v985 = vadd.f32 %v983, %v984
  %v986 = vsel %vm968, %v854, 0.0
  %v987 = vadd.f32 %v985, %v986
  %v988 = vsel %vm968, %v859, 0.0
  %v989 = vadd.f32 %v987, %v988
  %v990 = vsel %vm968, %v862, 0.0
  %v991 = vadd.f32 %v989, %v990
  %v992 = vsel %vm968, %v867, 0.0
  %v993 = vadd.f32 %v991, %v992
  %v994 = vsel %vm968, %v870, 0.0
  %v995 = vadd.f32 %v993, %v994
  %v996 = vsel %vm968, %v875, 0.0
  %v997 = vadd.f32 %v995, %v996
  %v998 = vsel %vm968, %v878, 0.0
  %v999 = vadd.f32 %v997, %v998
  %v1000 = vrot.slane %v999, 4
  %v1001 = vadd.f32 %v999, %v1000
  %v1002 = vrot.slane %v1001, 2
  %v1003 = vadd.f32 %v1001, %v1002
  %v1004 = vrot.slane %v1003, 1
  %v1005 = vadd.f32 %v1003, %v1004
  %v1006 = vmul.f32 %v819, %v819
  %v1007 = vmul.f32 %v822, %v822
  %v1008 = vmul.f32 %v827, %v827
  %v1009 = vmul.f32 %v830, %v830
  %v1010 = vmul.f32 %v835, %v835
  %v1011 = vmul.f32 %v838, %v838
  %v1012 = vmul.f32 %v843, %v843
  %v1013 = vmul.f32 %v846, %v846
  %v1014 = vmul.f32 %v851, %v851
  %v1015 = vmul.f32 %v854, %v854
  %v1016 = vmul.f32 %v859, %v859
  %v1017 = vmul.f32 %v862, %v862
  %v1018 = vmul.f32 %v867, %v867
  %v1019 = vmul.f32 %v870, %v870
  %v1020 = vmul.f32 %v875, %v875
  %v1021 = vmul.f32 %v878, %v878
  %v1022 = vsel %vm968, %v1006, 0.0
  %v1023 = vsel %vm968, %v1007, 0.0
  %v1024 = vadd.f32 %v1022, %v1023
  %v1025 = vsel %vm968, %v1008, 0.0
  %v1026 = vadd.f32 %v1024, %v1025
  %v1027 = vsel %vm968, %v1009, 0.0
  %v1028 = vadd.f32 %v1026, %v1027
  %v1029 = vsel %vm968, %v1010, 0.0
  %v1030 = vadd.f32 %v1028, %v1029
  %v1031 = vsel %vm968, %v1011, 0.0
  %v1032 = vadd.f32 %v1030, %v1031
  %v1033 = vsel %vm968, %v1012, 0.0
  %v1034 = vadd.f32 %v1032, %v1033
  %v1035 = vsel %vm968, %v1013, 0.0
  %v1036 = vadd.f32 %v1034, %v1035
  %v1037 = vsel %vm968, %v1014, 0.0
  %v1038 = vadd.f32 %v1036, %v1037
  %v1039 = vsel %vm968, %v1015, 0.0
  %v1040 = vadd.f32 %v1038, %v1039
  %v1041 = vsel %vm968, %v1016, 0.0
  %v1042 = vadd.f32 %v1040, %v1041
  %v1043 = vsel %vm968, %v1017, 0.0
  %v1044 = vadd.f32 %v1042, %v1043
  %v1045 = vsel %vm968, %v1018, 0.0
  %v1046 = vadd.f32 %v1044, %v1045
  %v1047 = vsel %vm968, %v1019, 0.0
  %v1048 = vadd.f32 %v1046, %v1047
  %v1049 = vsel %vm968, %v1020, 0.0
  %v1050 = vadd.f32 %v1048, %v1049
  %v1051 = vsel %vm968, %v1021, 0.0
  %v1052 = vadd.f32 %v1050, %v1051
  %v1053 = vrot.slane %v1052, 4
  %v1054 = vadd.f32 %v1052, %v1053
  %v1055 = vrot.slane %v1054, 2
  %v1056 = vadd.f32 %v1054, %v1055
  %v1057 = vrot.slane %v1056, 1
  %v1058 = vadd.f32 %v1056, %v1057
  %v1059 = vld [vmem:[%s3] sm:$0x3]
  %vm1060 = vcmask 1040384
  %v1061 = vsel %vm1060, %v1005, %v1058
  %v1062 = vadd.f32 %v1059, %v1061
  %vm1063 = vcmask 517120
  %1064 = vst.msk [vmem:[%s3] sm:$0x3] %vm1063, %v1062
  // Predicated region
  $region14: #{backbone_forward.34} parent=0 // pred_check
    _
  $region15: #{backbone_forward.34} parent=0 // pred_check_branch
    %1066 = sbr.rel (0) target = $region17
  $region16: #{backbone_forward.34} parent=0 // pred_region
    _
  $region17: #{backbone_forward.34} parent=0 // pred_fallthru
    _
  // Predicated region
  $region18: #{backbone_forward.34} parent=0 // pred_check
    _
  $region19: #{backbone_forward.34} parent=0 // pred_check_branch
    %1068 = sbr.rel (0) target = $region21
  $region20: #{backbone_forward.34} parent=0 // pred_region
    _
  $region21: #{backbone_forward.34} parent=0 // pred_fallthru
    _
  // Predicated region
  $region22: #{backbone_forward.34} parent=0 // pred_check
    _
  $region23: #{backbone_forward.34} parent=0 // pred_check_branch
    %1070 = sbr.rel (0) target = $region25
  $region24: #{backbone_forward.34} parent=0 // pred_region
    _
  $region25: #{backbone_forward.34} parent=0 // pred_fallthru
    _
  // Predicated region
  $region26: #{backbone_forward.34} parent=0 // pred_check
    _
  $region27: #{backbone_forward.34} parent=0 // pred_check_branch
    %1072 = sbr.rel (0) target = $region29
  $region28: #{backbone_forward.34} parent=0 // pred_region
    _
  $region29: #{backbone_forward.34} parent=0 // pred_fallthru
    _

// kernel: backbone_forward.35
$region0: #{backbone_forward.35}
  #allocation0 [shape = 'u32[]', space=smem, size = 0x4, offset = 0x4, fixed_abs, tag = 'smem constant byte address 0x4 - core index']
  #allocation1 [shape = 'u32[144,128]{1,0:T(1,128)}', space=vmem, size = 0x12000, scoped, tag = 'internal scratch']
  %s0 = inlined_call_operand.vmem [shape: bf16[128,64], index: 0, kind: input, shape index: {}]
  %s1 = inlined_call_operand.vmem [shape: f32[1,64], index: 1, kind: input, shape index: {}]
  %s2 = inlined_call_operand.vmem [shape: f32[1,64], index: 2, kind: input, shape index: {}]
  %s3 = inlined_call_operand.vmem [shape: bf16[128,64], index: 3, kind: output, shape index: {}]
  %s4 = sld [smem:[#allocation0]]
  $region22: #{backbone_forward.35} parent=0
    _
  %s6 = ssub.s32 1, %s4
  %s7 = scalar_select 0, %s6, %s4
  // Predicated region
  $region2: #{backbone_forward.35} parent=0 // pred_check
    _
  $region3: #{backbone_forward.35} parent=0 // pred_check_branch
    %9 = sbr.rel (0) target = $region5
  $region4: #{backbone_forward.35} parent=0 // pred_region
    _
  $region5: #{backbone_forward.35} parent=0 // pred_fallthru
    _
  // Predicated region
  $region6: #{backbone_forward.35} parent=0 // pred_check
    _
  $region7: #{backbone_forward.35} parent=0 // pred_check_branch
    %11 = sbr.rel (0) target = $region9
  $region8: #{backbone_forward.35} parent=0 // pred_region
    _
  $region9: #{backbone_forward.35} parent=0 // pred_fallthru
    _
  // Predicated region
  $region10: #{backbone_forward.35} parent=0 // pred_check
    _
  $region11: #{backbone_forward.35} parent=0 // pred_check_branch
    %13 = sbr.rel (0) target = $region13
  $region12: #{backbone_forward.35} parent=0 // pred_region
    _
  $region13: #{backbone_forward.35} parent=0 // pred_fallthru
    _
  %v14 = vld [vmem:[%s0] sm:$0xf]
  %v15 = vld [vmem:[%s0 + $0x4] sm:$0xf]
  %v16 = vld [vmem:[%s0 + $0x8] sm:$0xf]
  %v17 = vld [vmem:[%s0 + $0xc] sm:$0xf]
  %v18 = vld [vmem:[%s0 + $0x10] sm:$0xf]
  %v19 = vld [vmem:[%s0 + $0x14] sm:$0xf]
  %v20 = vld [vmem:[%s0 + $0x18] sm:$0xf]
  %v21 = vld [vmem:[%s0 + $0x1c] sm:$0xf]
  %v22 = vld [vmem:[%s0 + $0x20] sm:$0xf]
  %v23 = vld [vmem:[%s0 + $0x24] sm:$0xf]
  %v24 = vld [vmem:[%s0 + $0x28] sm:$0xf]
  %v25 = vld [vmem:[%s0 + $0x2c] sm:$0xf]
  %v26 = vld [vmem:[%s0 + $0x30] sm:$0xf]
  %v27 = vld [vmem:[%s0 + $0x34] sm:$0xf]
  %v28 = vld [vmem:[%s0 + $0x38] sm:$0xf]
  %v29 = vld [vmem:[%s0 + $0x3c] sm:$0xf]
  %v30 = vunpack.c.l.bf16 %v14
  %v31 = vunpack.c.l.bf16 %v15
  %v32 = vunpack.c.l.bf16 %v16
  %v33 = vunpack.c.l.bf16 %v17
  %v34 = vunpack.c.l.bf16 %v18
  %v35 = vunpack.c.l.bf16 %v19
  %v36 = vunpack.c.l.bf16 %v20
  %v37 = vunpack.c.l.bf16 %v21
  %v38 = vunpack.c.l.bf16 %v22
  %v39 = vunpack.c.l.bf16 %v23
  %v40 = vunpack.c.l.bf16 %v24
  %v41 = vunpack.c.l.bf16 %v25
  %v42 = vunpack.c.l.bf16 %v26
  %v43 = vunpack.c.l.bf16 %v27
  %v44 = vunpack.c.l.bf16 %v28
  %v45 = vunpack.c.l.bf16 %v29
  %v46 = vld [vmem:[%s1] sm:$0x1]
  %v48 = vlaneseq
  %v49 = vshrl.u32 %v48, 7
  %v50 = vsub.s32 0, %v49
  %v51 = vrot.slane %v46, %v50
  %v53 = vmul.f32 %v30, %v51
  %v54 = vmul.f32 %v31, %v51
  %v55 = vmul.f32 %v32, %v51
  %v56 = vmul.f32 %v33, %v51
  %v57 = vmul.f32 %v34, %v51
  %v58 = vmul.f32 %v35, %v51
  %v59 = vmul.f32 %v36, %v51
  %v60 = vmul.f32 %v37, %v51
  %v61 = vmul.f32 %v38, %v51
  %v62 = vmul.f32 %v39, %v51
  %v63 = vmul.f32 %v40, %v51
  %v64 = vmul.f32 %v41, %v51
  %v65 = vmul.f32 %v42, %v51
  %v66 = vmul.f32 %v43, %v51
  %v67 = vmul.f32 %v44, %v51
  %v68 = vmul.f32 %v45, %v51
  %v69 = vld [vmem:[%s2] sm:$0x1]
  %v71 = vlaneseq
  %v72 = vshrl.u32 %v71, 7
  %v73 = vsub.s32 0, %v72
  %v74 = vrot.slane %v69, %v73
  %v76 = vadd.f32 %v53, %v74
  %v77 = vadd.f32 %v54, %v74
  %v78 = vadd.f32 %v55, %v74
  %v79 = vadd.f32 %v56, %v74
  %v80 = vadd.f32 %v57, %v74
  %v81 = vadd.f32 %v58, %v74
  %v82 = vadd.f32 %v59, %v74
  %v83 = vadd.f32 %v60, %v74
  %v84 = vadd.f32 %v61, %v74
  %v85 = vadd.f32 %v62, %v74
  %v86 = vadd.f32 %v63, %v74
  %v87 = vadd.f32 %v64, %v74
  %v88 = vadd.f32 %v65, %v74
  %v89 = vadd.f32 %v66, %v74
  %v90 = vadd.f32 %v67, %v74
  %v91 = vadd.f32 %v68, %v74
  %v92 = vmax.f32 %v76, 0.0
  %v93 = vmax.f32 %v77, 0.0
  %v94 = vmax.f32 %v78, 0.0
  %v95 = vmax.f32 %v79, 0.0
  %v96 = vmax.f32 %v80, 0.0
  %v97 = vmax.f32 %v81, 0.0
  %v98 = vmax.f32 %v82, 0.0
  %v99 = vmax.f32 %v83, 0.0
  %v100 = vmax.f32 %v84, 0.0
  %v101 = vmax.f32 %v85, 0.0
  %v102 = vmax.f32 %v86, 0.0
  %v103 = vmax.f32 %v87, 0.0
  %v104 = vmax.f32 %v88, 0.0
  %v105 = vmax.f32 %v89, 0.0
  %v106 = vmax.f32 %v90, 0.0
  %v107 = vmax.f32 %v91, 0.0
  %v108 = vpack.c.bf16 %v93, %v92
  %v109 = vpack.c.bf16 %v95, %v94
  %v110 = vpack.c.bf16 %v97, %v96
  %v111 = vpack.c.bf16 %v99, %v98
  %v112 = vpack.c.bf16 %v101, %v100
  %v113 = vpack.c.bf16 %v103, %v102
  %v114 = vpack.c.bf16 %v105, %v104
  %v115 = vpack.c.bf16 %v107, %v106
  %v124 = vunpack.c.l.b16 %v108
  %v125 = vunpack.c.h.b16 %v108
  %v126 = vunpack.c.l.b16 %v109
  %v127 = vunpack.c.h.b16 %v109
  %v128 = vunpack.c.l.b16 %v110
  %v129 = vunpack.c.h.b16 %v110
  %v130 = vunpack.c.l.b16 %v111
  %v131 = vunpack.c.h.b16 %v111
  %v132 = vunpack.c.l.b16 %v112
  %v133 = vunpack.c.h.b16 %v112
  %v134 = vunpack.c.l.b16 %v113
  %v135 = vunpack.c.h.b16 %v113
  %v136 = vunpack.c.l.b16 %v114
  %v137 = vunpack.c.h.b16 %v114
  %v138 = vunpack.c.l.b16 %v115
  %v139 = vunpack.c.h.b16 %v115
  %v140 = vpack.c.b16 %v124, %v124
  %v141 = vpack.c.b16 %v125, %v125
  %v142 = vpack.c.b16 %v126, %v126
  %v143 = vpack.c.b16 %v127, %v127
  %v144 = vpack.c.b16 %v128, %v128
  %v145 = vpack.c.b16 %v129, %v129
  %v146 = vpack.c.b16 %v130, %v130
  %v147 = vpack.c.b16 %v131, %v131
  %v148 = vpack.c.b16 %v132, %v132
  %v149 = vpack.c.b16 %v133, %v133
  %v150 = vpack.c.b16 %v134, %v134
  %v151 = vpack.c.b16 %v135, %v135
  %v152 = vpack.c.b16 %v136, %v136
  %v153 = vpack.c.b16 %v137, %v137
  %v154 = vpack.c.b16 %v138, %v138
  %v155 = vpack.c.b16 %v139, %v139
  %vm172 = vcmask 519168
  %173 = vst.msk [vmem:[%s3] sm:$0xf] %vm172, %v140
  %174 = vst.msk [vmem:[%s3 + $0x4] sm:$0xf] %vm172, %v141
  %175 = vst.msk [vmem:[%s3 + $0x8] sm:$0xf] %vm172, %v142
  %176 = vst.msk [vmem:[%s3 + $0xc] sm:$0xf] %vm172, %v143
  %177 = vst.msk [vmem:[%s3 + $0x10] sm:$0xf] %vm172, %v144
  %178 = vst.msk [vmem:[%s3 + $0x14] sm:$0xf] %vm172, %v145
  %179 = vst.msk [vmem:[%s3 + $0x18] sm:$0xf] %vm172, %v146
  %180 = vst.msk [vmem:[%s3 + $0x1c] sm:$0xf] %vm172, %v147
  %181 = vst.msk [vmem:[%s3 + $0x20] sm:$0xf] %vm172, %v148
  %182 = vst.msk [vmem:[%s3 + $0x24] sm:$0xf] %vm172, %v149
  %183 = vst.msk [vmem:[%s3 + $0x28] sm:$0xf] %vm172, %v150
  %184 = vst.msk [vmem:[%s3 + $0x2c] sm:$0xf] %vm172, %v151
  %185 = vst.msk [vmem:[%s3 + $0x30] sm:$0xf] %vm172, %v152
  %186 = vst.msk [vmem:[%s3 + $0x34] sm:$0xf] %vm172, %v153
  %187 = vst.msk [vmem:[%s3 + $0x38] sm:$0xf] %vm172, %v154
  %188 = vst.msk [vmem:[%s3 + $0x3c] sm:$0xf] %vm172, %v155
  // Predicated region
  $region14: #{backbone_forward.35} parent=0 // pred_check
    _
  $region15: #{backbone_forward.35} parent=0 // pred_check_branch
    %190 = sbr.rel (0) target = $region17
  $region16: #{backbone_forward.35} parent=0 // pred_region
    _
  $region17: #{backbone_forward.35} parent=0 // pred_fallthru
    _
  // Predicated region
  $region18: #{backbone_forward.35} parent=0 // pred_check
    _
  $region19: #{backbone_forward.35} parent=0 // pred_check_branch
    %192 = sbr.rel (0) target = $region21
  $region20: #{backbone_forward.35} parent=0 // pred_region
    _
  $region21: #{backbone_forward.35} parent=0 // pred_fallthru
    _

// kernel: backbone_forward.44
$region0: #{backbone_forward.44}
  #allocation0 [shape = 'u32[]', space=smem, size = 0x4, offset = 0x4, fixed_abs, tag = 'smem constant byte address 0x4 - core index']
  #allocation1 [shape = 'u32[144,128]{1,0:T(1,128)}', space=vmem, size = 0x12000, scoped, tag = 'internal scratch']
  %s0 = inlined_call_operand.vmem [shape: bf16[32,128], index: 0, kind: input, shape index: {}]
  %s1 = inlined_call_operand.vmem [shape: bf16[128,128], index: 1, kind: input, shape index: {}]
  %s2 = inlined_call_operand.vmem [shape: bf16[32,128], index: 2, kind: output, shape index: {0}]
  %s3 = inlined_call_operand.vmem [shape: f32[2,128], index: 3, kind: output, shape index: {1}]
  %4 = xla_tuple %s2, %s3
  %s5 = sld [smem:[#allocation0]]
  $region30: #{backbone_forward.44} parent=0
    _
  %s7 = ssub.s32 1, %s5
  %s8 = scalar_select 0, %s7, %s5
  // Predicated region
  $region2: #{backbone_forward.44} parent=0 // pred_check
    _
  $region3: #{backbone_forward.44} parent=0 // pred_check_branch
    %10 = sbr.rel (0) target = $region5
  $region4: #{backbone_forward.44} parent=0 // pred_region
    _
  $region5: #{backbone_forward.44} parent=0 // pred_fallthru
    _
  // Predicated region
  $region6: #{backbone_forward.44} parent=0 // pred_check
    _
  $region7: #{backbone_forward.44} parent=0 // pred_check_branch
    %12 = sbr.rel (0) target = $region9
  $region8: #{backbone_forward.44} parent=0 // pred_region
    _
  $region9: #{backbone_forward.44} parent=0 // pred_fallthru
    _
  %v14 = vld [vmem:[%s0] sm:$0xf]
  %v15 = vld [vmem:[%s0 + $0x4] sm:$0xf]
  %v16 = vld [vmem:[%s0 + $0x8] sm:$0xf]
  %v17 = vld [vmem:[%s0 + $0xc] sm:$0xf]
  %v18 = vld [vmem:[%s1] sm:$0xf]
  %v19 = vld [vmem:[%s1 + $0x4] sm:$0xf]
  %v20 = vld [vmem:[%s1 + $0x8] sm:$0xf]
  %v21 = vld [vmem:[%s1 + $0xc] sm:$0xf]
  %v22 = vld [vmem:[%s1 + $0x10] sm:$0xf]
  %v23 = vld [vmem:[%s1 + $0x14] sm:$0xf]
  %v24 = vld [vmem:[%s1 + $0x18] sm:$0xf]
  %v25 = vld [vmem:[%s1 + $0x1c] sm:$0xf]
  %v26 = vld [vmem:[%s1 + $0x20] sm:$0xf]
  %v27 = vld [vmem:[%s1 + $0x24] sm:$0xf]
  %v28 = vld [vmem:[%s1 + $0x28] sm:$0xf]
  %v29 = vld [vmem:[%s1 + $0x2c] sm:$0xf]
  %v30 = vld [vmem:[%s1 + $0x30] sm:$0xf]
  %v31 = vld [vmem:[%s1 + $0x34] sm:$0xf]
  %v32 = vld [vmem:[%s1 + $0x38] sm:$0xf]
  %v33 = vld [vmem:[%s1 + $0x3c] sm:$0xf]
  %v38 = vunpack.c.l.b16 %v14
  %v39 = vunpack.c.l.b16 %v15
  %v40 = vunpack.c.l.b16 %v16
  %v41 = vunpack.c.l.b16 %v17
  %v42 = vpack.c.b16 %v39, %v38
  %v43 = vpack.c.b16 %v41, %v40
  %v62 = vunpack.c.l.b16 %v18
  %v63 = vunpack.c.l.b16 %v19
  %v64 = vunpack.c.l.b16 %v20
  %v65 = vunpack.c.l.b16 %v21
  %v66 = vunpack.c.l.b16 %v22
  %v67 = vunpack.c.l.b16 %v23
  %v68 = vunpack.c.l.b16 %v24
  %v69 = vunpack.c.l.b16 %v25
  %v70 = vunpack.c.l.b16 %v26
  %v71 = vunpack.c.l.b16 %v27
  %v72 = vunpack.c.l.b16 %v28
  %v73 = vunpack.c.l.b16 %v29
  %v74 = vunpack.c.l.b16 %v30
  %v75 = vunpack.c.l.b16 %v31
  %v76 = vunpack.c.l.b16 %v32
  %v77 = vunpack.c.l.b16 %v33
  %v78 = vpack.c.b16 %v63, %v62
  %v79 = vpack.c.b16 %v65, %v64
  %v80 = vpack.c.b16 %v67, %v66
  %v81 = vpack.c.b16 %v69, %v68
  %v82 = vpack.c.b16 %v71, %v70
  %v83 = vpack.c.b16 %v73, %v72
  %v84 = vpack.c.b16 %v75, %v74
  %v85 = vpack.c.b16 %v77, %v76
  %94 = vmatprep.subr.bf16.mxu0 0
  %95 = vmatpush1.bf16.msra.mxu0 %v85
  %96 = vmatprep.subr.bf16.mxu0 0
  %97 = vmatpush1.bf16.msra.mxu0 %v84
  %98 = vmatprep.subr.bf16.mxu0 0
  %99 = vmatpush1.bf16.msra.mxu0 %v83
  %100 = vmatprep.subr.bf16.mxu0 0
  %101 = vmatpush1.bf16.msra.mxu0 %v82
  %102 = vmatprep.subr.bf16.mxu0 0
  %103 = vmatpush1.bf16.msra.mxu0 %v81
  %104 = vmatprep.subr.bf16.mxu0 0
  %105 = vmatpush1.bf16.msra.mxu0 %v80
  %106 = vmatprep.subr.bf16.mxu0 0
  %107 = vmatpush1.bf16.msra.mxu0 %v79
  %108 = vmatprep.subr.bf16.mxu0 0
  %109 = vmatpush1.bf16.msra.mxu0 %v78
  %110 = vmatprep.subr.bf16.mxu0 0
  %111 = vmatpush2.bf16.msra.mxu0 0
  %112 = vmatprep.subr.bf16.mxu0 0
  %113 = vmatpush2.bf16.msra.mxu0 0
  %114 = vmatprep.subr.bf16.mxu0 0
  %115 = vmatpush2.bf16.msra.mxu0 0
  %116 = vmatprep.subr.bf16.mxu0 0
  %117 = vmatpush2.bf16.msra.mxu0 0
  %118 = vmatprep.subr.bf16.mxu0 0
  %119 = vmatpush2.bf16.msra.mxu0 0
  %120 = vmatprep.subr.bf16.mxu0 0
  %121 = vmatpush2.bf16.msra.mxu0 0
  %122 = vmatprep.subr.bf16.mxu0 0
  %123 = vmatpush2.bf16.msra.mxu0 0
  %124 = vmatprep.subr.bf16.mxu0 0
  %125 = vmatpush2.bf16.msra.mxu0 0
  %126 = vmatprep.mubr.bf16.mxu0 0
  %127 = vmatmul.mubr.bf16.gmra.mxu0 %v42
  %v128 = vpop.f32.mrf.mxu0
  %v129 = vadd.f32 0.0, %v128
  %v130 = vpop.f32.mrf.mxu0
  %v131 = vpop.f32.mrf.mxu0
  %v132 = vadd.f32 0.0, %v131
  %v133 = vpop.f32.mrf.mxu0
  %134 = vmatprep.mubr.bf16.mxu0 0
  %135 = vmatmul.mubr.bf16.gmra.mxu0 %v43
  %v136 = vpop.f32.mrf.mxu0
  %v137 = vadd.f32 0.0, %v136
  %v138 = vpop.f32.mrf.mxu0
  %v139 = vpop.f32.mrf.mxu0
  %v140 = vadd.f32 0.0, %v139
  %v141 = vpop.f32.mrf.mxu0
  %142 = vdwg.mxu0
  %v143 = vpack.c.bf16 %v132, %v129
  %v144 = vpack.c.bf16 %v140, %v137
  %v147 = vunpack.c.l.b16 %v143
  %v148 = vunpack.c.h.b16 %v143
  %v149 = vunpack.c.l.b16 %v144
  %v150 = vunpack.c.h.b16 %v144
  %v151 = vpack.c.b16 %v147, %v147
  %v152 = vpack.c.b16 %v148, %v148
  %v153 = vpack.c.b16 %v149, %v149
  %v154 = vpack.c.b16 %v150, %v150
  %159 = vst [vmem:[%s2] sm:$0xf] %v151
  %160 = vst [vmem:[%s2 + $0x4] sm:$0xf] %v152
  %161 = vst [vmem:[%s2 + $0x8] sm:$0xf] %v153
  %162 = vst [vmem:[%s2 + $0xc] sm:$0xf] %v154
  %p163 = scmp.eq.s32.totalorder 0, 0
  // Predicated region
  $region10: #{backbone_forward.44} parent=0 // pred_check
    %p164 = pneg %p163
  $region11: #{backbone_forward.44} parent=0 // pred_check_branch
    %166 = sbr.rel (%p164) target = $region13
  $region12: #{backbone_forward.44} parent=0 // pred_region
    %167 = vst [vmem:[%s3] sm:$0x3] 0.0
  $region13: #{backbone_forward.44} parent=0 // pred_fallthru
    _
  %v168 = vadd.f32 %v129, %v132
  %v169 = vadd.f32 %v168, %v137
  %v170 = vadd.f32 %v169, %v140
  %v171 = vrot.slane %v170, 4
  %v172 = vadd.f32 %v170, %v171
  %v173 = vrot.slane %v172, 2
  %v174 = vadd.f32 %v172, %v173
  %v175 = vrot.slane %v174, 1
  %v176 = vadd.f32 %v174, %v175
  %v177 = vmul.f32 %v129, %v129
  %v178 = vmul.f32 %v132, %v132
  %v179 = vmul.f32 %v137, %v137
  %v180 = vmul.f32 %v140, %v140
  %v181 = vadd.f32 %v177, %v178
  %v182 = vadd.f32 %v181, %v179
  %v183 = vadd.f32 %v182, %v180
  %v184 = vrot.slane %v183, 4
  %v185 = vadd.f32 %v183, %v184
  %v186 = vrot.slane %v185, 2
  %v187 = vadd.f32 %v185, %v186
  %v188 = vrot.slane %v187, 1
  %v189 = vadd.f32 %v187, %v188
  %v190 = vld [vmem:[%s3] sm:$0x3]
  %vm191 = vcmask 1040384
  %v192 = vsel %vm191, %v176, %v189
  %v193 = vadd.f32 %v190, %v192
  %194 = vst [vmem:[%s3] sm:$0x3] %v193
  // Predicated region
  $region14: #{backbone_forward.44} parent=0 // pred_check
    _
  $region15: #{backbone_forward.44} parent=0 // pred_check_branch
    %196 = sbr.rel (0) target = $region17
  $region16: #{backbone_forward.44} parent=0 // pred_region
    _
  $region17: #{backbone_forward.44} parent=0 // pred_fallthru
    _
  // Predicated region
  $region18: #{backbone_forward.44} parent=0 // pred_check
    _
  $region19: #{backbone_forward.44} parent=0 // pred_check_branch
    %198 = sbr.rel (0) target = $region21
  $region20: #{backbone_forward.44} parent=0 // pred_region
    _
  $region21: #{backbone_forward.44} parent=0 // pred_fallthru
    _
  // Predicated region
  $region22: #{backbone_forward.44} parent=0 // pred_check
    _
  $region23: #{backbone_forward.44} parent=0 // pred_check_branch
    %200 = sbr.rel (0) target = $region25
  $region24: #{backbone_forward.44} parent=0 // pred_region
    _
  $region25: #{backbone_forward.44} parent=0 // pred_fallthru
    _
  // Predicated region
  $region26: #{backbone_forward.44} parent=0 // pred_check
    _
  $region27: #{backbone_forward.44} parent=0 // pred_check_branch
    %202 = sbr.rel (0) target = $region29
  $region28: #{backbone_forward.44} parent=0 // pred_region
    _
  $region29: #{backbone_forward.44} parent=0 // pred_fallthru
    _

// kernel: backbone_forward.37
$region0: #{backbone_forward.37}
  #allocation0 [shape = 'u32[]', space=smem, size = 0x4, offset = 0x4, fixed_abs, tag = 'smem constant byte address 0x4 - core index']
  #allocation1 [shape = 'u32[144,128]{1,0:T(1,128)}', space=vmem, size = 0x12000, scoped, tag = 'internal scratch']
  %s0 = inlined_call_operand.vmem [shape: bf16[128,64], index: 0, kind: input, shape index: {}]
  %s1 = inlined_call_operand.vmem [shape: f32[1,64], index: 1, kind: input, shape index: {}]
  %s2 = inlined_call_operand.vmem [shape: f32[1,64], index: 2, kind: input, shape index: {}]
  %s3 = inlined_call_operand.vmem [shape: bf16[128,64], index: 3, kind: input, shape index: {}]
  %s4 = inlined_call_operand.vmem [shape: bf16[128,64], index: 4, kind: output, shape index: {}]
  %s5 = sld [smem:[#allocation0]]
  $region26: #{backbone_forward.37} parent=0
    _
  %s7 = ssub.s32 1, %s5
  %s8 = scalar_select 0, %s7, %s5
  // Predicated region
  $region2: #{backbone_forward.37} parent=0 // pred_check
    _
  $region3: #{backbone_forward.37} parent=0 // pred_check_branch
    %10 = sbr.rel (0) target = $region5
  $region4: #{backbone_forward.37} parent=0 // pred_region
    _
  $region5: #{backbone_forward.37} parent=0 // pred_fallthru
    _
  // Predicated region
  $region6: #{backbone_forward.37} parent=0 // pred_check
    _
  $region7: #{backbone_forward.37} parent=0 // pred_check_branch
    %12 = sbr.rel (0) target = $region9
  $region8: #{backbone_forward.37} parent=0 // pred_region
    _
  $region9: #{backbone_forward.37} parent=0 // pred_fallthru
    _
  // Predicated region
  $region10: #{backbone_forward.37} parent=0 // pred_check
    _
  $region11: #{backbone_forward.37} parent=0 // pred_check_branch
    %14 = sbr.rel (0) target = $region13
  $region12: #{backbone_forward.37} parent=0 // pred_region
    _
  $region13: #{backbone_forward.37} parent=0 // pred_fallthru
    _
  // Predicated region
  $region14: #{backbone_forward.37} parent=0 // pred_check
    _
  $region15: #{backbone_forward.37} parent=0 // pred_check_branch
    %16 = sbr.rel (0) target = $region17
  $region16: #{backbone_forward.37} parent=0 // pred_region
    _
  $region17: #{backbone_forward.37} parent=0 // pred_fallthru
    _
  %v17 = vld [vmem:[%s0] sm:$0xf]
  %v18 = vld [vmem:[%s0 + $0x4] sm:$0xf]
  %v19 = vld [vmem:[%s0 + $0x8] sm:$0xf]
  %v20 = vld [vmem:[%s0 + $0xc] sm:$0xf]
  %v21 = vld [vmem:[%s0 + $0x10] sm:$0xf]
  %v22 = vld [vmem:[%s0 + $0x14] sm:$0xf]
  %v23 = vld [vmem:[%s0 + $0x18] sm:$0xf]
  %v24 = vld [vmem:[%s0 + $0x1c] sm:$0xf]
  %v25 = vld [vmem:[%s0 + $0x20] sm:$0xf]
  %v26 = vld [vmem:[%s0 + $0x24] sm:$0xf]
  %v27 = vld [vmem:[%s0 + $0x28] sm:$0xf]
  %v28 = vld [vmem:[%s0 + $0x2c] sm:$0xf]
  %v29 = vld [vmem:[%s0 + $0x30] sm:$0xf]
  %v30 = vld [vmem:[%s0 + $0x34] sm:$0xf]
  %v31 = vld [vmem:[%s0 + $0x38] sm:$0xf]
  %v32 = vld [vmem:[%s0 + $0x3c] sm:$0xf]
  %v33 = vunpack.c.l.bf16 %v17
  %v34 = vunpack.c.l.bf16 %v18
  %v35 = vunpack.c.l.bf16 %v19
  %v36 = vunpack.c.l.bf16 %v20
  %v37 = vunpack.c.l.bf16 %v21
  %v38 = vunpack.c.l.bf16 %v22
  %v39 = vunpack.c.l.bf16 %v23
  %v40 = vunpack.c.l.bf16 %v24
  %v41 = vunpack.c.l.bf16 %v25
  %v42 = vunpack.c.l.bf16 %v26
  %v43 = vunpack.c.l.bf16 %v27
  %v44 = vunpack.c.l.bf16 %v28
  %v45 = vunpack.c.l.bf16 %v29
  %v46 = vunpack.c.l.bf16 %v30
  %v47 = vunpack.c.l.bf16 %v31
  %v48 = vunpack.c.l.bf16 %v32
  %v49 = vld [vmem:[%s3] sm:$0xf]
  %v50 = vld [vmem:[%s3 + $0x4] sm:$0xf]
  %v51 = vld [vmem:[%s3 + $0x8] sm:$0xf]
  %v52 = vld [vmem:[%s3 + $0xc] sm:$0xf]
  %v53 = vld [vmem:[%s3 + $0x10] sm:$0xf]
  %v54 = vld [vmem:[%s3 + $0x14] sm:$0xf]
  %v55 = vld [vmem:[%s3 + $0x18] sm:$0xf]
  %v56 = vld [vmem:[%s3 + $0x1c] sm:$0xf]
  %v57 = vld [vmem:[%s3 + $0x20] sm:$0xf]
  %v58 = vld [vmem:[%s3 + $0x24] sm:$0xf]
  %v59 = vld [vmem:[%s3 + $0x28] sm:$0xf]
  %v60 = vld [vmem:[%s3 + $0x2c] sm:$0xf]
  %v61 = vld [vmem:[%s3 + $0x30] sm:$0xf]
  %v62 = vld [vmem:[%s3 + $0x34] sm:$0xf]
  %v63 = vld [vmem:[%s3 + $0x38] sm:$0xf]
  %v64 = vld [vmem:[%s3 + $0x3c] sm:$0xf]
  %v65 = vunpack.c.l.bf16 %v49
  %v66 = vunpack.c.l.bf16 %v50
  %v67 = vunpack.c.l.bf16 %v51
  %v68 = vunpack.c.l.bf16 %v52
  %v69 = vunpack.c.l.bf16 %v53
  %v70 = vunpack.c.l.bf16 %v54
  %v71 = vunpack.c.l.bf16 %v55
  %v72 = vunpack.c.l.bf16 %v56
  %v73 = vunpack.c.l.bf16 %v57
  %v74 = vunpack.c.l.bf16 %v58
  %v75 = vunpack.c.l.bf16 %v59
  %v76 = vunpack.c.l.bf16 %v60
  %v77 = vunpack.c.l.bf16 %v61
  %v78 = vunpack.c.l.bf16 %v62
  %v79 = vunpack.c.l.bf16 %v63
  %v80 = vunpack.c.l.bf16 %v64
  %v81 = vld [vmem:[%s1] sm:$0x1]
  %v83 = vlaneseq
  %v84 = vshrl.u32 %v83, 7
  %v85 = vsub.s32 0, %v84
  %v86 = vrot.slane %v81, %v85
  %v88 = vmul.f32 %v33, %v86
  %v89 = vmul.f32 %v34, %v86
  %v90 = vmul.f32 %v35, %v86
  %v91 = vmul.f32 %v36, %v86
  %v92 = vmul.f32 %v37, %v86
  %v93 = vmul.f32 %v38, %v86
  %v94 = vmul.f32 %v39, %v86
  %v95 = vmul.f32 %v40, %v86
  %v96 = vmul.f32 %v41, %v86
  %v97 = vmul.f32 %v42, %v86
  %v98 = vmul.f32 %v43, %v86
  %v99 = vmul.f32 %v44, %v86
  %v100 = vmul.f32 %v45, %v86
  %v101 = vmul.f32 %v46, %v86
  %v102 = vmul.f32 %v47, %v86
  %v103 = vmul.f32 %v48, %v86
  %v104 = vld [vmem:[%s2] sm:$0x1]
  %v106 = vlaneseq
  %v107 = vshrl.u32 %v106, 7
  %v108 = vsub.s32 0, %v107
  %v109 = vrot.slane %v104, %v108
  %v111 = vadd.f32 %v88, %v109
  %v112 = vadd.f32 %v89, %v109
  %v113 = vadd.f32 %v90, %v109
  %v114 = vadd.f32 %v91, %v109
  %v115 = vadd.f32 %v92, %v109
  %v116 = vadd.f32 %v93, %v109
  %v117 = vadd.f32 %v94, %v109
  %v118 = vadd.f32 %v95, %v109
  %v119 = vadd.f32 %v96, %v109
  %v120 = vadd.f32 %v97, %v109
  %v121 = vadd.f32 %v98, %v109
  %v122 = vadd.f32 %v99, %v109
  %v123 = vadd.f32 %v100, %v109
  %v124 = vadd.f32 %v101, %v109
  %v125 = vadd.f32 %v102, %v109
  %v126 = vadd.f32 %v103, %v109
  %v127 = vadd.f32 %v111, %v65
  %v128 = vadd.f32 %v112, %v66
  %v129 = vadd.f32 %v113, %v67
  %v130 = vadd.f32 %v114, %v68
  %v131 = vadd.f32 %v115, %v69
  %v132 = vadd.f32 %v116, %v70
  %v133 = vadd.f32 %v117, %v71
  %v134 = vadd.f32 %v118, %v72
  %v135 = vadd.f32 %v119, %v73
  %v136 = vadd.f32 %v120, %v74
  %v137 = vadd.f32 %v121, %v75
  %v138 = vadd.f32 %v122, %v76
  %v139 = vadd.f32 %v123, %v77
  %v140 = vadd.f32 %v124, %v78
  %v141 = vadd.f32 %v125, %v79
  %v142 = vadd.f32 %v126, %v80
  %v143 = vmax.f32 %v127, 0.0
  %v144 = vmax.f32 %v128, 0.0
  %v145 = vmax.f32 %v129, 0.0
  %v146 = vmax.f32 %v130, 0.0
  %v147 = vmax.f32 %v131, 0.0
  %v148 = vmax.f32 %v132, 0.0
  %v149 = vmax.f32 %v133, 0.0
  %v150 = vmax.f32 %v134, 0.0
  %v151 = vmax.f32 %v135, 0.0
  %v152 = vmax.f32 %v136, 0.0
  %v153 = vmax.f32 %v137, 0.0
  %v154 = vmax.f32 %v138, 0.0
  %v155 = vmax.f32 %v139, 0.0
  %v156 = vmax.f32 %v140, 0.0
  %v157 = vmax.f32 %v141, 0.0
  %v158 = vmax.f32 %v142, 0.0
  %v159 = vpack.c.bf16 %v144, %v143
  %v160 = vpack.c.bf16 %v146, %v145
  %v161 = vpack.c.bf16 %v148, %v147
  %v162 = vpack.c.bf16 %v150, %v149
  %v163 = vpack.c.bf16 %v152, %v151
  %v164 = vpack.c.bf16 %v154, %v153
  %v165 = vpack.c.bf16 %v156, %v155
  %v166 = vpack.c.bf16 %v158, %v157
  %v175 = vunpack.c.l.b16 %v159
  %v176 = vunpack.c.h.b16 %v159
  %v177 = vunpack.c.l.b16 %v160
  %v178 = vunpack.c.h.b16 %v160
  %v179 = vunpack.c.l.b16 %v161
  %v180 = vunpack.c.h.b16 %v161
  %v181 = vunpack.c.l.b16 %v162
  %v182 = vunpack.c.h.b16 %v162
  %v183 = vunpack.c.l.b16 %v163
  %v184 = vunpack.c.h.b16 %v163
  %v185 = vunpack.c.l.b16 %v164
  %v186 = vunpack.c.h.b16 %v164
  %v187 = vunpack.c.l.b16 %v165
  %v188 = vunpack.c.h.b16 %v165
  %v189 = vunpack.c.l.b16 %v166
  %v190 = vunpack.c.h.b16 %v166
  %v191 = vpack.c.b16 %v175, %v175
  %v192 = vpack.c.b16 %v176, %v176
  %v193 = vpack.c.b16 %v177, %v177
  %v194 = vpack.c.b16 %v178, %v178
  %v195 = vpack.c.b16 %v179, %v179
  %v196 = vpack.c.b16 %v180, %v180
  %v197 = vpack.c.b16 %v181, %v181
  %v198 = vpack.c.b16 %v182, %v182
  %v199 = vpack.c.b16 %v183, %v183
  %v200 = vpack.c.b16 %v184, %v184
  %v201 = vpack.c.b16 %v185, %v185
  %v202 = vpack.c.b16 %v186, %v186
  %v203 = vpack.c.b16 %v187, %v187
  %v204 = vpack.c.b16 %v188, %v188
  %v205 = vpack.c.b16 %v189, %v189
  %v206 = vpack.c.b16 %v190, %v190
  %vm223 = vcmask 519168
  %224 = vst.msk [vmem:[%s4] sm:$0xf] %vm223, %v191
  %225 = vst.msk [vmem:[%s4 + $0x4] sm:$0xf] %vm223, %v192
  %226 = vst.msk [vmem:[%s4 + $0x8] sm:$0xf] %vm223, %v193
  %227 = vst.msk [vmem:[%s4 + $0xc] sm:$0xf] %vm223, %v194
  %228 = vst.msk [vmem:[%s4 + $0x10] sm:$0xf] %vm223, %v195
  %229 = vst.msk [vmem:[%s4 + $0x14] sm:$0xf] %vm223, %v196
  %230 = vst.msk [vmem:[%s4 + $0x18] sm:$0xf] %vm223, %v197
  %231 = vst.msk [vmem:[%s4 + $0x1c] sm:$0xf] %vm223, %v198
  %232 = vst.msk [vmem:[%s4 + $0x20] sm:$0xf] %vm223, %v199
  %233 = vst.msk [vmem:[%s4 + $0x24] sm:$0xf] %vm223, %v200
  %234 = vst.msk [vmem:[%s4 + $0x28] sm:$0xf] %vm223, %v201
  %235 = vst.msk [vmem:[%s4 + $0x2c] sm:$0xf] %vm223, %v202
  %236 = vst.msk [vmem:[%s4 + $0x30] sm:$0xf] %vm223, %v203
  %237 = vst.msk [vmem:[%s4 + $0x34] sm:$0xf] %vm223, %v204
  %238 = vst.msk [vmem:[%s4 + $0x38] sm:$0xf] %vm223, %v205
  %239 = vst.msk [vmem:[%s4 + $0x3c] sm:$0xf] %vm223, %v206
  // Predicated region
  $region18: #{backbone_forward.37} parent=0 // pred_check
    _
  $region19: #{backbone_forward.37} parent=0 // pred_check_branch
    %241 = sbr.rel (0) target = $region21
  $region20: #{backbone_forward.37} parent=0 // pred_region
    _
  $region21: #{backbone_forward.37} parent=0 // pred_fallthru
    _
  // Predicated region
  $region22: #{backbone_forward.37} parent=0 // pred_check
    _
  $region23: #{backbone_forward.37} parent=0 // pred_check_branch
    %243 = sbr.rel (0) target = $region25
  $region24: #{backbone_forward.37} parent=0 // pred_region
    _
  $region25: #{backbone_forward.37} parent=0 // pred_fallthru
    _

// kernel: backbone_forward.45
$region0: #{backbone_forward.45}
  #allocation0 [shape = 'u32[]', space=smem, size = 0x4, offset = 0x4, fixed_abs, tag = 'smem constant byte address 0x4 - core index']
  #allocation1 [shape = 'u32[144,128]{1,0:T(1,128)}', space=vmem, size = 0x12000, scoped, tag = 'internal scratch']
  %s0 = inlined_call_operand.vmem [shape: bf16[32,128], index: 0, kind: input, shape index: {}]
  %s1 = inlined_call_operand.vmem [shape: f32[1,128], index: 1, kind: input, shape index: {}]
  %s2 = inlined_call_operand.vmem [shape: f32[1,128], index: 2, kind: input, shape index: {}]
  %s3 = inlined_call_operand.vmem [shape: bf16[32,128], index: 3, kind: output, shape index: {}]
  %s4 = sld [smem:[#allocation0]]
  $region22: #{backbone_forward.45} parent=0
    _
  %s6 = ssub.s32 1, %s4
  %s7 = scalar_select 0, %s6, %s4
  // Predicated region
  $region2: #{backbone_forward.45} parent=0 // pred_check
    _
  $region3: #{backbone_forward.45} parent=0 // pred_check_branch
    %9 = sbr.rel (0) target = $region5
  $region4: #{backbone_forward.45} parent=0 // pred_region
    _
  $region5: #{backbone_forward.45} parent=0 // pred_fallthru
    _
  // Predicated region
  $region6: #{backbone_forward.45} parent=0 // pred_check
    _
  $region7: #{backbone_forward.45} parent=0 // pred_check_branch
    %11 = sbr.rel (0) target = $region9
  $region8: #{backbone_forward.45} parent=0 // pred_region
    _
  $region9: #{backbone_forward.45} parent=0 // pred_fallthru
    _
  // Predicated region
  $region10: #{backbone_forward.45} parent=0 // pred_check
    _
  $region11: #{backbone_forward.45} parent=0 // pred_check_branch
    %13 = sbr.rel (0) target = $region13
  $region12: #{backbone_forward.45} parent=0 // pred_region
    _
  $region13: #{backbone_forward.45} parent=0 // pred_fallthru
    _
  %v14 = vld [vmem:[%s0] sm:$0xf]
  %v15 = vld [vmem:[%s0 + $0x4] sm:$0xf]
  %v16 = vld [vmem:[%s0 + $0x8] sm:$0xf]
  %v17 = vld [vmem:[%s0 + $0xc] sm:$0xf]
  %v18 = vunpack.c.l.bf16 %v14
  %v19 = vunpack.c.l.bf16 %v15
  %v20 = vunpack.c.l.bf16 %v16
  %v21 = vunpack.c.l.bf16 %v17
  %v22 = vld [vmem:[%s1] sm:$0x1]
  %v24 = vlaneseq
  %v25 = vshrl.u32 %v24, 7
  %v26 = vsub.s32 0, %v25
  %v27 = vrot.slane %v22, %v26
  %v29 = vmul.f32 %v18, %v27
  %v30 = vmul.f32 %v19, %v27
  %v31 = vmul.f32 %v20, %v27
  %v32 = vmul.f32 %v21, %v27
  %v33 = vld [vmem:[%s2] sm:$0x1]
  %v35 = vlaneseq
  %v36 = vshrl.u32 %v35, 7
  %v37 = vsub.s32 0, %v36
  %v38 = vrot.slane %v33, %v37
  %v40 = vadd.f32 %v29, %v38
  %v41 = vadd.f32 %v30, %v38
  %v42 = vadd.f32 %v31, %v38
  %v43 = vadd.f32 %v32, %v38
  %v44 = vpack.c.bf16 %v41, %v40
  %v45 = vpack.c.bf16 %v43, %v42
  %v48 = vunpack.c.l.b16 %v44
  %v49 = vunpack.c.h.b16 %v44
  %v50 = vunpack.c.l.b16 %v45
  %v51 = vunpack.c.h.b16 %v45
  %v52 = vpack.c.b16 %v48, %v48
  %v53 = vpack.c.b16 %v49, %v49
  %v54 = vpack.c.b16 %v50, %v50
  %v55 = vpack.c.b16 %v51, %v51
  %60 = vst [vmem:[%s3] sm:$0xf] %v52
  %61 = vst [vmem:[%s3 + $0x4] sm:$0xf] %v53
  %62 = vst [vmem:[%s3 + $0x8] sm:$0xf] %v54
  %63 = vst [vmem:[%s3 + $0xc] sm:$0xf] %v55
  // Predicated region
  $region14: #{backbone_forward.45} parent=0 // pred_check
    _
  $region15: #{backbone_forward.45} parent=0 // pred_check_branch
    %65 = sbr.rel (0) target = $region17
  $region16: #{backbone_forward.45} parent=0 // pred_region
    _
  $region17: #{backbone_forward.45} parent=0 // pred_fallthru
    _
  // Predicated region
  $region18: #{backbone_forward.45} parent=0 // pred_check
    _
  $region19: #{backbone_forward.45} parent=0 // pred_check_branch
    %67 = sbr.rel (0) target = $region21
  $region20: #{backbone_forward.45} parent=0 // pred_region
    _
  $region21: #{backbone_forward.45} parent=0 // pred_fallthru
    _

// kernel: backbone_forward.43
$region0: #{backbone_forward.43}
  #allocation0 [shape = 'u32[]', space=smem, size = 0x4, offset = 0x4, fixed_abs, tag = 'smem constant byte address 0x4 - core index']
  #allocation1 [shape = 'u32[144,128]{1,0:T(1,128)}', space=vmem, size = 0x12000, scoped, tag = 'internal scratch']
  %s0 = inlined_call_operand.vmem [shape: bf16[32,128], index: 0, kind: input, shape index: {}]
  %s1 = inlined_call_operand.vmem [shape: f32[1,128], index: 1, kind: input, shape index: {}]
  %s2 = inlined_call_operand.vmem [shape: f32[1,128], index: 2, kind: input, shape index: {}]
  %s3 = inlined_call_operand.vmem [shape: bf16[32,128], index: 3, kind: output, shape index: {}]
  %s4 = sld [smem:[#allocation0]]
  $region22: #{backbone_forward.43} parent=0
    _
  %s6 = ssub.s32 1, %s4
  %s7 = scalar_select 0, %s6, %s4
  // Predicated region
  $region2: #{backbone_forward.43} parent=0 // pred_check
    _
  $region3: #{backbone_forward.43} parent=0 // pred_check_branch
    %9 = sbr.rel (0) target = $region5
  $region4: #{backbone_forward.43} parent=0 // pred_region
    _
  $region5: #{backbone_forward.43} parent=0 // pred_fallthru
    _
  // Predicated region
  $region6: #{backbone_forward.43} parent=0 // pred_check
    _
  $region7: #{backbone_forward.43} parent=0 // pred_check_branch
    %11 = sbr.rel (0) target = $region9
  $region8: #{backbone_forward.43} parent=0 // pred_region
    _
  $region9: #{backbone_forward.43} parent=0 // pred_fallthru
    _
  // Predicated region
  $region10: #{backbone_forward.43} parent=0 // pred_check
    _
  $region11: #{backbone_forward.43} parent=0 // pred_check_branch
    %13 = sbr.rel (0) target = $region13
  $region12: #{backbone_forward.43} parent=0 // pred_region
    _
  $region13: #{backbone_forward.43} parent=0 // pred_fallthru
    _
  %v14 = vld [vmem:[%s0] sm:$0xf]
  %v15 = vld [vmem:[%s0 + $0x4] sm:$0xf]
  %v16 = vld [vmem:[%s0 + $0x8] sm:$0xf]
  %v17 = vld [vmem:[%s0 + $0xc] sm:$0xf]
  %v18 = vunpack.c.l.bf16 %v14
  %v19 = vunpack.c.l.bf16 %v15
  %v20 = vunpack.c.l.bf16 %v16
  %v21 = vunpack.c.l.bf16 %v17
  %v22 = vld [vmem:[%s1] sm:$0x1]
  %v24 = vlaneseq
  %v25 = vshrl.u32 %v24, 7
  %v26 = vsub.s32 0, %v25
  %v27 = vrot.slane %v22, %v26
  %v29 = vmul.f32 %v18, %v27
  %v30 = vmul.f32 %v19, %v27
  %v31 = vmul.f32 %v20, %v27
  %v32 = vmul.f32 %v21, %v27
  %v33 = vld [vmem:[%s2] sm:$0x1]
  %v35 = vlaneseq
  %v36 = vshrl.u32 %v35, 7
  %v37 = vsub.s32 0, %v36
  %v38 = vrot.slane %v33, %v37
  %v40 = vadd.f32 %v29, %v38
  %v41 = vadd.f32 %v30, %v38
  %v42 = vadd.f32 %v31, %v38
  %v43 = vadd.f32 %v32, %v38
  %v44 = vmax.f32 %v40, 0.0
  %v45 = vmax.f32 %v41, 0.0
  %v46 = vmax.f32 %v42, 0.0
  %v47 = vmax.f32 %v43, 0.0
  %v48 = vpack.c.bf16 %v45, %v44
  %v49 = vpack.c.bf16 %v47, %v46
  %v52 = vunpack.c.l.b16 %v48
  %v53 = vunpack.c.h.b16 %v48
  %v54 = vunpack.c.l.b16 %v49
  %v55 = vunpack.c.h.b16 %v49
  %v56 = vpack.c.b16 %v52, %v52
  %v57 = vpack.c.b16 %v53, %v53
  %v58 = vpack.c.b16 %v54, %v54
  %v59 = vpack.c.b16 %v55, %v55
  %64 = vst [vmem:[%s3] sm:$0xf] %v56
  %65 = vst [vmem:[%s3 + $0x4] sm:$0xf] %v57
  %66 = vst [vmem:[%s3 + $0x8] sm:$0xf] %v58
  %67 = vst [vmem:[%s3 + $0xc] sm:$0xf] %v59
  // Predicated region
  $region14: #{backbone_forward.43} parent=0 // pred_check
    _
  $region15: #{backbone_forward.43} parent=0 // pred_check_branch
    %69 = sbr.rel (0) target = $region17
  $region16: #{backbone_forward.43} parent=0 // pred_region
    _
  $region17: #{backbone_forward.43} parent=0 // pred_fallthru
    _
  // Predicated region
  $region18: #{backbone_forward.43} parent=0 // pred_check
    _
  $region19: #{backbone_forward.43} parent=0 // pred_check_branch
    %71 = sbr.rel (0) target = $region21
  $region20: #{backbone_forward.43} parent=0 // pred_region
    _
  $region21: #{backbone_forward.43} parent=0 // pred_fallthru
    _

// kernel: backbone_forward.42
$region0: #{backbone_forward.42}
  #allocation0 [shape = 'u32[]', space=smem, size = 0x4, offset = 0x4, fixed_abs, tag = 'smem constant byte address 0x4 - core index']
  #allocation1 [shape = 'u32[144,128]{1,0:T(1,128)}', space=vmem, size = 0x12000, scoped, tag = 'internal scratch']
  %s0 = inlined_call_operand.vmem [shape: bf16[32,640], index: 0, kind: input, shape index: {}]
  %s1 = inlined_call_operand.vmem [shape: bf16[640,128], index: 1, kind: input, shape index: {}]
  %s2 = inlined_call_operand.vmem [shape: bf16[32,128], index: 2, kind: output, shape index: {0}]
  %s3 = inlined_call_operand.vmem [shape: f32[2,128], index: 3, kind: output, shape index: {1}]
  %4 = xla_tuple %s2, %s3
  %s5 = sld [smem:[#allocation0]]
  $region30: #{backbone_forward.42} parent=0
    _
  %s7 = ssub.s32 1, %s5
  %s8 = scalar_select 0, %s7, %s5
  // Predicated region
  $region2: #{backbone_forward.42} parent=0 // pred_check
    _
  $region3: #{backbone_forward.42} parent=0 // pred_check_branch
    %10 = sbr.rel (0) target = $region5
  $region4: #{backbone_forward.42} parent=0 // pred_region
    _
  $region5: #{backbone_forward.42} parent=0 // pred_fallthru
    _
  // Predicated region
  $region6: #{backbone_forward.42} parent=0 // pred_check
    _
  $region7: #{backbone_forward.42} parent=0 // pred_check_branch
    %12 = sbr.rel (0) target = $region9
  $region8: #{backbone_forward.42} parent=0 // pred_region
    _
  $region9: #{backbone_forward.42} parent=0 // pred_fallthru
    _
  %v14 = vld [vmem:[%s0] sm:$0xff]
  %v15 = vld [vmem:[%s0 + $0x8] sm:$0xff]
  %v16 = vld [vmem:[%s0 + $0x10] sm:$0xf]
  %v17 = vld [vmem:[%s0 + $0x14] sm:$0xff]
  %v18 = vld [vmem:[%s0 + $0x1c] sm:$0xff]
  %v19 = vld [vmem:[%s0 + $0x24] sm:$0xf]
  %v20 = vld [vmem:[%s0 + $0x28] sm:$0xff]
  %v21 = vld [vmem:[%s0 + $0x30] sm:$0xff]
  %v22 = vld [vmem:[%s0 + $0x38] sm:$0xf]
  %v23 = vld [vmem:[%s0 + $0x3c] sm:$0xff]
  %v24 = vld [vmem:[%s0 + $0x44] sm:$0xff]
  %v25 = vld [vmem:[%s0 + $0x4c] sm:$0xf]
  %v26 = vld [vmem:[%s1] sm:$0xf]
  %v27 = vld [vmem:[%s1 + $0x4] sm:$0xf]
  %v28 = vld [vmem:[%s1 + $0x8] sm:$0xf]
  %v29 = vld [vmem:[%s1 + $0xc] sm:$0xf]
  %v30 = vld [vmem:[%s1 + $0x10] sm:$0xf]
  %v31 = vld [vmem:[%s1 + $0x14] sm:$0xf]
  %v32 = vld [vmem:[%s1 + $0x18] sm:$0xf]
  %v33 = vld [vmem:[%s1 + $0x1c] sm:$0xf]
  %v34 = vld [vmem:[%s1 + $0x20] sm:$0xf]
  %v35 = vld [vmem:[%s1 + $0x24] sm:$0xf]
  %v36 = vld [vmem:[%s1 + $0x28] sm:$0xf]
  %v37 = vld [vmem:[%s1 + $0x2c] sm:$0xf]
  %v38 = vld [vmem:[%s1 + $0x30] sm:$0xf]
  %v39 = vld [vmem:[%s1 + $0x34] sm:$0xf]
  %v40 = vld [vmem:[%s1 + $0x38] sm:$0xf]
  %v41 = vld [vmem:[%s1 + $0x3c] sm:$0xf]
  %v42 = vld [vmem:[%s1 + $0x40] sm:$0xf]
  %v43 = vld [vmem:[%s1 + $0x44] sm:$0xf]
  %v44 = vld [vmem:[%s1 + $0x48] sm:$0xf]
  %v45 = vld [vmem:[%s1 + $0x4c] sm:$0xf]
  %v46 = vld [vmem:[%s1 + $0x50] sm:$0xf]
  %v47 = vld [vmem:[%s1 + $0x54] sm:$0xf]
  %v48 = vld [vmem:[%s1 + $0x58] sm:$0xf]
  %v49 = vld [vmem:[%s1 + $0x5c] sm:$0xf]
  %v50 = vld [vmem:[%s1 + $0x60] sm:$0xf]
  %v51 = vld [vmem:[%s1 + $0x64] sm:$0xf]
  %v52 = vld [vmem:[%s1 + $0x68] sm:$0xf]
  %v53 = vld [vmem:[%s1 + $0x6c] sm:$0xf]
  %v54 = vld [vmem:[%s1 + $0x70] sm:$0xf]
  %v55 = vld [vmem:[%s1 + $0x74] sm:$0xf]
  %v56 = vld [vmem:[%s1 + $0x78] sm:$0xf]
  %v57 = vld [vmem:[%s1 + $0x7c] sm:$0xf]
  %v58 = vld [vmem:[%s1 + $0x80] sm:$0xf]
  %v59 = vld [vmem:[%s1 + $0x84] sm:$0xf]
  %v60 = vld [vmem:[%s1 + $0x88] sm:$0xf]
  %v61 = vld [vmem:[%s1 + $0x8c] sm:$0xf]
  %v62 = vld [vmem:[%s1 + $0x90] sm:$0xf]
  %v63 = vld [vmem:[%s1 + $0x94] sm:$0xf]
  %v64 = vld [vmem:[%s1 + $0x98] sm:$0xf]
  %v65 = vld [vmem:[%s1 + $0x9c] sm:$0xf]
  %v66 = vld [vmem:[%s1 + $0xa0] sm:$0xf]
  %v67 = vld [vmem:[%s1 + $0xa4] sm:$0xf]
  %v68 = vld [vmem:[%s1 + $0xa8] sm:$0xf]
  %v69 = vld [vmem:[%s1 + $0xac] sm:$0xf]
  %v70 = vld [vmem:[%s1 + $0xb0] sm:$0xf]
  %v71 = vld [vmem:[%s1 + $0xb4] sm:$0xf]
  %v72 = vld [vmem:[%s1 + $0xb8] sm:$0xf]
  %v73 = vld [vmem:[%s1 + $0xbc] sm:$0xf]
  %v74 = vld [vmem:[%s1 + $0xc0] sm:$0xf]
  %v75 = vld [vmem:[%s1 + $0xc4] sm:$0xf]
  %v76 = vld [vmem:[%s1 + $0xc8] sm:$0xf]
  %v77 = vld [vmem:[%s1 + $0xcc] sm:$0xf]
  %v78 = vld [vmem:[%s1 + $0xd0] sm:$0xf]
  %v79 = vld [vmem:[%s1 + $0xd4] sm:$0xf]
  %v80 = vld [vmem:[%s1 + $0xd8] sm:$0xf]
  %v81 = vld [vmem:[%s1 + $0xdc] sm:$0xf]
  %v82 = vld [vmem:[%s1 + $0xe0] sm:$0xf]
  %v83 = vld [vmem:[%s1 + $0xe4] sm:$0xf]
  %v84 = vld [vmem:[%s1 + $0xe8] sm:$0xf]
  %v85 = vld [vmem:[%s1 + $0xec] sm:$0xf]
  %v86 = vld [vmem:[%s1 + $0xf0] sm:$0xf]
  %v87 = vld [vmem:[%s1 + $0xf4] sm:$0xf]
  %v88 = vld [vmem:[%s1 + $0xf8] sm:$0xf]
  %v89 = vld [vmem:[%s1 + $0xfc] sm:$0xf]
  %v90 = vld [vmem:[%s1 + $0x100] sm:$0xf]
  %v91 = vld [vmem:[%s1 + $0x104] sm:$0xf]
  %v92 = vld [vmem:[%s1 + $0x108] sm:$0xf]
  %v93 = vld [vmem:[%s1 + $0x10c] sm:$0xf]
  %v94 = vld [vmem:[%s1 + $0x110] sm:$0xf]
  %v95 = vld [vmem:[%s1 + $0x114] sm:$0xf]
  %v96 = vld [vmem:[%s1 + $0x118] sm:$0xf]
  %v97 = vld [vmem:[%s1 + $0x11c] sm:$0xf]
  %v98 = vld [vmem:[%s1 + $0x120] sm:$0xf]
  %v99 = vld [vmem:[%s1 + $0x124] sm:$0xf]
  %v100 = vld [vmem:[%s1 + $0x128] sm:$0xf]
  %v101 = vld [vmem:[%s1 + $0x12c] sm:$0xf]
  %v102 = vld [vmem:[%s1 + $0x130] sm:$0xf]
  %v103 = vld [vmem:[%s1 + $0x134] sm:$0xf]
  %v104 = vld [vmem:[%s1 + $0x138] sm:$0xf]
  %v105 = vld [vmem:[%s1 + $0x13c] sm:$0xf]
  %v118 = vunpack.c.l.b16 %v14
  %v119 = vunpack.c.h.b16 %v14
  %v120 = vunpack.c.l.b16 %v15
  %v121 = vunpack.c.h.b16 %v15
  %v122 = vunpack.c.l.b16 %v16
  %v123 = vunpack.c.l.b16 %v17
  %v124 = vunpack.c.h.b16 %v17
  %v125 = vunpack.c.l.b16 %v18
  %v126 = vunpack.c.h.b16 %v18
  %v127 = vunpack.c.l.b16 %v19
  %v128 = vunpack.c.l.b16 %v20
  %v129 = vunpack.c.h.b16 %v20
  %v130 = vunpack.c.l.b16 %v21
  %v131 = vunpack.c.h.b16 %v21
  %v132 = vunpack.c.l.b16 %v22
  %v133 = vunpack.c.l.b16 %v23
  %v134 = vunpack.c.h.b16 %v23
  %v135 = vunpack.c.l.b16 %v24
  %v136 = vunpack.c.h.b16 %v24
  %v137 = vunpack.c.l.b16 %v25
  %v138 = vpack.c.b16 %v123, %v118
  %v139 = vpack.c.b16 %v124, %v119
  %v140 = vpack.c.b16 %v125, %v120
  %v141 = vpack.c.b16 %v126, %v121
  %v142 = vpack.c.b16 %v127, %v122
  %v143 = vpack.c.b16 %v133, %v128
  %v144 = vpack.c.b16 %v134, %v129
  %v145 = vpack.c.b16 %v135, %v130
  %v146 = vpack.c.b16 %v136, %v131
  %v147 = vpack.c.b16 %v137, %v132
  %v238 = vunpack.c.l.b16 %v26
  %v239 = vunpack.c.l.b16 %v27
  %v240 = vunpack.c.l.b16 %v28
  %v241 = vunpack.c.l.b16 %v29
  %v242 = vunpack.c.l.b16 %v30
  %v243 = vunpack.c.l.b16 %v31
  %v244 = vunpack.c.l.b16 %v32
  %v245 = vunpack.c.l.b16 %v33
  %v246 = vunpack.c.l.b16 %v34
  %v247 = vunpack.c.l.b16 %v35
  %v248 = vunpack.c.l.b16 %v36
  %v249 = vunpack.c.l.b16 %v37
  %v250 = vunpack.c.l.b16 %v38
  %v251 = vunpack.c.l.b16 %v39
  %v252 = vunpack.c.l.b16 %v40
  %v253 = vunpack.c.l.b16 %v41
  %v254 = vunpack.c.l.b16 %v42
  %v255 = vunpack.c.l.b16 %v43
  %v256 = vunpack.c.l.b16 %v44
  %v257 = vunpack.c.l.b16 %v45
  %v258 = vunpack.c.l.b16 %v46
  %v259 = vunpack.c.l.b16 %v47
  %v260 = vunpack.c.l.b16 %v48
  %v261 = vunpack.c.l.b16 %v49
  %v262 = vunpack.c.l.b16 %v50
  %v263 = vunpack.c.l.b16 %v51
  %v264 = vunpack.c.l.b16 %v52
  %v265 = vunpack.c.l.b16 %v53
  %v266 = vunpack.c.l.b16 %v54
  %v267 = vunpack.c.l.b16 %v55
  %v268 = vunpack.c.l.b16 %v56
  %v269 = vunpack.c.l.b16 %v57
  %v270 = vunpack.c.l.b16 %v58
  %v271 = vunpack.c.l.b16 %v59
  %v272 = vunpack.c.l.b16 %v60
  %v273 = vunpack.c.l.b16 %v61
  %v274 = vunpack.c.l.b16 %v62
  %v275 = vunpack.c.l.b16 %v63
  %v276 = vunpack.c.l.b16 %v64
  %v277 = vunpack.c.l.b16 %v65
  %v278 = vunpack.c.l.b16 %v66
  %v279 = vunpack.c.l.b16 %v67
  %v280 = vunpack.c.l.b16 %v68
  %v281 = vunpack.c.l.b16 %v69
  %v282 = vunpack.c.l.b16 %v70
  %v283 = vunpack.c.l.b16 %v71
  %v284 = vunpack.c.l.b16 %v72
  %v285 = vunpack.c.l.b16 %v73
  %v286 = vunpack.c.l.b16 %v74
  %v287 = vunpack.c.l.b16 %v75
  %v288 = vunpack.c.l.b16 %v76
  %v289 = vunpack.c.l.b16 %v77
  %v290 = vunpack.c.l.b16 %v78
  %v291 = vunpack.c.l.b16 %v79
  %v292 = vunpack.c.l.b16 %v80
  %v293 = vunpack.c.l.b16 %v81
  %v294 = vunpack.c.l.b16 %v82
  %v295 = vunpack.c.l.b16 %v83
  %v296 = vunpack.c.l.b16 %v84
  %v297 = vunpack.c.l.b16 %v85
  %v298 = vunpack.c.l.b16 %v86
  %v299 = vunpack.c.l.b16 %v87
  %v300 = vunpack.c.l.b16 %v88
  %v301 = vunpack.c.l.b16 %v89
  %v302 = vunpack.c.l.b16 %v90
  %v303 = vunpack.c.l.b16 %v91
  %v304 = vunpack.c.l.b16 %v92
  %v305 = vunpack.c.l.b16 %v93
  %v306 = vunpack.c.l.b16 %v94
  %v307 = vunpack.c.l.b16 %v95
  %v308 = vunpack.c.l.b16 %v96
  %v309 = vunpack.c.l.b16 %v97
  %v310 = vunpack.c.l.b16 %v98
  %v311 = vunpack.c.l.b16 %v99
  %v312 = vunpack.c.l.b16 %v100
  %v313 = vunpack.c.l.b16 %v101
  %v314 = vunpack.c.l.b16 %v102
  %v315 = vunpack.c.l.b16 %v103
  %v316 = vunpack.c.l.b16 %v104
  %v317 = vunpack.c.l.b16 %v105
  %v318 = vpack.c.b16 %v239, %v238
  %v319 = vpack.c.b16 %v241, %v240
  %v320 = vpack.c.b16 %v243, %v242
  %v321 = vpack.c.b16 %v245, %v244
  %v322 = vpack.c.b16 %v247, %v246
  %v323 = vpack.c.b16 %v249, %v248
  %v324 = vpack.c.b16 %v251, %v250
  %v325 = vpack.c.b16 %v253, %v252
  %v326 = vpack.c.b16 %v255, %v254
  %v327 = vpack.c.b16 %v257, %v256
  %v328 = vpack.c.b16 %v259, %v258
  %v329 = vpack.c.b16 %v261, %v260
  %v330 = vpack.c.b16 %v263, %v262
  %v331 = vpack.c.b16 %v265, %v264
  %v332 = vpack.c.b16 %v267, %v266
  %v333 = vpack.c.b16 %v269, %v268
  %v334 = vpack.c.b16 %v271, %v270
  %v335 = vpack.c.b16 %v273, %v272
  %v336 = vpack.c.b16 %v275, %v274
  %v337 = vpack.c.b16 %v277, %v276
  %v338 = vpack.c.b16 %v279, %v278
  %v339 = vpack.c.b16 %v281, %v280
  %v340 = vpack.c.b16 %v283, %v282
  %v341 = vpack.c.b16 %v285, %v284
  %v342 = vpack.c.b16 %v287, %v286
  %v343 = vpack.c.b16 %v289, %v288
  %v344 = vpack.c.b16 %v291, %v290
  %v345 = vpack.c.b16 %v293, %v292
  %v346 = vpack.c.b16 %v295, %v294
  %v347 = vpack.c.b16 %v297, %v296
  %v348 = vpack.c.b16 %v299, %v298
  %v349 = vpack.c.b16 %v301, %v300
  %v350 = vpack.c.b16 %v303, %v302
  %v351 = vpack.c.b16 %v305, %v304
  %v352 = vpack.c.b16 %v307, %v306
  %v353 = vpack.c.b16 %v309, %v308
  %v354 = vpack.c.b16 %v311, %v310
  %v355 = vpack.c.b16 %v313, %v312
  %v356 = vpack.c.b16 %v315, %v314
  %v357 = vpack.c.b16 %v317, %v316
  %398 = vmatprep.subr.bf16.mxu0 0
  %399 = vmatpush1.bf16.msra.mxu0 %v325
  %400 = vmatprep.subr.bf16.mxu0 0
  %401 = vmatpush1.bf16.msra.mxu0 %v324
  %402 = vmatprep.subr.bf16.mxu0 0
  %403 = vmatpush1.bf16.msra.mxu0 %v323
  %404 = vmatprep.subr.bf16.mxu0 0
  %405 = vmatpush1.bf16.msra.mxu0 %v322
  %406 = vmatprep.subr.bf16.mxu0 0
  %407 = vmatpush1.bf16.msra.mxu0 %v321
  %408 = vmatprep.subr.bf16.mxu0 0
  %409 = vmatpush1.bf16.msra.mxu0 %v320
  %410 = vmatprep.subr.bf16.mxu0 0
  %411 = vmatpush1.bf16.msra.mxu0 %v319
  %412 = vmatprep.subr.bf16.mxu0 0
  %413 = vmatpush1.bf16.msra.mxu0 %v318
  %414 = vmatprep.subr.bf16.mxu0 0
  %415 = vmatpush2.bf16.msra.mxu0 %v333
  %416 = vmatprep.subr.bf16.mxu0 0
  %417 = vmatpush2.bf16.msra.mxu0 %v332
  %418 = vmatprep.subr.bf16.mxu0 0
  %419 = vmatpush2.bf16.msra.mxu0 %v331
  %420 = vmatprep.subr.bf16.mxu0 0
  %421 = vmatpush2.bf16.msra.mxu0 %v330
  %422 = vmatprep.subr.bf16.mxu0 0
  %423 = vmatpush2.bf16.msra.mxu0 %v329
  %424 = vmatprep.subr.bf16.mxu0 0
  %425 = vmatpush2.bf16.msra.mxu0 %v328
  %426 = vmatprep.subr.bf16.mxu0 0
  %427 = vmatpush2.bf16.msra.mxu0 %v327
  %428 = vmatprep.subr.bf16.mxu0 0
  %429 = vmatpush2.bf16.msra.mxu0 %v326
  %430 = vmatprep.mubr.bf16.mxu0 %v139
  %431 = vmatmul.mubr.bf16.gmra.mxu0 %v138
  %v432 = vpop.f32.mrf.mxu0
  %v433 = vadd.f32 0.0, %v432
  %v434 = vpop.f32.mrf.mxu0
  %v435 = vpop.f32.mrf.mxu0
  %v436 = vadd.f32 0.0, %v435
  %v437 = vpop.f32.mrf.mxu0
  %438 = vmatprep.mubr.bf16.mxu0 %v144
  %439 = vmatmul.mubr.bf16.gmra.mxu0 %v143
  %v440 = vpop.f32.mrf.mxu0
  %v441 = vadd.f32 0.0, %v440
  %v442 = vpop.f32.mrf.mxu0
  %v443 = vpop.f32.mrf.mxu0
  %v444 = vadd.f32 0.0, %v443
  %v445 = vpop.f32.mrf.mxu0
  %446 = vdwg.mxu0
  %447 = vmatprep.subr.bf16.mxu0 0
  %448 = vmatpush1.bf16.msra.mxu0 %v341
  %449 = vmatprep.subr.bf16.mxu0 0
  %450 = vmatpush1.bf16.msra.mxu0 %v340
  %451 = vmatprep.subr.bf16.mxu0 0
  %452 = vmatpush1.bf16.msra.mxu0 %v339
  %453 = vmatprep.subr.bf16.mxu0 0
  %454 = vmatpush1.bf16.msra.mxu0 %v338
  %455 = vmatprep.subr.bf16.mxu0 0
  %456 = vmatpush1.bf16.msra.mxu0 %v337
  %457 = vmatprep.subr.bf16.mxu0 0
  %458 = vmatpush1.bf16.msra.mxu0 %v336
  %459 = vmatprep.subr.bf16.mxu0 0
  %460 = vmatpush1.bf16.msra.mxu0 %v335
  %461 = vmatprep.subr.bf16.mxu0 0
  %462 = vmatpush1.bf16.msra.mxu0 %v334
  %463 = vmatprep.subr.bf16.mxu0 0
  %464 = vmatpush2.bf16.msra.mxu0 %v349
  %465 = vmatprep.subr.bf16.mxu0 0
  %466 = vmatpush2.bf16.msra.mxu0 %v348
  %467 = vmatprep.subr.bf16.mxu0 0
  %468 = vmatpush2.bf16.msra.mxu0 %v347
  %469 = vmatprep.subr.bf16.mxu0 0
  %470 = vmatpush2.bf16.msra.mxu0 %v346
  %471 = vmatprep.subr.bf16.mxu0 0
  %472 = vmatpush2.bf16.msra.mxu0 %v345
  %473 = vmatprep.subr.bf16.mxu0 0
  %474 = vmatpush2.bf16.msra.mxu0 %v344
  %475 = vmatprep.subr.bf16.mxu0 0
  %476 = vmatpush2.bf16.msra.mxu0 %v343
  %477 = vmatprep.subr.bf16.mxu0 0
  %478 = vmatpush2.bf16.msra.mxu0 %v342
  %479 = vmatprep.mubr.bf16.mxu0 %v141
  %480 = vmatmul.mubr.bf16.gmra.mxu0 %v140
  %v481 = vpop.f32.mrf.mxu0
  %v482 = vadd.f32 %v433, %v481
  %v483 = vpop.f32.mrf.mxu0
  %v484 = vpop.f32.mrf.mxu0
  %v485 = vadd.f32 %v436, %v484
  %v486 = vpop.f32.mrf.mxu0
  %487 = vmatprep.mubr.bf16.mxu0 %v146
  %488 = vmatmul.mubr.bf16.gmra.mxu0 %v145
  %v489 = vpop.f32.mrf.mxu0
  %v490 = vadd.f32 %v441, %v489
  %v491 = vpop.f32.mrf.mxu0
  %v492 = vpop.f32.mrf.mxu0
  %v493 = vadd.f32 %v444, %v492
  %v494 = vpop.f32.mrf.mxu0
  %495 = vdwg.mxu0
  %496 = vmatprep.subr.bf16.mxu0 0
  %497 = vmatpush1.bf16.msra.mxu0 %v357
  %498 = vmatprep.subr.bf16.mxu0 0
  %499 = vmatpush1.bf16.msra.mxu0 %v356
  %500 = vmatprep.subr.bf16.mxu0 0
  %501 = vmatpush1.bf16.msra.mxu0 %v355
  %502 = vmatprep.subr.bf16.mxu0 0
  %503 = vmatpush1.bf16.msra.mxu0 %v354
  %504 = vmatprep.subr.bf16.mxu0 0
  %505 = vmatpush1.bf16.msra.mxu0 %v353
  %506 = vmatprep.subr.bf16.mxu0 0
  %507 = vmatpush1.bf16.msra.mxu0 %v352
  %508 = vmatprep.subr.bf16.mxu0 0
  %509 = vmatpush1.bf16.msra.mxu0 %v351
  %510 = vmatprep.subr.bf16.mxu0 0
  %511 = vmatpush1.bf16.msra.mxu0 %v350
  %512 = vmatprep.subr.bf16.mxu0 0
  %513 = vmatpush2.bf16.msra.mxu0 0
  %514 = vmatprep.subr.bf16.mxu0 0
  %515 = vmatpush2.bf16.msra.mxu0 0
  %516 = vmatprep.subr.bf16.mxu0 0
  %517 = vmatpush2.bf16.msra.mxu0 0
  %518 = vmatprep.subr.bf16.mxu0 0
  %519 = vmatpush2.bf16.msra.mxu0 0
  %520 = vmatprep.subr.bf16.mxu0 0
  %521 = vmatpush2.bf16.msra.mxu0 0
  %522 = vmatprep.subr.bf16.mxu0 0
  %523 = vmatpush2.bf16.msra.mxu0 0
  %524 = vmatprep.subr.bf16.mxu0 0
  %525 = vmatpush2.bf16.msra.mxu0 0
  %526 = vmatprep.subr.bf16.mxu0 0
  %527 = vmatpush2.bf16.msra.mxu0 0
  %528 = vmatprep.mubr.bf16.mxu0 0
  %529 = vmatmul.mubr.bf16.gmra.mxu0 %v142
  %v530 = vpop.f32.mrf.mxu0
  %v531 = vadd.f32 %v482, %v530
  %v532 = vpop.f32.mrf.mxu0
  %v533 = vpop.f32.mrf.mxu0
  %v534 = vadd.f32 %v485, %v533
  %v535 = vpop.f32.mrf.mxu0
  %536 = vmatprep.mubr.bf16.mxu0 0
  %537 = vmatmul.mubr.bf16.gmra.mxu0 %v147
  %v538 = vpop.f32.mrf.mxu0
  %v539 = vadd.f32 %v490, %v538
  %v540 = vpop.f32.mrf.mxu0
  %v541 = vpop.f32.mrf.mxu0
  %v542 = vadd.f32 %v493, %v541
  %v543 = vpop.f32.mrf.mxu0
  %544 = vdwg.mxu0
  %v545 = vpack.c.bf16 %v534, %v531
  %v546 = vpack.c.bf16 %v542, %v539
  %v549 = vunpack.c.l.b16 %v545
  %v550 = vunpack.c.h.b16 %v545
  %v551 = vunpack.c.l.b16 %v546
  %v552 = vunpack.c.h.b16 %v546
  %v553 = vpack.c.b16 %v549, %v549
  %v554 = vpack.c.b16 %v550, %v550
  %v555 = vpack.c.b16 %v551, %v551
  %v556 = vpack.c.b16 %v552, %v552
  %561 = vst [vmem:[%s2] sm:$0xf] %v553
  %562 = vst [vmem:[%s2 + $0x4] sm:$0xf] %v554
  %563 = vst [vmem:[%s2 + $0x8] sm:$0xf] %v555
  %564 = vst [vmem:[%s2 + $0xc] sm:$0xf] %v556
  %p565 = scmp.eq.s32.totalorder 0, 0
  // Predicated region
  $region10: #{backbone_forward.42} parent=0 // pred_check
    %p566 = pneg %p565
  $region11: #{backbone_forward.42} parent=0 // pred_check_branch
    %568 = sbr.rel (%p566) target = $region13
  $region12: #{backbone_forward.42} parent=0 // pred_region
    %569 = vst [vmem:[%s3] sm:$0x3] 0.0
  $region13: #{backbone_forward.42} parent=0 // pred_fallthru
    _
  %v570 = vadd.f32 %v531, %v534
  %v571 = vadd.f32 %v570, %v539
  %v572 = vadd.f32 %v571, %v542
  %v573 = vrot.slane %v572, 4
  %v574 = vadd.f32 %v572, %v573
  %v575 = vrot.slane %v574, 2
  %v576 = vadd.f32 %v574, %v575
  %v577 = vrot.slane %v576, 1
  %v578 = vadd.f32 %v576, %v577
  %v579 = vmul.f32 %v531, %v531
  %v580 = vmul.f32 %v534, %v534
  %v581 = vmul.f32 %v539, %v539
  %v582 = vmul.f32 %v542, %v542
  %v583 = vadd.f32 %v579, %v580
  %v584 = vadd.f32 %v583, %v581
  %v585 = vadd.f32 %v584, %v582
  %v586 = vrot.slane %v585, 4
  %v587 = vadd.f32 %v585, %v586
  %v588 = vrot.slane %v587, 2
  %v589 = vadd.f32 %v587, %v588
  %v590 = vrot.slane %v589, 1
  %v591 = vadd.f32 %v589, %v590
  %v592 = vld [vmem:[%s3] sm:$0x3]
  %vm593 = vcmask 1040384
  %v594 = vsel %vm593, %v578, %v591
  %v595 = vadd.f32 %v592, %v594
  %596 = vst [vmem:[%s3] sm:$0x3] %v595
  // Predicated region
  $region14: #{backbone_forward.42} parent=0 // pred_check
    _
  $region15: #{backbone_forward.42} parent=0 // pred_check_branch
    %598 = sbr.rel (0) target = $region17
  $region16: #{backbone_forward.42} parent=0 // pred_region
    _
  $region17: #{backbone_forward.42} parent=0 // pred_fallthru
    _
  // Predicated region
  $region18: #{backbone_forward.42} parent=0 // pred_check
    _
  $region19: #{backbone_forward.42} parent=0 // pred_check_branch
    %600 = sbr.rel (0) target = $region21
  $region20: #{backbone_forward.42} parent=0 // pred_region
    _
  $region21: #{backbone_forward.42} parent=0 // pred_fallthru
    _
  // Predicated region
  $region22: #{backbone_forward.42} parent=0 // pred_check
    _
  $region23: #{backbone_forward.42} parent=0 // pred_check_branch
    %602 = sbr.rel (0) target = $region25
  $region24: #{backbone_forward.42} parent=0 // pred_region
    _
  $region25: #{backbone_forward.42} parent=0 // pred_fallthru
    _
  // Predicated region
  $region26: #{backbone_forward.42} parent=0 // pred_check
    _
  $region27: #{backbone_forward.42} parent=0 // pred_check_branch
    %604 = sbr.rel (0) target = $region29
  $region28: #{backbone_forward.42} parent=0 // pred_region
    _
  $region29: #{backbone_forward.42} parent=0 // pred_fallthru
    _

// kernel: backbone_forward.54
$region0: #{backbone_forward.54}
  #allocation0 [shape = 'u32[]', space=smem, size = 0x4, offset = 0x4, fixed_abs, tag = 'smem constant byte address 0x4 - core index']
  #allocation1 [shape = 'u32[144,128]{1,0:T(1,128)}', space=vmem, size = 0x12000, scoped, tag = 'internal scratch']
  %s0 = inlined_call_operand.vmem [shape: bf16[8,128], index: 0, kind: input, shape index: {}]
  %s1 = inlined_call_operand.vmem [shape: bf16[128,256], index: 1, kind: input, shape index: {}]
  %s2 = inlined_call_operand.vmem [shape: bf16[8,256], index: 2, kind: output, shape index: {0}]
  %s3 = inlined_call_operand.vmem [shape: f32[2,256], index: 3, kind: output, shape index: {1}]
  %4 = xla_tuple %s2, %s3
  %s5 = sld [smem:[#allocation0]]
  $region30: #{backbone_forward.54} parent=0
    _
  %s7 = ssub.s32 1, %s5
  %s8 = scalar_select 0, %s7, %s5
  // Predicated region
  $region2: #{backbone_forward.54} parent=0 // pred_check
    _
  $region3: #{backbone_forward.54} parent=0 // pred_check_branch
    %10 = sbr.rel (0) target = $region5
  $region4: #{backbone_forward.54} parent=0 // pred_region
    _
  $region5: #{backbone_forward.54} parent=0 // pred_fallthru
    _
  // Predicated region
  $region6: #{backbone_forward.54} parent=0 // pred_check
    _
  $region7: #{backbone_forward.54} parent=0 // pred_check_branch
    %12 = sbr.rel (0) target = $region9
  $region8: #{backbone_forward.54} parent=0 // pred_region
    _
  $region9: #{backbone_forward.54} parent=0 // pred_fallthru
    _
  %v14 = vld [vmem:[%s0] sm:$0xf]
  %v15 = vld [vmem:[%s1] sm:$0xff]
  %v16 = vld [vmem:[%s1 + $0x8] sm:$0xff]
  %v17 = vld [vmem:[%s1 + $0x10] sm:$0xff]
  %v18 = vld [vmem:[%s1 + $0x18] sm:$0xff]
  %v19 = vld [vmem:[%s1 + $0x20] sm:$0xff]
  %v20 = vld [vmem:[%s1 + $0x28] sm:$0xff]
  %v21 = vld [vmem:[%s1 + $0x30] sm:$0xff]
  %v22 = vld [vmem:[%s1 + $0x38] sm:$0xff]
  %v23 = vld [vmem:[%s1 + $0x40] sm:$0xff]
  %v24 = vld [vmem:[%s1 + $0x48] sm:$0xff]
  %v25 = vld [vmem:[%s1 + $0x50] sm:$0xff]
  %v26 = vld [vmem:[%s1 + $0x58] sm:$0xff]
  %v27 = vld [vmem:[%s1 + $0x60] sm:$0xff]
  %v28 = vld [vmem:[%s1 + $0x68] sm:$0xff]
  %v29 = vld [vmem:[%s1 + $0x70] sm:$0xff]
  %v30 = vld [vmem:[%s1 + $0x78] sm:$0xff]
  %v47 = vunpack.c.l.b16 %v15
  %v48 = vunpack.c.h.b16 %v15
  %v49 = vunpack.c.l.b16 %v16
  %v50 = vunpack.c.h.b16 %v16
  %v51 = vunpack.c.l.b16 %v17
  %v52 = vunpack.c.h.b16 %v17
  %v53 = vunpack.c.l.b16 %v18
  %v54 = vunpack.c.h.b16 %v18
  %v55 = vunpack.c.l.b16 %v19
  %v56 = vunpack.c.h.b16 %v19
  %v57 = vunpack.c.l.b16 %v20
  %v58 = vunpack.c.h.b16 %v20
  %v59 = vunpack.c.l.b16 %v21
  %v60 = vunpack.c.h.b16 %v21
  %v61 = vunpack.c.l.b16 %v22
  %v62 = vunpack.c.h.b16 %v22
  %v63 = vunpack.c.l.b16 %v23
  %v64 = vunpack.c.h.b16 %v23
  %v65 = vunpack.c.l.b16 %v24
  %v66 = vunpack.c.h.b16 %v24
  %v67 = vunpack.c.l.b16 %v25
  %v68 = vunpack.c.h.b16 %v25
  %v69 = vunpack.c.l.b16 %v26
  %v70 = vunpack.c.h.b16 %v26
  %v71 = vunpack.c.l.b16 %v27
  %v72 = vunpack.c.h.b16 %v27
  %v73 = vunpack.c.l.b16 %v28
  %v74 = vunpack.c.h.b16 %v28
  %v75 = vunpack.c.l.b16 %v29
  %v76 = vunpack.c.h.b16 %v29
  %v77 = vunpack.c.l.b16 %v30
  %v78 = vunpack.c.h.b16 %v30
  %v79 = vpack.c.b16 %v49, %v47
  %v80 = vpack.c.b16 %v50, %v48
  %v81 = vpack.c.b16 %v53, %v51
  %v82 = vpack.c.b16 %v54, %v52
  %v83 = vpack.c.b16 %v57, %v55
  %v84 = vpack.c.b16 %v58, %v56
  %v85 = vpack.c.b16 %v61, %v59
  %v86 = vpack.c.b16 %v62, %v60
  %v87 = vpack.c.b16 %v65, %v63
  %v88 = vpack.c.b16 %v66, %v64
  %v89 = vpack.c.b16 %v69, %v67
  %v90 = vpack.c.b16 %v70, %v68
  %v91 = vpack.c.b16 %v73, %v71
  %v92 = vpack.c.b16 %v74, %v72
  %v93 = vpack.c.b16 %v77, %v75
  %v94 = vpack.c.b16 %v78, %v76
  %111 = vmatprep.subr.bf16.mxu0 %v94
  %112 = vmatpush1.bf16.msra.mxu0 %v93
  %113 = vmatprep.subr.bf16.mxu0 %v92
  %114 = vmatpush1.bf16.msra.mxu0 %v91
  %115 = vmatprep.subr.bf16.mxu0 %v90
  %116 = vmatpush1.bf16.msra.mxu0 %v89
  %117 = vmatprep.subr.bf16.mxu0 %v88
  %118 = vmatpush1.bf16.msra.mxu0 %v87
  %119 = vmatprep.subr.bf16.mxu0 %v86
  %120 = vmatpush1.bf16.msra.mxu0 %v85
  %121 = vmatprep.subr.bf16.mxu0 %v84
  %122 = vmatpush1.bf16.msra.mxu0 %v83
  %123 = vmatprep.subr.bf16.mxu0 %v82
  %124 = vmatpush1.bf16.msra.mxu0 %v81
  %125 = vmatprep.subr.bf16.mxu0 %v80
  %126 = vmatpush1.bf16.msra.mxu0 %v79
  %127 = vmatprep.subr.bf16.mxu0 0
  %128 = vmatpush2.bf16.msra.mxu0 0
  %129 = vmatprep.subr.bf16.mxu0 0
  %130 = vmatpush2.bf16.msra.mxu0 0
  %131 = vmatprep.subr.bf16.mxu0 0
  %132 = vmatpush2.bf16.msra.mxu0 0
  %133 = vmatprep.subr.bf16.mxu0 0
  %134 = vmatpush2.bf16.msra.mxu0 0
  %135 = vmatprep.subr.bf16.mxu0 0
  %136 = vmatpush2.bf16.msra.mxu0 0
  %137 = vmatprep.subr.bf16.mxu0 0
  %138 = vmatpush2.bf16.msra.mxu0 0
  %139 = vmatprep.subr.bf16.mxu0 0
  %140 = vmatpush2.bf16.msra.mxu0 0
  %141 = vmatprep.subr.bf16.mxu0 0
  %142 = vmatpush2.bf16.msra.mxu0 0
  %143 = vmatprep.mubr.bf16.mxu0 0
  %144 = vmatmul.mubr.bf16.gmra.mxu0 %v14
  %v145 = vpop.f32.mrf.mxu0
  %v146 = vadd.f32 0.0, %v145
  %v147 = vpop.f32.mrf.mxu0
  %v148 = vadd.f32 0.0, %v147
  %v149 = vpop.f32.mrf.mxu0
  %v150 = vpop.f32.mrf.mxu0
  %151 = vdwg.mxu0
  %v152 = vpack.c.bf16 %v146, %v146
  %v153 = vpack.c.bf16 %v148, %v148
  %v156 = vunpack.c.l.b16 %v152
  %v157 = vunpack.c.l.b16 %v153
  %v158 = vpack.c.b16 %v157, %v156
  %160 = vst [vmem:[%s2] sm:$0xff] %v158
  %p161 = scmp.eq.s32.totalorder 0, 0
  // Predicated region
  $region10: #{backbone_forward.54} parent=0 // pred_check
    %p162 = pneg %p161
  $region11: #{backbone_forward.54} parent=0 // pred_check_branch
    %164 = sbr.rel (%p162) target = $region13
  $region12: #{backbone_forward.54} parent=0 // pred_region
    %165 = vst [vmem:[%s3] sm:$0xf] 0.0
  $region13: #{backbone_forward.54} parent=0 // pred_fallthru
    _
  %v166 = vrot.slane %v146, 4
  %v167 = vadd.f32 %v146, %v166
  %v168 = vrot.slane %v167, 2
  %v169 = vadd.f32 %v167, %v168
  %v170 = vrot.slane %v169, 1
  %v171 = vadd.f32 %v169, %v170
  %v172 = vrot.slane %v148, 4
  %v173 = vadd.f32 %v148, %v172
  %v174 = vrot.slane %v173, 2
  %v175 = vadd.f32 %v173, %v174
  %v176 = vrot.slane %v175, 1
  %v177 = vadd.f32 %v175, %v176
  %v178 = vmul.f32 %v146, %v146
  %v179 = vmul.f32 %v148, %v148
  %v180 = vrot.slane %v178, 4
  %v181 = vadd.f32 %v178, %v180
  %v182 = vrot.slane %v181, 2
  %v183 = vadd.f32 %v181, %v182
  %v184 = vrot.slane %v183, 1
  %v185 = vadd.f32 %v183, %v184
  %v186 = vrot.slane %v179, 4
  %v187 = vadd.f32 %v179, %v186
  %v188 = vrot.slane %v187, 2
  %v189 = vadd.f32 %v187, %v188
  %v190 = vrot.slane %v189, 1
  %v191 = vadd.f32 %v189, %v190
  %v192 = vld [vmem:[%s3] sm:$0xf]
  %vm193 = vcmask 1040384
  %v194 = vsel %vm193, %v171, %v185
  %v195 = vsel %vm193, %v177, %v191
  %v198 = vcombine.low %v194, %v195
  %v200 = vunpack.c.l.s4 1983009808
  %v201 = vunpack.c.0.s8 %v200
  %v202 = vlaneseq
  %v203 = vshrl.u32 %v202, 7
  %v204 = vsub.s32 %v201, %v203
  %v205 = vrot.slane %v198, %v204
  %v207 = vadd.f32 %v192, %v205
  %208 = vst [vmem:[%s3] sm:$0xf] %v207
  // Predicated region
  $region14: #{backbone_forward.54} parent=0 // pred_check
    _
  $region15: #{backbone_forward.54} parent=0 // pred_check_branch
    %210 = sbr.rel (0) target = $region17
  $region16: #{backbone_forward.54} parent=0 // pred_region
    _
  $region17: #{backbone_forward.54} parent=0 // pred_fallthru
    _
  // Predicated region
  $region18: #{backbone_forward.54} parent=0 // pred_check
    _
  $region19: #{backbone_forward.54} parent=0 // pred_check_branch
    %212 = sbr.rel (0) target = $region21
  $region20: #{backbone_forward.54} parent=0 // pred_region
    _
  $region21: #{backbone_forward.54} parent=0 // pred_fallthru
    _
  // Predicated region
  $region22: #{backbone_forward.54} parent=0 // pred_check
    _
  $region23: #{backbone_forward.54} parent=0 // pred_check_branch
    %214 = sbr.rel (0) target = $region25
  $region24: #{backbone_forward.54} parent=0 // pred_region
    _
  $region25: #{backbone_forward.54} parent=0 // pred_fallthru
    _
  // Predicated region
  $region26: #{backbone_forward.54} parent=0 // pred_check
    _
  $region27: #{backbone_forward.54} parent=0 // pred_check_branch
    %216 = sbr.rel (0) target = $region29
  $region28: #{backbone_forward.54} parent=0 // pred_region
    _
  $region29: #{backbone_forward.54} parent=0 // pred_fallthru
    _

// kernel: backbone_forward.47
$region0: #{backbone_forward.47}
  #allocation0 [shape = 'u32[]', space=smem, size = 0x4, offset = 0x4, fixed_abs, tag = 'smem constant byte address 0x4 - core index']
  #allocation1 [shape = 'u32[144,128]{1,0:T(1,128)}', space=vmem, size = 0x12000, scoped, tag = 'internal scratch']
  %s0 = inlined_call_operand.vmem [shape: bf16[32,128], index: 0, kind: input, shape index: {}]
  %s1 = inlined_call_operand.vmem [shape: f32[1,128], index: 1, kind: input, shape index: {}]
  %s2 = inlined_call_operand.vmem [shape: f32[1,128], index: 2, kind: input, shape index: {}]
  %s3 = inlined_call_operand.vmem [shape: bf16[32,128], index: 3, kind: input, shape index: {}]
  %s4 = inlined_call_operand.vmem [shape: bf16[32,128], index: 4, kind: output, shape index: {}]
  %s5 = sld [smem:[#allocation0]]
  $region26: #{backbone_forward.47} parent=0
    _
  %s7 = ssub.s32 1, %s5
  %s8 = scalar_select 0, %s7, %s5
  // Predicated region
  $region2: #{backbone_forward.47} parent=0 // pred_check
    _
  $region3: #{backbone_forward.47} parent=0 // pred_check_branch
    %10 = sbr.rel (0) target = $region5
  $region4: #{backbone_forward.47} parent=0 // pred_region
    _
  $region5: #{backbone_forward.47} parent=0 // pred_fallthru
    _
  // Predicated region
  $region6: #{backbone_forward.47} parent=0 // pred_check
    _
  $region7: #{backbone_forward.47} parent=0 // pred_check_branch
    %12 = sbr.rel (0) target = $region9
  $region8: #{backbone_forward.47} parent=0 // pred_region
    _
  $region9: #{backbone_forward.47} parent=0 // pred_fallthru
    _
  // Predicated region
  $region10: #{backbone_forward.47} parent=0 // pred_check
    _
  $region11: #{backbone_forward.47} parent=0 // pred_check_branch
    %14 = sbr.rel (0) target = $region13
  $region12: #{backbone_forward.47} parent=0 // pred_region
    _
  $region13: #{backbone_forward.47} parent=0 // pred_fallthru
    _
  // Predicated region
  $region14: #{backbone_forward.47} parent=0 // pred_check
    _
  $region15: #{backbone_forward.47} parent=0 // pred_check_branch
    %16 = sbr.rel (0) target = $region17
  $region16: #{backbone_forward.47} parent=0 // pred_region
    _
  $region17: #{backbone_forward.47} parent=0 // pred_fallthru
    _
  %v17 = vld [vmem:[%s0] sm:$0xf]
  %v18 = vld [vmem:[%s0 + $0x4] sm:$0xf]
  %v19 = vld [vmem:[%s0 + $0x8] sm:$0xf]
  %v20 = vld [vmem:[%s0 + $0xc] sm:$0xf]
  %v21 = vunpack.c.l.bf16 %v17
  %v22 = vunpack.c.l.bf16 %v18
  %v23 = vunpack.c.l.bf16 %v19
  %v24 = vunpack.c.l.bf16 %v20
  %v25 = vld [vmem:[%s3] sm:$0xf]
  %v26 = vld [vmem:[%s3 + $0x4] sm:$0xf]
  %v27 = vld [vmem:[%s3 + $0x8] sm:$0xf]
  %v28 = vld [vmem:[%s3 + $0xc] sm:$0xf]
  %v29 = vunpack.c.l.bf16 %v25
  %v30 = vunpack.c.l.bf16 %v26
  %v31 = vunpack.c.l.bf16 %v27
  %v32 = vunpack.c.l.bf16 %v28
  %v33 = vld [vmem:[%s1] sm:$0x1]
  %v35 = vlaneseq
  %v36 = vshrl.u32 %v35, 7
  %v37 = vsub.s32 0, %v36
  %v38 = vrot.slane %v33, %v37
  %v40 = vmul.f32 %v21, %v38
  %v41 = vmul.f32 %v22, %v38
  %v42 = vmul.f32 %v23, %v38
  %v43 = vmul.f32 %v24, %v38
  %v44 = vld [vmem:[%s2] sm:$0x1]
  %v46 = vlaneseq
  %v47 = vshrl.u32 %v46, 7
  %v48 = vsub.s32 0, %v47
  %v49 = vrot.slane %v44, %v48
  %v51 = vadd.f32 %v40, %v49
  %v52 = vadd.f32 %v41, %v49
  %v53 = vadd.f32 %v42, %v49
  %v54 = vadd.f32 %v43, %v49
  %v55 = vadd.f32 %v51, %v29
  %v56 = vadd.f32 %v52, %v30
  %v57 = vadd.f32 %v53, %v31
  %v58 = vadd.f32 %v54, %v32
  %v59 = vmax.f32 %v55, 0.0
  %v60 = vmax.f32 %v56, 0.0
  %v61 = vmax.f32 %v57, 0.0
  %v62 = vmax.f32 %v58, 0.0
  %v63 = vpack.c.bf16 %v60, %v59
  %v64 = vpack.c.bf16 %v62, %v61
  %v67 = vunpack.c.l.b16 %v63
  %v68 = vunpack.c.h.b16 %v63
  %v69 = vunpack.c.l.b16 %v64
  %v70 = vunpack.c.h.b16 %v64
  %v71 = vpack.c.b16 %v67, %v67
  %v72 = vpack.c.b16 %v68, %v68
  %v73 = vpack.c.b16 %v69, %v69
  %v74 = vpack.c.b16 %v70, %v70
  %79 = vst [vmem:[%s4] sm:$0xf] %v71
  %80 = vst [vmem:[%s4 + $0x4] sm:$0xf] %v72
  %81 = vst [vmem:[%s4 + $0x8] sm:$0xf] %v73
  %82 = vst [vmem:[%s4 + $0xc] sm:$0xf] %v74
  // Predicated region
  $region18: #{backbone_forward.47} parent=0 // pred_check
    _
  $region19: #{backbone_forward.47} parent=0 // pred_check_branch
    %84 = sbr.rel (0) target = $region21
  $region20: #{backbone_forward.47} parent=0 // pred_region
    _
  $region21: #{backbone_forward.47} parent=0 // pred_fallthru
    _
  // Predicated region
  $region22: #{backbone_forward.47} parent=0 // pred_check
    _
  $region23: #{backbone_forward.47} parent=0 // pred_check_branch
    %86 = sbr.rel (0) target = $region25
  $region24: #{backbone_forward.47} parent=0 // pred_region
    _
  $region25: #{backbone_forward.47} parent=0 // pred_fallthru
    _

// kernel: backbone_forward.46
$region0: #{backbone_forward.46}
  #allocation0 [shape = 'u32[]', space=smem, size = 0x4, offset = 0x4, fixed_abs, tag = 'smem constant byte address 0x4 - core index']
  #allocation1 [shape = 'u32[144,128]{1,0:T(1,128)}', space=vmem, size = 0x12000, scoped, tag = 'internal scratch']
  %s0 = inlined_call_operand.vmem [shape: bf16[32,1152], index: 0, kind: input, shape index: {}]
  %s1 = inlined_call_operand.vmem [shape: bf16[1152,128], index: 1, kind: input, shape index: {}]
  %s2 = inlined_call_operand.vmem [shape: bf16[32,128], index: 2, kind: output, shape index: {0}]
  %s3 = inlined_call_operand.vmem [shape: f32[2,128], index: 3, kind: output, shape index: {1}]
  %4 = xla_tuple %s2, %s3
  %s5 = sld [smem:[#allocation0]]
  $region30: #{backbone_forward.46} parent=0
    _
  %s7 = ssub.s32 1, %s5
  %s8 = scalar_select 0, %s7, %s5
  // Predicated region
  $region2: #{backbone_forward.46} parent=0 // pred_check
    _
  $region3: #{backbone_forward.46} parent=0 // pred_check_branch
    %10 = sbr.rel (0) target = $region5
  $region4: #{backbone_forward.46} parent=0 // pred_region
    _
  $region5: #{backbone_forward.46} parent=0 // pred_fallthru
    _
  // Predicated region
  $region6: #{backbone_forward.46} parent=0 // pred_check
    _
  $region7: #{backbone_forward.46} parent=0 // pred_check_branch
    %12 = sbr.rel (0) target = $region9
  $region8: #{backbone_forward.46} parent=0 // pred_region
    _
  $region9: #{backbone_forward.46} parent=0 // pred_fallthru
    _
  %v14 = vld [vmem:[%s0] sm:$0xff]
  %v15 = vld [vmem:[%s0 + $0x8] sm:$0xff]
  %v16 = vld [vmem:[%s0 + $0x10] sm:$0xff]
  %v17 = vld [vmem:[%s0 + $0x18] sm:$0xff]
  %v18 = vld [vmem:[%s0 + $0x20] sm:$0xf]
  %v19 = vld [vmem:[%s0 + $0x24] sm:$0xff]
  %v20 = vld [vmem:[%s0 + $0x2c] sm:$0xff]
  %v21 = vld [vmem:[%s0 + $0x34] sm:$0xff]
  %v22 = vld [vmem:[%s0 + $0x3c] sm:$0xff]
  %v23 = vld [vmem:[%s0 + $0x44] sm:$0xf]
  %v24 = vld [vmem:[%s0 + $0x48] sm:$0xff]
  %v25 = vld [vmem:[%s0 + $0x50] sm:$0xff]
  %v26 = vld [vmem:[%s0 + $0x58] sm:$0xff]
  %v27 = vld [vmem:[%s0 + $0x60] sm:$0xff]
  %v28 = vld [vmem:[%s0 + $0x68] sm:$0xf]
  %v29 = vld [vmem:[%s0 + $0x6c] sm:$0xff]
  %v30 = vld [vmem:[%s0 + $0x74] sm:$0xff]
  %v31 = vld [vmem:[%s0 + $0x7c] sm:$0xff]
  %v32 = vld [vmem:[%s0 + $0x84] sm:$0xff]
  %v33 = vld [vmem:[%s0 + $0x8c] sm:$0xf]
  %v34 = vld [vmem:[%s1] sm:$0xf]
  %v35 = vld [vmem:[%s1 + $0x4] sm:$0xf]
  %v36 = vld [vmem:[%s1 + $0x8] sm:$0xf]
  %v37 = vld [vmem:[%s1 + $0xc] sm:$0xf]
  %v38 = vld [vmem:[%s1 + $0x10] sm:$0xf]
  %v39 = vld [vmem:[%s1 + $0x14] sm:$0xf]
  %v40 = vld [vmem:[%s1 + $0x18] sm:$0xf]
  %v41 = vld [vmem:[%s1 + $0x1c] sm:$0xf]
  %v42 = vld [vmem:[%s1 + $0x20] sm:$0xf]
  %v43 = vld [vmem:[%s1 + $0x24] sm:$0xf]
  %v44 = vld [vmem:[%s1 + $0x28] sm:$0xf]
  %v45 = vld [vmem:[%s1 + $0x2c] sm:$0xf]
  %v46 = vld [vmem:[%s1 + $0x30] sm:$0xf]
  %v47 = vld [vmem:[%s1 + $0x34] sm:$0xf]
  %v48 = vld [vmem:[%s1 + $0x38] sm:$0xf]
  %v49 = vld [vmem:[%s1 + $0x3c] sm:$0xf]
  %v50 = vld [vmem:[%s1 + $0x40] sm:$0xf]
  %v51 = vld [vmem:[%s1 + $0x44] sm:$0xf]
  %v52 = vld [vmem:[%s1 + $0x48] sm:$0xf]
  %v53 = vld [vmem:[%s1 + $0x4c] sm:$0xf]
  %v54 = vld [vmem:[%s1 + $0x50] sm:$0xf]
  %v55 = vld [vmem:[%s1 + $0x54] sm:$0xf]
  %v56 = vld [vmem:[%s1 + $0x58] sm:$0xf]
  %v57 = vld [vmem:[%s1 + $0x5c] sm:$0xf]
  %v58 = vld [vmem:[%s1 + $0x60] sm:$0xf]
  %v59 = vld [vmem:[%s1 + $0x64] sm:$0xf]
  %v60 = vld [vmem:[%s1 + $0x68] sm:$0xf]
  %v61 = vld [vmem:[%s1 + $0x6c] sm:$0xf]
  %v62 = vld [vmem:[%s1 + $0x70] sm:$0xf]
  %v63 = vld [vmem:[%s1 + $0x74] sm:$0xf]
  %v64 = vld [vmem:[%s1 + $0x78] sm:$0xf]
  %v65 = vld [vmem:[%s1 + $0x7c] sm:$0xf]
  %v66 = vld [vmem:[%s1 + $0x80] sm:$0xf]
  %v67 = vld [vmem:[%s1 + $0x84] sm:$0xf]
  %v68 = vld [vmem:[%s1 + $0x88] sm:$0xf]
  %v69 = vld [vmem:[%s1 + $0x8c] sm:$0xf]
  %v70 = vld [vmem:[%s1 + $0x90] sm:$0xf]
  %v71 = vld [vmem:[%s1 + $0x94] sm:$0xf]
  %v72 = vld [vmem:[%s1 + $0x98] sm:$0xf]
  %v73 = vld [vmem:[%s1 + $0x9c] sm:$0xf]
  %v74 = vld [vmem:[%s1 + $0xa0] sm:$0xf]
  %v75 = vld [vmem:[%s1 + $0xa4] sm:$0xf]
  %v76 = vld [vmem:[%s1 + $0xa8] sm:$0xf]
  %v77 = vld [vmem:[%s1 + $0xac] sm:$0xf]
  %v78 = vld [vmem:[%s1 + $0xb0] sm:$0xf]
  %v79 = vld [vmem:[%s1 + $0xb4] sm:$0xf]
  %v80 = vld [vmem:[%s1 + $0xb8] sm:$0xf]
  %v81 = vld [vmem:[%s1 + $0xbc] sm:$0xf]
  %v82 = vld [vmem:[%s1 + $0xc0] sm:$0xf]
  %v83 = vld [vmem:[%s1 + $0xc4] sm:$0xf]
  %v84 = vld [vmem:[%s1 + $0xc8] sm:$0xf]
  %v85 = vld [vmem:[%s1 + $0xcc] sm:$0xf]
  %v86 = vld [vmem:[%s1 + $0xd0] sm:$0xf]
  %v87 = vld [vmem:[%s1 + $0xd4] sm:$0xf]
  %v88 = vld [vmem:[%s1 + $0xd8] sm:$0xf]
  %v89 = vld [vmem:[%s1 + $0xdc] sm:$0xf]
  %v90 = vld [vmem:[%s1 + $0xe0] sm:$0xf]
  %v91 = vld [vmem:[%s1 + $0xe4] sm:$0xf]
  %v92 = vld [vmem:[%s1 + $0xe8] sm:$0xf]
  %v93 = vld [vmem:[%s1 + $0xec] sm:$0xf]
  %v94 = vld [vmem:[%s1 + $0xf0] sm:$0xf]
  %v95 = vld [vmem:[%s1 + $0xf4] sm:$0xf]
  %v96 = vld [vmem:[%s1 + $0xf8] sm:$0xf]
  %v97 = vld [vmem:[%s1 + $0xfc] sm:$0xf]
  %v98 = vld [vmem:[%s1 + $0x100] sm:$0xf]
  %v99 = vld [vmem:[%s1 + $0x104] sm:$0xf]
  %v100 = vld [vmem:[%s1 + $0x108] sm:$0xf]
  %v101 = vld [vmem:[%s1 + $0x10c] sm:$0xf]
  %v102 = vld [vmem:[%s1 + $0x110] sm:$0xf]
  %v103 = vld [vmem:[%s1 + $0x114] sm:$0xf]
  %v104 = vld [vmem:[%s1 + $0x118] sm:$0xf]
  %v105 = vld [vmem:[%s1 + $0x11c] sm:$0xf]
  %v106 = vld [vmem:[%s1 + $0x120] sm:$0xf]
  %v107 = vld [vmem:[%s1 + $0x124] sm:$0xf]
  %v108 = vld [vmem:[%s1 + $0x128] sm:$0xf]
  %v109 = vld [vmem:[%s1 + $0x12c] sm:$0xf]
  %v110 = vld [vmem:[%s1 + $0x130] sm:$0xf]
  %v111 = vld [vmem:[%s1 + $0x134] sm:$0xf]
  %v112 = vld [vmem:[%s1 + $0x138] sm:$0xf]
  %v113 = vld [vmem:[%s1 + $0x13c] sm:$0xf]
  %v114 = vld [vmem:[%s1 + $0x140] sm:$0xf]
  %v115 = vld [vmem:[%s1 + $0x144] sm:$0xf]
  %v116 = vld [vmem:[%s1 + $0x148] sm:$0xf]
  %v117 = vld [vmem:[%s1 + $0x14c] sm:$0xf]
  %v118 = vld [vmem:[%s1 + $0x150] sm:$0xf]
  %v119 = vld [vmem:[%s1 + $0x154] sm:$0xf]
  %v120 = vld [vmem:[%s1 + $0x158] sm:$0xf]
  %v121 = vld [vmem:[%s1 + $0x15c] sm:$0xf]
  %v122 = vld [vmem:[%s1 + $0x160] sm:$0xf]
  %v123 = vld [vmem:[%s1 + $0x164] sm:$0xf]
  %v124 = vld [vmem:[%s1 + $0x168] sm:$0xf]
  %v125 = vld [vmem:[%s1 + $0x16c] sm:$0xf]
  %v126 = vld [vmem:[%s1 + $0x170] sm:$0xf]
  %v127 = vld [vmem:[%s1 + $0x174] sm:$0xf]
  %v128 = vld [vmem:[%s1 + $0x178] sm:$0xf]
  %v129 = vld [vmem:[%s1 + $0x17c] sm:$0xf]
  %v130 = vld [vmem:[%s1 + $0x180] sm:$0xf]
  %v131 = vld [vmem:[%s1 + $0x184] sm:$0xf]
  %v132 = vld [vmem:[%s1 + $0x188] sm:$0xf]
  %v133 = vld [vmem:[%s1 + $0x18c] sm:$0xf]
  %v134 = vld [vmem:[%s1 + $0x190] sm:$0xf]
  %v135 = vld [vmem:[%s1 + $0x194] sm:$0xf]
  %v136 = vld [vmem:[%s1 + $0x198] sm:$0xf]
  %v137 = vld [vmem:[%s1 + $0x19c] sm:$0xf]
  %v138 = vld [vmem:[%s1 + $0x1a0] sm:$0xf]
  %v139 = vld [vmem:[%s1 + $0x1a4] sm:$0xf]
  %v140 = vld [vmem:[%s1 + $0x1a8] sm:$0xf]
  %v141 = vld [vmem:[%s1 + $0x1ac] sm:$0xf]
  %v142 = vld [vmem:[%s1 + $0x1b0] sm:$0xf]
  %v143 = vld [vmem:[%s1 + $0x1b4] sm:$0xf]
  %v144 = vld [vmem:[%s1 + $0x1b8] sm:$0xf]
  %v145 = vld [vmem:[%s1 + $0x1bc] sm:$0xf]
  %v146 = vld [vmem:[%s1 + $0x1c0] sm:$0xf]
  %v147 = vld [vmem:[%s1 + $0x1c4] sm:$0xf]
  %v148 = vld [vmem:[%s1 + $0x1c8] sm:$0xf]
  %v149 = vld [vmem:[%s1 + $0x1cc] sm:$0xf]
  %v150 = vld [vmem:[%s1 + $0x1d0] sm:$0xf]
  %v151 = vld [vmem:[%s1 + $0x1d4] sm:$0xf]
  %v152 = vld [vmem:[%s1 + $0x1d8] sm:$0xf]
  %v153 = vld [vmem:[%s1 + $0x1dc] sm:$0xf]
  %v154 = vld [vmem:[%s1 + $0x1e0] sm:$0xf]
  %v155 = vld [vmem:[%s1 + $0x1e4] sm:$0xf]
  %v156 = vld [vmem:[%s1 + $0x1e8] sm:$0xf]
  %v157 = vld [vmem:[%s1 + $0x1ec] sm:$0xf]
  %v158 = vld [vmem:[%s1 + $0x1f0] sm:$0xf]
  %v159 = vld [vmem:[%s1 + $0x1f4] sm:$0xf]
  %v160 = vld [vmem:[%s1 + $0x1f8] sm:$0xf]
  %v161 = vld [vmem:[%s1 + $0x1fc] sm:$0xf]
  %v162 = vld [vmem:[%s1 + $0x200] sm:$0xf]
  %v163 = vld [vmem:[%s1 + $0x204] sm:$0xf]
  %v164 = vld [vmem:[%s1 + $0x208] sm:$0xf]
  %v165 = vld [vmem:[%s1 + $0x20c] sm:$0xf]
  %v166 = vld [vmem:[%s1 + $0x210] sm:$0xf]
  %v167 = vld [vmem:[%s1 + $0x214] sm:$0xf]
  %v168 = vld [vmem:[%s1 + $0x218] sm:$0xf]
  %v169 = vld [vmem:[%s1 + $0x21c] sm:$0xf]
  %v170 = vld [vmem:[%s1 + $0x220] sm:$0xf]
  %v171 = vld [vmem:[%s1 + $0x224] sm:$0xf]
  %v172 = vld [vmem:[%s1 + $0x228] sm:$0xf]
  %v173 = vld [vmem:[%s1 + $0x22c] sm:$0xf]
  %v174 = vld [vmem:[%s1 + $0x230] sm:$0xf]
  %v175 = vld [vmem:[%s1 + $0x234] sm:$0xf]
  %v176 = vld [vmem:[%s1 + $0x238] sm:$0xf]
  %v177 = vld [vmem:[%s1 + $0x23c] sm:$0xf]
  %v198 = vunpack.c.l.b16 %v14
  %v199 = vunpack.c.h.b16 %v14
  %v200 = vunpack.c.l.b16 %v15
  %v201 = vunpack.c.h.b16 %v15
  %v202 = vunpack.c.l.b16 %v16
  %v203 = vunpack.c.h.b16 %v16
  %v204 = vunpack.c.l.b16 %v17
  %v205 = vunpack.c.h.b16 %v17
  %v206 = vunpack.c.l.b16 %v18
  %v207 = vunpack.c.l.b16 %v19
  %v208 = vunpack.c.h.b16 %v19
  %v209 = vunpack.c.l.b16 %v20
  %v210 = vunpack.c.h.b16 %v20
  %v211 = vunpack.c.l.b16 %v21
  %v212 = vunpack.c.h.b16 %v21
  %v213 = vunpack.c.l.b16 %v22
  %v214 = vunpack.c.h.b16 %v22
  %v215 = vunpack.c.l.b16 %v23
  %v216 = vunpack.c.l.b16 %v24
  %v217 = vunpack.c.h.b16 %v24
  %v218 = vunpack.c.l.b16 %v25
  %v219 = vunpack.c.h.b16 %v25
  %v220 = vunpack.c.l.b16 %v26
  %v221 = vunpack.c.h.b16 %v26
  %v222 = vunpack.c.l.b16 %v27
  %v223 = vunpack.c.h.b16 %v27
  %v224 = vunpack.c.l.b16 %v28
  %v225 = vunpack.c.l.b16 %v29
  %v226 = vunpack.c.h.b16 %v29
  %v227 = vunpack.c.l.b16 %v30
  %v228 = vunpack.c.h.b16 %v30
  %v229 = vunpack.c.l.b16 %v31
  %v230 = vunpack.c.h.b16 %v31
  %v231 = vunpack.c.l.b16 %v32
  %v232 = vunpack.c.h.b16 %v32
  %v233 = vunpack.c.l.b16 %v33
  %v234 = vpack.c.b16 %v207, %v198
  %v235 = vpack.c.b16 %v208, %v199
  %v236 = vpack.c.b16 %v209, %v200
  %v237 = vpack.c.b16 %v210, %v201
  %v238 = vpack.c.b16 %v211, %v202
  %v239 = vpack.c.b16 %v212, %v203
  %v240 = vpack.c.b16 %v213, %v204
  %v241 = vpack.c.b16 %v214, %v205
  %v242 = vpack.c.b16 %v215, %v206
  %v243 = vpack.c.b16 %v225, %v216
  %v244 = vpack.c.b16 %v226, %v217
  %v245 = vpack.c.b16 %v227, %v218
  %v246 = vpack.c.b16 %v228, %v219
  %v247 = vpack.c.b16 %v229, %v220
  %v248 = vpack.c.b16 %v230, %v221
  %v249 = vpack.c.b16 %v231, %v222
  %v250 = vpack.c.b16 %v232, %v223
  %v251 = vpack.c.b16 %v233, %v224
  %v414 = vunpack.c.l.b16 %v34
  %v415 = vunpack.c.l.b16 %v35
  %v416 = vunpack.c.l.b16 %v36
  %v417 = vunpack.c.l.b16 %v37
  %v418 = vunpack.c.l.b16 %v38
  %v419 = vunpack.c.l.b16 %v39
  %v420 = vunpack.c.l.b16 %v40
  %v421 = vunpack.c.l.b16 %v41
  %v422 = vunpack.c.l.b16 %v42
  %v423 = vunpack.c.l.b16 %v43
  %v424 = vunpack.c.l.b16 %v44
  %v425 = vunpack.c.l.b16 %v45
  %v426 = vunpack.c.l.b16 %v46
  %v427 = vunpack.c.l.b16 %v47
  %v428 = vunpack.c.l.b16 %v48
  %v429 = vunpack.c.l.b16 %v49
  %v430 = vunpack.c.l.b16 %v50
  %v431 = vunpack.c.l.b16 %v51
  %v432 = vunpack.c.l.b16 %v52
  %v433 = vunpack.c.l.b16 %v53
  %v434 = vunpack.c.l.b16 %v54
  %v435 = vunpack.c.l.b16 %v55
  %v436 = vunpack.c.l.b16 %v56
  %v437 = vunpack.c.l.b16 %v57
  %v438 = vunpack.c.l.b16 %v58
  %v439 = vunpack.c.l.b16 %v59
  %v440 = vunpack.c.l.b16 %v60
  %v441 = vunpack.c.l.b16 %v61
  %v442 = vunpack.c.l.b16 %v62
  %v443 = vunpack.c.l.b16 %v63
  %v444 = vunpack.c.l.b16 %v64
  %v445 = vunpack.c.l.b16 %v65
  %v446 = vunpack.c.l.b16 %v66
  %v447 = vunpack.c.l.b16 %v67
  %v448 = vunpack.c.l.b16 %v68
  %v449 = vunpack.c.l.b16 %v69
  %v450 = vunpack.c.l.b16 %v70
  %v451 = vunpack.c.l.b16 %v71
  %v452 = vunpack.c.l.b16 %v72
  %v453 = vunpack.c.l.b16 %v73
  %v454 = vunpack.c.l.b16 %v74
  %v455 = vunpack.c.l.b16 %v75
  %v456 = vunpack.c.l.b16 %v76
  %v457 = vunpack.c.l.b16 %v77
  %v458 = vunpack.c.l.b16 %v78
  %v459 = vunpack.c.l.b16 %v79
  %v460 = vunpack.c.l.b16 %v80
  %v461 = vunpack.c.l.b16 %v81
  %v462 = vunpack.c.l.b16 %v82
  %v463 = vunpack.c.l.b16 %v83
  %v464 = vunpack.c.l.b16 %v84
  %v465 = vunpack.c.l.b16 %v85
  %v466 = vunpack.c.l.b16 %v86
  %v467 = vunpack.c.l.b16 %v87
  %v468 = vunpack.c.l.b16 %v88
  %v469 = vunpack.c.l.b16 %v89
  %v470 = vunpack.c.l.b16 %v90
  %v471 = vunpack.c.l.b16 %v91
  %v472 = vunpack.c.l.b16 %v92
  %v473 = vunpack.c.l.b16 %v93
  %v474 = vunpack.c.l.b16 %v94
  %v475 = vunpack.c.l.b16 %v95
  %v476 = vunpack.c.l.b16 %v96
  %v477 = vunpack.c.l.b16 %v97
  %v478 = vunpack.c.l.b16 %v98
  %v479 = vunpack.c.l.b16 %v99
  %v480 = vunpack.c.l.b16 %v100
  %v481 = vunpack.c.l.b16 %v101
  %v482 = vunpack.c.l.b16 %v102
  %v483 = vunpack.c.l.b16 %v103
  %v484 = vunpack.c.l.b16 %v104
  %v485 = vunpack.c.l.b16 %v105
  %v486 = vunpack.c.l.b16 %v106
  %v487 = vunpack.c.l.b16 %v107
  %v488 = vunpack.c.l.b16 %v108
  %v489 = vunpack.c.l.b16 %v109
  %v490 = vunpack.c.l.b16 %v110
  %v491 = vunpack.c.l.b16 %v111
  %v492 = vunpack.c.l.b16 %v112
  %v493 = vunpack.c.l.b16 %v113
  %v494 = vunpack.c.l.b16 %v114
  %v495 = vunpack.c.l.b16 %v115
  %v496 = vunpack.c.l.b16 %v116
  %v497 = vunpack.c.l.b16 %v117
  %v498 = vunpack.c.l.b16 %v118
  %v499 = vunpack.c.l.b16 %v119
  %v500 = vunpack.c.l.b16 %v120
  %v501 = vunpack.c.l.b16 %v121
  %v502 = vunpack.c.l.b16 %v122
  %v503 = vunpack.c.l.b16 %v123
  %v504 = vunpack.c.l.b16 %v124
  %v505 = vunpack.c.l.b16 %v125
  %v506 = vunpack.c.l.b16 %v126
  %v507 = vunpack.c.l.b16 %v127
  %v508 = vunpack.c.l.b16 %v128
  %v509 = vunpack.c.l.b16 %v129
  %v510 = vunpack.c.l.b16 %v130
  %v511 = vunpack.c.l.b16 %v131
  %v512 = vunpack.c.l.b16 %v132
  %v513 = vunpack.c.l.b16 %v133
  %v514 = vunpack.c.l.b16 %v134
  %v515 = vunpack.c.l.b16 %v135
  %v516 = vunpack.c.l.b16 %v136
  %v517 = vunpack.c.l.b16 %v137
  %v518 = vunpack.c.l.b16 %v138
  %v519 = vunpack.c.l.b16 %v139
  %v520 = vunpack.c.l.b16 %v140
  %v521 = vunpack.c.l.b16 %v141
  %v522 = vunpack.c.l.b16 %v142
  %v523 = vunpack.c.l.b16 %v143
  %v524 = vunpack.c.l.b16 %v144
  %v525 = vunpack.c.l.b16 %v145
  %v526 = vunpack.c.l.b16 %v146
  %v527 = vunpack.c.l.b16 %v147
  %v528 = vunpack.c.l.b16 %v148
  %v529 = vunpack.c.l.b16 %v149
  %v530 = vunpack.c.l.b16 %v150
  %v531 = vunpack.c.l.b16 %v151
  %v532 = vunpack.c.l.b16 %v152
  %v533 = vunpack.c.l.b16 %v153
  %v534 = vunpack.c.l.b16 %v154
  %v535 = vunpack.c.l.b16 %v155
  %v536 = vunpack.c.l.b16 %v156
  %v537 = vunpack.c.l.b16 %v157
  %v538 = vunpack.c.l.b16 %v158
  %v539 = vunpack.c.l.b16 %v159
  %v540 = vunpack.c.l.b16 %v160
  %v541 = vunpack.c.l.b16 %v161
  %v542 = vunpack.c.l.b16 %v162
  %v543 = vunpack.c.l.b16 %v163
  %v544 = vunpack.c.l.b16 %v164
  %v545 = vunpack.c.l.b16 %v165
  %v546 = vunpack.c.l.b16 %v166
  %v547 = vunpack.c.l.b16 %v167
  %v548 = vunpack.c.l.b16 %v168
  %v549 = vunpack.c.l.b16 %v169
  %v550 = vunpack.c.l.b16 %v170
  %v551 = vunpack.c.l.b16 %v171
  %v552 = vunpack.c.l.b16 %v172
  %v553 = vunpack.c.l.b16 %v173
  %v554 = vunpack.c.l.b16 %v174
  %v555 = vunpack.c.l.b16 %v175
  %v556 = vunpack.c.l.b16 %v176
  %v557 = vunpack.c.l.b16 %v177
  %v558 = vpack.c.b16 %v415, %v414
  %v559 = vpack.c.b16 %v417, %v416
  %v560 = vpack.c.b16 %v419, %v418
  %v561 = vpack.c.b16 %v421, %v420
  %v562 = vpack.c.b16 %v423, %v422
  %v563 = vpack.c.b16 %v425, %v424
  %v564 = vpack.c.b16 %v427, %v426
  %v565 = vpack.c.b16 %v429, %v428
  %v566 = vpack.c.b16 %v431, %v430
  %v567 = vpack.c.b16 %v433, %v432
  %v568 = vpack.c.b16 %v435, %v434
  %v569 = vpack.c.b16 %v437, %v436
  %v570 = vpack.c.b16 %v439, %v438
  %v571 = vpack.c.b16 %v441, %v440
  %v572 = vpack.c.b16 %v443, %v442
  %v573 = vpack.c.b16 %v445, %v444
  %v574 = vpack.c.b16 %v447, %v446
  %v575 = vpack.c.b16 %v449, %v448
  %v576 = vpack.c.b16 %v451, %v450
  %v577 = vpack.c.b16 %v453, %v452
  %v578 = vpack.c.b16 %v455, %v454
  %v579 = vpack.c.b16 %v457, %v456
  %v580 = vpack.c.b16 %v459, %v458
  %v581 = vpack.c.b16 %v461, %v460
  %v582 = vpack.c.b16 %v463, %v462
  %v583 = vpack.c.b16 %v465, %v464
  %v584 = vpack.c.b16 %v467, %v466
  %v585 = vpack.c.b16 %v469, %v468
  %v586 = vpack.c.b16 %v471, %v470
  %v587 = vpack.c.b16 %v473, %v472
  %v588 = vpack.c.b16 %v475, %v474
  %v589 = vpack.c.b16 %v477, %v476
  %v590 = vpack.c.b16 %v479, %v478
  %v591 = vpack.c.b16 %v481, %v480
  %v592 = vpack.c.b16 %v483, %v482
  %v593 = vpack.c.b16 %v485, %v484
  %v594 = vpack.c.b16 %v487, %v486
  %v595 = vpack.c.b16 %v489, %v488
  %v596 = vpack.c.b16 %v491, %v490
  %v597 = vpack.c.b16 %v493, %v492
  %v598 = vpack.c.b16 %v495, %v494
  %v599 = vpack.c.b16 %v497, %v496
  %v600 = vpack.c.b16 %v499, %v498
  %v601 = vpack.c.b16 %v501, %v500
  %v602 = vpack.c.b16 %v503, %v502
  %v603 = vpack.c.b16 %v505, %v504
  %v604 = vpack.c.b16 %v507, %v506
  %v605 = vpack.c.b16 %v509, %v508
  %v606 = vpack.c.b16 %v511, %v510
  %v607 = vpack.c.b16 %v513, %v512
  %v608 = vpack.c.b16 %v515, %v514
  %v609 = vpack.c.b16 %v517, %v516
  %v610 = vpack.c.b16 %v519, %v518
  %v611 = vpack.c.b16 %v521, %v520
  %v612 = vpack.c.b16 %v523, %v522
  %v613 = vpack.c.b16 %v525, %v524
  %v614 = vpack.c.b16 %v527, %v526
  %v615 = vpack.c.b16 %v529, %v528
  %v616 = vpack.c.b16 %v531, %v530
  %v617 = vpack.c.b16 %v533, %v532
  %v618 = vpack.c.b16 %v535, %v534
  %v619 = vpack.c.b16 %v537, %v536
  %v620 = vpack.c.b16 %v539, %v538
  %v621 = vpack.c.b16 %v541, %v540
  %v622 = vpack.c.b16 %v543, %v542
  %v623 = vpack.c.b16 %v545, %v544
  %v624 = vpack.c.b16 %v547, %v546
  %v625 = vpack.c.b16 %v549, %v548
  %v626 = vpack.c.b16 %v551, %v550
  %v627 = vpack.c.b16 %v553, %v552
  %v628 = vpack.c.b16 %v555, %v554
  %v629 = vpack.c.b16 %v557, %v556
  %702 = vmatprep.subr.bf16.mxu0 0
  %703 = vmatpush1.bf16.msra.mxu0 %v565
  %704 = vmatprep.subr.bf16.mxu0 0
  %705 = vmatpush1.bf16.msra.mxu0 %v564
  %706 = vmatprep.subr.bf16.mxu0 0
  %707 = vmatpush1.bf16.msra.mxu0 %v563
  %708 = vmatprep.subr.bf16.mxu0 0
  %709 = vmatpush1.bf16.msra.mxu0 %v562
  %710 = vmatprep.subr.bf16.mxu0 0
  %711 = vmatpush1.bf16.msra.mxu0 %v561
  %712 = vmatprep.subr.bf16.mxu0 0
  %713 = vmatpush1.bf16.msra.mxu0 %v560
  %714 = vmatprep.subr.bf16.mxu0 0
  %715 = vmatpush1.bf16.msra.mxu0 %v559
  %716 = vmatprep.subr.bf16.mxu0 0
  %717 = vmatpush1.bf16.msra.mxu0 %v558
  %718 = vmatprep.subr.bf16.mxu0 0
  %719 = vmatpush2.bf16.msra.mxu0 %v573
  %720 = vmatprep.subr.bf16.mxu0 0
  %721 = vmatpush2.bf16.msra.mxu0 %v572
  %722 = vmatprep.subr.bf16.mxu0 0
  %723 = vmatpush2.bf16.msra.mxu0 %v571
  %724 = vmatprep.subr.bf16.mxu0 0
  %725 = vmatpush2.bf16.msra.mxu0 %v570
  %726 = vmatprep.subr.bf16.mxu0 0
  %727 = vmatpush2.bf16.msra.mxu0 %v569
  %728 = vmatprep.subr.bf16.mxu0 0
  %729 = vmatpush2.bf16.msra.mxu0 %v568
  %730 = vmatprep.subr.bf16.mxu0 0
  %731 = vmatpush2.bf16.msra.mxu0 %v567
  %732 = vmatprep.subr.bf16.mxu0 0
  %733 = vmatpush2.bf16.msra.mxu0 %v566
  %734 = vmatprep.mubr.bf16.mxu0 %v235
  %735 = vmatmul.mubr.bf16.gmra.mxu0 %v234
  %v736 = vpop.f32.mrf.mxu0
  %v737 = vadd.f32 0.0, %v736
  %v738 = vpop.f32.mrf.mxu0
  %v739 = vpop.f32.mrf.mxu0
  %v740 = vadd.f32 0.0, %v739
  %v741 = vpop.f32.mrf.mxu0
  %742 = vmatprep.mubr.bf16.mxu0 %v244
  %743 = vmatmul.mubr.bf16.gmra.mxu0 %v243
  %v744 = vpop.f32.mrf.mxu0
  %v745 = vadd.f32 0.0, %v744
  %v746 = vpop.f32.mrf.mxu0
  %v747 = vpop.f32.mrf.mxu0
  %v748 = vadd.f32 0.0, %v747
  %v749 = vpop.f32.mrf.mxu0
  %750 = vdwg.mxu0
  %751 = vmatprep.subr.bf16.mxu0 0
  %752 = vmatpush1.bf16.msra.mxu0 %v581
  %753 = vmatprep.subr.bf16.mxu0 0
  %754 = vmatpush1.bf16.msra.mxu0 %v580
  %755 = vmatprep.subr.bf16.mxu0 0
  %756 = vmatpush1.bf16.msra.mxu0 %v579
  %757 = vmatprep.subr.bf16.mxu0 0
  %758 = vmatpush1.bf16.msra.mxu0 %v578
  %759 = vmatprep.subr.bf16.mxu0 0
  %760 = vmatpush1.bf16.msra.mxu0 %v577
  %761 = vmatprep.subr.bf16.mxu0 0
  %762 = vmatpush1.bf16.msra.mxu0 %v576
  %763 = vmatprep.subr.bf16.mxu0 0
  %764 = vmatpush1.bf16.msra.mxu0 %v575
  %765 = vmatprep.subr.bf16.mxu0 0
  %766 = vmatpush1.bf16.msra.mxu0 %v574
  %767 = vmatprep.subr.bf16.mxu0 0
  %768 = vmatpush2.bf16.msra.mxu0 %v589
  %769 = vmatprep.subr.bf16.mxu0 0
  %770 = vmatpush2.bf16.msra.mxu0 %v588
  %771 = vmatprep.subr.bf16.mxu0 0
  %772 = vmatpush2.bf16.msra.mxu0 %v587
  %773 = vmatprep.subr.bf16.mxu0 0
  %774 = vmatpush2.bf16.msra.mxu0 %v586
  %775 = vmatprep.subr.bf16.mxu0 0
  %776 = vmatpush2.bf16.msra.mxu0 %v585
  %777 = vmatprep.subr.bf16.mxu0 0
  %778 = vmatpush2.bf16.msra.mxu0 %v584
  %779 = vmatprep.subr.bf16.mxu0 0
  %780 = vmatpush2.bf16.msra.mxu0 %v583
  %781 = vmatprep.subr.bf16.mxu0 0
  %782 = vmatpush2.bf16.msra.mxu0 %v582
  %783 = vmatprep.mubr.bf16.mxu0 %v237
  %784 = vmatmul.mubr.bf16.gmra.mxu0 %v236
  %v785 = vpop.f32.mrf.mxu0
  %v786 = vadd.f32 %v737, %v785
  %v787 = vpop.f32.mrf.mxu0
  %v788 = vpop.f32.mrf.mxu0
  %v789 = vadd.f32 %v740, %v788
  %v790 = vpop.f32.mrf.mxu0
  %791 = vmatprep.mubr.bf16.mxu0 %v246
  %792 = vmatmul.mubr.bf16.gmra.mxu0 %v245
  %v793 = vpop.f32.mrf.mxu0
  %v794 = vadd.f32 %v745, %v793
  %v795 = vpop.f32.mrf.mxu0
  %v796 = vpop.f32.mrf.mxu0
  %v797 = vadd.f32 %v748, %v796
  %v798 = vpop.f32.mrf.mxu0
  %799 = vdwg.mxu0
  %800 = vmatprep.subr.bf16.mxu0 0
  %801 = vmatpush1.bf16.msra.mxu0 %v597
  %802 = vmatprep.subr.bf16.mxu0 0
  %803 = vmatpush1.bf16.msra.mxu0 %v596
  %804 = vmatprep.subr.bf16.mxu0 0
  %805 = vmatpush1.bf16.msra.mxu0 %v595
  %806 = vmatprep.subr.bf16.mxu0 0
  %807 = vmatpush1.bf16.msra.mxu0 %v594
  %808 = vmatprep.subr.bf16.mxu0 0
  %809 = vmatpush1.bf16.msra.mxu0 %v593
  %810 = vmatprep.subr.bf16.mxu0 0
  %811 = vmatpush1.bf16.msra.mxu0 %v592
  %812 = vmatprep.subr.bf16.mxu0 0
  %813 = vmatpush1.bf16.msra.mxu0 %v591
  %814 = vmatprep.subr.bf16.mxu0 0
  %815 = vmatpush1.bf16.msra.mxu0 %v590
  %816 = vmatprep.subr.bf16.mxu0 0
  %817 = vmatpush2.bf16.msra.mxu0 %v605
  %818 = vmatprep.subr.bf16.mxu0 0
  %819 = vmatpush2.bf16.msra.mxu0 %v604
  %820 = vmatprep.subr.bf16.mxu0 0
  %821 = vmatpush2.bf16.msra.mxu0 %v603
  %822 = vmatprep.subr.bf16.mxu0 0
  %823 = vmatpush2.bf16.msra.mxu0 %v602
  %824 = vmatprep.subr.bf16.mxu0 0
  %825 = vmatpush2.bf16.msra.mxu0 %v601
  %826 = vmatprep.subr.bf16.mxu0 0
  %827 = vmatpush2.bf16.msra.mxu0 %v600
  %828 = vmatprep.subr.bf16.mxu0 0
  %829 = vmatpush2.bf16.msra.mxu0 %v599
  %830 = vmatprep.subr.bf16.mxu0 0
  %831 = vmatpush2.bf16.msra.mxu0 %v598
  %832 = vmatprep.mubr.bf16.mxu0 %v239
  %833 = vmatmul.mubr.bf16.gmra.mxu0 %v238
  %v834 = vpop.f32.mrf.mxu0
  %v835 = vadd.f32 %v786, %v834
  %v836 = vpop.f32.mrf.mxu0
  %v837 = vpop.f32.mrf.mxu0
  %v838 = vadd.f32 %v789, %v837
  %v839 = vpop.f32.mrf.mxu0
  %840 = vmatprep.mubr.bf16.mxu0 %v248
  %841 = vmatmul.mubr.bf16.gmra.mxu0 %v247
  %v842 = vpop.f32.mrf.mxu0
  %v843 = vadd.f32 %v794, %v842
  %v844 = vpop.f32.mrf.mxu0
  %v845 = vpop.f32.mrf.mxu0
  %v846 = vadd.f32 %v797, %v845
  %v847 = vpop.f32.mrf.mxu0
  %848 = vdwg.mxu0
  %849 = vmatprep.subr.bf16.mxu0 0
  %850 = vmatpush1.bf16.msra.mxu0 %v613
  %851 = vmatprep.subr.bf16.mxu0 0
  %852 = vmatpush1.bf16.msra.mxu0 %v612
  %853 = vmatprep.subr.bf16.mxu0 0
  %854 = vmatpush1.bf16.msra.mxu0 %v611
  %855 = vmatprep.subr.bf16.mxu0 0
  %856 = vmatpush1.bf16.msra.mxu0 %v610
  %857 = vmatprep.subr.bf16.mxu0 0
  %858 = vmatpush1.bf16.msra.mxu0 %v609
  %859 = vmatprep.subr.bf16.mxu0 0
  %860 = vmatpush1.bf16.msra.mxu0 %v608
  %861 = vmatprep.subr.bf16.mxu0 0
  %862 = vmatpush1.bf16.msra.mxu0 %v607
  %863 = vmatprep.subr.bf16.mxu0 0
  %864 = vmatpush1.bf16.msra.mxu0 %v606
  %865 = vmatprep.subr.bf16.mxu0 0
  %866 = vmatpush2.bf16.msra.mxu0 %v621
  %867 = vmatprep.subr.bf16.mxu0 0
  %868 = vmatpush2.bf16.msra.mxu0 %v620
  %869 = vmatprep.subr.bf16.mxu0 0
  %870 = vmatpush2.bf16.msra.mxu0 %v619
  %871 = vmatprep.subr.bf16.mxu0 0
  %872 = vmatpush2.bf16.msra.mxu0 %v618
  %873 = vmatprep.subr.bf16.mxu0 0
  %874 = vmatpush2.bf16.msra.mxu0 %v617
  %875 = vmatprep.subr.bf16.mxu0 0
  %876 = vmatpush2.bf16.msra.mxu0 %v616
  %877 = vmatprep.subr.bf16.mxu0 0
  %878 = vmatpush2.bf16.msra.mxu0 %v615
  %879 = vmatprep.subr.bf16.mxu0 0
  %880 = vmatpush2.bf16.msra.mxu0 %v614
  %881 = vmatprep.mubr.bf16.mxu0 %v241
  %882 = vmatmul.mubr.bf16.gmra.mxu0 %v240
  %v883 = vpop.f32.mrf.mxu0
  %v884 = vadd.f32 %v835, %v883
  %v885 = vpop.f32.mrf.mxu0
  %v886 = vpop.f32.mrf.mxu0
  %v887 = vadd.f32 %v838, %v886
  %v888 = vpop.f32.mrf.mxu0
  %889 = vmatprep.mubr.bf16.mxu0 %v250
  %890 = vmatmul.mubr.bf16.gmra.mxu0 %v249
  %v891 = vpop.f32.mrf.mxu0
  %v892 = vadd.f32 %v843, %v891
  %v893 = vpop.f32.mrf.mxu0
  %v894 = vpop.f32.mrf.mxu0
  %v895 = vadd.f32 %v846, %v894
  %v896 = vpop.f32.mrf.mxu0
  %897 = vdwg.mxu0
  %898 = vmatprep.subr.bf16.mxu0 0
  %899 = vmatpush1.bf16.msra.mxu0 %v629
  %900 = vmatprep.subr.bf16.mxu0 0
  %901 = vmatpush1.bf16.msra.mxu0 %v628
  %902 = vmatprep.subr.bf16.mxu0 0
  %903 = vmatpush1.bf16.msra.mxu0 %v627
  %904 = vmatprep.subr.bf16.mxu0 0
  %905 = vmatpush1.bf16.msra.mxu0 %v626
  %906 = vmatprep.subr.bf16.mxu0 0
  %907 = vmatpush1.bf16.msra.mxu0 %v625
  %908 = vmatprep.subr.bf16.mxu0 0
  %909 = vmatpush1.bf16.msra.mxu0 %v624
  %910 = vmatprep.subr.bf16.mxu0 0
  %911 = vmatpush1.bf16.msra.mxu0 %v623
  %912 = vmatprep.subr.bf16.mxu0 0
  %913 = vmatpush1.bf16.msra.mxu0 %v622
  %914 = vmatprep.subr.bf16.mxu0 0
  %915 = vmatpush2.bf16.msra.mxu0 0
  %916 = vmatprep.subr.bf16.mxu0 0
  %917 = vmatpush2.bf16.msra.mxu0 0
  %918 = vmatprep.subr.bf16.mxu0 0
  %919 = vmatpush2.bf16.msra.mxu0 0
  %920 = vmatprep.subr.bf16.mxu0 0
  %921 = vmatpush2.bf16.msra.mxu0 0
  %922 = vmatprep.subr.bf16.mxu0 0
  %923 = vmatpush2.bf16.msra.mxu0 0
  %924 = vmatprep.subr.bf16.mxu0 0
  %925 = vmatpush2.bf16.msra.mxu0 0
  %926 = vmatprep.subr.bf16.mxu0 0
  %927 = vmatpush2.bf16.msra.mxu0 0
  %928 = vmatprep.subr.bf16.mxu0 0
  %929 = vmatpush2.bf16.msra.mxu0 0
  %930 = vmatprep.mubr.bf16.mxu0 0
  %931 = vmatmul.mubr.bf16.gmra.mxu0 %v242
  %v932 = vpop.f32.mrf.mxu0
  %v933 = vadd.f32 %v884, %v932
  %v934 = vpop.f32.mrf.mxu0
  %v935 = vpop.f32.mrf.mxu0
  %v936 = vadd.f32 %v887, %v935
  %v937 = vpop.f32.mrf.mxu0
  %938 = vmatprep.mubr.bf16.mxu0 0
  %939 = vmatmul.mubr.bf16.gmra.mxu0 %v251
  %v940 = vpop.f32.mrf.mxu0
  %v941 = vadd.f32 %v892, %v940
  %v942 = vpop.f32.mrf.mxu0
  %v943 = vpop.f32.mrf.mxu0
  %v944 = vadd.f32 %v895, %v943
  %v945 = vpop.f32.mrf.mxu0
  %946 = vdwg.mxu0
  %v947 = vpack.c.bf16 %v936, %v933
  %v948 = vpack.c.bf16 %v944, %v941
  %v951 = vunpack.c.l.b16 %v947
  %v952 = vunpack.c.h.b16 %v947
  %v953 = vunpack.c.l.b16 %v948
  %v954 = vunpack.c.h.b16 %v948
  %v955 = vpack.c.b16 %v951, %v951
  %v956 = vpack.c.b16 %v952, %v952
  %v957 = vpack.c.b16 %v953, %v953
  %v958 = vpack.c.b16 %v954, %v954
  %963 = vst [vmem:[%s2] sm:$0xf] %v955
  %964 = vst [vmem:[%s2 + $0x4] sm:$0xf] %v956
  %965 = vst [vmem:[%s2 + $0x8] sm:$0xf] %v957
  %966 = vst [vmem:[%s2 + $0xc] sm:$0xf] %v958
  %p967 = scmp.eq.s32.totalorder 0, 0
  // Predicated region
  $region10: #{backbone_forward.46} parent=0 // pred_check
    %p968 = pneg %p967
  $region11: #{backbone_forward.46} parent=0 // pred_check_branch
    %970 = sbr.rel (%p968) target = $region13
  $region12: #{backbone_forward.46} parent=0 // pred_region
    %971 = vst [vmem:[%s3] sm:$0x3] 0.0
  $region13: #{backbone_forward.46} parent=0 // pred_fallthru
    _
  %v972 = vadd.f32 %v933, %v936
  %v973 = vadd.f32 %v972, %v941
  %v974 = vadd.f32 %v973, %v944
  %v975 = vrot.slane %v974, 4
  %v976 = vadd.f32 %v974, %v975
  %v977 = vrot.slane %v976, 2
  %v978 = vadd.f32 %v976, %v977
  %v979 = vrot.slane %v978, 1
  %v980 = vadd.f32 %v978, %v979
  %v981 = vmul.f32 %v933, %v933
  %v982 = vmul.f32 %v936, %v936
  %v983 = vmul.f32 %v941, %v941
  %v984 = vmul.f32 %v944, %v944
  %v985 = vadd.f32 %v981, %v982
  %v986 = vadd.f32 %v985, %v983
  %v987 = vadd.f32 %v986, %v984
  %v988 = vrot.slane %v987, 4
  %v989 = vadd.f32 %v987, %v988
  %v990 = vrot.slane %v989, 2
  %v991 = vadd.f32 %v989, %v990
  %v992 = vrot.slane %v991, 1
  %v993 = vadd.f32 %v991, %v992
  %v994 = vld [vmem:[%s3] sm:$0x3]
  %vm995 = vcmask 1040384
  %v996 = vsel %vm995, %v980, %v993
  %v997 = vadd.f32 %v994, %v996
  %998 = vst [vmem:[%s3] sm:$0x3] %v997
  // Predicated region
  $region14: #{backbone_forward.46} parent=0 // pred_check
    _
  $region15: #{backbone_forward.46} parent=0 // pred_check_branch
    %1000 = sbr.rel (0) target = $region17
  $region16: #{backbone_forward.46} parent=0 // pred_region
    _
  $region17: #{backbone_forward.46} parent=0 // pred_fallthru
    _
  // Predicated region
  $region18: #{backbone_forward.46} parent=0 // pred_check
    _
  $region19: #{backbone_forward.46} parent=0 // pred_check_branch
    %1002 = sbr.rel (0) target = $region21
  $region20: #{backbone_forward.46} parent=0 // pred_region
    _
  $region21: #{backbone_forward.46} parent=0 // pred_fallthru
    _
  // Predicated region
  $region22: #{backbone_forward.46} parent=0 // pred_check
    _
  $region23: #{backbone_forward.46} parent=0 // pred_check_branch
    %1004 = sbr.rel (0) target = $region25
  $region24: #{backbone_forward.46} parent=0 // pred_region
    _
  $region25: #{backbone_forward.46} parent=0 // pred_fallthru
    _
  // Predicated region
  $region26: #{backbone_forward.46} parent=0 // pred_check
    _
  $region27: #{backbone_forward.46} parent=0 // pred_check_branch
    %1006 = sbr.rel (0) target = $region29
  $region28: #{backbone_forward.46} parent=0 // pred_region
    _
  $region29: #{backbone_forward.46} parent=0 // pred_fallthru
    _

// kernel: backbone_forward.55
$region0: #{backbone_forward.55}
  #allocation0 [shape = 'u32[]', space=smem, size = 0x4, offset = 0x4, fixed_abs, tag = 'smem constant byte address 0x4 - core index']
  #allocation1 [shape = 'u32[144,128]{1,0:T(1,128)}', space=vmem, size = 0x12000, scoped, tag = 'internal scratch']
  %s0 = inlined_call_operand.vmem [shape: bf16[8,256], index: 0, kind: input, shape index: {}]
  %s1 = inlined_call_operand.vmem [shape: f32[1,256], index: 1, kind: input, shape index: {}]
  %s2 = inlined_call_operand.vmem [shape: f32[1,256], index: 2, kind: input, shape index: {}]
  %s3 = inlined_call_operand.vmem [shape: bf16[8,256], index: 3, kind: output, shape index: {}]
  %s4 = sld [smem:[#allocation0]]
  $region22: #{backbone_forward.55} parent=0
    _
  %s6 = ssub.s32 1, %s4
  %s7 = scalar_select 0, %s6, %s4
  // Predicated region
  $region2: #{backbone_forward.55} parent=0 // pred_check
    _
  $region3: #{backbone_forward.55} parent=0 // pred_check_branch
    %9 = sbr.rel (0) target = $region5
  $region4: #{backbone_forward.55} parent=0 // pred_region
    _
  $region5: #{backbone_forward.55} parent=0 // pred_fallthru
    _
  // Predicated region
  $region6: #{backbone_forward.55} parent=0 // pred_check
    _
  $region7: #{backbone_forward.55} parent=0 // pred_check_branch
    %11 = sbr.rel (0) target = $region9
  $region8: #{backbone_forward.55} parent=0 // pred_region
    _
  $region9: #{backbone_forward.55} parent=0 // pred_fallthru
    _
  // Predicated region
  $region10: #{backbone_forward.55} parent=0 // pred_check
    _
  $region11: #{backbone_forward.55} parent=0 // pred_check_branch
    %13 = sbr.rel (0) target = $region13
  $region12: #{backbone_forward.55} parent=0 // pred_region
    _
  $region13: #{backbone_forward.55} parent=0 // pred_fallthru
    _
  %v14 = vld [vmem:[%s0] sm:$0xff]
  %v15 = vunpack.c.l.bf16 %v14
  %v16 = vunpack.c.h.bf16 %v14
  %v17 = vld [vmem:[%s1] sm:$0x3]
  %v19 = vlaneseq
  %v20 = vshrl.u32 %v19, 7
  %v21 = vsub.s32 0, %v20
  %v22 = vrot.slane %v17, %v21
  %v23 = vlaneseq
  %v24 = vshrl.u32 %v23, 7
  %v25 = vsub.s32 1, %v24
  %v26 = vrot.slane %v17, %v25
  %v29 = vmul.f32 %v15, %v22
  %v30 = vmul.f32 %v16, %v26
  %v31 = vld [vmem:[%s2] sm:$0x3]
  %v33 = vlaneseq
  %v34 = vshrl.u32 %v33, 7
  %v35 = vsub.s32 0, %v34
  %v36 = vrot.slane %v31, %v35
  %v37 = vlaneseq
  %v38 = vshrl.u32 %v37, 7
  %v39 = vsub.s32 1, %v38
  %v40 = vrot.slane %v31, %v39
  %v43 = vadd.f32 %v29, %v36
  %v44 = vadd.f32 %v30, %v40
  %v45 = vpack.c.bf16 %v43, %v43
  %v46 = vpack.c.bf16 %v44, %v44
  %v49 = vunpack.c.l.b16 %v45
  %v50 = vunpack.c.l.b16 %v46
  %v51 = vpack.c.b16 %v50, %v49
  %53 = vst [vmem:[%s3] sm:$0xff] %v51
  // Predicated region
  $region14: #{backbone_forward.55} parent=0 // pred_check
    _
  $region15: #{backbone_forward.55} parent=0 // pred_check_branch
    %55 = sbr.rel (0) target = $region17
  $region16: #{backbone_forward.55} parent=0 // pred_region
    _
  $region17: #{backbone_forward.55} parent=0 // pred_fallthru
    _
  // Predicated region
  $region18: #{backbone_forward.55} parent=0 // pred_check
    _
  $region19: #{backbone_forward.55} parent=0 // pred_check_branch
    %57 = sbr.rel (0) target = $region21
  $region20: #{backbone_forward.55} parent=0 // pred_region
    _
  $region21: #{backbone_forward.55} parent=0 // pred_fallthru
    _

// kernel: backbone_forward.53
$region0: #{backbone_forward.53}
  #allocation0 [shape = 'u32[]', space=smem, size = 0x4, offset = 0x4, fixed_abs, tag = 'smem constant byte address 0x4 - core index']
  #allocation1 [shape = 'u32[144,128]{1,0:T(1,128)}', space=vmem, size = 0x12000, scoped, tag = 'internal scratch']
  %s0 = inlined_call_operand.vmem [shape: bf16[8,256], index: 0, kind: input, shape index: {}]
  %s1 = inlined_call_operand.vmem [shape: f32[1,256], index: 1, kind: input, shape index: {}]
  %s2 = inlined_call_operand.vmem [shape: f32[1,256], index: 2, kind: input, shape index: {}]
  %s3 = inlined_call_operand.vmem [shape: bf16[8,256], index: 3, kind: output, shape index: {}]
  %s4 = sld [smem:[#allocation0]]
  $region22: #{backbone_forward.53} parent=0
    _
  %s6 = ssub.s32 1, %s4
  %s7 = scalar_select 0, %s6, %s4
  // Predicated region
  $region2: #{backbone_forward.53} parent=0 // pred_check
    _
  $region3: #{backbone_forward.53} parent=0 // pred_check_branch
    %9 = sbr.rel (0) target = $region5
  $region4: #{backbone_forward.53} parent=0 // pred_region
    _
  $region5: #{backbone_forward.53} parent=0 // pred_fallthru
    _
  // Predicated region
  $region6: #{backbone_forward.53} parent=0 // pred_check
    _
  $region7: #{backbone_forward.53} parent=0 // pred_check_branch
    %11 = sbr.rel (0) target = $region9
  $region8: #{backbone_forward.53} parent=0 // pred_region
    _
  $region9: #{backbone_forward.53} parent=0 // pred_fallthru
    _
  // Predicated region
  $region10: #{backbone_forward.53} parent=0 // pred_check
    _
  $region11: #{backbone_forward.53} parent=0 // pred_check_branch
    %13 = sbr.rel (0) target = $region13
  $region12: #{backbone_forward.53} parent=0 // pred_region
    _
  $region13: #{backbone_forward.53} parent=0 // pred_fallthru
    _
  %v14 = vld [vmem:[%s0] sm:$0xff]
  %v15 = vunpack.c.l.bf16 %v14
  %v16 = vunpack.c.h.bf16 %v14
  %v17 = vld [vmem:[%s1] sm:$0x3]
  %v19 = vlaneseq
  %v20 = vshrl.u32 %v19, 7
  %v21 = vsub.s32 0, %v20
  %v22 = vrot.slane %v17, %v21
  %v23 = vlaneseq
  %v24 = vshrl.u32 %v23, 7
  %v25 = vsub.s32 1, %v24
  %v26 = vrot.slane %v17, %v25
  %v29 = vmul.f32 %v15, %v22
  %v30 = vmul.f32 %v16, %v26
  %v31 = vld [vmem:[%s2] sm:$0x3]
  %v33 = vlaneseq
  %v34 = vshrl.u32 %v33, 7
  %v35 = vsub.s32 0, %v34
  %v36 = vrot.slane %v31, %v35
  %v37 = vlaneseq
  %v38 = vshrl.u32 %v37, 7
  %v39 = vsub.s32 1, %v38
  %v40 = vrot.slane %v31, %v39
  %v43 = vadd.f32 %v29, %v36
  %v44 = vadd.f32 %v30, %v40
  %v45 = vmax.f32 %v43, 0.0
  %v46 = vmax.f32 %v44, 0.0
  %v47 = vpack.c.bf16 %v45, %v45
  %v48 = vpack.c.bf16 %v46, %v46
  %v51 = vunpack.c.l.b16 %v47
  %v52 = vunpack.c.l.b16 %v48
  %v53 = vpack.c.b16 %v52, %v51
  %55 = vst [vmem:[%s3] sm:$0xff] %v53
  // Predicated region
  $region14: #{backbone_forward.53} parent=0 // pred_check
    _
  $region15: #{backbone_forward.53} parent=0 // pred_check_branch
    %57 = sbr.rel (0) target = $region17
  $region16: #{backbone_forward.53} parent=0 // pred_region
    _
  $region17: #{backbone_forward.53} parent=0 // pred_fallthru
    _
  // Predicated region
  $region18: #{backbone_forward.53} parent=0 // pred_check
    _
  $region19: #{backbone_forward.53} parent=0 // pred_check_branch
    %59 = sbr.rel (0) target = $region21
  $region20: #{backbone_forward.53} parent=0 // pred_region
    _
  $region21: #{backbone_forward.53} parent=0 // pred_fallthru
    _

// kernel: backbone_forward.52
$region0: #{backbone_forward.52}
  #allocation0 [shape = 'u32[]', space=smem, size = 0x4, offset = 0x4, fixed_abs, tag = 'smem constant byte address 0x4 - core index']
  #allocation1 [shape = 'u32[144,128]{1,0:T(1,128)}', space=vmem, size = 0x12000, scoped, tag = 'internal scratch']
  %s0 = inlined_call_operand.vmem [shape: bf16[8,1152], index: 0, kind: input, shape index: {}]
  %s1 = inlined_call_operand.vmem [shape: bf16[1152,256], index: 1, kind: input, shape index: {}]
  %s2 = inlined_call_operand.vmem [shape: bf16[8,256], index: 2, kind: output, shape index: {0}]
  %s3 = inlined_call_operand.vmem [shape: f32[2,256], index: 3, kind: output, shape index: {1}]
  %4 = xla_tuple %s2, %s3
  %s5 = sld [smem:[#allocation0]]
  $region30: #{backbone_forward.52} parent=0
    _
  %s7 = ssub.s32 1, %s5
  %s8 = scalar_select 0, %s7, %s5
  // Predicated region
  $region2: #{backbone_forward.52} parent=0 // pred_check
    _
  $region3: #{backbone_forward.52} parent=0 // pred_check_branch
    %10 = sbr.rel (0) target = $region5
  $region4: #{backbone_forward.52} parent=0 // pred_region
    _
  $region5: #{backbone_forward.52} parent=0 // pred_fallthru
    _
  // Predicated region
  $region6: #{backbone_forward.52} parent=0 // pred_check
    _
  $region7: #{backbone_forward.52} parent=0 // pred_check_branch
    %12 = sbr.rel (0) target = $region9
  $region8: #{backbone_forward.52} parent=0 // pred_region
    _
  $region9: #{backbone_forward.52} parent=0 // pred_fallthru
    _
  %v14 = vld [vmem:[%s0] sm:$0xff]
  %v15 = vld [vmem:[%s0 + $0x8] sm:$0xff]
  %v16 = vld [vmem:[%s0 + $0x10] sm:$0xff]
  %v17 = vld [vmem:[%s0 + $0x18] sm:$0xff]
  %v18 = vld [vmem:[%s0 + $0x20] sm:$0xf]
  %v19 = vld [vmem:[%s1] sm:$0xff]
  %v20 = vld [vmem:[%s1 + $0x8] sm:$0xff]
  %v21 = vld [vmem:[%s1 + $0x10] sm:$0xff]
  %v22 = vld [vmem:[%s1 + $0x18] sm:$0xff]
  %v23 = vld [vmem:[%s1 + $0x20] sm:$0xff]
  %v24 = vld [vmem:[%s1 + $0x28] sm:$0xff]
  %v25 = vld [vmem:[%s1 + $0x30] sm:$0xff]
  %v26 = vld [vmem:[%s1 + $0x38] sm:$0xff]
  %v27 = vld [vmem:[%s1 + $0x40] sm:$0xff]
  %v28 = vld [vmem:[%s1 + $0x48] sm:$0xff]
  %v29 = vld [vmem:[%s1 + $0x50] sm:$0xff]
  %v30 = vld [vmem:[%s1 + $0x58] sm:$0xff]
  %v31 = vld [vmem:[%s1 + $0x60] sm:$0xff]
  %v32 = vld [vmem:[%s1 + $0x68] sm:$0xff]
  %v33 = vld [vmem:[%s1 + $0x70] sm:$0xff]
  %v34 = vld [vmem:[%s1 + $0x78] sm:$0xff]
  %v35 = vld [vmem:[%s1 + $0x80] sm:$0xff]
  %v36 = vld [vmem:[%s1 + $0x88] sm:$0xff]
  %v37 = vld [vmem:[%s1 + $0x90] sm:$0xff]
  %v38 = vld [vmem:[%s1 + $0x98] sm:$0xff]
  %v39 = vld [vmem:[%s1 + $0xa0] sm:$0xff]
  %v40 = vld [vmem:[%s1 + $0xa8] sm:$0xff]
  %v41 = vld [vmem:[%s1 + $0xb0] sm:$0xff]
  %v42 = vld [vmem:[%s1 + $0xb8] sm:$0xff]
  %v43 = vld [vmem:[%s1 + $0xc0] sm:$0xff]
  %v44 = vld [vmem:[%s1 + $0xc8] sm:$0xff]
  %v45 = vld [vmem:[%s1 + $0xd0] sm:$0xff]
  %v46 = vld [vmem:[%s1 + $0xd8] sm:$0xff]
  %v47 = vld [vmem:[%s1 + $0xe0] sm:$0xff]
  %v48 = vld [vmem:[%s1 + $0xe8] sm:$0xff]
  %v49 = vld [vmem:[%s1 + $0xf0] sm:$0xff]
  %v50 = vld [vmem:[%s1 + $0xf8] sm:$0xff]
  %v51 = vld [vmem:[%s1 + $0x100] sm:$0xff]
  %v52 = vld [vmem:[%s1 + $0x108] sm:$0xff]
  %v53 = vld [vmem:[%s1 + $0x110] sm:$0xff]
  %v54 = vld [vmem:[%s1 + $0x118] sm:$0xff]
  %v55 = vld [vmem:[%s1 + $0x120] sm:$0xff]
  %v56 = vld [vmem:[%s1 + $0x128] sm:$0xff]
  %v57 = vld [vmem:[%s1 + $0x130] sm:$0xff]
  %v58 = vld [vmem:[%s1 + $0x138] sm:$0xff]
  %v59 = vld [vmem:[%s1 + $0x140] sm:$0xff]
  %v60 = vld [vmem:[%s1 + $0x148] sm:$0xff]
  %v61 = vld [vmem:[%s1 + $0x150] sm:$0xff]
  %v62 = vld [vmem:[%s1 + $0x158] sm:$0xff]
  %v63 = vld [vmem:[%s1 + $0x160] sm:$0xff]
  %v64 = vld [vmem:[%s1 + $0x168] sm:$0xff]
  %v65 = vld [vmem:[%s1 + $0x170] sm:$0xff]
  %v66 = vld [vmem:[%s1 + $0x178] sm:$0xff]
  %v67 = vld [vmem:[%s1 + $0x180] sm:$0xff]
  %v68 = vld [vmem:[%s1 + $0x188] sm:$0xff]
  %v69 = vld [vmem:[%s1 + $0x190] sm:$0xff]
  %v70 = vld [vmem:[%s1 + $0x198] sm:$0xff]
  %v71 = vld [vmem:[%s1 + $0x1a0] sm:$0xff]
  %v72 = vld [vmem:[%s1 + $0x1a8] sm:$0xff]
  %v73 = vld [vmem:[%s1 + $0x1b0] sm:$0xff]
  %v74 = vld [vmem:[%s1 + $0x1b8] sm:$0xff]
  %v75 = vld [vmem:[%s1 + $0x1c0] sm:$0xff]
  %v76 = vld [vmem:[%s1 + $0x1c8] sm:$0xff]
  %v77 = vld [vmem:[%s1 + $0x1d0] sm:$0xff]
  %v78 = vld [vmem:[%s1 + $0x1d8] sm:$0xff]
  %v79 = vld [vmem:[%s1 + $0x1e0] sm:$0xff]
  %v80 = vld [vmem:[%s1 + $0x1e8] sm:$0xff]
  %v81 = vld [vmem:[%s1 + $0x1f0] sm:$0xff]
  %v82 = vld [vmem:[%s1 + $0x1f8] sm:$0xff]
  %v83 = vld [vmem:[%s1 + $0x200] sm:$0xff]
  %v84 = vld [vmem:[%s1 + $0x208] sm:$0xff]
  %v85 = vld [vmem:[%s1 + $0x210] sm:$0xff]
  %v86 = vld [vmem:[%s1 + $0x218] sm:$0xff]
  %v87 = vld [vmem:[%s1 + $0x220] sm:$0xff]
  %v88 = vld [vmem:[%s1 + $0x228] sm:$0xff]
  %v89 = vld [vmem:[%s1 + $0x230] sm:$0xff]
  %v90 = vld [vmem:[%s1 + $0x238] sm:$0xff]
  %v91 = vld [vmem:[%s1 + $0x240] sm:$0xff]
  %v92 = vld [vmem:[%s1 + $0x248] sm:$0xff]
  %v93 = vld [vmem:[%s1 + $0x250] sm:$0xff]
  %v94 = vld [vmem:[%s1 + $0x258] sm:$0xff]
  %v95 = vld [vmem:[%s1 + $0x260] sm:$0xff]
  %v96 = vld [vmem:[%s1 + $0x268] sm:$0xff]
  %v97 = vld [vmem:[%s1 + $0x270] sm:$0xff]
  %v98 = vld [vmem:[%s1 + $0x278] sm:$0xff]
  %v99 = vld [vmem:[%s1 + $0x280] sm:$0xff]
  %v100 = vld [vmem:[%s1 + $0x288] sm:$0xff]
  %v101 = vld [vmem:[%s1 + $0x290] sm:$0xff]
  %v102 = vld [vmem:[%s1 + $0x298] sm:$0xff]
  %v103 = vld [vmem:[%s1 + $0x2a0] sm:$0xff]
  %v104 = vld [vmem:[%s1 + $0x2a8] sm:$0xff]
  %v105 = vld [vmem:[%s1 + $0x2b0] sm:$0xff]
  %v106 = vld [vmem:[%s1 + $0x2b8] sm:$0xff]
  %v107 = vld [vmem:[%s1 + $0x2c0] sm:$0xff]
  %v108 = vld [vmem:[%s1 + $0x2c8] sm:$0xff]
  %v109 = vld [vmem:[%s1 + $0x2d0] sm:$0xff]
  %v110 = vld [vmem:[%s1 + $0x2d8] sm:$0xff]
  %v111 = vld [vmem:[%s1 + $0x2e0] sm:$0xff]
  %v112 = vld [vmem:[%s1 + $0x2e8] sm:$0xff]
  %v113 = vld [vmem:[%s1 + $0x2f0] sm:$0xff]
  %v114 = vld [vmem:[%s1 + $0x2f8] sm:$0xff]
  %v115 = vld [vmem:[%s1 + $0x300] sm:$0xff]
  %v116 = vld [vmem:[%s1 + $0x308] sm:$0xff]
  %v117 = vld [vmem:[%s1 + $0x310] sm:$0xff]
  %v118 = vld [vmem:[%s1 + $0x318] sm:$0xff]
  %v119 = vld [vmem:[%s1 + $0x320] sm:$0xff]
  %v120 = vld [vmem:[%s1 + $0x328] sm:$0xff]
  %v121 = vld [vmem:[%s1 + $0x330] sm:$0xff]
  %v122 = vld [vmem:[%s1 + $0x338] sm:$0xff]
  %v123 = vld [vmem:[%s1 + $0x340] sm:$0xff]
  %v124 = vld [vmem:[%s1 + $0x348] sm:$0xff]
  %v125 = vld [vmem:[%s1 + $0x350] sm:$0xff]
  %v126 = vld [vmem:[%s1 + $0x358] sm:$0xff]
  %v127 = vld [vmem:[%s1 + $0x360] sm:$0xff]
  %v128 = vld [vmem:[%s1 + $0x368] sm:$0xff]
  %v129 = vld [vmem:[%s1 + $0x370] sm:$0xff]
  %v130 = vld [vmem:[%s1 + $0x378] sm:$0xff]
  %v131 = vld [vmem:[%s1 + $0x380] sm:$0xff]
  %v132 = vld [vmem:[%s1 + $0x388] sm:$0xff]
  %v133 = vld [vmem:[%s1 + $0x390] sm:$0xff]
  %v134 = vld [vmem:[%s1 + $0x398] sm:$0xff]
  %v135 = vld [vmem:[%s1 + $0x3a0] sm:$0xff]
  %v136 = vld [vmem:[%s1 + $0x3a8] sm:$0xff]
  %v137 = vld [vmem:[%s1 + $0x3b0] sm:$0xff]
  %v138 = vld [vmem:[%s1 + $0x3b8] sm:$0xff]
  %v139 = vld [vmem:[%s1 + $0x3c0] sm:$0xff]
  %v140 = vld [vmem:[%s1 + $0x3c8] sm:$0xff]
  %v141 = vld [vmem:[%s1 + $0x3d0] sm:$0xff]
  %v142 = vld [vmem:[%s1 + $0x3d8] sm:$0xff]
  %v143 = vld [vmem:[%s1 + $0x3e0] sm:$0xff]
  %v144 = vld [vmem:[%s1 + $0x3e8] sm:$0xff]
  %v145 = vld [vmem:[%s1 + $0x3f0] sm:$0xff]
  %v146 = vld [vmem:[%s1 + $0x3f8] sm:$0xff]
  %v147 = vld [vmem:[%s1 + $0x400] sm:$0xff]
  %v148 = vld [vmem:[%s1 + $0x408] sm:$0xff]
  %v149 = vld [vmem:[%s1 + $0x410] sm:$0xff]
  %v150 = vld [vmem:[%s1 + $0x418] sm:$0xff]
  %v151 = vld [vmem:[%s1 + $0x420] sm:$0xff]
  %v152 = vld [vmem:[%s1 + $0x428] sm:$0xff]
  %v153 = vld [vmem:[%s1 + $0x430] sm:$0xff]
  %v154 = vld [vmem:[%s1 + $0x438] sm:$0xff]
  %v155 = vld [vmem:[%s1 + $0x440] sm:$0xff]
  %v156 = vld [vmem:[%s1 + $0x448] sm:$0xff]
  %v157 = vld [vmem:[%s1 + $0x450] sm:$0xff]
  %v158 = vld [vmem:[%s1 + $0x458] sm:$0xff]
  %v159 = vld [vmem:[%s1 + $0x460] sm:$0xff]
  %v160 = vld [vmem:[%s1 + $0x468] sm:$0xff]
  %v161 = vld [vmem:[%s1 + $0x470] sm:$0xff]
  %v162 = vld [vmem:[%s1 + $0x478] sm:$0xff]
  %v168 = vunpack.c.l.b16 %v14
  %v169 = vunpack.c.h.b16 %v14
  %v170 = vunpack.c.l.b16 %v15
  %v171 = vunpack.c.h.b16 %v15
  %v172 = vunpack.c.l.b16 %v16
  %v173 = vunpack.c.h.b16 %v16
  %v174 = vunpack.c.l.b16 %v17
  %v175 = vunpack.c.h.b16 %v17
  %v176 = vunpack.c.l.b16 %v18
  %v177 = vpack.c.b16 %v168, %v168
  %v178 = vpack.c.b16 %v169, %v169
  %v179 = vpack.c.b16 %v170, %v170
  %v180 = vpack.c.b16 %v171, %v171
  %v181 = vpack.c.b16 %v172, %v172
  %v182 = vpack.c.b16 %v173, %v173
  %v183 = vpack.c.b16 %v174, %v174
  %v184 = vpack.c.b16 %v175, %v175
  %v185 = vpack.c.b16 %v176, %v176
  %v339 = vunpack.c.l.b16 %v19
  %v340 = vunpack.c.h.b16 %v19
  %v341 = vunpack.c.l.b16 %v20
  %v342 = vunpack.c.h.b16 %v20
  %v343 = vunpack.c.l.b16 %v21
  %v344 = vunpack.c.h.b16 %v21
  %v345 = vunpack.c.l.b16 %v22
  %v346 = vunpack.c.h.b16 %v22
  %v347 = vunpack.c.l.b16 %v23
  %v348 = vunpack.c.h.b16 %v23
  %v349 = vunpack.c.l.b16 %v24
  %v350 = vunpack.c.h.b16 %v24
  %v351 = vunpack.c.l.b16 %v25
  %v352 = vunpack.c.h.b16 %v25
  %v353 = vunpack.c.l.b16 %v26
  %v354 = vunpack.c.h.b16 %v26
  %v355 = vunpack.c.l.b16 %v27
  %v356 = vunpack.c.h.b16 %v27
  %v357 = vunpack.c.l.b16 %v28
  %v358 = vunpack.c.h.b16 %v28
  %v359 = vunpack.c.l.b16 %v29
  %v360 = vunpack.c.h.b16 %v29
  %v361 = vunpack.c.l.b16 %v30
  %v362 = vunpack.c.h.b16 %v30
  %v363 = vunpack.c.l.b16 %v31
  %v364 = vunpack.c.h.b16 %v31
  %v365 = vunpack.c.l.b16 %v32
  %v366 = vunpack.c.h.b16 %v32
  %v367 = vunpack.c.l.b16 %v33
  %v368 = vunpack.c.h.b16 %v33
  %v369 = vunpack.c.l.b16 %v34
  %v370 = vunpack.c.h.b16 %v34
  %v371 = vunpack.c.l.b16 %v35
  %v372 = vunpack.c.h.b16 %v35
  %v373 = vunpack.c.l.b16 %v36
  %v374 = vunpack.c.h.b16 %v36
  %v375 = vunpack.c.l.b16 %v37
  %v376 = vunpack.c.h.b16 %v37
  %v377 = vunpack.c.l.b16 %v38
  %v378 = vunpack.c.h.b16 %v38
  %v379 = vunpack.c.l.b16 %v39
  %v380 = vunpack.c.h.b16 %v39
  %v381 = vunpack.c.l.b16 %v40
  %v382 = vunpack.c.h.b16 %v40
  %v383 = vunpack.c.l.b16 %v41
  %v384 = vunpack.c.h.b16 %v41
  %v385 = vunpack.c.l.b16 %v42
  %v386 = vunpack.c.h.b16 %v42
  %v387 = vunpack.c.l.b16 %v43
  %v388 = vunpack.c.h.b16 %v43
  %v389 = vunpack.c.l.b16 %v44
  %v390 = vunpack.c.h.b16 %v44
  %v391 = vunpack.c.l.b16 %v45
  %v392 = vunpack.c.h.b16 %v45
  %v393 = vunpack.c.l.b16 %v46
  %v394 = vunpack.c.h.b16 %v46
  %v395 = vunpack.c.l.b16 %v47
  %v396 = vunpack.c.h.b16 %v47
  %v397 = vunpack.c.l.b16 %v48
  %v398 = vunpack.c.h.b16 %v48
  %v399 = vunpack.c.l.b16 %v49
  %v400 = vunpack.c.h.b16 %v49
  %v401 = vunpack.c.l.b16 %v50
  %v402 = vunpack.c.h.b16 %v50
  %v403 = vunpack.c.l.b16 %v51
  %v404 = vunpack.c.h.b16 %v51
  %v405 = vunpack.c.l.b16 %v52
  %v406 = vunpack.c.h.b16 %v52
  %v407 = vunpack.c.l.b16 %v53
  %v408 = vunpack.c.h.b16 %v53
  %v409 = vunpack.c.l.b16 %v54
  %v410 = vunpack.c.h.b16 %v54
  %v411 = vunpack.c.l.b16 %v55
  %v412 = vunpack.c.h.b16 %v55
  %v413 = vunpack.c.l.b16 %v56
  %v414 = vunpack.c.h.b16 %v56
  %v415 = vunpack.c.l.b16 %v57
  %v416 = vunpack.c.h.b16 %v57
  %v417 = vunpack.c.l.b16 %v58
  %v418 = vunpack.c.h.b16 %v58
  %v419 = vunpack.c.l.b16 %v59
  %v420 = vunpack.c.h.b16 %v59
  %v421 = vunpack.c.l.b16 %v60
  %v422 = vunpack.c.h.b16 %v60
  %v423 = vunpack.c.l.b16 %v61
  %v424 = vunpack.c.h.b16 %v61
  %v425 = vunpack.c.l.b16 %v62
  %v426 = vunpack.c.h.b16 %v62
  %v427 = vunpack.c.l.b16 %v63
  %v428 = vunpack.c.h.b16 %v63
  %v429 = vunpack.c.l.b16 %v64
  %v430 = vunpack.c.h.b16 %v64
  %v431 = vunpack.c.l.b16 %v65
  %v432 = vunpack.c.h.b16 %v65
  %v433 = vunpack.c.l.b16 %v66
  %v434 = vunpack.c.h.b16 %v66
  %v435 = vunpack.c.l.b16 %v67
  %v436 = vunpack.c.h.b16 %v67
  %v437 = vunpack.c.l.b16 %v68
  %v438 = vunpack.c.h.b16 %v68
  %v439 = vunpack.c.l.b16 %v69
  %v440 = vunpack.c.h.b16 %v69
  %v441 = vunpack.c.l.b16 %v70
  %v442 = vunpack.c.h.b16 %v70
  %v443 = vunpack.c.l.b16 %v71
  %v444 = vunpack.c.h.b16 %v71
  %v445 = vunpack.c.l.b16 %v72
  %v446 = vunpack.c.h.b16 %v72
  %v447 = vunpack.c.l.b16 %v73
  %v448 = vunpack.c.h.b16 %v73
  %v449 = vunpack.c.l.b16 %v74
  %v450 = vunpack.c.h.b16 %v74
  %v451 = vunpack.c.l.b16 %v75
  %v452 = vunpack.c.h.b16 %v75
  %v453 = vunpack.c.l.b16 %v76
  %v454 = vunpack.c.h.b16 %v76
  %v455 = vunpack.c.l.b16 %v77
  %v456 = vunpack.c.h.b16 %v77
  %v457 = vunpack.c.l.b16 %v78
  %v458 = vunpack.c.h.b16 %v78
  %v459 = vunpack.c.l.b16 %v79
  %v460 = vunpack.c.h.b16 %v79
  %v461 = vunpack.c.l.b16 %v80
  %v462 = vunpack.c.h.b16 %v80
  %v463 = vunpack.c.l.b16 %v81
  %v464 = vunpack.c.h.b16 %v81
  %v465 = vunpack.c.l.b16 %v82
  %v466 = vunpack.c.h.b16 %v82
  %v467 = vunpack.c.l.b16 %v83
  %v468 = vunpack.c.h.b16 %v83
  %v469 = vunpack.c.l.b16 %v84
  %v470 = vunpack.c.h.b16 %v84
  %v471 = vunpack.c.l.b16 %v85
  %v472 = vunpack.c.h.b16 %v85
  %v473 = vunpack.c.l.b16 %v86
  %v474 = vunpack.c.h.b16 %v86
  %v475 = vunpack.c.l.b16 %v87
  %v476 = vunpack.c.h.b16 %v87
  %v477 = vunpack.c.l.b16 %v88
  %v478 = vunpack.c.h.b16 %v88
  %v479 = vunpack.c.l.b16 %v89
  %v480 = vunpack.c.h.b16 %v89
  %v481 = vunpack.c.l.b16 %v90
  %v482 = vunpack.c.h.b16 %v90
  %v483 = vunpack.c.l.b16 %v91
  %v484 = vunpack.c.h.b16 %v91
  %v485 = vunpack.c.l.b16 %v92
  %v486 = vunpack.c.h.b16 %v92
  %v487 = vunpack.c.l.b16 %v93
  %v488 = vunpack.c.h.b16 %v93
  %v489 = vunpack.c.l.b16 %v94
  %v490 = vunpack.c.h.b16 %v94
  %v491 = vunpack.c.l.b16 %v95
  %v492 = vunpack.c.h.b16 %v95
  %v493 = vunpack.c.l.b16 %v96
  %v494 = vunpack.c.h.b16 %v96
  %v495 = vunpack.c.l.b16 %v97
  %v496 = vunpack.c.h.b16 %v97
  %v497 = vunpack.c.l.b16 %v98
  %v498 = vunpack.c.h.b16 %v98
  %v499 = vunpack.c.l.b16 %v99
  %v500 = vunpack.c.h.b16 %v99
  %v501 = vunpack.c.l.b16 %v100
  %v502 = vunpack.c.h.b16 %v100
  %v503 = vunpack.c.l.b16 %v101
  %v504 = vunpack.c.h.b16 %v101
  %v505 = vunpack.c.l.b16 %v102
  %v506 = vunpack.c.h.b16 %v102
  %v507 = vunpack.c.l.b16 %v103
  %v508 = vunpack.c.h.b16 %v103
  %v509 = vunpack.c.l.b16 %v104
  %v510 = vunpack.c.h.b16 %v104
  %v511 = vunpack.c.l.b16 %v105
  %v512 = vunpack.c.h.b16 %v105
  %v513 = vunpack.c.l.b16 %v106
  %v514 = vunpack.c.h.b16 %v106
  %v515 = vunpack.c.l.b16 %v107
  %v516 = vunpack.c.h.b16 %v107
  %v517 = vunpack.c.l.b16 %v108
  %v518 = vunpack.c.h.b16 %v108
  %v519 = vunpack.c.l.b16 %v109
  %v520 = vunpack.c.h.b16 %v109
  %v521 = vunpack.c.l.b16 %v110
  %v522 = vunpack.c.h.b16 %v110
  %v523 = vunpack.c.l.b16 %v111
  %v524 = vunpack.c.h.b16 %v111
  %v525 = vunpack.c.l.b16 %v112
  %v526 = vunpack.c.h.b16 %v112
  %v527 = vunpack.c.l.b16 %v113
  %v528 = vunpack.c.h.b16 %v113
  %v529 = vunpack.c.l.b16 %v114
  %v530 = vunpack.c.h.b16 %v114
  %v531 = vunpack.c.l.b16 %v115
  %v532 = vunpack.c.h.b16 %v115
  %v533 = vunpack.c.l.b16 %v116
  %v534 = vunpack.c.h.b16 %v116
  %v535 = vunpack.c.l.b16 %v117
  %v536 = vunpack.c.h.b16 %v117
  %v537 = vunpack.c.l.b16 %v118
  %v538 = vunpack.c.h.b16 %v118
  %v539 = vunpack.c.l.b16 %v119
  %v540 = vunpack.c.h.b16 %v119
  %v541 = vunpack.c.l.b16 %v120
  %v542 = vunpack.c.h.b16 %v120
  %v543 = vunpack.c.l.b16 %v121
  %v544 = vunpack.c.h.b16 %v121
  %v545 = vunpack.c.l.b16 %v122
  %v546 = vunpack.c.h.b16 %v122
  %v547 = vunpack.c.l.b16 %v123
  %v548 = vunpack.c.h.b16 %v123
  %v549 = vunpack.c.l.b16 %v124
  %v550 = vunpack.c.h.b16 %v124
  %v551 = vunpack.c.l.b16 %v125
  %v552 = vunpack.c.h.b16 %v125
  %v553 = vunpack.c.l.b16 %v126
  %v554 = vunpack.c.h.b16 %v126
  %v555 = vunpack.c.l.b16 %v127
  %v556 = vunpack.c.h.b16 %v127
  %v557 = vunpack.c.l.b16 %v128
  %v558 = vunpack.c.h.b16 %v128
  %v559 = vunpack.c.l.b16 %v129
  %v560 = vunpack.c.h.b16 %v129
  %v561 = vunpack.c.l.b16 %v130
  %v562 = vunpack.c.h.b16 %v130
  %v563 = vunpack.c.l.b16 %v131
  %v564 = vunpack.c.h.b16 %v131
  %v565 = vunpack.c.l.b16 %v132
  %v566 = vunpack.c.h.b16 %v132
  %v567 = vunpack.c.l.b16 %v133
  %v568 = vunpack.c.h.b16 %v133
  %v569 = vunpack.c.l.b16 %v134
  %v570 = vunpack.c.h.b16 %v134
  %v571 = vunpack.c.l.b16 %v135
  %v572 = vunpack.c.h.b16 %v135
  %v573 = vunpack.c.l.b16 %v136
  %v574 = vunpack.c.h.b16 %v136
  %v575 = vunpack.c.l.b16 %v137
  %v576 = vunpack.c.h.b16 %v137
  %v577 = vunpack.c.l.b16 %v138
  %v578 = vunpack.c.h.b16 %v138
  %v579 = vunpack.c.l.b16 %v139
  %v580 = vunpack.c.h.b16 %v139
  %v581 = vunpack.c.l.b16 %v140
  %v582 = vunpack.c.h.b16 %v140
  %v583 = vunpack.c.l.b16 %v141
  %v584 = vunpack.c.h.b16 %v141
  %v585 = vunpack.c.l.b16 %v142
  %v586 = vunpack.c.h.b16 %v142
  %v587 = vunpack.c.l.b16 %v143
  %v588 = vunpack.c.h.b16 %v143
  %v589 = vunpack.c.l.b16 %v144
  %v590 = vunpack.c.h.b16 %v144
  %v591 = vunpack.c.l.b16 %v145
  %v592 = vunpack.c.h.b16 %v145
  %v593 = vunpack.c.l.b16 %v146
  %v594 = vunpack.c.h.b16 %v146
  %v595 = vunpack.c.l.b16 %v147
  %v596 = vunpack.c.h.b16 %v147
  %v597 = vunpack.c.l.b16 %v148
  %v598 = vunpack.c.h.b16 %v148
  %v599 = vunpack.c.l.b16 %v149
  %v600 = vunpack.c.h.b16 %v149
  %v601 = vunpack.c.l.b16 %v150
  %v602 = vunpack.c.h.b16 %v150
  %v603 = vunpack.c.l.b16 %v151
  %v604 = vunpack.c.h.b16 %v151
  %v605 = vunpack.c.l.b16 %v152
  %v606 = vunpack.c.h.b16 %v152
  %v607 = vunpack.c.l.b16 %v153
  %v608 = vunpack.c.h.b16 %v153
  %v609 = vunpack.c.l.b16 %v154
  %v610 = vunpack.c.h.b16 %v154
  %v611 = vunpack.c.l.b16 %v155
  %v612 = vunpack.c.h.b16 %v155
  %v613 = vunpack.c.l.b16 %v156
  %v614 = vunpack.c.h.b16 %v156
  %v615 = vunpack.c.l.b16 %v157
  %v616 = vunpack.c.h.b16 %v157
  %v617 = vunpack.c.l.b16 %v158
  %v618 = vunpack.c.h.b16 %v158
  %v619 = vunpack.c.l.b16 %v159
  %v620 = vunpack.c.h.b16 %v159
  %v621 = vunpack.c.l.b16 %v160
  %v622 = vunpack.c.h.b16 %v160
  %v623 = vunpack.c.l.b16 %v161
  %v624 = vunpack.c.h.b16 %v161
  %v625 = vunpack.c.l.b16 %v162
  %v626 = vunpack.c.h.b16 %v162
  %v627 = vpack.c.b16 %v341, %v339
  %v628 = vpack.c.b16 %v342, %v340
  %v629 = vpack.c.b16 %v345, %v343
  %v630 = vpack.c.b16 %v346, %v344
  %v631 = vpack.c.b16 %v349, %v347
  %v632 = vpack.c.b16 %v350, %v348
  %v633 = vpack.c.b16 %v353, %v351
  %v634 = vpack.c.b16 %v354, %v352
  %v635 = vpack.c.b16 %v357, %v355
  %v636 = vpack.c.b16 %v358, %v356
  %v637 = vpack.c.b16 %v361, %v359
  %v638 = vpack.c.b16 %v362, %v360
  %v639 = vpack.c.b16 %v365, %v363
  %v640 = vpack.c.b16 %v366, %v364
  %v641 = vpack.c.b16 %v369, %v367
  %v642 = vpack.c.b16 %v370, %v368
  %v643 = vpack.c.b16 %v373, %v371
  %v644 = vpack.c.b16 %v374, %v372
  %v645 = vpack.c.b16 %v377, %v375
  %v646 = vpack.c.b16 %v378, %v376
  %v647 = vpack.c.b16 %v381, %v379
  %v648 = vpack.c.b16 %v382, %v380
  %v649 = vpack.c.b16 %v385, %v383
  %v650 = vpack.c.b16 %v386, %v384
  %v651 = vpack.c.b16 %v389, %v387
  %v652 = vpack.c.b16 %v390, %v388
  %v653 = vpack.c.b16 %v393, %v391
  %v654 = vpack.c.b16 %v394, %v392
  %v655 = vpack.c.b16 %v397, %v395
  %v656 = vpack.c.b16 %v398, %v396
  %v657 = vpack.c.b16 %v401, %v399
  %v658 = vpack.c.b16 %v402, %v400
  %v659 = vpack.c.b16 %v405, %v403
  %v660 = vpack.c.b16 %v406, %v404
  %v661 = vpack.c.b16 %v409, %v407
  %v662 = vpack.c.b16 %v410, %v408
  %v663 = vpack.c.b16 %v413, %v411
  %v664 = vpack.c.b16 %v414, %v412
  %v665 = vpack.c.b16 %v417, %v415
  %v666 = vpack.c.b16 %v418, %v416
  %v667 = vpack.c.b16 %v421, %v419
  %v668 = vpack.c.b16 %v422, %v420
  %v669 = vpack.c.b16 %v425, %v423
  %v670 = vpack.c.b16 %v426, %v424
  %v671 = vpack.c.b16 %v429, %v427
  %v672 = vpack.c.b16 %v430, %v428
  %v673 = vpack.c.b16 %v433, %v431
  %v674 = vpack.c.b16 %v434, %v432
  %v675 = vpack.c.b16 %v437, %v435
  %v676 = vpack.c.b16 %v438, %v436
  %v677 = vpack.c.b16 %v441, %v439
  %v678 = vpack.c.b16 %v442, %v440
  %v679 = vpack.c.b16 %v445, %v443
  %v680 = vpack.c.b16 %v446, %v444
  %v681 = vpack.c.b16 %v449, %v447
  %v682 = vpack.c.b16 %v450, %v448
  %v683 = vpack.c.b16 %v453, %v451
  %v684 = vpack.c.b16 %v454, %v452
  %v685 = vpack.c.b16 %v457, %v455
  %v686 = vpack.c.b16 %v458, %v456
  %v687 = vpack.c.b16 %v461, %v459
  %v688 = vpack.c.b16 %v462, %v460
  %v689 = vpack.c.b16 %v465, %v463
  %v690 = vpack.c.b16 %v466, %v464
  %v691 = vpack.c.b16 %v469, %v467
  %v692 = vpack.c.b16 %v470, %v468
  %v693 = vpack.c.b16 %v473, %v471
  %v694 = vpack.c.b16 %v474, %v472
  %v695 = vpack.c.b16 %v477, %v475
  %v696 = vpack.c.b16 %v478, %v476
  %v697 = vpack.c.b16 %v481, %v479
  %v698 = vpack.c.b16 %v482, %v480
  %v699 = vpack.c.b16 %v485, %v483
  %v700 = vpack.c.b16 %v486, %v484
  %v701 = vpack.c.b16 %v489, %v487
  %v702 = vpack.c.b16 %v490, %v488
  %v703 = vpack.c.b16 %v493, %v491
  %v704 = vpack.c.b16 %v494, %v492
  %v705 = vpack.c.b16 %v497, %v495
  %v706 = vpack.c.b16 %v498, %v496
  %v707 = vpack.c.b16 %v501, %v499
  %v708 = vpack.c.b16 %v502, %v500
  %v709 = vpack.c.b16 %v505, %v503
  %v710 = vpack.c.b16 %v506, %v504
  %v711 = vpack.c.b16 %v509, %v507
  %v712 = vpack.c.b16 %v510, %v508
  %v713 = vpack.c.b16 %v513, %v511
  %v714 = vpack.c.b16 %v514, %v512
  %v715 = vpack.c.b16 %v517, %v515
  %v716 = vpack.c.b16 %v518, %v516
  %v717 = vpack.c.b16 %v521, %v519
  %v718 = vpack.c.b16 %v522, %v520
  %v719 = vpack.c.b16 %v525, %v523
  %v720 = vpack.c.b16 %v526, %v524
  %v721 = vpack.c.b16 %v529, %v527
  %v722 = vpack.c.b16 %v530, %v528
  %v723 = vpack.c.b16 %v533, %v531
  %v724 = vpack.c.b16 %v534, %v532
  %v725 = vpack.c.b16 %v537, %v535
  %v726 = vpack.c.b16 %v538, %v536
  %v727 = vpack.c.b16 %v541, %v539
  %v728 = vpack.c.b16 %v542, %v540
  %v729 = vpack.c.b16 %v545, %v543
  %v730 = vpack.c.b16 %v546, %v544
  %v731 = vpack.c.b16 %v549, %v547
  %v732 = vpack.c.b16 %v550, %v548
  %v733 = vpack.c.b16 %v553, %v551
  %v734 = vpack.c.b16 %v554, %v552
  %v735 = vpack.c.b16 %v557, %v555
  %v736 = vpack.c.b16 %v558, %v556
  %v737 = vpack.c.b16 %v561, %v559
  %v738 = vpack.c.b16 %v562, %v560
  %v739 = vpack.c.b16 %v565, %v563
  %v740 = vpack.c.b16 %v566, %v564
  %v741 = vpack.c.b16 %v569, %v567
  %v742 = vpack.c.b16 %v570, %v568
  %v743 = vpack.c.b16 %v573, %v571
  %v744 = vpack.c.b16 %v574, %v572
  %v745 = vpack.c.b16 %v577, %v575
  %v746 = vpack.c.b16 %v578, %v576
  %v747 = vpack.c.b16 %v581, %v579
  %v748 = vpack.c.b16 %v582, %v580
  %v749 = vpack.c.b16 %v585, %v583
  %v750 = vpack.c.b16 %v586, %v584
  %v751 = vpack.c.b16 %v589, %v587
  %v752 = vpack.c.b16 %v590, %v588
  %v753 = vpack.c.b16 %v593, %v591
  %v754 = vpack.c.b16 %v594, %v592
  %v755 = vpack.c.b16 %v597, %v595
  %v756 = vpack.c.b16 %v598, %v596
  %v757 = vpack.c.b16 %v601, %v599
  %v758 = vpack.c.b16 %v602, %v600
  %v759 = vpack.c.b16 %v605, %v603
  %v760 = vpack.c.b16 %v606, %v604
  %v761 = vpack.c.b16 %v609, %v607
  %v762 = vpack.c.b16 %v610, %v608
  %v763 = vpack.c.b16 %v613, %v611
  %v764 = vpack.c.b16 %v614, %v612
  %v765 = vpack.c.b16 %v617, %v615
  %v766 = vpack.c.b16 %v618, %v616
  %v767 = vpack.c.b16 %v621, %v619
  %v768 = vpack.c.b16 %v622, %v620
  %v769 = vpack.c.b16 %v625, %v623
  %v770 = vpack.c.b16 %v626, %v624
  %915 = vmatprep.subr.bf16.mxu0 %v642
  %916 = vmatpush1.bf16.msra.mxu0 %v641
  %917 = vmatprep.subr.bf16.mxu0 %v640
  %918 = vmatpush1.bf16.msra.mxu0 %v639
  %919 = vmatprep.subr.bf16.mxu0 %v638
  %920 = vmatpush1.bf16.msra.mxu0 %v637
  %921 = vmatprep.subr.bf16.mxu0 %v636
  %922 = vmatpush1.bf16.msra.mxu0 %v635
  %923 = vmatprep.subr.bf16.mxu0 %v634
  %924 = vmatpush1.bf16.msra.mxu0 %v633
  %925 = vmatprep.subr.bf16.mxu0 %v632
  %926 = vmatpush1.bf16.msra.mxu0 %v631
  %927 = vmatprep.subr.bf16.mxu0 %v630
  %928 = vmatpush1.bf16.msra.mxu0 %v629
  %929 = vmatprep.subr.bf16.mxu0 %v628
  %930 = vmatpush1.bf16.msra.mxu0 %v627
  %931 = vmatprep.subr.bf16.mxu0 %v658
  %932 = vmatpush2.bf16.msra.mxu0 %v657
  %933 = vmatprep.subr.bf16.mxu0 %v656
  %934 = vmatpush2.bf16.msra.mxu0 %v655
  %935 = vmatprep.subr.bf16.mxu0 %v654
  %936 = vmatpush2.bf16.msra.mxu0 %v653
  %937 = vmatprep.subr.bf16.mxu0 %v652
  %938 = vmatpush2.bf16.msra.mxu0 %v651
  %939 = vmatprep.subr.bf16.mxu0 %v650
  %940 = vmatpush2.bf16.msra.mxu0 %v649
  %941 = vmatprep.subr.bf16.mxu0 %v648
  %942 = vmatpush2.bf16.msra.mxu0 %v647
  %943 = vmatprep.subr.bf16.mxu0 %v646
  %944 = vmatpush2.bf16.msra.mxu0 %v645
  %945 = vmatprep.subr.bf16.mxu0 %v644
  %946 = vmatpush2.bf16.msra.mxu0 %v643
  %947 = vmatprep.mubr.bf16.mxu0 %v178
  %948 = vmatmul.mubr.bf16.gmra.mxu0 %v177
  %v949 = vpop.f32.mrf.mxu0
  %v950 = vadd.f32 0.0, %v949
  %v951 = vpop.f32.mrf.mxu0
  %v952 = vadd.f32 0.0, %v951
  %v953 = vpop.f32.mrf.mxu0
  %v954 = vpop.f32.mrf.mxu0
  %955 = vdwg.mxu0
  %956 = vmatprep.subr.bf16.mxu0 %v674
  %957 = vmatpush1.bf16.msra.mxu0 %v673
  %958 = vmatprep.subr.bf16.mxu0 %v672
  %959 = vmatpush1.bf16.msra.mxu0 %v671
  %960 = vmatprep.subr.bf16.mxu0 %v670
  %961 = vmatpush1.bf16.msra.mxu0 %v669
  %962 = vmatprep.subr.bf16.mxu0 %v668
  %963 = vmatpush1.bf16.msra.mxu0 %v667
  %964 = vmatprep.subr.bf16.mxu0 %v666
  %965 = vmatpush1.bf16.msra.mxu0 %v665
  %966 = vmatprep.subr.bf16.mxu0 %v664
  %967 = vmatpush1.bf16.msra.mxu0 %v663
  %968 = vmatprep.subr.bf16.mxu0 %v662
  %969 = vmatpush1.bf16.msra.mxu0 %v661
  %970 = vmatprep.subr.bf16.mxu0 %v660
  %971 = vmatpush1.bf16.msra.mxu0 %v659
  %972 = vmatprep.subr.bf16.mxu0 %v690
  %973 = vmatpush2.bf16.msra.mxu0 %v689
  %974 = vmatprep.subr.bf16.mxu0 %v688
  %975 = vmatpush2.bf16.msra.mxu0 %v687
  %976 = vmatprep.subr.bf16.mxu0 %v686
  %977 = vmatpush2.bf16.msra.mxu0 %v685
  %978 = vmatprep.subr.bf16.mxu0 %v684
  %979 = vmatpush2.bf16.msra.mxu0 %v683
  %980 = vmatprep.subr.bf16.mxu0 %v682
  %981 = vmatpush2.bf16.msra.mxu0 %v681
  %982 = vmatprep.subr.bf16.mxu0 %v680
  %983 = vmatpush2.bf16.msra.mxu0 %v679
  %984 = vmatprep.subr.bf16.mxu0 %v678
  %985 = vmatpush2.bf16.msra.mxu0 %v677
  %986 = vmatprep.subr.bf16.mxu0 %v676
  %987 = vmatpush2.bf16.msra.mxu0 %v675
  %988 = vmatprep.mubr.bf16.mxu0 %v180
  %989 = vmatmul.mubr.bf16.gmra.mxu0 %v179
  %v990 = vpop.f32.mrf.mxu0
  %v991 = vadd.f32 %v950, %v990
  %v992 = vpop.f32.mrf.mxu0
  %v993 = vadd.f32 %v952, %v992
  %v994 = vpop.f32.mrf.mxu0
  %v995 = vpop.f32.mrf.mxu0
  %996 = vdwg.mxu0
  %997 = vmatprep.subr.bf16.mxu0 %v706
  %998 = vmatpush1.bf16.msra.mxu0 %v705
  %999 = vmatprep.subr.bf16.mxu0 %v704
  %1000 = vmatpush1.bf16.msra.mxu0 %v703
  %1001 = vmatprep.subr.bf16.mxu0 %v702
  %1002 = vmatpush1.bf16.msra.mxu0 %v701
  %1003 = vmatprep.subr.bf16.mxu0 %v700
  %1004 = vmatpush1.bf16.msra.mxu0 %v699
  %1005 = vmatprep.subr.bf16.mxu0 %v698
  %1006 = vmatpush1.bf16.msra.mxu0 %v697
  %1007 = vmatprep.subr.bf16.mxu0 %v696
  %1008 = vmatpush1.bf16.msra.mxu0 %v695
  %1009 = vmatprep.subr.bf16.mxu0 %v694
  %1010 = vmatpush1.bf16.msra.mxu0 %v693
  %1011 = vmatprep.subr.bf16.mxu0 %v692
  %1012 = vmatpush1.bf16.msra.mxu0 %v691
  %1013 = vmatprep.subr.bf16.mxu0 %v722
  %1014 = vmatpush2.bf16.msra.mxu0 %v721
  %1015 = vmatprep.subr.bf16.mxu0 %v720
  %1016 = vmatpush2.bf16.msra.mxu0 %v719
  %1017 = vmatprep.subr.bf16.mxu0 %v718
  %1018 = vmatpush2.bf16.msra.mxu0 %v717
  %1019 = vmatprep.subr.bf16.mxu0 %v716
  %1020 = vmatpush2.bf16.msra.mxu0 %v715
  %1021 = vmatprep.subr.bf16.mxu0 %v714
  %1022 = vmatpush2.bf16.msra.mxu0 %v713
  %1023 = vmatprep.subr.bf16.mxu0 %v712
  %1024 = vmatpush2.bf16.msra.mxu0 %v711
  %1025 = vmatprep.subr.bf16.mxu0 %v710
  %1026 = vmatpush2.bf16.msra.mxu0 %v709
  %1027 = vmatprep.subr.bf16.mxu0 %v708
  %1028 = vmatpush2.bf16.msra.mxu0 %v707
  %1029 = vmatprep.mubr.bf16.mxu0 %v182
  %1030 = vmatmul.mubr.bf16.gmra.mxu0 %v181
  %v1031 = vpop.f32.mrf.mxu0
  %v1032 = vadd.f32 %v991, %v1031
  %v1033 = vpop.f32.mrf.mxu0
  %v1034 = vadd.f32 %v993, %v1033
  %v1035 = vpop.f32.mrf.mxu0
  %v1036 = vpop.f32.mrf.mxu0
  %1037 = vdwg.mxu0
  %1038 = vmatprep.subr.bf16.mxu0 %v738
  %1039 = vmatpush1.bf16.msra.mxu0 %v737
  %1040 = vmatprep.subr.bf16.mxu0 %v736
  %1041 = vmatpush1.bf16.msra.mxu0 %v735
  %1042 = vmatprep.subr.bf16.mxu0 %v734
  %1043 = vmatpush1.bf16.msra.mxu0 %v733
  %1044 = vmatprep.subr.bf16.mxu0 %v732
  %1045 = vmatpush1.bf16.msra.mxu0 %v731
  %1046 = vmatprep.subr.bf16.mxu0 %v730
  %1047 = vmatpush1.bf16.msra.mxu0 %v729
  %1048 = vmatprep.subr.bf16.mxu0 %v728
  %1049 = vmatpush1.bf16.msra.mxu0 %v727
  %1050 = vmatprep.subr.bf16.mxu0 %v726
  %1051 = vmatpush1.bf16.msra.mxu0 %v725
  %1052 = vmatprep.subr.bf16.mxu0 %v724
  %1053 = vmatpush1.bf16.msra.mxu0 %v723
  %1054 = vmatprep.subr.bf16.mxu0 %v754
  %1055 = vmatpush2.bf16.msra.mxu0 %v753
  %1056 = vmatprep.subr.bf16.mxu0 %v752
  %1057 = vmatpush2.bf16.msra.mxu0 %v751
  %1058 = vmatprep.subr.bf16.mxu0 %v750
  %1059 = vmatpush2.bf16.msra.mxu0 %v749
  %1060 = vmatprep.subr.bf16.mxu0 %v748
  %1061 = vmatpush2.bf16.msra.mxu0 %v747
  %1062 = vmatprep.subr.bf16.mxu0 %v746
  %1063 = vmatpush2.bf16.msra.mxu0 %v745
  %1064 = vmatprep.subr.bf16.mxu0 %v744
  %1065 = vmatpush2.bf16.msra.mxu0 %v743
  %1066 = vmatprep.subr.bf16.mxu0 %v742
  %1067 = vmatpush2.bf16.msra.mxu0 %v741
  %1068 = vmatprep.subr.bf16.mxu0 %v740
  %1069 = vmatpush2.bf16.msra.mxu0 %v739
  %1070 = vmatprep.mubr.bf16.mxu0 %v184
  %1071 = vmatmul.mubr.bf16.gmra.mxu0 %v183
  %v1072 = vpop.f32.mrf.mxu0
  %v1073 = vadd.f32 %v1032, %v1072
  %v1074 = vpop.f32.mrf.mxu0
  %v1075 = vadd.f32 %v1034, %v1074
  %v1076 = vpop.f32.mrf.mxu0
  %v1077 = vpop.f32.mrf.mxu0
  %1078 = vdwg.mxu0
  %1079 = vmatprep.subr.bf16.mxu0 %v770
  %1080 = vmatpush1.bf16.msra.mxu0 %v769
  %1081 = vmatprep.subr.bf16.mxu0 %v768
  %1082 = vmatpush1.bf16.msra.mxu0 %v767
  %1083 = vmatprep.subr.bf16.mxu0 %v766
  %1084 = vmatpush1.bf16.msra.mxu0 %v765
  %1085 = vmatprep.subr.bf16.mxu0 %v764
  %1086 = vmatpush1.bf16.msra.mxu0 %v763
  %1087 = vmatprep.subr.bf16.mxu0 %v762
  %1088 = vmatpush1.bf16.msra.mxu0 %v761
  %1089 = vmatprep.subr.bf16.mxu0 %v760
  %1090 = vmatpush1.bf16.msra.mxu0 %v759
  %1091 = vmatprep.subr.bf16.mxu0 %v758
  %1092 = vmatpush1.bf16.msra.mxu0 %v757
  %1093 = vmatprep.subr.bf16.mxu0 %v756
  %1094 = vmatpush1.bf16.msra.mxu0 %v755
  %1095 = vmatprep.subr.bf16.mxu0 0
  %1096 = vmatpush2.bf16.msra.mxu0 0
  %1097 = vmatprep.subr.bf16.mxu0 0
  %1098 = vmatpush2.bf16.msra.mxu0 0
  %1099 = vmatprep.subr.bf16.mxu0 0
  %1100 = vmatpush2.bf16.msra.mxu0 0
  %1101 = vmatprep.subr.bf16.mxu0 0
  %1102 = vmatpush2.bf16.msra.mxu0 0
  %1103 = vmatprep.subr.bf16.mxu0 0
  %1104 = vmatpush2.bf16.msra.mxu0 0
  %1105 = vmatprep.subr.bf16.mxu0 0
  %1106 = vmatpush2.bf16.msra.mxu0 0
  %1107 = vmatprep.subr.bf16.mxu0 0
  %1108 = vmatpush2.bf16.msra.mxu0 0
  %1109 = vmatprep.subr.bf16.mxu0 0
  %1110 = vmatpush2.bf16.msra.mxu0 0
  %1111 = vmatprep.mubr.bf16.mxu0 0
  %1112 = vmatmul.mubr.bf16.gmra.mxu0 %v185
  %v1113 = vpop.f32.mrf.mxu0
  %v1114 = vadd.f32 %v1073, %v1113
  %v1115 = vpop.f32.mrf.mxu0
  %v1116 = vadd.f32 %v1075, %v1115
  %v1117 = vpop.f32.mrf.mxu0
  %v1118 = vpop.f32.mrf.mxu0
  %1119 = vdwg.mxu0
  %v1120 = vpack.c.bf16 %v1114, %v1114
  %v1121 = vpack.c.bf16 %v1116, %v1116
  %v1124 = vunpack.c.l.b16 %v1120
  %v1125 = vunpack.c.l.b16 %v1121
  %v1126 = vpack.c.b16 %v1125, %v1124
  %1128 = vst [vmem:[%s2] sm:$0xff] %v1126
  %p1129 = scmp.eq.s32.totalorder 0, 0
  // Predicated region
  $region10: #{backbone_forward.52} parent=0 // pred_check
    %p1130 = pneg %p1129
  $region11: #{backbone_forward.52} parent=0 // pred_check_branch
    %1132 = sbr.rel (%p1130) target = $region13
  $region12: #{backbone_forward.52} parent=0 // pred_region
    %1133 = vst [vmem:[%s3] sm:$0xf] 0.0
  $region13: #{backbone_forward.52} parent=0 // pred_fallthru
    _
  %v1134 = vrot.slane %v1114, 4
  %v1135 = vadd.f32 %v1114, %v1134
  %v1136 = vrot.slane %v1135, 2
  %v1137 = vadd.f32 %v1135, %v1136
  %v1138 = vrot.slane %v1137, 1
  %v1139 = vadd.f32 %v1137, %v1138
  %v1140 = vrot.slane %v1116, 4
  %v1141 = vadd.f32 %v1116, %v1140
  %v1142 = vrot.slane %v1141, 2
  %v1143 = vadd.f32 %v1141, %v1142
  %v1144 = vrot.slane %v1143, 1
  %v1145 = vadd.f32 %v1143, %v1144
  %v1146 = vmul.f32 %v1114, %v1114
  %v1147 = vmul.f32 %v1116, %v1116
  %v1148 = vrot.slane %v1146, 4
  %v1149 = vadd.f32 %v1146, %v1148
  %v1150 = vrot.slane %v1149, 2
  %v1151 = vadd.f32 %v1149, %v1150
  %v1152 = vrot.slane %v1151, 1
  %v1153 = vadd.f32 %v1151, %v1152
  %v1154 = vrot.slane %v1147, 4
  %v1155 = vadd.f32 %v1147, %v1154
  %v1156 = vrot.slane %v1155, 2
  %v1157 = vadd.f32 %v1155, %v1156
  %v1158 = vrot.slane %v1157, 1
  %v1159 = vadd.f32 %v1157, %v1158
  %v1160 = vld [vmem:[%s3] sm:$0xf]
  %vm1161 = vcmask 1040384
  %v1162 = vsel %vm1161, %v1139, %v1153
  %v1163 = vsel %vm1161, %v1145, %v1159
  %v1166 = vcombine.low %v1162, %v1163
  %v1168 = vunpack.c.l.s4 1983009808
  %v1169 = vunpack.c.0.s8 %v1168
  %v1170 = vlaneseq
  %v1171 = vshrl.u32 %v1170, 7
  %v1172 = vsub.s32 %v1169, %v1171
  %v1173 = vrot.slane %v1166, %v1172
  %v1175 = vadd.f32 %v1160, %v1173
  %1176 = vst [vmem:[%s3] sm:$0xf] %v1175
  // Predicated region
  $region14: #{backbone_forward.52} parent=0 // pred_check
    _
  $region15: #{backbone_forward.52} parent=0 // pred_check_branch
    %1178 = sbr.rel (0) target = $region17
  $region16: #{backbone_forward.52} parent=0 // pred_region
    _
  $region17: #{backbone_forward.52} parent=0 // pred_fallthru
    _
  // Predicated region
  $region18: #{backbone_forward.52} parent=0 // pred_check
    _
  $region19: #{backbone_forward.52} parent=0 // pred_check_branch
    %1180 = sbr.rel (0) target = $region21
  $region20: #{backbone_forward.52} parent=0 // pred_region
    _
  $region21: #{backbone_forward.52} parent=0 // pred_fallthru
    _
  // Predicated region
  $region22: #{backbone_forward.52} parent=0 // pred_check
    _
  $region23: #{backbone_forward.52} parent=0 // pred_check_branch
    %1182 = sbr.rel (0) target = $region25
  $region24: #{backbone_forward.52} parent=0 // pred_region
    _
  $region25: #{backbone_forward.52} parent=0 // pred_fallthru
    _
  // Predicated region
  $region26: #{backbone_forward.52} parent=0 // pred_check
    _
  $region27: #{backbone_forward.52} parent=0 // pred_check_branch
    %1184 = sbr.rel (0) target = $region29
  $region28: #{backbone_forward.52} parent=0 // pred_region
    _
  $region29: #{backbone_forward.52} parent=0 // pred_fallthru
    _

// kernel: backbone_forward.57
$region0: #{backbone_forward.57}
  #allocation0 [shape = 'u32[]', space=smem, size = 0x4, offset = 0x4, fixed_abs, tag = 'smem constant byte address 0x4 - core index']
  #allocation1 [shape = 'u32[144,128]{1,0:T(1,128)}', space=vmem, size = 0x12000, scoped, tag = 'internal scratch']
  %s0 = inlined_call_operand.vmem [shape: bf16[8,256], index: 0, kind: input, shape index: {}]
  %s1 = inlined_call_operand.vmem [shape: f32[1,256], index: 1, kind: input, shape index: {}]
  %s2 = inlined_call_operand.vmem [shape: f32[1,256], index: 2, kind: input, shape index: {}]
  %s3 = inlined_call_operand.vmem [shape: bf16[8,256], index: 3, kind: input, shape index: {}]
  %s4 = inlined_call_operand.vmem [shape: bf16[8,256], index: 4, kind: output, shape index: {}]
  %s5 = sld [smem:[#allocation0]]
  $region26: #{backbone_forward.57} parent=0
    _
  %s7 = ssub.s32 1, %s5
  %s8 = scalar_select 0, %s7, %s5
  // Predicated region
  $region2: #{backbone_forward.57} parent=0 // pred_check
    _
  $region3: #{backbone_forward.57} parent=0 // pred_check_branch
    %10 = sbr.rel (0) target = $region5
  $region4: #{backbone_forward.57} parent=0 // pred_region
    _
  $region5: #{backbone_forward.57} parent=0 // pred_fallthru
    _
  // Predicated region
  $region6: #{backbone_forward.57} parent=0 // pred_check
    _
  $region7: #{backbone_forward.57} parent=0 // pred_check_branch
    %12 = sbr.rel (0) target = $region9
  $region8: #{backbone_forward.57} parent=0 // pred_region
    _
  $region9: #{backbone_forward.57} parent=0 // pred_fallthru
    _
  // Predicated region
  $region10: #{backbone_forward.57} parent=0 // pred_check
    _
  $region11: #{backbone_forward.57} parent=0 // pred_check_branch
    %14 = sbr.rel (0) target = $region13
  $region12: #{backbone_forward.57} parent=0 // pred_region
    _
  $region13: #{backbone_forward.57} parent=0 // pred_fallthru
    _
  // Predicated region
  $region14: #{backbone_forward.57} parent=0 // pred_check
    _
  $region15: #{backbone_forward.57} parent=0 // pred_check_branch
    %16 = sbr.rel (0) target = $region17
  $region16: #{backbone_forward.57} parent=0 // pred_region
    _
  $region17: #{backbone_forward.57} parent=0 // pred_fallthru
    _
  %v17 = vld [vmem:[%s0] sm:$0xff]
  %v18 = vunpack.c.l.bf16 %v17
  %v19 = vunpack.c.h.bf16 %v17
  %v20 = vld [vmem:[%s3] sm:$0xff]
  %v21 = vunpack.c.l.bf16 %v20
  %v22 = vunpack.c.h.bf16 %v20
  %v23 = vld [vmem:[%s1] sm:$0x3]
  %v25 = vlaneseq
  %v26 = vshrl.u32 %v25, 7
  %v27 = vsub.s32 0, %v26
  %v28 = vrot.slane %v23, %v27
  %v29 = vlaneseq
  %v30 = vshrl.u32 %v29, 7
  %v31 = vsub.s32 1, %v30
  %v32 = vrot.slane %v23, %v31
  %v35 = vmul.f32 %v18, %v28
  %v36 = vmul.f32 %v19, %v32
  %v37 = vld [vmem:[%s2] sm:$0x3]
  %v39 = vlaneseq
  %v40 = vshrl.u32 %v39, 7
  %v41 = vsub.s32 0, %v40
  %v42 = vrot.slane %v37, %v41
  %v43 = vlaneseq
  %v44 = vshrl.u32 %v43, 7
  %v45 = vsub.s32 1, %v44
  %v46 = vrot.slane %v37, %v45
  %v49 = vadd.f32 %v35, %v42
  %v50 = vadd.f32 %v36, %v46
  %v51 = vadd.f32 %v49, %v21
  %v52 = vadd.f32 %v50, %v22
  %v53 = vmax.f32 %v51, 0.0
  %v54 = vmax.f32 %v52, 0.0
  %v55 = vpack.c.bf16 %v53, %v53
  %v56 = vpack.c.bf16 %v54, %v54
  %v59 = vunpack.c.l.b16 %v55
  %v60 = vunpack.c.l.b16 %v56
  %v61 = vpack.c.b16 %v60, %v59
  %63 = vst [vmem:[%s4] sm:$0xff] %v61
  // Predicated region
  $region18: #{backbone_forward.57} parent=0 // pred_check
    _
  $region19: #{backbone_forward.57} parent=0 // pred_check_branch
    %65 = sbr.rel (0) target = $region21
  $region20: #{backbone_forward.57} parent=0 // pred_region
    _
  $region21: #{backbone_forward.57} parent=0 // pred_fallthru
    _
  // Predicated region
  $region22: #{backbone_forward.57} parent=0 // pred_check
    _
  $region23: #{backbone_forward.57} parent=0 // pred_check_branch
    %67 = sbr.rel (0) target = $region25
  $region24: #{backbone_forward.57} parent=0 // pred_region
    _
  $region25: #{backbone_forward.57} parent=0 // pred_fallthru
    _

// kernel: backbone_forward.56
$region0: #{backbone_forward.56}
  #allocation0 [shape = 'u32[]', space=smem, size = 0x4, offset = 0x4, fixed_abs, tag = 'smem constant byte address 0x4 - core index']
  #allocation1 [shape = 'u32[144,128]{1,0:T(1,128)}', space=vmem, size = 0x12000, scoped, tag = 'internal scratch']
  %s0 = inlined_call_operand.vmem [shape: bf16[8,2304], index: 0, kind: input, shape index: {}]
  %s1 = inlined_call_operand.vmem [shape: bf16[2304,256], index: 1, kind: input, shape index: {}]
  %s2 = inlined_call_operand.vmem [shape: bf16[8,256], index: 2, kind: output, shape index: {0}]
  %s3 = inlined_call_operand.vmem [shape: f32[2,256], index: 3, kind: output, shape index: {1}]
  %4 = xla_tuple %s2, %s3
  %s5 = sld [smem:[#allocation0]]
  $region30: #{backbone_forward.56} parent=0
    _
  %s7 = ssub.s32 1, %s5
  %s8 = scalar_select 0, %s7, %s5
  // Predicated region
  $region2: #{backbone_forward.56} parent=0 // pred_check
    _
  $region3: #{backbone_forward.56} parent=0 // pred_check_branch
    %10 = sbr.rel (0) target = $region5
  $region4: #{backbone_forward.56} parent=0 // pred_region
    _
  $region5: #{backbone_forward.56} parent=0 // pred_fallthru
    _
  // Predicated region
  $region6: #{backbone_forward.56} parent=0 // pred_check
    _
  $region7: #{backbone_forward.56} parent=0 // pred_check_branch
    %12 = sbr.rel (0) target = $region9
  $region8: #{backbone_forward.56} parent=0 // pred_region
    _
  $region9: #{backbone_forward.56} parent=0 // pred_fallthru
    _
  %v13 = vld [vmem:[%s0] sm:$0xff]
  %v14 = vld [vmem:[%s0 + $0x8] sm:$0xff]
  %v15 = vld [vmem:[%s0 + $0x10] sm:$0xff]
  %v16 = vld [vmem:[%s0 + $0x18] sm:$0xff]
  %v17 = vld [vmem:[%s0 + $0x20] sm:$0xff]
  %v18 = vld [vmem:[%s0 + $0x28] sm:$0xff]
  %v19 = vld [vmem:[%s0 + $0x30] sm:$0xff]
  %v20 = vld [vmem:[%s0 + $0x38] sm:$0xff]
  %v21 = vld [vmem:[%s0 + $0x40] sm:$0xff]
  %v22 = vld [vmem:[%s1] sm:$0xff]
  %v23 = vld [vmem:[%s1 + $0x8] sm:$0xff]
  %v24 = vld [vmem:[%s1 + $0x10] sm:$0xff]
  %v25 = vld [vmem:[%s1 + $0x18] sm:$0xff]
  %v26 = vld [vmem:[%s1 + $0x20] sm:$0xff]
  %v27 = vld [vmem:[%s1 + $0x28] sm:$0xff]
  %v28 = vld [vmem:[%s1 + $0x30] sm:$0xff]
  %v29 = vld [vmem:[%s1 + $0x38] sm:$0xff]
  %v30 = vld [vmem:[%s1 + $0x40] sm:$0xff]
  %v31 = vld [vmem:[%s1 + $0x48] sm:$0xff]
  %v32 = vld [vmem:[%s1 + $0x50] sm:$0xff]
  %v33 = vld [vmem:[%s1 + $0x58] sm:$0xff]
  %v34 = vld [vmem:[%s1 + $0x60] sm:$0xff]
  %v35 = vld [vmem:[%s1 + $0x68] sm:$0xff]
  %v36 = vld [vmem:[%s1 + $0x70] sm:$0xff]
  %v37 = vld [vmem:[%s1 + $0x78] sm:$0xff]
  %v38 = vld [vmem:[%s1 + $0x80] sm:$0xff]
  %v39 = vld [vmem:[%s1 + $0x88] sm:$0xff]
  %v40 = vld [vmem:[%s1 + $0x90] sm:$0xff]
  %v41 = vld [vmem:[%s1 + $0x98] sm:$0xff]
  %v42 = vld [vmem:[%s1 + $0xa0] sm:$0xff]
  %v43 = vld [vmem:[%s1 + $0xa8] sm:$0xff]
  %v44 = vld [vmem:[%s1 + $0xb0] sm:$0xff]
  %v45 = vld [vmem:[%s1 + $0xb8] sm:$0xff]
  %v46 = vld [vmem:[%s1 + $0xc0] sm:$0xff]
  %v47 = vld [vmem:[%s1 + $0xc8] sm:$0xff]
  %v48 = vld [vmem:[%s1 + $0xd0] sm:$0xff]
  %v49 = vld [vmem:[%s1 + $0xd8] sm:$0xff]
  %v50 = vld [vmem:[%s1 + $0xe0] sm:$0xff]
  %v51 = vld [vmem:[%s1 + $0xe8] sm:$0xff]
  %v52 = vld [vmem:[%s1 + $0xf0] sm:$0xff]
  %v53 = vld [vmem:[%s1 + $0xf8] sm:$0xff]
  %v54 = vld [vmem:[%s1 + $0x100] sm:$0xff]
  %v55 = vld [vmem:[%s1 + $0x108] sm:$0xff]
  %v56 = vld [vmem:[%s1 + $0x110] sm:$0xff]
  %v57 = vld [vmem:[%s1 + $0x118] sm:$0xff]
  %v58 = vld [vmem:[%s1 + $0x120] sm:$0xff]
  %v59 = vld [vmem:[%s1 + $0x128] sm:$0xff]
  %v60 = vld [vmem:[%s1 + $0x130] sm:$0xff]
  %v61 = vld [vmem:[%s1 + $0x138] sm:$0xff]
  %v62 = vld [vmem:[%s1 + $0x140] sm:$0xff]
  %v63 = vld [vmem:[%s1 + $0x148] sm:$0xff]
  %v64 = vld [vmem:[%s1 + $0x150] sm:$0xff]
  %v65 = vld [vmem:[%s1 + $0x158] sm:$0xff]
  %v66 = vld [vmem:[%s1 + $0x160] sm:$0xff]
  %v67 = vld [vmem:[%s1 + $0x168] sm:$0xff]
  %v68 = vld [vmem:[%s1 + $0x170] sm:$0xff]
  %v69 = vld [vmem:[%s1 + $0x178] sm:$0xff]
  %v70 = vld [vmem:[%s1 + $0x180] sm:$0xff]
  %v71 = vld [vmem:[%s1 + $0x188] sm:$0xff]
  %v72 = vld [vmem:[%s1 + $0x190] sm:$0xff]
  %v73 = vld [vmem:[%s1 + $0x198] sm:$0xff]
  %v74 = vld [vmem:[%s1 + $0x1a0] sm:$0xff]
  %v75 = vld [vmem:[%s1 + $0x1a8] sm:$0xff]
  %v76 = vld [vmem:[%s1 + $0x1b0] sm:$0xff]
  %v77 = vld [vmem:[%s1 + $0x1b8] sm:$0xff]
  %v78 = vld [vmem:[%s1 + $0x1c0] sm:$0xff]
  %v79 = vld [vmem:[%s1 + $0x1c8] sm:$0xff]
  %v80 = vld [vmem:[%s1 + $0x1d0] sm:$0xff]
  %v81 = vld [vmem:[%s1 + $0x1d8] sm:$0xff]
  %v82 = vld [vmem:[%s1 + $0x1e0] sm:$0xff]
  %v83 = vld [vmem:[%s1 + $0x1e8] sm:$0xff]
  %v84 = vld [vmem:[%s1 + $0x1f0] sm:$0xff]
  %v85 = vld [vmem:[%s1 + $0x1f8] sm:$0xff]
  %v86 = vld [vmem:[%s1 + $0x200] sm:$0xff]
  %v87 = vld [vmem:[%s1 + $0x208] sm:$0xff]
  %v88 = vld [vmem:[%s1 + $0x210] sm:$0xff]
  %v89 = vld [vmem:[%s1 + $0x218] sm:$0xff]
  %v90 = vld [vmem:[%s1 + $0x220] sm:$0xff]
  %v91 = vld [vmem:[%s1 + $0x228] sm:$0xff]
  %v92 = vld [vmem:[%s1 + $0x230] sm:$0xff]
  %v93 = vld [vmem:[%s1 + $0x238] sm:$0xff]
  %v94 = vld [vmem:[%s1 + $0x240] sm:$0xff]
  %v95 = vld [vmem:[%s1 + $0x248] sm:$0xff]
  %v96 = vld [vmem:[%s1 + $0x250] sm:$0xff]
  %v97 = vld [vmem:[%s1 + $0x258] sm:$0xff]
  %v98 = vld [vmem:[%s1 + $0x260] sm:$0xff]
  %v99 = vld [vmem:[%s1 + $0x268] sm:$0xff]
  %v100 = vld [vmem:[%s1 + $0x270] sm:$0xff]
  %v101 = vld [vmem:[%s1 + $0x278] sm:$0xff]
  %v102 = vld [vmem:[%s1 + $0x280] sm:$0xff]
  %v103 = vld [vmem:[%s1 + $0x288] sm:$0xff]
  %v104 = vld [vmem:[%s1 + $0x290] sm:$0xff]
  %v105 = vld [vmem:[%s1 + $0x298] sm:$0xff]
  %v106 = vld [vmem:[%s1 + $0x2a0] sm:$0xff]
  %v107 = vld [vmem:[%s1 + $0x2a8] sm:$0xff]
  %v108 = vld [vmem:[%s1 + $0x2b0] sm:$0xff]
  %v109 = vld [vmem:[%s1 + $0x2b8] sm:$0xff]
  %v110 = vld [vmem:[%s1 + $0x2c0] sm:$0xff]
  %v111 = vld [vmem:[%s1 + $0x2c8] sm:$0xff]
  %v112 = vld [vmem:[%s1 + $0x2d0] sm:$0xff]
  %v113 = vld [vmem:[%s1 + $0x2d8] sm:$0xff]
  %v114 = vld [vmem:[%s1 + $0x2e0] sm:$0xff]
  %v115 = vld [vmem:[%s1 + $0x2e8] sm:$0xff]
  %v116 = vld [vmem:[%s1 + $0x2f0] sm:$0xff]
  %v117 = vld [vmem:[%s1 + $0x2f8] sm:$0xff]
  %v118 = vld [vmem:[%s1 + $0x300] sm:$0xff]
  %v119 = vld [vmem:[%s1 + $0x308] sm:$0xff]
  %v120 = vld [vmem:[%s1 + $0x310] sm:$0xff]
  %v121 = vld [vmem:[%s1 + $0x318] sm:$0xff]
  %v122 = vld [vmem:[%s1 + $0x320] sm:$0xff]
  %v123 = vld [vmem:[%s1 + $0x328] sm:$0xff]
  %v124 = vld [vmem:[%s1 + $0x330] sm:$0xff]
  %v125 = vld [vmem:[%s1 + $0x338] sm:$0xff]
  %v126 = vld [vmem:[%s1 + $0x340] sm:$0xff]
  %v127 = vld [vmem:[%s1 + $0x348] sm:$0xff]
  %v128 = vld [vmem:[%s1 + $0x350] sm:$0xff]
  %v129 = vld [vmem:[%s1 + $0x358] sm:$0xff]
  %v130 = vld [vmem:[%s1 + $0x360] sm:$0xff]
  %v131 = vld [vmem:[%s1 + $0x368] sm:$0xff]
  %v132 = vld [vmem:[%s1 + $0x370] sm:$0xff]
  %v133 = vld [vmem:[%s1 + $0x378] sm:$0xff]
  %v134 = vld [vmem:[%s1 + $0x380] sm:$0xff]
  %v135 = vld [vmem:[%s1 + $0x388] sm:$0xff]
  %v136 = vld [vmem:[%s1 + $0x390] sm:$0xff]
  %v137 = vld [vmem:[%s1 + $0x398] sm:$0xff]
  %v138 = vld [vmem:[%s1 + $0x3a0] sm:$0xff]
  %v139 = vld [vmem:[%s1 + $0x3a8] sm:$0xff]
  %v140 = vld [vmem:[%s1 + $0x3b0] sm:$0xff]
  %v141 = vld [vmem:[%s1 + $0x3b8] sm:$0xff]
  %v142 = vld [vmem:[%s1 + $0x3c0] sm:$0xff]
  %v143 = vld [vmem:[%s1 + $0x3c8] sm:$0xff]
  %v144 = vld [vmem:[%s1 + $0x3d0] sm:$0xff]
  %v145 = vld [vmem:[%s1 + $0x3d8] sm:$0xff]
  %v146 = vld [vmem:[%s1 + $0x3e0] sm:$0xff]
  %v147 = vld [vmem:[%s1 + $0x3e8] sm:$0xff]
  %v148 = vld [vmem:[%s1 + $0x3f0] sm:$0xff]
  %v149 = vld [vmem:[%s1 + $0x3f8] sm:$0xff]
  %v150 = vld [vmem:[%s1 + $0x400] sm:$0xff]
  %v151 = vld [vmem:[%s1 + $0x408] sm:$0xff]
  %v152 = vld [vmem:[%s1 + $0x410] sm:$0xff]
  %v153 = vld [vmem:[%s1 + $0x418] sm:$0xff]
  %v154 = vld [vmem:[%s1 + $0x420] sm:$0xff]
  %v155 = vld [vmem:[%s1 + $0x428] sm:$0xff]
  %v156 = vld [vmem:[%s1 + $0x430] sm:$0xff]
  %v157 = vld [vmem:[%s1 + $0x438] sm:$0xff]
  %v158 = vld [vmem:[%s1 + $0x440] sm:$0xff]
  %v159 = vld [vmem:[%s1 + $0x448] sm:$0xff]
  %v160 = vld [vmem:[%s1 + $0x450] sm:$0xff]
  %v161 = vld [vmem:[%s1 + $0x458] sm:$0xff]
  %v162 = vld [vmem:[%s1 + $0x460] sm:$0xff]
  %v163 = vld [vmem:[%s1 + $0x468] sm:$0xff]
  %v164 = vld [vmem:[%s1 + $0x470] sm:$0xff]
  %v165 = vld [vmem:[%s1 + $0x478] sm:$0xff]
  %v166 = vld [vmem:[%s1 + $0x480] sm:$0xff]
  %v167 = vld [vmem:[%s1 + $0x488] sm:$0xff]
  %v168 = vld [vmem:[%s1 + $0x490] sm:$0xff]
  %v169 = vld [vmem:[%s1 + $0x498] sm:$0xff]
  %v170 = vld [vmem:[%s1 + $0x4a0] sm:$0xff]
  %v171 = vld [vmem:[%s1 + $0x4a8] sm:$0xff]
  %v172 = vld [vmem:[%s1 + $0x4b0] sm:$0xff]
  %v173 = vld [vmem:[%s1 + $0x4b8] sm:$0xff]
  %v174 = vld [vmem:[%s1 + $0x4c0] sm:$0xff]
  %v175 = vld [vmem:[%s1 + $0x4c8] sm:$0xff]
  %v176 = vld [vmem:[%s1 + $0x4d0] sm:$0xff]
  %v177 = vld [vmem:[%s1 + $0x4d8] sm:$0xff]
  %v178 = vld [vmem:[%s1 + $0x4e0] sm:$0xff]
  %v179 = vld [vmem:[%s1 + $0x4e8] sm:$0xff]
  %v180 = vld [vmem:[%s1 + $0x4f0] sm:$0xff]
  %v181 = vld [vmem:[%s1 + $0x4f8] sm:$0xff]
  %v182 = vld [vmem:[%s1 + $0x500] sm:$0xff]
  %v183 = vld [vmem:[%s1 + $0x508] sm:$0xff]
  %v184 = vld [vmem:[%s1 + $0x510] sm:$0xff]
  %v185 = vld [vmem:[%s1 + $0x518] sm:$0xff]
  %v186 = vld [vmem:[%s1 + $0x520] sm:$0xff]
  %v187 = vld [vmem:[%s1 + $0x528] sm:$0xff]
  %v188 = vld [vmem:[%s1 + $0x530] sm:$0xff]
  %v189 = vld [vmem:[%s1 + $0x538] sm:$0xff]
  %v190 = vld [vmem:[%s1 + $0x540] sm:$0xff]
  %v191 = vld [vmem:[%s1 + $0x548] sm:$0xff]
  %v192 = vld [vmem:[%s1 + $0x550] sm:$0xff]
  %v193 = vld [vmem:[%s1 + $0x558] sm:$0xff]
  %v194 = vld [vmem:[%s1 + $0x560] sm:$0xff]
  %v195 = vld [vmem:[%s1 + $0x568] sm:$0xff]
  %v196 = vld [vmem:[%s1 + $0x570] sm:$0xff]
  %v197 = vld [vmem:[%s1 + $0x578] sm:$0xff]
  %v198 = vld [vmem:[%s1 + $0x580] sm:$0xff]
  %v199 = vld [vmem:[%s1 + $0x588] sm:$0xff]
  %v200 = vld [vmem:[%s1 + $0x590] sm:$0xff]
  %v201 = vld [vmem:[%s1 + $0x598] sm:$0xff]
  %v202 = vld [vmem:[%s1 + $0x5a0] sm:$0xff]
  %v203 = vld [vmem:[%s1 + $0x5a8] sm:$0xff]
  %v204 = vld [vmem:[%s1 + $0x5b0] sm:$0xff]
  %v205 = vld [vmem:[%s1 + $0x5b8] sm:$0xff]
  %v206 = vld [vmem:[%s1 + $0x5c0] sm:$0xff]
  %v207 = vld [vmem:[%s1 + $0x5c8] sm:$0xff]
  %v208 = vld [vmem:[%s1 + $0x5d0] sm:$0xff]
  %v209 = vld [vmem:[%s1 + $0x5d8] sm:$0xff]
  %v210 = vld [vmem:[%s1 + $0x5e0] sm:$0xff]
  %v211 = vld [vmem:[%s1 + $0x5e8] sm:$0xff]
  %v212 = vld [vmem:[%s1 + $0x5f0] sm:$0xff]
  %v213 = vld [vmem:[%s1 + $0x5f8] sm:$0xff]
  %v214 = vld [vmem:[%s1 + $0x600] sm:$0xff]
  %v215 = vld [vmem:[%s1 + $0x608] sm:$0xff]
  %v216 = vld [vmem:[%s1 + $0x610] sm:$0xff]
  %v217 = vld [vmem:[%s1 + $0x618] sm:$0xff]
  %v218 = vld [vmem:[%s1 + $0x620] sm:$0xff]
  %v219 = vld [vmem:[%s1 + $0x628] sm:$0xff]
  %v220 = vld [vmem:[%s1 + $0x630] sm:$0xff]
  %v221 = vld [vmem:[%s1 + $0x638] sm:$0xff]
  %v222 = vld [vmem:[%s1 + $0x640] sm:$0xff]
  %v223 = vld [vmem:[%s1 + $0x648] sm:$0xff]
  %v224 = vld [vmem:[%s1 + $0x650] sm:$0xff]
  %v225 = vld [vmem:[%s1 + $0x658] sm:$0xff]
  %v226 = vld [vmem:[%s1 + $0x660] sm:$0xff]
  %v227 = vld [vmem:[%s1 + $0x668] sm:$0xff]
  %v228 = vld [vmem:[%s1 + $0x670] sm:$0xff]
  %v229 = vld [vmem:[%s1 + $0x678] sm:$0xff]
  %v230 = vld [vmem:[%s1 + $0x680] sm:$0xff]
  %v231 = vld [vmem:[%s1 + $0x688] sm:$0xff]
  %v232 = vld [vmem:[%s1 + $0x690] sm:$0xff]
  %v233 = vld [vmem:[%s1 + $0x698] sm:$0xff]
  %v234 = vld [vmem:[%s1 + $0x6a0] sm:$0xff]
  %v235 = vld [vmem:[%s1 + $0x6a8] sm:$0xff]
  %v236 = vld [vmem:[%s1 + $0x6b0] sm:$0xff]
  %v237 = vld [vmem:[%s1 + $0x6b8] sm:$0xff]
  %v238 = vld [vmem:[%s1 + $0x6c0] sm:$0xff]
  %v239 = vld [vmem:[%s1 + $0x6c8] sm:$0xff]
  %v240 = vld [vmem:[%s1 + $0x6d0] sm:$0xff]
  %v241 = vld [vmem:[%s1 + $0x6d8] sm:$0xff]
  %v242 = vld [vmem:[%s1 + $0x6e0] sm:$0xff]
  %v243 = vld [vmem:[%s1 + $0x6e8] sm:$0xff]
  %v244 = vld [vmem:[%s1 + $0x6f0] sm:$0xff]
  %v245 = vld [vmem:[%s1 + $0x6f8] sm:$0xff]
  %v246 = vld [vmem:[%s1 + $0x700] sm:$0xff]
  %v247 = vld [vmem:[%s1 + $0x708] sm:$0xff]
  %v248 = vld [vmem:[%s1 + $0x710] sm:$0xff]
  %v249 = vld [vmem:[%s1 + $0x718] sm:$0xff]
  %v250 = vld [vmem:[%s1 + $0x720] sm:$0xff]
  %v251 = vld [vmem:[%s1 + $0x728] sm:$0xff]
  %v252 = vld [vmem:[%s1 + $0x730] sm:$0xff]
  %v253 = vld [vmem:[%s1 + $0x738] sm:$0xff]
  %v254 = vld [vmem:[%s1 + $0x740] sm:$0xff]
  %v255 = vld [vmem:[%s1 + $0x748] sm:$0xff]
  %v256 = vld [vmem:[%s1 + $0x750] sm:$0xff]
  %v257 = vld [vmem:[%s1 + $0x758] sm:$0xff]
  %v258 = vld [vmem:[%s1 + $0x760] sm:$0xff]
  %v259 = vld [vmem:[%s1 + $0x768] sm:$0xff]
  %v260 = vld [vmem:[%s1 + $0x770] sm:$0xff]
  %v261 = vld [vmem:[%s1 + $0x778] sm:$0xff]
  %v262 = vld [vmem:[%s1 + $0x780] sm:$0xff]
  %v263 = vld [vmem:[%s1 + $0x788] sm:$0xff]
  %v264 = vld [vmem:[%s1 + $0x790] sm:$0xff]
  %v265 = vld [vmem:[%s1 + $0x798] sm:$0xff]
  %v266 = vld [vmem:[%s1 + $0x7a0] sm:$0xff]
  %v267 = vld [vmem:[%s1 + $0x7a8] sm:$0xff]
  %v268 = vld [vmem:[%s1 + $0x7b0] sm:$0xff]
  %v269 = vld [vmem:[%s1 + $0x7b8] sm:$0xff]
  %v270 = vld [vmem:[%s1 + $0x7c0] sm:$0xff]
  %v271 = vld [vmem:[%s1 + $0x7c8] sm:$0xff]
  %v272 = vld [vmem:[%s1 + $0x7d0] sm:$0xff]
  %v273 = vld [vmem:[%s1 + $0x7d8] sm:$0xff]
  %v274 = vld [vmem:[%s1 + $0x7e0] sm:$0xff]
  %v275 = vld [vmem:[%s1 + $0x7e8] sm:$0xff]
  %v276 = vld [vmem:[%s1 + $0x7f0] sm:$0xff]
  %v277 = vld [vmem:[%s1 + $0x7f8] sm:$0xff]
  %v278 = vld [vmem:[%s1 + $0x800] sm:$0xff]
  %v279 = vld [vmem:[%s1 + $0x808] sm:$0xff]
  %v280 = vld [vmem:[%s1 + $0x810] sm:$0xff]
  %v281 = vld [vmem:[%s1 + $0x818] sm:$0xff]
  %v282 = vld [vmem:[%s1 + $0x820] sm:$0xff]
  %v283 = vld [vmem:[%s1 + $0x828] sm:$0xff]
  %v284 = vld [vmem:[%s1 + $0x830] sm:$0xff]
  %v285 = vld [vmem:[%s1 + $0x838] sm:$0xff]
  %v286 = vld [vmem:[%s1 + $0x840] sm:$0xff]
  %v287 = vld [vmem:[%s1 + $0x848] sm:$0xff]
  %v288 = vld [vmem:[%s1 + $0x850] sm:$0xff]
  %v289 = vld [vmem:[%s1 + $0x858] sm:$0xff]
  %v290 = vld [vmem:[%s1 + $0x860] sm:$0xff]
  %v291 = vld [vmem:[%s1 + $0x868] sm:$0xff]
  %v292 = vld [vmem:[%s1 + $0x870] sm:$0xff]
  %v293 = vld [vmem:[%s1 + $0x878] sm:$0xff]
  %v294 = vld [vmem:[%s1 + $0x880] sm:$0xff]
  %v295 = vld [vmem:[%s1 + $0x888] sm:$0xff]
  %v296 = vld [vmem:[%s1 + $0x890] sm:$0xff]
  %v297 = vld [vmem:[%s1 + $0x898] sm:$0xff]
  %v298 = vld [vmem:[%s1 + $0x8a0] sm:$0xff]
  %v299 = vld [vmem:[%s1 + $0x8a8] sm:$0xff]
  %v300 = vld [vmem:[%s1 + $0x8b0] sm:$0xff]
  %v301 = vld [vmem:[%s1 + $0x8b8] sm:$0xff]
  %v302 = vld [vmem:[%s1 + $0x8c0] sm:$0xff]
  %v303 = vld [vmem:[%s1 + $0x8c8] sm:$0xff]
  %v304 = vld [vmem:[%s1 + $0x8d0] sm:$0xff]
  %v305 = vld [vmem:[%s1 + $0x8d8] sm:$0xff]
  %v306 = vld [vmem:[%s1 + $0x8e0] sm:$0xff]
  %v307 = vld [vmem:[%s1 + $0x8e8] sm:$0xff]
  %v308 = vld [vmem:[%s1 + $0x8f0] sm:$0xff]
  %v309 = vld [vmem:[%s1 + $0x8f8] sm:$0xff]
  %v319 = vunpack.c.l.b16 %v13
  %v320 = vunpack.c.h.b16 %v13
  %v321 = vunpack.c.l.b16 %v14
  %v322 = vunpack.c.h.b16 %v14
  %v323 = vunpack.c.l.b16 %v15
  %v324 = vunpack.c.h.b16 %v15
  %v325 = vunpack.c.l.b16 %v16
  %v326 = vunpack.c.h.b16 %v16
  %v327 = vunpack.c.l.b16 %v17
  %v328 = vunpack.c.h.b16 %v17
  %v329 = vunpack.c.l.b16 %v18
  %v330 = vunpack.c.h.b16 %v18
  %v331 = vunpack.c.l.b16 %v19
  %v332 = vunpack.c.h.b16 %v19
  %v333 = vunpack.c.l.b16 %v20
  %v334 = vunpack.c.h.b16 %v20
  %v335 = vunpack.c.l.b16 %v21
  %v336 = vunpack.c.h.b16 %v21
  %v337 = vpack.c.b16 %v319, %v319
  %v338 = vpack.c.b16 %v320, %v320
  %v339 = vpack.c.b16 %v321, %v321
  %v340 = vpack.c.b16 %v322, %v322
  %v341 = vpack.c.b16 %v323, %v323
  %v342 = vpack.c.b16 %v324, %v324
  %v343 = vpack.c.b16 %v325, %v325
  %v344 = vpack.c.b16 %v326, %v326
  %v345 = vpack.c.b16 %v327, %v327
  %v346 = vpack.c.b16 %v328, %v328
  %v347 = vpack.c.b16 %v329, %v329
  %v348 = vpack.c.b16 %v330, %v330
  %v349 = vpack.c.b16 %v331, %v331
  %v350 = vpack.c.b16 %v332, %v332
  %v351 = vpack.c.b16 %v333, %v333
  %v352 = vpack.c.b16 %v334, %v334
  %v353 = vpack.c.b16 %v335, %v335
  %v354 = vpack.c.b16 %v336, %v336
  %v661 = vunpack.c.l.b16 %v22
  %v662 = vunpack.c.h.b16 %v22
  %v663 = vunpack.c.l.b16 %v23
  %v664 = vunpack.c.h.b16 %v23
  %v665 = vunpack.c.l.b16 %v24
  %v666 = vunpack.c.h.b16 %v24
  %v667 = vunpack.c.l.b16 %v25
  %v668 = vunpack.c.h.b16 %v25
  %v669 = vunpack.c.l.b16 %v26
  %v670 = vunpack.c.h.b16 %v26
  %v671 = vunpack.c.l.b16 %v27
  %v672 = vunpack.c.h.b16 %v27
  %v673 = vunpack.c.l.b16 %v28
  %v674 = vunpack.c.h.b16 %v28
  %v675 = vunpack.c.l.b16 %v29
  %v676 = vunpack.c.h.b16 %v29
  %v677 = vunpack.c.l.b16 %v30
  %v678 = vunpack.c.h.b16 %v30
  %v679 = vunpack.c.l.b16 %v31
  %v680 = vunpack.c.h.b16 %v31
  %v681 = vunpack.c.l.b16 %v32
  %v682 = vunpack.c.h.b16 %v32
  %v683 = vunpack.c.l.b16 %v33
  %v684 = vunpack.c.h.b16 %v33
  %v685 = vunpack.c.l.b16 %v34
  %v686 = vunpack.c.h.b16 %v34
  %v687 = vunpack.c.l.b16 %v35
  %v688 = vunpack.c.h.b16 %v35
  %v689 = vunpack.c.l.b16 %v36
  %v690 = vunpack.c.h.b16 %v36
  %v691 = vunpack.c.l.b16 %v37
  %v692 = vunpack.c.h.b16 %v37
  %v693 = vunpack.c.l.b16 %v38
  %v694 = vunpack.c.h.b16 %v38
  %v695 = vunpack.c.l.b16 %v39
  %v696 = vunpack.c.h.b16 %v39
  %v697 = vunpack.c.l.b16 %v40
  %v698 = vunpack.c.h.b16 %v40
  %v699 = vunpack.c.l.b16 %v41
  %v700 = vunpack.c.h.b16 %v41
  %v701 = vunpack.c.l.b16 %v42
  %v702 = vunpack.c.h.b16 %v42
  %v703 = vunpack.c.l.b16 %v43
  %v704 = vunpack.c.h.b16 %v43
  %v705 = vunpack.c.l.b16 %v44
  %v706 = vunpack.c.h.b16 %v44
  %v707 = vunpack.c.l.b16 %v45
  %v708 = vunpack.c.h.b16 %v45
  %v709 = vunpack.c.l.b16 %v46
  %v710 = vunpack.c.h.b16 %v46
  %v711 = vunpack.c.l.b16 %v47
  %v712 = vunpack.c.h.b16 %v47
  %v713 = vunpack.c.l.b16 %v48
  %v714 = vunpack.c.h.b16 %v48
  %v715 = vunpack.c.l.b16 %v49
  %v716 = vunpack.c.h.b16 %v49
  %v717 = vunpack.c.l.b16 %v50
  %v718 = vunpack.c.h.b16 %v50
  %v719 = vunpack.c.l.b16 %v51
  %v720 = vunpack.c.h.b16 %v51
  %v721 = vunpack.c.l.b16 %v52
  %v722 = vunpack.c.h.b16 %v52
  %v723 = vunpack.c.l.b16 %v53
  %v724 = vunpack.c.h.b16 %v53
  %v725 = vunpack.c.l.b16 %v54
  %v726 = vunpack.c.h.b16 %v54
  %v727 = vunpack.c.l.b16 %v55
  %v728 = vunpack.c.h.b16 %v55
  %v729 = vunpack.c.l.b16 %v56
  %v730 = vunpack.c.h.b16 %v56
  %v731 = vunpack.c.l.b16 %v57
  %v732 = vunpack.c.h.b16 %v57
  %v733 = vunpack.c.l.b16 %v58
  %v734 = vunpack.c.h.b16 %v58
  %v735 = vunpack.c.l.b16 %v59
  %v736 = vunpack.c.h.b16 %v59
  %v737 = vunpack.c.l.b16 %v60
  %v738 = vunpack.c.h.b16 %v60
  %v739 = vunpack.c.l.b16 %v61
  %v740 = vunpack.c.h.b16 %v61
  %v741 = vunpack.c.l.b16 %v62
  %v742 = vunpack.c.h.b16 %v62
  %v743 = vunpack.c.l.b16 %v63
  %v744 = vunpack.c.h.b16 %v63
  %v745 = vunpack.c.l.b16 %v64
  %v746 = vunpack.c.h.b16 %v64
  %v747 = vunpack.c.l.b16 %v65
  %v748 = vunpack.c.h.b16 %v65
  %v749 = vunpack.c.l.b16 %v66
  %v750 = vunpack.c.h.b16 %v66
  %v751 = vunpack.c.l.b16 %v67
  %v752 = vunpack.c.h.b16 %v67
  %v753 = vunpack.c.l.b16 %v68
  %v754 = vunpack.c.h.b16 %v68
  %v755 = vunpack.c.l.b16 %v69
  %v756 = vunpack.c.h.b16 %v69
  %v757 = vunpack.c.l.b16 %v70
  %v758 = vunpack.c.h.b16 %v70
  %v759 = vunpack.c.l.b16 %v71
  %v760 = vunpack.c.h.b16 %v71
  %v761 = vunpack.c.l.b16 %v72
  %v762 = vunpack.c.h.b16 %v72
  %v763 = vunpack.c.l.b16 %v73
  %v764 = vunpack.c.h.b16 %v73
  %v765 = vunpack.c.l.b16 %v74
  %v766 = vunpack.c.h.b16 %v74
  %v767 = vunpack.c.l.b16 %v75
  %v768 = vunpack.c.h.b16 %v75
  %v769 = vunpack.c.l.b16 %v76
  %v770 = vunpack.c.h.b16 %v76
  %v771 = vunpack.c.l.b16 %v77
  %v772 = vunpack.c.h.b16 %v77
  %v773 = vunpack.c.l.b16 %v78
  %v774 = vunpack.c.h.b16 %v78
  %v775 = vunpack.c.l.b16 %v79
  %v776 = vunpack.c.h.b16 %v79
  %v777 = vunpack.c.l.b16 %v80
  %v778 = vunpack.c.h.b16 %v80
  %v779 = vunpack.c.l.b16 %v81
  %v780 = vunpack.c.h.b16 %v81
  %v781 = vunpack.c.l.b16 %v82
  %v782 = vunpack.c.h.b16 %v82
  %v783 = vunpack.c.l.b16 %v83
  %v784 = vunpack.c.h.b16 %v83
  %v785 = vunpack.c.l.b16 %v84
  %v786 = vunpack.c.h.b16 %v84
  %v787 = vunpack.c.l.b16 %v85
  %v788 = vunpack.c.h.b16 %v85
  %v789 = vunpack.c.l.b16 %v86
  %v790 = vunpack.c.h.b16 %v86
  %v791 = vunpack.c.l.b16 %v87
  %v792 = vunpack.c.h.b16 %v87
  %v793 = vunpack.c.l.b16 %v88
  %v794 = vunpack.c.h.b16 %v88
  %v795 = vunpack.c.l.b16 %v89
  %v796 = vunpack.c.h.b16 %v89
  %v797 = vunpack.c.l.b16 %v90
  %v798 = vunpack.c.h.b16 %v90
  %v799 = vunpack.c.l.b16 %v91
  %v800 = vunpack.c.h.b16 %v91
  %v801 = vunpack.c.l.b16 %v92
  %v802 = vunpack.c.h.b16 %v92
  %v803 = vunpack.c.l.b16 %v93
  %v804 = vunpack.c.h.b16 %v93
  %v805 = vunpack.c.l.b16 %v94
  %v806 = vunpack.c.h.b16 %v94
  %v807 = vunpack.c.l.b16 %v95
  %v808 = vunpack.c.h.b16 %v95
  %v809 = vunpack.c.l.b16 %v96
  %v810 = vunpack.c.h.b16 %v96
  %v811 = vunpack.c.l.b16 %v97
  %v812 = vunpack.c.h.b16 %v97
  %v813 = vunpack.c.l.b16 %v98
  %v814 = vunpack.c.h.b16 %v98
  %v815 = vunpack.c.l.b16 %v99
  %v816 = vunpack.c.h.b16 %v99
  %v817 = vunpack.c.l.b16 %v100
  %v818 = vunpack.c.h.b16 %v100
  %v819 = vunpack.c.l.b16 %v101
  %v820 = vunpack.c.h.b16 %v101
  %v821 = vunpack.c.l.b16 %v102
  %v822 = vunpack.c.h.b16 %v102
  %v823 = vunpack.c.l.b16 %v103
  %v824 = vunpack.c.h.b16 %v103
  %v825 = vunpack.c.l.b16 %v104
  %v826 = vunpack.c.h.b16 %v104
  %v827 = vunpack.c.l.b16 %v105
  %v828 = vunpack.c.h.b16 %v105
  %v829 = vunpack.c.l.b16 %v106
  %v830 = vunpack.c.h.b16 %v106
  %v831 = vunpack.c.l.b16 %v107
  %v832 = vunpack.c.h.b16 %v107
  %v833 = vunpack.c.l.b16 %v108
  %v834 = vunpack.c.h.b16 %v108
  %v835 = vunpack.c.l.b16 %v109
  %v836 = vunpack.c.h.b16 %v109
  %v837 = vunpack.c.l.b16 %v110
  %v838 = vunpack.c.h.b16 %v110
  %v839 = vunpack.c.l.b16 %v111
  %v840 = vunpack.c.h.b16 %v111
  %v841 = vunpack.c.l.b16 %v112
  %v842 = vunpack.c.h.b16 %v112
  %v843 = vunpack.c.l.b16 %v113
  %v844 = vunpack.c.h.b16 %v113
  %v845 = vunpack.c.l.b16 %v114
  %v846 = vunpack.c.h.b16 %v114
  %v847 = vunpack.c.l.b16 %v115
  %v848 = vunpack.c.h.b16 %v115
  %v849 = vunpack.c.l.b16 %v116
  %v850 = vunpack.c.h.b16 %v116
  %v851 = vunpack.c.l.b16 %v117
  %v852 = vunpack.c.h.b16 %v117
  %v853 = vunpack.c.l.b16 %v118
  %v854 = vunpack.c.h.b16 %v118
  %v855 = vunpack.c.l.b16 %v119
  %v856 = vunpack.c.h.b16 %v119
  %v857 = vunpack.c.l.b16 %v120
  %v858 = vunpack.c.h.b16 %v120
  %v859 = vunpack.c.l.b16 %v121
  %v860 = vunpack.c.h.b16 %v121
  %v861 = vunpack.c.l.b16 %v122
  %v862 = vunpack.c.h.b16 %v122
  %v863 = vunpack.c.l.b16 %v123
  %v864 = vunpack.c.h.b16 %v123
  %v865 = vunpack.c.l.b16 %v124
  %v866 = vunpack.c.h.b16 %v124
  %v867 = vunpack.c.l.b16 %v125
  %v868 = vunpack.c.h.b16 %v125
  %v869 = vunpack.c.l.b16 %v126
  %v870 = vunpack.c.h.b16 %v126
  %v871 = vunpack.c.l.b16 %v127
  %v872 = vunpack.c.h.b16 %v127
  %v873 = vunpack.c.l.b16 %v128
  %v874 = vunpack.c.h.b16 %v128
  %v875 = vunpack.c.l.b16 %v129
  %v876 = vunpack.c.h.b16 %v129
  %v877 = vunpack.c.l.b16 %v130
  %v878 = vunpack.c.h.b16 %v130
  %v879 = vunpack.c.l.b16 %v131
  %v880 = vunpack.c.h.b16 %v131
  %v881 = vunpack.c.l.b16 %v132
  %v882 = vunpack.c.h.b16 %v132
  %v883 = vunpack.c.l.b16 %v133
  %v884 = vunpack.c.h.b16 %v133
  %v885 = vunpack.c.l.b16 %v134
  %v886 = vunpack.c.h.b16 %v134
  %v887 = vunpack.c.l.b16 %v135
  %v888 = vunpack.c.h.b16 %v135
  %v889 = vunpack.c.l.b16 %v136
  %v890 = vunpack.c.h.b16 %v136
  %v891 = vunpack.c.l.b16 %v137
  %v892 = vunpack.c.h.b16 %v137
  %v893 = vunpack.c.l.b16 %v138
  %v894 = vunpack.c.h.b16 %v138
  %v895 = vunpack.c.l.b16 %v139
  %v896 = vunpack.c.h.b16 %v139
  %v897 = vunpack.c.l.b16 %v140
  %v898 = vunpack.c.h.b16 %v140
  %v899 = vunpack.c.l.b16 %v141
  %v900 = vunpack.c.h.b16 %v141
  %v901 = vunpack.c.l.b16 %v142
  %v902 = vunpack.c.h.b16 %v142
  %v903 = vunpack.c.l.b16 %v143
  %v904 = vunpack.c.h.b16 %v143
  %v905 = vunpack.c.l.b16 %v144
  %v906 = vunpack.c.h.b16 %v144
  %v907 = vunpack.c.l.b16 %v145
  %v908 = vunpack.c.h.b16 %v145
  %v909 = vunpack.c.l.b16 %v146
  %v910 = vunpack.c.h.b16 %v146
  %v911 = vunpack.c.l.b16 %v147
  %v912 = vunpack.c.h.b16 %v147
  %v913 = vunpack.c.l.b16 %v148
  %v914 = vunpack.c.h.b16 %v148
  %v915 = vunpack.c.l.b16 %v149
  %v916 = vunpack.c.h.b16 %v149
  %v917 = vunpack.c.l.b16 %v150
  %v918 = vunpack.c.h.b16 %v150
  %v919 = vunpack.c.l.b16 %v151
  %v920 = vunpack.c.h.b16 %v151
  %v921 = vunpack.c.l.b16 %v152
  %v922 = vunpack.c.h.b16 %v152
  %v923 = vunpack.c.l.b16 %v153
  %v924 = vunpack.c.h.b16 %v153
  %v925 = vunpack.c.l.b16 %v154
  %v926 = vunpack.c.h.b16 %v154
  %v927 = vunpack.c.l.b16 %v155
  %v928 = vunpack.c.h.b16 %v155
  %v929 = vunpack.c.l.b16 %v156
  %v930 = vunpack.c.h.b16 %v156
  %v931 = vunpack.c.l.b16 %v157
  %v932 = vunpack.c.h.b16 %v157
  %v933 = vunpack.c.l.b16 %v158
  %v934 = vunpack.c.h.b16 %v158
  %v935 = vunpack.c.l.b16 %v159
  %v936 = vunpack.c.h.b16 %v159
  %v937 = vunpack.c.l.b16 %v160
  %v938 = vunpack.c.h.b16 %v160
  %v939 = vunpack.c.l.b16 %v161
  %v940 = vunpack.c.h.b16 %v161
  %v941 = vunpack.c.l.b16 %v162
  %v942 = vunpack.c.h.b16 %v162
  %v943 = vunpack.c.l.b16 %v163
  %v944 = vunpack.c.h.b16 %v163
  %v945 = vunpack.c.l.b16 %v164
  %v946 = vunpack.c.h.b16 %v164
  %v947 = vunpack.c.l.b16 %v165
  %v948 = vunpack.c.h.b16 %v165
  %v949 = vunpack.c.l.b16 %v166
  %v950 = vunpack.c.h.b16 %v166
  %v951 = vunpack.c.l.b16 %v167
  %v952 = vunpack.c.h.b16 %v167
  %v953 = vunpack.c.l.b16 %v168
  %v954 = vunpack.c.h.b16 %v168
  %v955 = vunpack.c.l.b16 %v169
  %v956 = vunpack.c.h.b16 %v169
  %v957 = vunpack.c.l.b16 %v170
  %v958 = vunpack.c.h.b16 %v170
  %v959 = vunpack.c.l.b16 %v171
  %v960 = vunpack.c.h.b16 %v171
  %v961 = vunpack.c.l.b16 %v172
  %v962 = vunpack.c.h.b16 %v172
  %v963 = vunpack.c.l.b16 %v173
  %v964 = vunpack.c.h.b16 %v173
  %v965 = vunpack.c.l.b16 %v174
  %v966 = vunpack.c.h.b16 %v174
  %v967 = vunpack.c.l.b16 %v175
  %v968 = vunpack.c.h.b16 %v175
  %v969 = vunpack.c.l.b16 %v176
  %v970 = vunpack.c.h.b16 %v176
  %v971 = vunpack.c.l.b16 %v177
  %v972 = vunpack.c.h.b16 %v177
  %v973 = vunpack.c.l.b16 %v178
  %v974 = vunpack.c.h.b16 %v178
  %v975 = vunpack.c.l.b16 %v179
  %v976 = vunpack.c.h.b16 %v179
  %v977 = vunpack.c.l.b16 %v180
  %v978 = vunpack.c.h.b16 %v180
  %v979 = vunpack.c.l.b16 %v181
  %v980 = vunpack.c.h.b16 %v181
  %v981 = vunpack.c.l.b16 %v182
  %v982 = vunpack.c.h.b16 %v182
  %v983 = vunpack.c.l.b16 %v183
  %v984 = vunpack.c.h.b16 %v183
  %v985 = vunpack.c.l.b16 %v184
  %v986 = vunpack.c.h.b16 %v184
  %v987 = vunpack.c.l.b16 %v185
  %v988 = vunpack.c.h.b16 %v185
  %v989 = vunpack.c.l.b16 %v186
  %v990 = vunpack.c.h.b16 %v186
  %v991 = vunpack.c.l.b16 %v187
  %v992 = vunpack.c.h.b16 %v187
  %v993 = vunpack.c.l.b16 %v188
  %v994 = vunpack.c.h.b16 %v188
  %v995 = vunpack.c.l.b16 %v189
  %v996 = vunpack.c.h.b16 %v189
  %v997 = vunpack.c.l.b16 %v190
  %v998 = vunpack.c.h.b16 %v190
  %v999 = vunpack.c.l.b16 %v191
  %v1000 = vunpack.c.h.b16 %v191
  %v1001 = vunpack.c.l.b16 %v192
  %v1002 = vunpack.c.h.b16 %v192
  %v1003 = vunpack.c.l.b16 %v193
  %v1004 = vunpack.c.h.b16 %v193
  %v1005 = vunpack.c.l.b16 %v194
  %v1006 = vunpack.c.h.b16 %v194
  %v1007 = vunpack.c.l.b16 %v195
  %v1008 = vunpack.c.h.b16 %v195
  %v1009 = vunpack.c.l.b16 %v196
  %v1010 = vunpack.c.h.b16 %v196
  %v1011 = vunpack.c.l.b16 %v197
  %v1012 = vunpack.c.h.b16 %v197
  %v1013 = vunpack.c.l.b16 %v198
  %v1014 = vunpack.c.h.b16 %v198
  %v1015 = vunpack.c.l.b16 %v199
  %v1016 = vunpack.c.h.b16 %v199
  %v1017 = vunpack.c.l.b16 %v200
  %v1018 = vunpack.c.h.b16 %v200
  %v1019 = vunpack.c.l.b16 %v201
  %v1020 = vunpack.c.h.b16 %v201
  %v1021 = vunpack.c.l.b16 %v202
  %v1022 = vunpack.c.h.b16 %v202
  %v1023 = vunpack.c.l.b16 %v203
  %v1024 = vunpack.c.h.b16 %v203
  %v1025 = vunpack.c.l.b16 %v204
  %v1026 = vunpack.c.h.b16 %v204
  %v1027 = vunpack.c.l.b16 %v205
  %v1028 = vunpack.c.h.b16 %v205
  %v1029 = vunpack.c.l.b16 %v206
  %v1030 = vunpack.c.h.b16 %v206
  %v1031 = vunpack.c.l.b16 %v207
  %v1032 = vunpack.c.h.b16 %v207
  %v1033 = vunpack.c.l.b16 %v208
  %v1034 = vunpack.c.h.b16 %v208
  %v1035 = vunpack.c.l.b16 %v209
  %v1036 = vunpack.c.h.b16 %v209
  %v1037 = vunpack.c.l.b16 %v210
  %v1038 = vunpack.c.h.b16 %v210
  %v1039 = vunpack.c.l.b16 %v211
  %v1040 = vunpack.c.h.b16 %v211
  %v1041 = vunpack.c.l.b16 %v212
  %v1042 = vunpack.c.h.b16 %v212
  %v1043 = vunpack.c.l.b16 %v213
  %v1044 = vunpack.c.h.b16 %v213
  %v1045 = vunpack.c.l.b16 %v214
  %v1046 = vunpack.c.h.b16 %v214
  %v1047 = vunpack.c.l.b16 %v215
  %v1048 = vunpack.c.h.b16 %v215
  %v1049 = vunpack.c.l.b16 %v216
  %v1050 = vunpack.c.h.b16 %v216
  %v1051 = vunpack.c.l.b16 %v217
  %v1052 = vunpack.c.h.b16 %v217
  %v1053 = vunpack.c.l.b16 %v218
  %v1054 = vunpack.c.h.b16 %v218
  %v1055 = vunpack.c.l.b16 %v219
  %v1056 = vunpack.c.h.b16 %v219
  %v1057 = vunpack.c.l.b16 %v220
  %v1058 = vunpack.c.h.b16 %v220
  %v1059 = vunpack.c.l.b16 %v221
  %v1060 = vunpack.c.h.b16 %v221
  %v1061 = vunpack.c.l.b16 %v222
  %v1062 = vunpack.c.h.b16 %v222
  %v1063 = vunpack.c.l.b16 %v223
  %v1064 = vunpack.c.h.b16 %v223
  %v1065 = vunpack.c.l.b16 %v224
  %v1066 = vunpack.c.h.b16 %v224
  %v1067 = vunpack.c.l.b16 %v225
  %v1068 = vunpack.c.h.b16 %v225
  %v1069 = vunpack.c.l.b16 %v226
  %v1070 = vunpack.c.h.b16 %v226
  %v1071 = vunpack.c.l.b16 %v227
  %v1072 = vunpack.c.h.b16 %v227
  %v1073 = vunpack.c.l.b16 %v228
  %v1074 = vunpack.c.h.b16 %v228
  %v1075 = vunpack.c.l.b16 %v229
  %v1076 = vunpack.c.h.b16 %v229
  %v1077 = vunpack.c.l.b16 %v230
  %v1078 = vunpack.c.h.b16 %v230
  %v1079 = vunpack.c.l.b16 %v231
  %v1080 = vunpack.c.h.b16 %v231
  %v1081 = vunpack.c.l.b16 %v232
  %v1082 = vunpack.c.h.b16 %v232
  %v1083 = vunpack.c.l.b16 %v233
  %v1084 = vunpack.c.h.b16 %v233
  %v1085 = vunpack.c.l.b16 %v234
  %v1086 = vunpack.c.h.b16 %v234
  %v1087 = vunpack.c.l.b16 %v235
  %v1088 = vunpack.c.h.b16 %v235
  %v1089 = vunpack.c.l.b16 %v236
  %v1090 = vunpack.c.h.b16 %v236
  %v1091 = vunpack.c.l.b16 %v237
  %v1092 = vunpack.c.h.b16 %v237
  %v1093 = vunpack.c.l.b16 %v238
  %v1094 = vunpack.c.h.b16 %v238
  %v1095 = vunpack.c.l.b16 %v239
  %v1096 = vunpack.c.h.b16 %v239
  %v1097 = vunpack.c.l.b16 %v240
  %v1098 = vunpack.c.h.b16 %v240
  %v1099 = vunpack.c.l.b16 %v241
  %v1100 = vunpack.c.h.b16 %v241
  %v1101 = vunpack.c.l.b16 %v242
  %v1102 = vunpack.c.h.b16 %v242
  %v1103 = vunpack.c.l.b16 %v243
  %v1104 = vunpack.c.h.b16 %v243
  %v1105 = vunpack.c.l.b16 %v244
  %v1106 = vunpack.c.h.b16 %v244
  %v1107 = vunpack.c.l.b16 %v245
  %v1108 = vunpack.c.h.b16 %v245
  %v1109 = vunpack.c.l.b16 %v246
  %v1110 = vunpack.c.h.b16 %v246
  %v1111 = vunpack.c.l.b16 %v247
  %v1112 = vunpack.c.h.b16 %v247
  %v1113 = vunpack.c.l.b16 %v248
  %v1114 = vunpack.c.h.b16 %v248
  %v1115 = vunpack.c.l.b16 %v249
  %v1116 = vunpack.c.h.b16 %v249
  %v1117 = vunpack.c.l.b16 %v250
  %v1118 = vunpack.c.h.b16 %v250
  %v1119 = vunpack.c.l.b16 %v251
  %v1120 = vunpack.c.h.b16 %v251
  %v1121 = vunpack.c.l.b16 %v252
  %v1122 = vunpack.c.h.b16 %v252
  %v1123 = vunpack.c.l.b16 %v253
  %v1124 = vunpack.c.h.b16 %v253
  %v1125 = vunpack.c.l.b16 %v254
  %v1126 = vunpack.c.h.b16 %v254
  %v1127 = vunpack.c.l.b16 %v255
  %v1128 = vunpack.c.h.b16 %v255
  %v1129 = vunpack.c.l.b16 %v256
  %v1130 = vunpack.c.h.b16 %v256
  %v1131 = vunpack.c.l.b16 %v257
  %v1132 = vunpack.c.h.b16 %v257
  %v1133 = vunpack.c.l.b16 %v258
  %v1134 = vunpack.c.h.b16 %v258
  %v1135 = vunpack.c.l.b16 %v259
  %v1136 = vunpack.c.h.b16 %v259
  %v1137 = vunpack.c.l.b16 %v260
  %v1138 = vunpack.c.h.b16 %v260
  %v1139 = vunpack.c.l.b16 %v261
  %v1140 = vunpack.c.h.b16 %v261
  %v1141 = vunpack.c.l.b16 %v262
  %v1142 = vunpack.c.h.b16 %v262
  %v1143 = vunpack.c.l.b16 %v263
  %v1144 = vunpack.c.h.b16 %v263
  %v1145 = vunpack.c.l.b16 %v264
  %v1146 = vunpack.c.h.b16 %v264
  %v1147 = vunpack.c.l.b16 %v265
  %v1148 = vunpack.c.h.b16 %v265
  %v1149 = vunpack.c.l.b16 %v266
  %v1150 = vunpack.c.h.b16 %v266
  %v1151 = vunpack.c.l.b16 %v267
  %v1152 = vunpack.c.h.b16 %v267
  %v1153 = vunpack.c.l.b16 %v268
  %v1154 = vunpack.c.h.b16 %v268
  %v1155 = vunpack.c.l.b16 %v269
  %v1156 = vunpack.c.h.b16 %v269
  %v1157 = vunpack.c.l.b16 %v270
  %v1158 = vunpack.c.h.b16 %v270
  %v1159 = vunpack.c.l.b16 %v271
  %v1160 = vunpack.c.h.b16 %v271
  %v1161 = vunpack.c.l.b16 %v272
  %v1162 = vunpack.c.h.b16 %v272
  %v1163 = vunpack.c.l.b16 %v273
  %v1164 = vunpack.c.h.b16 %v273
  %v1165 = vunpack.c.l.b16 %v274
  %v1166 = vunpack.c.h.b16 %v274
  %v1167 = vunpack.c.l.b16 %v275
  %v1168 = vunpack.c.h.b16 %v275
  %v1169 = vunpack.c.l.b16 %v276
  %v1170 = vunpack.c.h.b16 %v276
  %v1171 = vunpack.c.l.b16 %v277
  %v1172 = vunpack.c.h.b16 %v277
  %v1173 = vunpack.c.l.b16 %v278
  %v1174 = vunpack.c.h.b16 %v278
  %v1175 = vunpack.c.l.b16 %v279
  %v1176 = vunpack.c.h.b16 %v279
  %v1177 = vunpack.c.l.b16 %v280
  %v1178 = vunpack.c.h.b16 %v280
  %v1179 = vunpack.c.l.b16 %v281
  %v1180 = vunpack.c.h.b16 %v281
  %v1181 = vunpack.c.l.b16 %v282
  %v1182 = vunpack.c.h.b16 %v282
  %v1183 = vunpack.c.l.b16 %v283
  %v1184 = vunpack.c.h.b16 %v283
  %v1185 = vunpack.c.l.b16 %v284
  %v1186 = vunpack.c.h.b16 %v284
  %v1187 = vunpack.c.l.b16 %v285
  %v1188 = vunpack.c.h.b16 %v285
  %v1189 = vunpack.c.l.b16 %v286
  %v1190 = vunpack.c.h.b16 %v286
  %v1191 = vunpack.c.l.b16 %v287
  %v1192 = vunpack.c.h.b16 %v287
  %v1193 = vunpack.c.l.b16 %v288
  %v1194 = vunpack.c.h.b16 %v288
  %v1195 = vunpack.c.l.b16 %v289
  %v1196 = vunpack.c.h.b16 %v289
  %v1197 = vunpack.c.l.b16 %v290
  %v1198 = vunpack.c.h.b16 %v290
  %v1199 = vunpack.c.l.b16 %v291
  %v1200 = vunpack.c.h.b16 %v291
  %v1201 = vunpack.c.l.b16 %v292
  %v1202 = vunpack.c.h.b16 %v292
  %v1203 = vunpack.c.l.b16 %v293
  %v1204 = vunpack.c.h.b16 %v293
  %v1205 = vunpack.c.l.b16 %v294
  %v1206 = vunpack.c.h.b16 %v294
  %v1207 = vunpack.c.l.b16 %v295
  %v1208 = vunpack.c.h.b16 %v295
  %v1209 = vunpack.c.l.b16 %v296
  %v1210 = vunpack.c.h.b16 %v296
  %v1211 = vunpack.c.l.b16 %v297
  %v1212 = vunpack.c.h.b16 %v297
  %v1213 = vunpack.c.l.b16 %v298
  %v1214 = vunpack.c.h.b16 %v298
  %v1215 = vunpack.c.l.b16 %v299
  %v1216 = vunpack.c.h.b16 %v299
  %v1217 = vunpack.c.l.b16 %v300
  %v1218 = vunpack.c.h.b16 %v300
  %v1219 = vunpack.c.l.b16 %v301
  %v1220 = vunpack.c.h.b16 %v301
  %v1221 = vunpack.c.l.b16 %v302
  %v1222 = vunpack.c.h.b16 %v302
  %v1223 = vunpack.c.l.b16 %v303
  %v1224 = vunpack.c.h.b16 %v303
  %v1225 = vunpack.c.l.b16 %v304
  %v1226 = vunpack.c.h.b16 %v304
  %v1227 = vunpack.c.l.b16 %v305
  %v1228 = vunpack.c.h.b16 %v305
  %v1229 = vunpack.c.l.b16 %v306
  %v1230 = vunpack.c.h.b16 %v306
  %v1231 = vunpack.c.l.b16 %v307
  %v1232 = vunpack.c.h.b16 %v307
  %v1233 = vunpack.c.l.b16 %v308
  %v1234 = vunpack.c.h.b16 %v308
  %v1235 = vunpack.c.l.b16 %v309
  %v1236 = vunpack.c.h.b16 %v309
  %v1237 = vpack.c.b16 %v663, %v661
  %v1238 = vpack.c.b16 %v664, %v662
  %v1239 = vpack.c.b16 %v667, %v665
  %v1240 = vpack.c.b16 %v668, %v666
  %v1241 = vpack.c.b16 %v671, %v669
  %v1242 = vpack.c.b16 %v672, %v670
  %v1243 = vpack.c.b16 %v675, %v673
  %v1244 = vpack.c.b16 %v676, %v674
  %v1245 = vpack.c.b16 %v679, %v677
  %v1246 = vpack.c.b16 %v680, %v678
  %v1247 = vpack.c.b16 %v683, %v681
  %v1248 = vpack.c.b16 %v684, %v682
  %v1249 = vpack.c.b16 %v687, %v685
  %v1250 = vpack.c.b16 %v688, %v686
  %v1251 = vpack.c.b16 %v691, %v689
  %v1252 = vpack.c.b16 %v692, %v690
  %v1253 = vpack.c.b16 %v695, %v693
  %v1254 = vpack.c.b16 %v696, %v694
  %v1255 = vpack.c.b16 %v699, %v697
  %v1256 = vpack.c.b16 %v700, %v698
  %v1257 = vpack.c.b16 %v703, %v701
  %v1258 = vpack.c.b16 %v704, %v702
  %v1259 = vpack.c.b16 %v707, %v705
  %v1260 = vpack.c.b16 %v708, %v706
  %v1261 = vpack.c.b16 %v711, %v709
  %v1262 = vpack.c.b16 %v712, %v710
  %v1263 = vpack.c.b16 %v715, %v713
  %v1264 = vpack.c.b16 %v716, %v714
  %v1265 = vpack.c.b16 %v719, %v717
  %v1266 = vpack.c.b16 %v720, %v718
  %v1267 = vpack.c.b16 %v723, %v721
  %v1268 = vpack.c.b16 %v724, %v722
  %v1269 = vpack.c.b16 %v727, %v725
  %v1270 = vpack.c.b16 %v728, %v726
  %v1271 = vpack.c.b16 %v731, %v729
  %v1272 = vpack.c.b16 %v732, %v730
  %v1273 = vpack.c.b16 %v735, %v733
  %v1274 = vpack.c.b16 %v736, %v734
  %v1275 = vpack.c.b16 %v739, %v737
  %v1276 = vpack.c.b16 %v740, %v738
  %v1277 = vpack.c.b16 %v743, %v741
  %v1278 = vpack.c.b16 %v744, %v742
  %v1279 = vpack.c.b16 %v747, %v745
  %v1280 = vpack.c.b16 %v748, %v746
  %v1281 = vpack.c.b16 %v751, %v749
  %v1282 = vpack.c.b16 %v752, %v750
  %v1283 = vpack.c.b16 %v755, %v753
  %v1284 = vpack.c.b16 %v756, %v754
  %v1285 = vpack.c.b16 %v759, %v757
  %v1286 = vpack.c.b16 %v760, %v758
  %v1287 = vpack.c.b16 %v763, %v761
  %v1288 = vpack.c.b16 %v764, %v762
  %v1289 = vpack.c.b16 %v767, %v765
  %v1290 = vpack.c.b16 %v768, %v766
  %v1291 = vpack.c.b16 %v771, %v769
  %v1292 = vpack.c.b16 %v772, %v770
  %v1293 = vpack.c.b16 %v775, %v773
  %v1294 = vpack.c.b16 %v776, %v774
  %v1295 = vpack.c.b16 %v779, %v777
  %v1296 = vpack.c.b16 %v780, %v778
  %v1297 = vpack.c.b16 %v783, %v781
  %v1298 = vpack.c.b16 %v784, %v782
  %v1299 = vpack.c.b16 %v787, %v785
  %v1300 = vpack.c.b16 %v788, %v786
  %v1301 = vpack.c.b16 %v791, %v789
  %v1302 = vpack.c.b16 %v792, %v790
  %v1303 = vpack.c.b16 %v795, %v793
  %v1304 = vpack.c.b16 %v796, %v794
  %v1305 = vpack.c.b16 %v799, %v797
  %v1306 = vpack.c.b16 %v800, %v798
  %v1307 = vpack.c.b16 %v803, %v801
  %v1308 = vpack.c.b16 %v804, %v802
  %v1309 = vpack.c.b16 %v807, %v805
  %v1310 = vpack.c.b16 %v808, %v806
  %v1311 = vpack.c.b16 %v811, %v809
  %v1312 = vpack.c.b16 %v812, %v810
  %v1313 = vpack.c.b16 %v815, %v813
  %v1314 = vpack.c.b16 %v816, %v814
  %v1315 = vpack.c.b16 %v819, %v817
  %v1316 = vpack.c.b16 %v820, %v818
  %v1317 = vpack.c.b16 %v823, %v821
  %v1318 = vpack.c.b16 %v824, %v822
  %v1319 = vpack.c.b16 %v827, %v825
  %v1320 = vpack.c.b16 %v828, %v826
  %v1321 = vpack.c.b16 %v831, %v829
  %v1322 = vpack.c.b16 %v832, %v830
  %v1323 = vpack.c.b16 %v835, %v833
  %v1324 = vpack.c.b16 %v836, %v834
  %v1325 = vpack.c.b16 %v839, %v837
  %v1326 = vpack.c.b16 %v840, %v838
  %v1327 = vpack.c.b16 %v843, %v841
  %v1328 = vpack.c.b16 %v844, %v842
  %v1329 = vpack.c.b16 %v847, %v845
  %v1330 = vpack.c.b16 %v848, %v846
  %v1331 = vpack.c.b16 %v851, %v849
  %v1332 = vpack.c.b16 %v852, %v850
  %v1333 = vpack.c.b16 %v855, %v853
  %v1334 = vpack.c.b16 %v856, %v854
  %v1335 = vpack.c.b16 %v859, %v857
  %v1336 = vpack.c.b16 %v860, %v858
  %v1337 = vpack.c.b16 %v863, %v861
  %v1338 = vpack.c.b16 %v864, %v862
  %v1339 = vpack.c.b16 %v867, %v865
  %v1340 = vpack.c.b16 %v868, %v866
  %v1341 = vpack.c.b16 %v871, %v869
  %v1342 = vpack.c.b16 %v872, %v870
  %v1343 = vpack.c.b16 %v875, %v873
  %v1344 = vpack.c.b16 %v876, %v874
  %v1345 = vpack.c.b16 %v879, %v877
  %v1346 = vpack.c.b16 %v880, %v878
  %v1347 = vpack.c.b16 %v883, %v881
  %v1348 = vpack.c.b16 %v884, %v882
  %v1349 = vpack.c.b16 %v887, %v885
  %v1350 = vpack.c.b16 %v888, %v886
  %v1351 = vpack.c.b16 %v891, %v889
  %v1352 = vpack.c.b16 %v892, %v890
  %v1353 = vpack.c.b16 %v895, %v893
  %v1354 = vpack.c.b16 %v896, %v894
  %v1355 = vpack.c.b16 %v899, %v897
  %v1356 = vpack.c.b16 %v900, %v898
  %v1357 = vpack.c.b16 %v903, %v901
  %v1358 = vpack.c.b16 %v904, %v902
  %v1359 = vpack.c.b16 %v907, %v905
  %v1360 = vpack.c.b16 %v908, %v906
  %v1361 = vpack.c.b16 %v911, %v909
  %v1362 = vpack.c.b16 %v912, %v910
  %v1363 = vpack.c.b16 %v915, %v913
  %v1364 = vpack.c.b16 %v916, %v914
  %v1365 = vpack.c.b16 %v919, %v917
  %v1366 = vpack.c.b16 %v920, %v918
  %v1367 = vpack.c.b16 %v923, %v921
  %v1368 = vpack.c.b16 %v924, %v922
  %v1369 = vpack.c.b16 %v927, %v925
  %v1370 = vpack.c.b16 %v928, %v926
  %v1371 = vpack.c.b16 %v931, %v929
  %v1372 = vpack.c.b16 %v932, %v930
  %v1373 = vpack.c.b16 %v935, %v933
  %v1374 = vpack.c.b16 %v936, %v934
  %v1375 = vpack.c.b16 %v939, %v937
  %v1376 = vpack.c.b16 %v940, %v938
  %v1377 = vpack.c.b16 %v943, %v941
  %v1378 = vpack.c.b16 %v944, %v942
  %v1379 = vpack.c.b16 %v947, %v945
  %v1380 = vpack.c.b16 %v948, %v946
  %v1381 = vpack.c.b16 %v951, %v949
  %v1382 = vpack.c.b16 %v952, %v950
  %v1383 = vpack.c.b16 %v955, %v953
  %v1384 = vpack.c.b16 %v956, %v954
  %v1385 = vpack.c.b16 %v959, %v957
  %v1386 = vpack.c.b16 %v960, %v958
  %v1387 = vpack.c.b16 %v963, %v961
  %v1388 = vpack.c.b16 %v964, %v962
  %v1389 = vpack.c.b16 %v967, %v965
  %v1390 = vpack.c.b16 %v968, %v966
  %v1391 = vpack.c.b16 %v971, %v969
  %v1392 = vpack.c.b16 %v972, %v970
  %v1393 = vpack.c.b16 %v975, %v973
  %v1394 = vpack.c.b16 %v976, %v974
  %v1395 = vpack.c.b16 %v979, %v977
  %v1396 = vpack.c.b16 %v980, %v978
  %v1397 = vpack.c.b16 %v983, %v981
  %v1398 = vpack.c.b16 %v984, %v982
  %v1399 = vpack.c.b16 %v987, %v985
  %v1400 = vpack.c.b16 %v988, %v986
  %v1401 = vpack.c.b16 %v991, %v989
  %v1402 = vpack.c.b16 %v992, %v990
  %v1403 = vpack.c.b16 %v995, %v993
  %v1404 = vpack.c.b16 %v996, %v994
  %v1405 = vpack.c.b16 %v999, %v997
  %v1406 = vpack.c.b16 %v1000, %v998
  %v1407 = vpack.c.b16 %v1003, %v1001
  %v1408 = vpack.c.b16 %v1004, %v1002
  %v1409 = vpack.c.b16 %v1007, %v1005
  %v1410 = vpack.c.b16 %v1008, %v1006
  %v1411 = vpack.c.b16 %v1011, %v1009
  %v1412 = vpack.c.b16 %v1012, %v1010
  %v1413 = vpack.c.b16 %v1015, %v1013
  %v1414 = vpack.c.b16 %v1016, %v1014
  %v1415 = vpack.c.b16 %v1019, %v1017
  %v1416 = vpack.c.b16 %v1020, %v1018
  %v1417 = vpack.c.b16 %v1023, %v1021
  %v1418 = vpack.c.b16 %v1024, %v1022
  %v1419 = vpack.c.b16 %v1027, %v1025
  %v1420 = vpack.c.b16 %v1028, %v1026
  %v1421 = vpack.c.b16 %v1031, %v1029
  %v1422 = vpack.c.b16 %v1032, %v1030
  %v1423 = vpack.c.b16 %v1035, %v1033
  %v1424 = vpack.c.b16 %v1036, %v1034
  %v1425 = vpack.c.b16 %v1039, %v1037
  %v1426 = vpack.c.b16 %v1040, %v1038
  %v1427 = vpack.c.b16 %v1043, %v1041
  %v1428 = vpack.c.b16 %v1044, %v1042
  %v1429 = vpack.c.b16 %v1047, %v1045
  %v1430 = vpack.c.b16 %v1048, %v1046
  %v1431 = vpack.c.b16 %v1051, %v1049
  %v1432 = vpack.c.b16 %v1052, %v1050
  %v1433 = vpack.c.b16 %v1055, %v1053
  %v1434 = vpack.c.b16 %v1056, %v1054
  %v1435 = vpack.c.b16 %v1059, %v1057
  %v1436 = vpack.c.b16 %v1060, %v1058
  %v1437 = vpack.c.b16 %v1063, %v1061
  %v1438 = vpack.c.b16 %v1064, %v1062
  %v1439 = vpack.c.b16 %v1067, %v1065
  %v1440 = vpack.c.b16 %v1068, %v1066
  %v1441 = vpack.c.b16 %v1071, %v1069
  %v1442 = vpack.c.b16 %v1072, %v1070
  %v1443 = vpack.c.b16 %v1075, %v1073
  %v1444 = vpack.c.b16 %v1076, %v1074
  %v1445 = vpack.c.b16 %v1079, %v1077
  %v1446 = vpack.c.b16 %v1080, %v1078
  %v1447 = vpack.c.b16 %v1083, %v1081
  %v1448 = vpack.c.b16 %v1084, %v1082
  %v1449 = vpack.c.b16 %v1087, %v1085
  %v1450 = vpack.c.b16 %v1088, %v1086
  %v1451 = vpack.c.b16 %v1091, %v1089
  %v1452 = vpack.c.b16 %v1092, %v1090
  %v1453 = vpack.c.b16 %v1095, %v1093
  %v1454 = vpack.c.b16 %v1096, %v1094
  %v1455 = vpack.c.b16 %v1099, %v1097
  %v1456 = vpack.c.b16 %v1100, %v1098
  %v1457 = vpack.c.b16 %v1103, %v1101
  %v1458 = vpack.c.b16 %v1104, %v1102
  %v1459 = vpack.c.b16 %v1107, %v1105
  %v1460 = vpack.c.b16 %v1108, %v1106
  %v1461 = vpack.c.b16 %v1111, %v1109
  %v1462 = vpack.c.b16 %v1112, %v1110
  %v1463 = vpack.c.b16 %v1115, %v1113
  %v1464 = vpack.c.b16 %v1116, %v1114
  %v1465 = vpack.c.b16 %v1119, %v1117
  %v1466 = vpack.c.b16 %v1120, %v1118
  %v1467 = vpack.c.b16 %v1123, %v1121
  %v1468 = vpack.c.b16 %v1124, %v1122
  %v1469 = vpack.c.b16 %v1127, %v1125
  %v1470 = vpack.c.b16 %v1128, %v1126
  %v1471 = vpack.c.b16 %v1131, %v1129
  %v1472 = vpack.c.b16 %v1132, %v1130
  %v1473 = vpack.c.b16 %v1135, %v1133
  %v1474 = vpack.c.b16 %v1136, %v1134
  %v1475 = vpack.c.b16 %v1139, %v1137
  %v1476 = vpack.c.b16 %v1140, %v1138
  %v1477 = vpack.c.b16 %v1143, %v1141
  %v1478 = vpack.c.b16 %v1144, %v1142
  %v1479 = vpack.c.b16 %v1147, %v1145
  %v1480 = vpack.c.b16 %v1148, %v1146
  %v1481 = vpack.c.b16 %v1151, %v1149
  %v1482 = vpack.c.b16 %v1152, %v1150
  %v1483 = vpack.c.b16 %v1155, %v1153
  %v1484 = vpack.c.b16 %v1156, %v1154
  %v1485 = vpack.c.b16 %v1159, %v1157
  %v1486 = vpack.c.b16 %v1160, %v1158
  %v1487 = vpack.c.b16 %v1163, %v1161
  %v1488 = vpack.c.b16 %v1164, %v1162
  %v1489 = vpack.c.b16 %v1167, %v1165
  %v1490 = vpack.c.b16 %v1168, %v1166
  %v1491 = vpack.c.b16 %v1171, %v1169
  %v1492 = vpack.c.b16 %v1172, %v1170
  %v1493 = vpack.c.b16 %v1175, %v1173
  %v1494 = vpack.c.b16 %v1176, %v1174
  %v1495 = vpack.c.b16 %v1179, %v1177
  %v1496 = vpack.c.b16 %v1180, %v1178
  %v1497 = vpack.c.b16 %v1183, %v1181
  %v1498 = vpack.c.b16 %v1184, %v1182
  %v1499 = vpack.c.b16 %v1187, %v1185
  %v1500 = vpack.c.b16 %v1188, %v1186
  %v1501 = vpack.c.b16 %v1191, %v1189
  %v1502 = vpack.c.b16 %v1192, %v1190
  %v1503 = vpack.c.b16 %v1195, %v1193
  %v1504 = vpack.c.b16 %v1196, %v1194
  %v1505 = vpack.c.b16 %v1199, %v1197
  %v1506 = vpack.c.b16 %v1200, %v1198
  %v1507 = vpack.c.b16 %v1203, %v1201
  %v1508 = vpack.c.b16 %v1204, %v1202
  %v1509 = vpack.c.b16 %v1207, %v1205
  %v1510 = vpack.c.b16 %v1208, %v1206
  %v1511 = vpack.c.b16 %v1211, %v1209
  %v1512 = vpack.c.b16 %v1212, %v1210
  %v1513 = vpack.c.b16 %v1215, %v1213
  %v1514 = vpack.c.b16 %v1216, %v1214
  %v1515 = vpack.c.b16 %v1219, %v1217
  %v1516 = vpack.c.b16 %v1220, %v1218
  %v1517 = vpack.c.b16 %v1223, %v1221
  %v1518 = vpack.c.b16 %v1224, %v1222
  %v1519 = vpack.c.b16 %v1227, %v1225
  %v1520 = vpack.c.b16 %v1228, %v1226
  %v1521 = vpack.c.b16 %v1231, %v1229
  %v1522 = vpack.c.b16 %v1232, %v1230
  %v1523 = vpack.c.b16 %v1235, %v1233
  %v1524 = vpack.c.b16 %v1236, %v1234
  %1813 = vmatprep.subr.bf16.mxu0 %v1252
  %1814 = vmatpush1.bf16.msra.mxu0 %v1251
  %1815 = vmatprep.subr.bf16.mxu0 %v1250
  %1816 = vmatpush1.bf16.msra.mxu0 %v1249
  %1817 = vmatprep.subr.bf16.mxu0 %v1248
  %1818 = vmatpush1.bf16.msra.mxu0 %v1247
  %1819 = vmatprep.subr.bf16.mxu0 %v1246
  %1820 = vmatpush1.bf16.msra.mxu0 %v1245
  %1821 = vmatprep.subr.bf16.mxu0 %v1244
  %1822 = vmatpush1.bf16.msra.mxu0 %v1243
  %1823 = vmatprep.subr.bf16.mxu0 %v1242
  %1824 = vmatpush1.bf16.msra.mxu0 %v1241
  %1825 = vmatprep.subr.bf16.mxu0 %v1240
  %1826 = vmatpush1.bf16.msra.mxu0 %v1239
  %1827 = vmatprep.subr.bf16.mxu0 %v1238
  %1828 = vmatpush1.bf16.msra.mxu0 %v1237
  %1829 = vmatprep.subr.bf16.mxu0 %v1268
  %1830 = vmatpush2.bf16.msra.mxu0 %v1267
  %1831 = vmatprep.subr.bf16.mxu0 %v1266
  %1832 = vmatpush2.bf16.msra.mxu0 %v1265
  %1833 = vmatprep.subr.bf16.mxu0 %v1264
  %1834 = vmatpush2.bf16.msra.mxu0 %v1263
  %1835 = vmatprep.subr.bf16.mxu0 %v1262
  %1836 = vmatpush2.bf16.msra.mxu0 %v1261
  %1837 = vmatprep.subr.bf16.mxu0 %v1260
  %1838 = vmatpush2.bf16.msra.mxu0 %v1259
  %1839 = vmatprep.subr.bf16.mxu0 %v1258
  %1840 = vmatpush2.bf16.msra.mxu0 %v1257
  %1841 = vmatprep.subr.bf16.mxu0 %v1256
  %1842 = vmatpush2.bf16.msra.mxu0 %v1255
  %1843 = vmatprep.subr.bf16.mxu0 %v1254
  %1844 = vmatpush2.bf16.msra.mxu0 %v1253
  %1845 = vmatprep.mubr.bf16.mxu0 %v338
  %1846 = vmatmul.mubr.bf16.gmra.mxu0 %v337
  %v1847 = vpop.f32.mrf.mxu0
  %v1848 = vadd.f32 0.0, %v1847
  %v1849 = vpop.f32.mrf.mxu0
  %v1850 = vadd.f32 0.0, %v1849
  %v1851 = vpop.f32.mrf.mxu0
  %v1852 = vpop.f32.mrf.mxu0
  %1853 = vdwg.mxu0
  %1854 = vmatprep.subr.bf16.mxu0 %v1284
  %1855 = vmatpush1.bf16.msra.mxu0 %v1283
  %1856 = vmatprep.subr.bf16.mxu0 %v1282
  %1857 = vmatpush1.bf16.msra.mxu0 %v1281
  %1858 = vmatprep.subr.bf16.mxu0 %v1280
  %1859 = vmatpush1.bf16.msra.mxu0 %v1279
  %1860 = vmatprep.subr.bf16.mxu0 %v1278
  %1861 = vmatpush1.bf16.msra.mxu0 %v1277
  %1862 = vmatprep.subr.bf16.mxu0 %v1276
  %1863 = vmatpush1.bf16.msra.mxu0 %v1275
  %1864 = vmatprep.subr.bf16.mxu0 %v1274
  %1865 = vmatpush1.bf16.msra.mxu0 %v1273
  %1866 = vmatprep.subr.bf16.mxu0 %v1272
  %1867 = vmatpush1.bf16.msra.mxu0 %v1271
  %1868 = vmatprep.subr.bf16.mxu0 %v1270
  %1869 = vmatpush1.bf16.msra.mxu0 %v1269
  %1870 = vmatprep.subr.bf16.mxu0 %v1300
  %1871 = vmatpush2.bf16.msra.mxu0 %v1299
  %1872 = vmatprep.subr.bf16.mxu0 %v1298
  %1873 = vmatpush2.bf16.msra.mxu0 %v1297
  %1874 = vmatprep.subr.bf16.mxu0 %v1296
  %1875 = vmatpush2.bf16.msra.mxu0 %v1295
  %1876 = vmatprep.subr.bf16.mxu0 %v1294
  %1877 = vmatpush2.bf16.msra.mxu0 %v1293
  %1878 = vmatprep.subr.bf16.mxu0 %v1292
  %1879 = vmatpush2.bf16.msra.mxu0 %v1291
  %1880 = vmatprep.subr.bf16.mxu0 %v1290
  %1881 = vmatpush2.bf16.msra.mxu0 %v1289
  %1882 = vmatprep.subr.bf16.mxu0 %v1288
  %1883 = vmatpush2.bf16.msra.mxu0 %v1287
  %1884 = vmatprep.subr.bf16.mxu0 %v1286
  %1885 = vmatpush2.bf16.msra.mxu0 %v1285
  %1886 = vmatprep.mubr.bf16.mxu0 %v340
  %1887 = vmatmul.mubr.bf16.gmra.mxu0 %v339
  %v1888 = vpop.f32.mrf.mxu0
  %v1889 = vadd.f32 %v1848, %v1888
  %v1890 = vpop.f32.mrf.mxu0
  %v1891 = vadd.f32 %v1850, %v1890
  %v1892 = vpop.f32.mrf.mxu0
  %v1893 = vpop.f32.mrf.mxu0
  %1894 = vdwg.mxu0
  %1895 = vmatprep.subr.bf16.mxu0 %v1316
  %1896 = vmatpush1.bf16.msra.mxu0 %v1315
  %1897 = vmatprep.subr.bf16.mxu0 %v1314
  %1898 = vmatpush1.bf16.msra.mxu0 %v1313
  %1899 = vmatprep.subr.bf16.mxu0 %v1312
  %1900 = vmatpush1.bf16.msra.mxu0 %v1311
  %1901 = vmatprep.subr.bf16.mxu0 %v1310
  %1902 = vmatpush1.bf16.msra.mxu0 %v1309
  %1903 = vmatprep.subr.bf16.mxu0 %v1308
  %1904 = vmatpush1.bf16.msra.mxu0 %v1307
  %1905 = vmatprep.subr.bf16.mxu0 %v1306
  %1906 = vmatpush1.bf16.msra.mxu0 %v1305
  %1907 = vmatprep.subr.bf16.mxu0 %v1304
  %1908 = vmatpush1.bf16.msra.mxu0 %v1303
  %1909 = vmatprep.subr.bf16.mxu0 %v1302
  %1910 = vmatpush1.bf16.msra.mxu0 %v1301
  %1911 = vmatprep.subr.bf16.mxu0 %v1332
  %1912 = vmatpush2.bf16.msra.mxu0 %v1331
  %1913 = vmatprep.subr.bf16.mxu0 %v1330
  %1914 = vmatpush2.bf16.msra.mxu0 %v1329
  %1915 = vmatprep.subr.bf16.mxu0 %v1328
  %1916 = vmatpush2.bf16.msra.mxu0 %v1327
  %1917 = vmatprep.subr.bf16.mxu0 %v1326
  %1918 = vmatpush2.bf16.msra.mxu0 %v1325
  %1919 = vmatprep.subr.bf16.mxu0 %v1324
  %1920 = vmatpush2.bf16.msra.mxu0 %v1323
  %1921 = vmatprep.subr.bf16.mxu0 %v1322
  %1922 = vmatpush2.bf16.msra.mxu0 %v1321
  %1923 = vmatprep.subr.bf16.mxu0 %v1320
  %1924 = vmatpush2.bf16.msra.mxu0 %v1319
  %1925 = vmatprep.subr.bf16.mxu0 %v1318
  %1926 = vmatpush2.bf16.msra.mxu0 %v1317
  %1927 = vmatprep.mubr.bf16.mxu0 %v342
  %1928 = vmatmul.mubr.bf16.gmra.mxu0 %v341
  %v1929 = vpop.f32.mrf.mxu0
  %v1930 = vadd.f32 %v1889, %v1929
  %v1931 = vpop.f32.mrf.mxu0
  %v1932 = vadd.f32 %v1891, %v1931
  %v1933 = vpop.f32.mrf.mxu0
  %v1934 = vpop.f32.mrf.mxu0
  %1935 = vdwg.mxu0
  %1936 = vmatprep.subr.bf16.mxu0 %v1348
  %1937 = vmatpush1.bf16.msra.mxu0 %v1347
  %1938 = vmatprep.subr.bf16.mxu0 %v1346
  %1939 = vmatpush1.bf16.msra.mxu0 %v1345
  %1940 = vmatprep.subr.bf16.mxu0 %v1344
  %1941 = vmatpush1.bf16.msra.mxu0 %v1343
  %1942 = vmatprep.subr.bf16.mxu0 %v1342
  %1943 = vmatpush1.bf16.msra.mxu0 %v1341
  %1944 = vmatprep.subr.bf16.mxu0 %v1340
  %1945 = vmatpush1.bf16.msra.mxu0 %v1339
  %1946 = vmatprep.subr.bf16.mxu0 %v1338
  %1947 = vmatpush1.bf16.msra.mxu0 %v1337
  %1948 = vmatprep.subr.bf16.mxu0 %v1336
  %1949 = vmatpush1.bf16.msra.mxu0 %v1335
  %1950 = vmatprep.subr.bf16.mxu0 %v1334
  %1951 = vmatpush1.bf16.msra.mxu0 %v1333
  %1952 = vmatprep.subr.bf16.mxu0 %v1364
  %1953 = vmatpush2.bf16.msra.mxu0 %v1363
  %1954 = vmatprep.subr.bf16.mxu0 %v1362
  %1955 = vmatpush2.bf16.msra.mxu0 %v1361
  %1956 = vmatprep.subr.bf16.mxu0 %v1360
  %1957 = vmatpush2.bf16.msra.mxu0 %v1359
  %1958 = vmatprep.subr.bf16.mxu0 %v1358
  %1959 = vmatpush2.bf16.msra.mxu0 %v1357
  %1960 = vmatprep.subr.bf16.mxu0 %v1356
  %1961 = vmatpush2.bf16.msra.mxu0 %v1355
  %1962 = vmatprep.subr.bf16.mxu0 %v1354
  %1963 = vmatpush2.bf16.msra.mxu0 %v1353
  %1964 = vmatprep.subr.bf16.mxu0 %v1352
  %1965 = vmatpush2.bf16.msra.mxu0 %v1351
  %1966 = vmatprep.subr.bf16.mxu0 %v1350
  %1967 = vmatpush2.bf16.msra.mxu0 %v1349
  %1968 = vmatprep.mubr.bf16.mxu0 %v344
  %1969 = vmatmul.mubr.bf16.gmra.mxu0 %v343
  %v1970 = vpop.f32.mrf.mxu0
  %v1971 = vadd.f32 %v1930, %v1970
  %v1972 = vpop.f32.mrf.mxu0
  %v1973 = vadd.f32 %v1932, %v1972
  %v1974 = vpop.f32.mrf.mxu0
  %v1975 = vpop.f32.mrf.mxu0
  %1976 = vdwg.mxu0
  %1977 = vmatprep.subr.bf16.mxu0 %v1380
  %1978 = vmatpush1.bf16.msra.mxu0 %v1379
  %1979 = vmatprep.subr.bf16.mxu0 %v1378
  %1980 = vmatpush1.bf16.msra.mxu0 %v1377
  %1981 = vmatprep.subr.bf16.mxu0 %v1376
  %1982 = vmatpush1.bf16.msra.mxu0 %v1375
  %1983 = vmatprep.subr.bf16.mxu0 %v1374
  %1984 = vmatpush1.bf16.msra.mxu0 %v1373
  %1985 = vmatprep.subr.bf16.mxu0 %v1372
  %1986 = vmatpush1.bf16.msra.mxu0 %v1371
  %1987 = vmatprep.subr.bf16.mxu0 %v1370
  %1988 = vmatpush1.bf16.msra.mxu0 %v1369
  %1989 = vmatprep.subr.bf16.mxu0 %v1368
  %1990 = vmatpush1.bf16.msra.mxu0 %v1367
  %1991 = vmatprep.subr.bf16.mxu0 %v1366
  %1992 = vmatpush1.bf16.msra.mxu0 %v1365
  %1993 = vmatprep.subr.bf16.mxu0 %v1396
  %1994 = vmatpush2.bf16.msra.mxu0 %v1395
  %1995 = vmatprep.subr.bf16.mxu0 %v1394
  %1996 = vmatpush2.bf16.msra.mxu0 %v1393
  %1997 = vmatprep.subr.bf16.mxu0 %v1392
  %1998 = vmatpush2.bf16.msra.mxu0 %v1391
  %1999 = vmatprep.subr.bf16.mxu0 %v1390
  %2000 = vmatpush2.bf16.msra.mxu0 %v1389
  %2001 = vmatprep.subr.bf16.mxu0 %v1388
  %2002 = vmatpush2.bf16.msra.mxu0 %v1387
  %2003 = vmatprep.subr.bf16.mxu0 %v1386
  %2004 = vmatpush2.bf16.msra.mxu0 %v1385
  %2005 = vmatprep.subr.bf16.mxu0 %v1384
  %2006 = vmatpush2.bf16.msra.mxu0 %v1383
  %2007 = vmatprep.subr.bf16.mxu0 %v1382
  %2008 = vmatpush2.bf16.msra.mxu0 %v1381
  %2009 = vmatprep.mubr.bf16.mxu0 %v346
  %2010 = vmatmul.mubr.bf16.gmra.mxu0 %v345
  %v2011 = vpop.f32.mrf.mxu0
  %v2012 = vadd.f32 %v1971, %v2011
  %v2013 = vpop.f32.mrf.mxu0
  %v2014 = vadd.f32 %v1973, %v2013
  %v2015 = vpop.f32.mrf.mxu0
  %v2016 = vpop.f32.mrf.mxu0
  %2017 = vdwg.mxu0
  %2018 = vmatprep.subr.bf16.mxu0 %v1412
  %2019 = vmatpush1.bf16.msra.mxu0 %v1411
  %2020 = vmatprep.subr.bf16.mxu0 %v1410
  %2021 = vmatpush1.bf16.msra.mxu0 %v1409
  %2022 = vmatprep.subr.bf16.mxu0 %v1408
  %2023 = vmatpush1.bf16.msra.mxu0 %v1407
  %2024 = vmatprep.subr.bf16.mxu0 %v1406
  %2025 = vmatpush1.bf16.msra.mxu0 %v1405
  %2026 = vmatprep.subr.bf16.mxu0 %v1404
  %2027 = vmatpush1.bf16.msra.mxu0 %v1403
  %2028 = vmatprep.subr.bf16.mxu0 %v1402
  %2029 = vmatpush1.bf16.msra.mxu0 %v1401
  %2030 = vmatprep.subr.bf16.mxu0 %v1400
  %2031 = vmatpush1.bf16.msra.mxu0 %v1399
  %2032 = vmatprep.subr.bf16.mxu0 %v1398
  %2033 = vmatpush1.bf16.msra.mxu0 %v1397
  %2034 = vmatprep.subr.bf16.mxu0 %v1428
  %2035 = vmatpush2.bf16.msra.mxu0 %v1427
  %2036 = vmatprep.subr.bf16.mxu0 %v1426
  %2037 = vmatpush2.bf16.msra.mxu0 %v1425
  %2038 = vmatprep.subr.bf16.mxu0 %v1424
  %2039 = vmatpush2.bf16.msra.mxu0 %v1423
  %2040 = vmatprep.subr.bf16.mxu0 %v1422
  %2041 = vmatpush2.bf16.msra.mxu0 %v1421
  %2042 = vmatprep.subr.bf16.mxu0 %v1420
  %2043 = vmatpush2.bf16.msra.mxu0 %v1419
  %2044 = vmatprep.subr.bf16.mxu0 %v1418
  %2045 = vmatpush2.bf16.msra.mxu0 %v1417
  %2046 = vmatprep.subr.bf16.mxu0 %v1416
  %2047 = vmatpush2.bf16.msra.mxu0 %v1415
  %2048 = vmatprep.subr.bf16.mxu0 %v1414
  %2049 = vmatpush2.bf16.msra.mxu0 %v1413
  %2050 = vmatprep.mubr.bf16.mxu0 %v348
  %2051 = vmatmul.mubr.bf16.gmra.mxu0 %v347
  %v2052 = vpop.f32.mrf.mxu0
  %v2053 = vadd.f32 %v2012, %v2052
  %v2054 = vpop.f32.mrf.mxu0
  %v2055 = vadd.f32 %v2014, %v2054
  %v2056 = vpop.f32.mrf.mxu0
  %v2057 = vpop.f32.mrf.mxu0
  %2058 = vdwg.mxu0
  %2059 = vmatprep.subr.bf16.mxu0 %v1444
  %2060 = vmatpush1.bf16.msra.mxu0 %v1443
  %2061 = vmatprep.subr.bf16.mxu0 %v1442
  %2062 = vmatpush1.bf16.msra.mxu0 %v1441
  %2063 = vmatprep.subr.bf16.mxu0 %v1440
  %2064 = vmatpush1.bf16.msra.mxu0 %v1439
  %2065 = vmatprep.subr.bf16.mxu0 %v1438
  %2066 = vmatpush1.bf16.msra.mxu0 %v1437
  %2067 = vmatprep.subr.bf16.mxu0 %v1436
  %2068 = vmatpush1.bf16.msra.mxu0 %v1435
  %2069 = vmatprep.subr.bf16.mxu0 %v1434
  %2070 = vmatpush1.bf16.msra.mxu0 %v1433
  %2071 = vmatprep.subr.bf16.mxu0 %v1432
  %2072 = vmatpush1.bf16.msra.mxu0 %v1431
  %2073 = vmatprep.subr.bf16.mxu0 %v1430
  %2074 = vmatpush1.bf16.msra.mxu0 %v1429
  %2075 = vmatprep.subr.bf16.mxu0 %v1460
  %2076 = vmatpush2.bf16.msra.mxu0 %v1459
  %2077 = vmatprep.subr.bf16.mxu0 %v1458
  %2078 = vmatpush2.bf16.msra.mxu0 %v1457
  %2079 = vmatprep.subr.bf16.mxu0 %v1456
  %2080 = vmatpush2.bf16.msra.mxu0 %v1455
  %2081 = vmatprep.subr.bf16.mxu0 %v1454
  %2082 = vmatpush2.bf16.msra.mxu0 %v1453
  %2083 = vmatprep.subr.bf16.mxu0 %v1452
  %2084 = vmatpush2.bf16.msra.mxu0 %v1451
  %2085 = vmatprep.subr.bf16.mxu0 %v1450
  %2086 = vmatpush2.bf16.msra.mxu0 %v1449
  %2087 = vmatprep.subr.bf16.mxu0 %v1448
  %2088 = vmatpush2.bf16.msra.mxu0 %v1447
  %2089 = vmatprep.subr.bf16.mxu0 %v1446
  %2090 = vmatpush2.bf16.msra.mxu0 %v1445
  %2091 = vmatprep.mubr.bf16.mxu0 %v350
  %2092 = vmatmul.mubr.bf16.gmra.mxu0 %v349
  %v2093 = vpop.f32.mrf.mxu0
  %v2094 = vadd.f32 %v2053, %v2093
  %v2095 = vpop.f32.mrf.mxu0
  %v2096 = vadd.f32 %v2055, %v2095
  %v2097 = vpop.f32.mrf.mxu0
  %v2098 = vpop.f32.mrf.mxu0
  %2099 = vdwg.mxu0
  %2100 = vmatprep.subr.bf16.mxu0 %v1476
  %2101 = vmatpush1.bf16.msra.mxu0 %v1475
  %2102 = vmatprep.subr.bf16.mxu0 %v1474
  %2103 = vmatpush1.bf16.msra.mxu0 %v1473
  %2104 = vmatprep.subr.bf16.mxu0 %v1472
  %2105 = vmatpush1.bf16.msra.mxu0 %v1471
  %2106 = vmatprep.subr.bf16.mxu0 %v1470
  %2107 = vmatpush1.bf16.msra.mxu0 %v1469
  %2108 = vmatprep.subr.bf16.mxu0 %v1468
  %2109 = vmatpush1.bf16.msra.mxu0 %v1467
  %2110 = vmatprep.subr.bf16.mxu0 %v1466
  %2111 = vmatpush1.bf16.msra.mxu0 %v1465
  %2112 = vmatprep.subr.bf16.mxu0 %v1464
  %2113 = vmatpush1.bf16.msra.mxu0 %v1463
  %2114 = vmatprep.subr.bf16.mxu0 %v1462
  %2115 = vmatpush1.bf16.msra.mxu0 %v1461
  %2116 = vmatprep.subr.bf16.mxu0 %v1492
  %2117 = vmatpush2.bf16.msra.mxu0 %v1491
  %2118 = vmatprep.subr.bf16.mxu0 %v1490
  %2119 = vmatpush2.bf16.msra.mxu0 %v1489
  %2120 = vmatprep.subr.bf16.mxu0 %v1488
  %2121 = vmatpush2.bf16.msra.mxu0 %v1487
  %2122 = vmatprep.subr.bf16.mxu0 %v1486
  %2123 = vmatpush2.bf16.msra.mxu0 %v1485
  %2124 = vmatprep.subr.bf16.mxu0 %v1484
  %2125 = vmatpush2.bf16.msra.mxu0 %v1483
  %2126 = vmatprep.subr.bf16.mxu0 %v1482
  %2127 = vmatpush2.bf16.msra.mxu0 %v1481
  %2128 = vmatprep.subr.bf16.mxu0 %v1480
  %2129 = vmatpush2.bf16.msra.mxu0 %v1479
  %2130 = vmatprep.subr.bf16.mxu0 %v1478
  %2131 = vmatpush2.bf16.msra.mxu0 %v1477
  %2132 = vmatprep.mubr.bf16.mxu0 %v352
  %2133 = vmatmul.mubr.bf16.gmra.mxu0 %v351
  %v2134 = vpop.f32.mrf.mxu0
  %v2135 = vadd.f32 %v2094, %v2134
  %v2136 = vpop.f32.mrf.mxu0
  %v2137 = vadd.f32 %v2096, %v2136
  %v2138 = vpop.f32.mrf.mxu0
  %v2139 = vpop.f32.mrf.mxu0
  %2140 = vdwg.mxu0
  %2141 = vmatprep.subr.bf16.mxu0 %v1508
  %2142 = vmatpush1.bf16.msra.mxu0 %v1507
  %2143 = vmatprep.subr.bf16.mxu0 %v1506
  %2144 = vmatpush1.bf16.msra.mxu0 %v1505
  %2145 = vmatprep.subr.bf16.mxu0 %v1504
  %2146 = vmatpush1.bf16.msra.mxu0 %v1503
  %2147 = vmatprep.subr.bf16.mxu0 %v1502
  %2148 = vmatpush1.bf16.msra.mxu0 %v1501
  %2149 = vmatprep.subr.bf16.mxu0 %v1500
  %2150 = vmatpush1.bf16.msra.mxu0 %v1499
  %2151 = vmatprep.subr.bf16.mxu0 %v1498
  %2152 = vmatpush1.bf16.msra.mxu0 %v1497
  %2153 = vmatprep.subr.bf16.mxu0 %v1496
  %2154 = vmatpush1.bf16.msra.mxu0 %v1495
  %2155 = vmatprep.subr.bf16.mxu0 %v1494
  %2156 = vmatpush1.bf16.msra.mxu0 %v1493
  %2157 = vmatprep.subr.bf16.mxu0 %v1524
  %2158 = vmatpush2.bf16.msra.mxu0 %v1523
  %2159 = vmatprep.subr.bf16.mxu0 %v1522
  %2160 = vmatpush2.bf16.msra.mxu0 %v1521
  %2161 = vmatprep.subr.bf16.mxu0 %v1520
  %2162 = vmatpush2.bf16.msra.mxu0 %v1519
  %2163 = vmatprep.subr.bf16.mxu0 %v1518
  %2164 = vmatpush2.bf16.msra.mxu0 %v1517
  %2165 = vmatprep.subr.bf16.mxu0 %v1516
  %2166 = vmatpush2.bf16.msra.mxu0 %v1515
  %2167 = vmatprep.subr.bf16.mxu0 %v1514
  %2168 = vmatpush2.bf16.msra.mxu0 %v1513
  %2169 = vmatprep.subr.bf16.mxu0 %v1512
  %2170 = vmatpush2.bf16.msra.mxu0 %v1511
  %2171 = vmatprep.subr.bf16.mxu0 %v1510
  %2172 = vmatpush2.bf16.msra.mxu0 %v1509
  %2173 = vmatprep.mubr.bf16.mxu0 %v354
  %2174 = vmatmul.mubr.bf16.gmra.mxu0 %v353
  %v2175 = vpop.f32.mrf.mxu0
  %v2176 = vadd.f32 %v2135, %v2175
  %v2177 = vpop.f32.mrf.mxu0
  %v2178 = vadd.f32 %v2137, %v2177
  %v2179 = vpop.f32.mrf.mxu0
  %v2180 = vpop.f32.mrf.mxu0
  %2181 = vdwg.mxu0
  %v2182 = vpack.c.bf16 %v2176, %v2176
  %v2183 = vpack.c.bf16 %v2178, %v2178
  %v2186 = vunpack.c.l.b16 %v2182
  %v2187 = vunpack.c.l.b16 %v2183
  %v2188 = vpack.c.b16 %v2187, %v2186
  %2190 = vst [vmem:[%s2] sm:$0xff] %v2188
  %p2191 = scmp.eq.s32.totalorder 0, 0
  // Predicated region
  $region10: #{backbone_forward.56} parent=0 // pred_check
    %p2192 = pneg %p2191
  $region11: #{backbone_forward.56} parent=0 // pred_check_branch
    %2194 = sbr.rel (%p2192) target = $region13
  $region12: #{backbone_forward.56} parent=0 // pred_region
    %2195 = vst [vmem:[%s3] sm:$0xf] 0.0
  $region13: #{backbone_forward.56} parent=0 // pred_fallthru
    _
  %v2196 = vrot.slane %v2176, 4
  %v2197 = vadd.f32 %v2176, %v2196
  %v2198 = vrot.slane %v2197, 2
  %v2199 = vadd.f32 %v2197, %v2198
  %v2200 = vrot.slane %v2199, 1
  %v2201 = vadd.f32 %v2199, %v2200
  %v2202 = vrot.slane %v2178, 4
  %v2203 = vadd.f32 %v2178, %v2202
  %v2204 = vrot.slane %v2203, 2
  %v2205 = vadd.f32 %v2203, %v2204
  %v2206 = vrot.slane %v2205, 1
  %v2207 = vadd.f32 %v2205, %v2206
  %v2208 = vmul.f32 %v2176, %v2176
  %v2209 = vmul.f32 %v2178, %v2178
  %v2210 = vrot.slane %v2208, 4
  %v2211 = vadd.f32 %v2208, %v2210
  %v2212 = vrot.slane %v2211, 2
  %v2213 = vadd.f32 %v2211, %v2212
  %v2214 = vrot.slane %v2213, 1
  %v2215 = vadd.f32 %v2213, %v2214
  %v2216 = vrot.slane %v2209, 4
  %v2217 = vadd.f32 %v2209, %v2216
  %v2218 = vrot.slane %v2217, 2
  %v2219 = vadd.f32 %v2217, %v2218
  %v2220 = vrot.slane %v2219, 1
  %v2221 = vadd.f32 %v2219, %v2220
  %v2222 = vld [vmem:[%s3] sm:$0xf]
  %vm2223 = vcmask 1040384
  %v2224 = vsel %vm2223, %v2201, %v2215
  %v2225 = vsel %vm2223, %v2207, %v2221
  %v2228 = vcombine.low %v2224, %v2225
  %v2230 = vunpack.c.l.s4 1983009808
  %v2231 = vunpack.c.0.s8 %v2230
  %v2232 = vlaneseq
  %v2233 = vshrl.u32 %v2232, 7
  %v2234 = vsub.s32 %v2231, %v2233
  %v2235 = vrot.slane %v2228, %v2234
  %v2237 = vadd.f32 %v2222, %v2235
  %2238 = vst [vmem:[%s3] sm:$0xf] %v2237
  // Predicated region
  $region14: #{backbone_forward.56} parent=0 // pred_check
    _
  $region15: #{backbone_forward.56} parent=0 // pred_check_branch
    %2240 = sbr.rel (0) target = $region17
  $region16: #{backbone_forward.56} parent=0 // pred_region
    _
  $region17: #{backbone_forward.56} parent=0 // pred_fallthru
    _
  // Predicated region
  $region18: #{backbone_forward.56} parent=0 // pred_check
    _
  $region19: #{backbone_forward.56} parent=0 // pred_check_branch
    %2242 = sbr.rel (0) target = $region21
  $region20: #{backbone_forward.56} parent=0 // pred_region
    _
  $region21: #{backbone_forward.56} parent=0 // pred_fallthru
    _
  // Predicated region
  $region22: #{backbone_forward.56} parent=0 // pred_check
    _
  $region23: #{backbone_forward.56} parent=0 // pred_check_branch
    %2244 = sbr.rel (0) target = $region25
  $region24: #{backbone_forward.56} parent=0 // pred_region
    _
  $region25: #{backbone_forward.56} parent=0 // pred_fallthru
    _
  // Predicated region
  $region26: #{backbone_forward.56} parent=0 // pred_check
    _
  $region27: #{backbone_forward.56} parent=0 // pred_check_branch
    %2246 = sbr.rel (0) target = $region29
  $region28: #{backbone_forward.56} parent=0 // pred_region
    _
  $region29: #{backbone_forward.56} parent=0 // pred_fallthru
    _

</llo_original>
